<compile_context>
chip_gen: v7x
topology: tpu7x:2x2x1
jax: 0.10.0
libtpu: 0.0.40
codegen_flags: <defaults>
</compile_context>

<pallas_src>
import functools

import jax
import jax.numpy as jnp
import numpy as np
from jax.experimental import pallas as pl
from jax.experimental.pallas import tpu as pltpu


def _stem_fused_kernel(x_ref, scale_ref, bias_ref, w_ref, out_ref,
                       pad_ref, patch_ref, *, bd, h, w, cinp, cout):
    """Fused BN(inference) + ReLU + Conv3d(3x3x3, pad=1) + MaxPool3d(2) for one
    (sample, depth-block) grid step.

    x_ref:     (D, H, W*Cin_p)            full-depth input slab of sample n (bf16)
    scale_ref: (1, 1, W*Cin_p)            folded BN scale, tiled along W (f32)
    bias_ref:  (1, 1, W*Cin_p)            folded BN bias,  tiled along W (f32)
    w_ref:     (9*W*Cin_p, W*Cout)        block-Toeplitz conv weight, parity-split cols (bf16)
    out_ref:   (bd//2, H//2, (W//2)*Cout) pooled output block (f32)
    pad_ref:   VMEM (bd+2, H+2, W*Cin_p)  bf16  BN+ReLU'd slab, zero-padded in D/H
    patch_ref: VMEM (bd, H, 9*W*Cin_p)    bf16  im2col patch over (kd, kh)
    """
    j = pl.program_id(1)
    nj = pl.num_programs(1)
    d0 = pl.multiple_of(j * bd, bd)

    wc = w * cinp
    h2, w2 = h // 2, w // 2
    bd2 = bd // 2
    half = w2 * cout

    scale = scale_ref[...]          # (1, 1, wc), hoisted once
    bias = bias_ref[...]

    def bn_relu(v):                 # v: (..., h, wc) bf16 -> bf16 (math in f32)
        v = v.astype(jnp.float32) * scale + bias
        return jnp.maximum(v, 0.0).astype(jnp.bfloat16)

    zero_h = jnp.zeros((bd + 2, 1, wc), jnp.bfloat16)
    zero_d = jnp.zeros((1, h, wc), jnp.bfloat16)

    # ---- (re)write every halo row each step: no cross-iteration scratch state ----
    pad_ref[:, 0:1, :] = zero_h                     # H front halo
    pad_ref[:, h + 1:h + 2, :] = zero_h             # H back halo

    # interior depths [d0, d0+bd)
    pad_ref[1:bd + 1, 1:h + 1, :] = bn_relu(x_ref[pl.ds(d0, bd)])

    # front depth halo (input depth d0-1, or zero padding at the volume edge)
    @pl.when(j == 0)
    def _():
        pad_ref[0:1, 1:h + 1, :] = zero_d

    @pl.when(j > 0)
    def _():
        pad_ref[0:1, 1:h + 1, :] = bn_relu(x_ref[pl.ds(d0 - 1, 1)])

    # back depth halo (input depth d0+bd, or zero padding at the volume edge)
    @pl.when(j == nj - 1)
    def _():
        pad_ref[bd + 1:bd + 2, 1:h + 1, :] = zero_d

    @pl.when(j < nj - 1)
    def _():
        pad_ref[bd + 1:bd + 2, 1:h + 1, :] = bn_relu(x_ref[pl.ds(d0 + bd, 1)])

    # ---- im2col over (kd, kh): 9 lane-aligned, 128*k-wide, unmasked stores ----
    for kd in range(3):
        for kh in range(3):
            tap = kd * 3 + kh
            patch_ref[:, :, tap * wc:(tap + 1) * wc] = pad_ref[kd:kd + bd, kh:kh + h, :]

    # ---- single MXU matmul: (bd*h, 9*wc) @ (9*wc, w*cout), f32 accumulation ----
    conv = jnp.dot(patch_ref[...].reshape(bd * h, 9 * wc), w_ref[...],
                   preferred_element_type=jnp.float32)        # (bd*h, w*cout)

    # ---- fused 2x2x2 max-pool epilogue (all in VMEM, lane-dense) ----
    # W pool: weight columns are parity-split -> one aligned full-vreg max.
    pw = jnp.maximum(conv[:, :half], conv[:, half:])          # (bd*h, w2*cout)
    pw = pw.reshape(bd, h2, 2, half)
    ph = jnp.maximum(pw[:, :, 0, :], pw[:, :, 1, :])          # pool H -> (bd, h2, w2*cout)
    ph = ph.reshape(bd2, 2, h2, half)
    po = jnp.maximum(ph[:, 0], ph[:, 1])                      # pool D -> (bd2, h2, w2*cout)

    out_ref[...] = po.astype(out_ref.dtype)


def _build_toeplitz_weight(conv_w, w, cinp, cout):
    """conv_w: (Cout, Cin, 3, 3, 3) PyTorch OIDHW ->
    block-Toeplitz (9*W*Cin_p, W*Cout) bf16 that folds (kw, Cin) and the W
    zero-pad into the contraction.  Input-channel rows are zero-padded to Cin_p
    (lane density) and the output-W columns are parity-reordered
    [even wo | odd wo] so the W max-pool is a single aligned vector max."""
    cin = conv_w.shape[1]
    w_perm = jnp.transpose(conv_w, (2, 3, 4, 1, 0)).astype(jnp.float32)  # (kd,kh,kw,Cin,Cout)
    if cinp > cin:
        w_perm = jnp.pad(w_perm, ((0, 0), (0, 0), (0, 0), (0, cinp - cin), (0, 0)))
    wi = np.arange(w)[:, None]
    wo = np.arange(w)[None, :]
    kw = wi - wo + 1                                   # kernel tap hit by (wi, wo)
    valid = jnp.asarray((kw >= 0) & (kw < 3), jnp.float32)
    kw_c = np.clip(kw, 0, 2)
    t = w_perm[:, :, kw_c, :, :]                       # (3,3,W,W,Cin_p,Cout)
    t = t * valid[None, None, :, :, None, None]
    wo_order = np.concatenate([np.arange(0, w, 2), np.arange(1, w, 2)])
    t = t[:, :, :, wo_order, :, :]                     # parity-split output columns
    t = jnp.transpose(t, (0, 1, 2, 4, 3, 5))           # (kd,kh,wi,Cin_p,wo',Cout)
    return t.reshape(9 * w * cinp, w * cout).astype(jnp.bfloat16)


def _pick_bd(d, h, wc):
    """Even divisor of d; prefer the smallest with bd*h >= 256 (fills the
    256-row MXU on v6e/v7x, halves grid steps) while keeping the im2col patch
    well under VMEM."""
    even_divs = [b for b in range(2, d + 1, 2) if d % b == 0]
    fits = [b for b in even_divs if b * h * 9 * wc * 2 <= (8 << 20)]
    if not fits:
        fits = even_divs[:1]
    for b in fits:
        if b * h >= 256:
            return b
    return fits[-1]


def stem_unit_forward(x_ncdhw, params, eps=1e-5):
    gamma, beta, rmean, rvar, conv_w = params          # conv_w: (Cout, Cin, 3, 3, 3)
    n, cin, d, h, w = x_ncdhw.shape
    cout = conv_w.shape[0]
    assert d % 2 == 0 and h % 2 == 0 and w % 2 == 0, "MaxPool3d(2) needs even spatial dims"

    # pad packed channel dim so W*Cin_p is a multiple of 128 lanes (if cheap)
    cinp = cin
    for c in range(cin, 2 * cin + 1):
        if (w * c) % 128 == 0:
            cinp = c
            break
    wc_in = w * cinp
    wc_out = w * cout
    d2, h2, w2 = d // 2, h // 2, w // 2

    bd = _pick_bd(d, h, wc_in)

    # ---- glue: layout + parameter folding only ----
    x_t = jnp.transpose(x_ncdhw, (0, 2, 3, 4, 1))                       # (n,d,h,w,cin)
    if cinp > cin:
        x_t = jnp.pad(x_t, ((0, 0),) * 4 + ((0, cinp - cin),))
    x3 = x_t.reshape(n, d, h, wc_in).astype(jnp.bfloat16)               # bf16 DMA

    inv_std = gamma / jnp.sqrt(rvar + eps)
    shift = beta - rmean * inv_std
    if cinp > cin:
        inv_std = jnp.pad(inv_std, (0, cinp - cin))
        shift = jnp.pad(shift, (0, cinp - cin))
    scale_t = jnp.tile(inv_std, w).reshape(1, 1, wc_in).astype(jnp.float32)
    bias_t = jnp.tile(shift, w).reshape(1, 1, wc_in).astype(jnp.float32)
    w_big = _build_toeplitz_weight(conv_w, w, cinp, cout)

    kernel = functools.partial(_stem_fused_kernel, bd=bd, h=h, w=w, cinp=cinp, cout=cout)

    out = pl.pallas_call(
        kernel,
        out_shape=jax.ShapeDtypeStruct((n, d2, h2, w2 * cout), jnp.float32),
        grid=(n, d // bd),
        in_specs=[
            pl.BlockSpec((None, d, h, wc_in), lambda ni, j: (ni, 0, 0, 0)),
            pl.BlockSpec((1, 1, wc_in), lambda ni, j: (0, 0, 0)),
            pl.BlockSpec((1, 1, wc_in), lambda ni, j: (0, 0, 0)),
            pl.BlockSpec((9 * wc_in, wc_out), lambda ni, j: (0, 0)),
        ],
        out_specs=pl.BlockSpec((None, bd // 2, h2, w2 * cout),
                               lambda ni, j: (ni, j, 0, 0)),
        scratch_shapes=[
            pltpu.VMEM((bd + 2, h + 2, wc_in), jnp.bfloat16),   # padded BN+ReLU slab
            pltpu.VMEM((bd, h, 9 * wc_in), jnp.bfloat16),       # im2col patch
        ],
        compiler_params=pltpu.CompilerParams(
            dimension_semantics=("parallel", "parallel")),
    )(x3, scale_t, bias_t, w_big)

    out = out.reshape(n, d2, h2, w2, cout)
    return jnp.transpose(out, (0, 4, 1, 2, 3))          # back to NCDHW


def reference(x_ncdhw, params, eps=1e-5):
    """Pure-JAX reference matching the PyTorch forward (inference-mode BN)."""
    gamma, beta, rmean, rvar, conv_w = params
    xb = (x_ncdhw - rmean[None, :, None, None, None]) / jnp.sqrt(rvar + eps)[None, :, None, None, None]
    xb = xb * gamma[None, :, None, None, None] + beta[None, :, None, None, None]
    xb = jnp.maximum(xb, 0.0)
    y = jax.lax.conv_general_dilated(
        xb, conv_w, window_strides=(1, 1, 1), padding=[(1, 1)] * 3,
        dimension_numbers=('NCDHW', 'OIDHW', 'NCDHW'),
        precision=jax.lax.Precision.HIGHEST)
    pooled = jax.lax.reduce_window(
        y, -jnp.inf, jax.lax.max, (1, 1, 2, 2, 2), (1, 1, 2, 2, 2), 'VALID')
    return pooled


if __name__ == "__main__":
    key = jax.random.PRNGKey(0)
    N, Cin, D, H, W = 2, 4, 16, 16, 16
    Cout = 32

    k1, k2, k3, k4, k5, k6 = jax.random.split(key, 6)
    x = jax.random.normal(k1, (N, Cin, D, H, W), jnp.float32)

    # Deterministic synthetic parameters (shapes from StemUnit.__init__).
    gamma = 1.0 + 0.1 * jax.random.normal(k2, (Cin,), jnp.float32)          # BN weight
    beta = 0.1 * jax.random.normal(k3, (Cin,), jnp.float32)                 # BN bias
    rmean = 0.1 * jax.random.normal(k4, (Cin,), jnp.float32)                # BN running_mean
    rvar = jnp.abs(1.0 + 0.1 * jax.random.normal(k5, (Cin,), jnp.float32))  # BN running_var
    conv_w = 0.1 * jax.random.normal(k6, (Cout, Cin, 3, 3, 3), jnp.float32)  # Conv3d weight
    params = (gamma, beta, rmean, rvar, conv_w)

    out = stem_unit_forward(x, params)
    out = jax.block_until_ready(out)

    assert out.shape == (N, Cout, D // 2, H // 2, W // 2), out.shape
    # Note: bf16 activations/weights on the MXU (f32 accumulation) vs the f32
    # HIGHEST-precision reference => small expected delta, within 2e-2.
    ref = reference(x, params)
    np.testing.assert_allclose(np.asarray(out), np.asarray(ref), rtol=2e-2, atol=2e-2)

    print("KERNEL_OK")
</pallas_src>

<mosaic_0001>
module attributes {stable_mosaic.version = 11 : i64} {
  func.func @_stem_fused_kernel(%arg0: i32, %arg1: i32, %arg2: memref<1x16x16x128xbf16, #tpu.memory_space<vmem>>, %arg3: memref<1x1x128xf32, #tpu.memory_space<vmem>>, %arg4: memref<1x1x128xf32, #tpu.memory_space<vmem>>, %arg5: memref<1152x512xbf16, #tpu.memory_space<vmem>>, %arg6: memref<1x8x8x256xf32, #tpu.memory_space<vmem>>, %arg7: memref<18x18x128xbf16, #tpu.memory_space<vmem>>, %arg8: memref<16x16x1152xbf16, #tpu.memory_space<vmem>>) attributes {dimension_semantics = [#tpu.dimension_semantics<parallel>, #tpu.dimension_semantics<parallel>], iteration_bounds = array<i64: 2, 1>, scalar_prefetch = 0 : i64, scratch_operands = 2 : i64, tpu.core_type = #tpu.core_type<tc>, window_params = [{transform_indices = @transform_0, window_bounds = array<i64: 1, 16, 16, 128>}, {pipeline_mode = #tpu.pipeline_mode<synchronous>, transform_indices = @transform_1, window_bounds = array<i64: 1, 1, 128>}, {pipeline_mode = #tpu.pipeline_mode<synchronous>, transform_indices = @transform_2, window_bounds = array<i64: 1, 1, 128>}, {pipeline_mode = #tpu.pipeline_mode<synchronous>, transform_indices = @transform_3, window_bounds = array<i64: 1152, 512>}, {transform_indices = @transform_4, window_bounds = array<i64: 1, 8, 8, 256>}]} {
    %c16_i32 = arith.constant 16 : i32
    %0 = arith.muli %arg1, %c16_i32 : i32
    %1 = tpu.assume_multiple %0, 16 : i32
    %c0 = arith.constant 0 : index
    %c0_0 = arith.constant 0 : index
    %c0_1 = arith.constant 0 : index
    %2 = vector.load %arg3[%c0, %c0_0, %c0_1] : memref<1x1x128xf32, #tpu.memory_space<vmem>>, vector<1x1x128xf32>
    %c0_2 = arith.constant 0 : index
    %c0_3 = arith.constant 0 : index
    %c0_4 = arith.constant 0 : index
    %3 = vector.load %arg4[%c0_2, %c0_3, %c0_4] : memref<1x1x128xf32, #tpu.memory_space<vmem>>, vector<1x1x128xf32>
    %cst = arith.constant 0.000000e+00 : bf16
    %4 = vector.broadcast %cst : bf16 to vector<18x1x128xbf16>
    %cst_5 = arith.constant 0.000000e+00 : bf16
    %5 = vector.broadcast %cst_5 : bf16 to vector<1x16x128xbf16>
    %c0_6 = arith.constant 0 : index
    %c0_7 = arith.constant 0 : index
    %c0_8 = arith.constant 0 : index
    %6 = vector.load %arg7[%c0_6, %c0_7, %c0_8] : memref<18x18x128xbf16, #tpu.memory_space<vmem>>, vector<18x1x128xbf16>
    tpu.vector_store %arg7[%c0_6, %c0_7, %c0_8], %4 {strides = array<i32>} : memref<18x18x128xbf16, #tpu.memory_space<vmem>>, vector<18x1x128xbf16>,
    %c0_9 = arith.constant 0 : index
    %c17 = arith.constant 17 : index
    %c0_10 = arith.constant 0 : index
    %7 = vector.load %arg7[%c0_9, %c17, %c0_10] : memref<18x18x128xbf16, #tpu.memory_space<vmem>>, vector<18x1x128xbf16>
    tpu.vector_store %arg7[%c0_9, %c17, %c0_10], %4 {strides = array<i32>} : memref<18x18x128xbf16, #tpu.memory_space<vmem>>, vector<18x1x128xbf16>,
    %c0_11 = arith.constant 0 : index
    %8 = arith.index_cast %1 : i32 to index
    %c0_12 = arith.constant 0 : index
    %c0_13 = arith.constant 0 : index
    %9 = vector.load %arg2[%c0_11, %8, %c0_12, %c0_13] : memref<1x16x16x128xbf16, #tpu.memory_space<vmem>>, vector<1x16x16x128xbf16>
    %10 = vector.shape_cast %9 : vector<1x16x16x128xbf16> to vector<16x16x128xbf16>
    %11 = arith.extf %10 : vector<16x16x128xbf16> to vector<16x16x128xf32>
    %12 = vector.broadcast %2 : vector<1x1x128xf32> to vector<16x16x128xf32>
    %13 = arith.mulf %11, %12 : vector<16x16x128xf32>
    %14 = vector.broadcast %3 : vector<1x1x128xf32> to vector<16x16x128xf32>
    %15 = arith.addf %13, %14 : vector<16x16x128xf32>
    %cst_14 = arith.constant 0.000000e+00 : f32
    %16 = vector.broadcast %cst_14 : f32 to vector<16x16x128xf32>
    %17 = arith.maximumf %15, %16 : vector<16x16x128xf32>
    %18 = arith.truncf %17 : vector<16x16x128xf32> to vector<16x16x128xbf16>
    %c1 = arith.constant 1 : index
    %c1_15 = arith.constant 1 : index
    %c0_16 = arith.constant 0 : index
    %19 = vector.load %arg7[%c1, %c1_15, %c0_16] : memref<18x18x128xbf16, #tpu.memory_space<vmem>>, vector<16x16x128xbf16>
    tpu.vector_store %arg7[%c1, %c1_15, %c0_16], %18 {strides = array<i32>} : memref<18x18x128xbf16, #tpu.memory_space<vmem>>, vector<16x16x128xbf16>,
    %c0_i32 = arith.constant 0 : i32
    %20 = arith.cmpi eq, %arg1, %c0_i32 : i32
    %21 = arith.extui %20 : i1 to i32
    %c0_i32_17 = arith.constant 0 : i32
    %22 = arith.cmpi ne, %21, %c0_i32_17 : i32
    scf.if %22 {
      %c0_79 = arith.constant 0 : index
      %c1_80 = arith.constant 1 : index
      %c0_81 = arith.constant 0 : index
      %72 = vector.load %arg7[%c0_79, %c1_80, %c0_81] : memref<18x18x128xbf16, #tpu.memory_space<vmem>>, vector<1x16x128xbf16>
      tpu.vector_store %arg7[%c0_79, %c1_80, %c0_81], %5 {strides = array<i32>} : memref<18x18x128xbf16, #tpu.memory_space<vmem>>, vector<1x16x128xbf16>,
    } else {
    }
    %c0_i32_18 = arith.constant 0 : i32
    %23 = arith.cmpi sgt, %arg1, %c0_i32_18 : i32
    %24 = arith.extui %23 : i1 to i32
    %c0_i32_19 = arith.constant 0 : i32
    %25 = arith.cmpi ne, %24, %c0_i32_19 : i32
    scf.if %25 {
      %c1_i32 = arith.constant 1 : i32
      %72 = arith.subi %1, %c1_i32 : i32
      %c0_79 = arith.constant 0 : index
      %73 = arith.index_cast %72 : i32 to index
      %c0_80 = arith.constant 0 : index
      %c0_81 = arith.constant 0 : index
      %74 = vector.load %arg2[%c0_79, %73, %c0_80, %c0_81] : memref<1x16x16x128xbf16, #tpu.memory_space<vmem>>, vector<1x1x16x128xbf16>
      %75 = vector.shape_cast %74 : vector<1x1x16x128xbf16> to vector<1x16x128xbf16>
      %76 = arith.extf %75 : vector<1x16x128xbf16> to vector<1x16x128xf32>
      %77 = vector.broadcast %2 : vector<1x1x128xf32> to vector<1x16x128xf32>
      %78 = arith.mulf %76, %77 : vector<1x16x128xf32>
      %79 = vector.broadcast %3 : vector<1x1x128xf32> to vector<1x16x128xf32>
      %80 = arith.addf %78, %79 : vector<1x16x128xf32>
      %cst_82 = arith.constant 0.000000e+00 : f32
      %81 = vector.broadcast %cst_82 : f32 to vector<1x16x128xf32>
      %82 = arith.maximumf %80, %81 : vector<1x16x128xf32>
      %83 = arith.truncf %82 : vector<1x16x128xf32> to vector<1x16x128xbf16>
      %c0_83 = arith.constant 0 : index
      %c1_84 = arith.constant 1 : index
      %c0_85 = arith.constant 0 : index
      %84 = vector.load %arg7[%c0_83, %c1_84, %c0_85] : memref<18x18x128xbf16, #tpu.memory_space<vmem>>, vector<1x16x128xbf16>
      tpu.vector_store %arg7[%c0_83, %c1_84, %c0_85], %83 {strides = array<i32>} : memref<18x18x128xbf16, #tpu.memory_space<vmem>>, vector<1x16x128xbf16>,
    } else {
    }
    %c0_i32_20 = arith.constant 0 : i32
    %26 = arith.cmpi eq, %arg1, %c0_i32_20 : i32
    %27 = arith.extui %26 : i1 to i32
    %c0_i32_21 = arith.constant 0 : i32
    %28 = arith.cmpi ne, %27, %c0_i32_21 : i32
    scf.if %28 {
      %c17_79 = arith.constant 17 : index
      %c1_80 = arith.constant 1 : index
      %c0_81 = arith.constant 0 : index
      %72 = vector.load %arg7[%c17_79, %c1_80, %c0_81] : memref<18x18x128xbf16, #tpu.memory_space<vmem>>, vector<1x16x128xbf16>
      tpu.vector_store %arg7[%c17_79, %c1_80, %c0_81], %5 {strides = array<i32>} : memref<18x18x128xbf16, #tpu.memory_space<vmem>>, vector<1x16x128xbf16>,
    } else {
    }
    %c0_i32_22 = arith.constant 0 : i32
    %29 = arith.cmpi slt, %arg1, %c0_i32_22 : i32
    %30 = arith.extui %29 : i1 to i32
    %c0_i32_23 = arith.constant 0 : i32
    %31 = arith.cmpi ne, %30, %c0_i32_23 : i32
    scf.if %31 {
      %c16_i32_79 = arith.constant 16 : i32
      %72 = arith.addi %1, %c16_i32_79 : i32
      %c0_80 = arith.constant 0 : index
      %73 = arith.index_cast %72 : i32 to index
      %c0_81 = arith.constant 0 : index
      %c0_82 = arith.constant 0 : index
      %74 = vector.load %arg2[%c0_80, %73, %c0_81, %c0_82] : memref<1x16x16x128xbf16, #tpu.memory_space<vmem>>, vector<1x1x16x128xbf16>
      %75 = vector.shape_cast %74 : vector<1x1x16x128xbf16> to vector<1x16x128xbf16>
      %76 = arith.extf %75 : vector<1x16x128xbf16> to vector<1x16x128xf32>
      %77 = vector.broadcast %2 : vector<1x1x128xf32> to vector<1x16x128xf32>
      %78 = arith.mulf %76, %77 : vector<1x16x128xf32>
      %79 = vector.broadcast %3 : vector<1x1x128xf32> to vector<1x16x128xf32>
      %80 = arith.addf %78, %79 : vector<1x16x128xf32>
      %cst_83 = arith.constant 0.000000e+00 : f32
      %81 = vector.broadcast %cst_83 : f32 to vector<1x16x128xf32>
      %82 = arith.maximumf %80, %81 : vector<1x16x128xf32>
      %83 = arith.truncf %82 : vector<1x16x128xf32> to vector<1x16x128xbf16>
      %c17_84 = arith.constant 17 : index
      %c1_85 = arith.constant 1 : index
      %c0_86 = arith.constant 0 : index
      %84 = vector.load %arg7[%c17_84, %c1_85, %c0_86] : memref<18x18x128xbf16, #tpu.memory_space<vmem>>, vector<1x16x128xbf16>
      tpu.vector_store %arg7[%c17_84, %c1_85, %c0_86], %83 {strides = array<i32>} : memref<18x18x128xbf16, #tpu.memory_space<vmem>>, vector<1x16x128xbf16>,
    } else {
    }
    %c0_24 = arith.constant 0 : index
    %c0_25 = arith.constant 0 : index
    %c0_26 = arith.constant 0 : index
    %32 = vector.load %arg7[%c0_24, %c0_25, %c0_26] : memref<18x18x128xbf16, #tpu.memory_space<vmem>>, vector<16x16x128xbf16>
    %c0_27 = arith.constant 0 : index
    %c0_28 = arith.constant 0 : index
    %c0_29 = arith.constant 0 : index
    %33 = vector.load %arg8[%c0_27, %c0_28, %c0_29] : memref<16x16x1152xbf16, #tpu.memory_space<vmem>>, vector<16x16x128xbf16>
    tpu.vector_store %arg8[%c0_27, %c0_28, %c0_29], %32 {strides = array<i32>} : memref<16x16x1152xbf16, #tpu.memory_space<vmem>>, vector<16x16x128xbf16>,
    %c0_30 = arith.constant 0 : index
    %c1_31 = arith.constant 1 : index
    %c0_32 = arith.constant 0 : index
    %34 = vector.load %arg7[%c0_30, %c1_31, %c0_32] : memref<18x18x128xbf16, #tpu.memory_space<vmem>>, vector<16x16x128xbf16>
    %c0_33 = arith.constant 0 : index
    %c0_34 = arith.constant 0 : index
    %c128 = arith.constant 128 : index
    %35 = vector.load %arg8[%c0_33, %c0_34, %c128] : memref<16x16x1152xbf16, #tpu.memory_space<vmem>>, vector<16x16x128xbf16>
    tpu.vector_store %arg8[%c0_33, %c0_34, %c128], %34 {strides = array<i32>} : memref<16x16x1152xbf16, #tpu.memory_space<vmem>>, vector<16x16x128xbf16>,
    %c0_35 = arith.constant 0 : index
    %c2 = arith.constant 2 : index
    %c0_36 = arith.constant 0 : index
    %36 = vector.load %arg7[%c0_35, %c2, %c0_36] : memref<18x18x128xbf16, #tpu.memory_space<vmem>>, vector<16x16x128xbf16>
    %c0_37 = arith.constant 0 : index
    %c0_38 = arith.constant 0 : index
    %c256 = arith.constant 256 : index
    %37 = vector.load %arg8[%c0_37, %c0_38, %c256] : memref<16x16x1152xbf16, #tpu.memory_space<vmem>>, vector<16x16x128xbf16>
    tpu.vector_store %arg8[%c0_37, %c0_38, %c256], %36 {strides = array<i32>} : memref<16x16x1152xbf16, #tpu.memory_space<vmem>>, vector<16x16x128xbf16>,
    %c1_39 = arith.constant 1 : index
    %c0_40 = arith.constant 0 : index
    %c0_41 = arith.constant 0 : index
    %38 = vector.load %arg7[%c1_39, %c0_40, %c0_41] : memref<18x18x128xbf16, #tpu.memory_space<vmem>>, vector<16x16x128xbf16>
    %c0_42 = arith.constant 0 : index
    %c0_43 = arith.constant 0 : index
    %c384 = arith.constant 384 : index
    %39 = vector.load %arg8[%c0_42, %c0_43, %c384] : memref<16x16x1152xbf16, #tpu.memory_space<vmem>>, vector<16x16x128xbf16>
    tpu.vector_store %arg8[%c0_42, %c0_43, %c384], %38 {strides = array<i32>} : memref<16x16x1152xbf16, #tpu.memory_space<vmem>>, vector<16x16x128xbf16>,
    %c1_44 = arith.constant 1 : index
    %c1_45 = arith.constant 1 : index
    %c0_46 = arith.constant 0 : index
    %40 = vector.load %arg7[%c1_44, %c1_45, %c0_46] : memref<18x18x128xbf16, #tpu.memory_space<vmem>>, vector<16x16x128xbf16>
    %c0_47 = arith.constant 0 : index
    %c0_48 = arith.constant 0 : index
    %c512 = arith.constant 512 : index
    %41 = vector.load %arg8[%c0_47, %c0_48, %c512] : memref<16x16x1152xbf16, #tpu.memory_space<vmem>>, vector<16x16x128xbf16>
    tpu.vector_store %arg8[%c0_47, %c0_48, %c512], %40 {strides = array<i32>} : memref<16x16x1152xbf16, #tpu.memory_space<vmem>>, vector<16x16x128xbf16>,
    %c1_49 = arith.constant 1 : index
    %c2_50 = arith.constant 2 : index
    %c0_51 = arith.constant 0 : index
    %42 = vector.load %arg7[%c1_49, %c2_50, %c0_51] : memref<18x18x128xbf16, #tpu.memory_space<vmem>>, vector<16x16x128xbf16>
    %c0_52 = arith.constant 0 : index
    %c0_53 = arith.constant 0 : index
    %c640 = arith.constant 640 : index
    %43 = vector.load %arg8[%c0_52, %c0_53, %c640] : memref<16x16x1152xbf16, #tpu.memory_space<vmem>>, vector<16x16x128xbf16>
    tpu.vector_store %arg8[%c0_52, %c0_53, %c640], %42 {strides = array<i32>} : memref<16x16x1152xbf16, #tpu.memory_space<vmem>>, vector<16x16x128xbf16>,
    %c2_54 = arith.constant 2 : index
    %c0_55 = arith.constant 0 : index
    %c0_56 = arith.constant 0 : index
    %44 = vector.load %arg7[%c2_54, %c0_55, %c0_56] : memref<18x18x128xbf16, #tpu.memory_space<vmem>>, vector<16x16x128xbf16>
    %c0_57 = arith.constant 0 : index
    %c0_58 = arith.constant 0 : index
    %c768 = arith.constant 768 : index
    %45 = vector.load %arg8[%c0_57, %c0_58, %c768] : memref<16x16x1152xbf16, #tpu.memory_space<vmem>>, vector<16x16x128xbf16>
    tpu.vector_store %arg8[%c0_57, %c0_58, %c768], %44 {strides = array<i32>} : memref<16x16x1152xbf16, #tpu.memory_space<vmem>>, vector<16x16x128xbf16>,
    %c2_59 = arith.constant 2 : index
    %c1_60 = arith.constant 1 : index
    %c0_61 = arith.constant 0 : index
    %46 = vector.load %arg7[%c2_59, %c1_60, %c0_61] : memref<18x18x128xbf16, #tpu.memory_space<vmem>>, vector<16x16x128xbf16>
    %c0_62 = arith.constant 0 : index
    %c0_63 = arith.constant 0 : index
    %c896 = arith.constant 896 : index
    %47 = vector.load %arg8[%c0_62, %c0_63, %c896] : memref<16x16x1152xbf16, #tpu.memory_space<vmem>>, vector<16x16x128xbf16>
    tpu.vector_store %arg8[%c0_62, %c0_63, %c896], %46 {strides = array<i32>} : memref<16x16x1152xbf16, #tpu.memory_space<vmem>>, vector<16x16x128xbf16>,
    %c2_64 = arith.constant 2 : index
    %c2_65 = arith.constant 2 : index
    %c0_66 = arith.constant 0 : index
    %48 = vector.load %arg7[%c2_64, %c2_65, %c0_66] : memref<18x18x128xbf16, #tpu.memory_space<vmem>>, vector<16x16x128xbf16>
    %c0_67 = arith.constant 0 : index
    %c0_68 = arith.constant 0 : index
    %c1024 = arith.constant 1024 : index
    %49 = vector.load %arg8[%c0_67, %c0_68, %c1024] : memref<16x16x1152xbf16, #tpu.memory_space<vmem>>, vector<16x16x128xbf16>
    tpu.vector_store %arg8[%c0_67, %c0_68, %c1024], %48 {strides = array<i32>} : memref<16x16x1152xbf16, #tpu.memory_space<vmem>>, vector<16x16x128xbf16>,
    %c0_69 = arith.constant 0 : index
    %c0_70 = arith.constant 0 : index
    %c0_71 = arith.constant 0 : index
    %50 = vector.load %arg8[%c0_69, %c0_70, %c0_71] : memref<16x16x1152xbf16, #tpu.memory_space<vmem>>, vector<16x16x1152xbf16>
    %51 = vector.shape_cast %50 : vector<16x16x1152xbf16> to vector<256x1152xbf16>
    %c0_72 = arith.constant 0 : index
    %c0_73 = arith.constant 0 : index
    %52 = vector.load %arg5[%c0_72, %c0_73] : memref<1152x512xbf16, #tpu.memory_space<vmem>>, vector<1152x512xbf16>
    %cst_74 = arith.constant dense<0.000000e+00> : vector<256x512xf32>
    %53 = tpu.matmul %51, %52, %cst_74 {dimension_numbers = #tpu.dot_dimension_numbers<[1], [0], [0], [1], [0, 0, 1, 1], [], []>} : vector<256x1152xbf16>, vector<1152x512xbf16>, vector<256x512xf32> -> vector<256x512xf32>
    %54 = vector.extract_strided_slice %53 {offsets = [0, 0], sizes = [256, 256], strides = [1, 1]} : vector<256x512xf32> to vector<256x256xf32>
    %55 = vector.extract_strided_slice %53 {offsets = [0, 256], sizes = [256, 256], strides = [1, 1]} : vector<256x512xf32> to vector<256x256xf32>
    %56 = arith.maximumf %54, %55 : vector<256x256xf32>
    %57 = vector.shape_cast %56 : vector<256x256xf32> to vector<16x8x2x256xf32>
    %58 = vector.extract_strided_slice %57 {offsets = [0, 0, 0, 0], sizes = [16, 8, 1, 256], strides = [1, 1, 1, 1]} : vector<16x8x2x256xf32> to vector<16x8x1x256xf32>
    %59 = vector.shape_cast %58 : vector<16x8x1x256xf32> to vector<16x8x256xf32>
    %60 = vector.extract_strided_slice %57 {offsets = [0, 0, 1, 0], sizes = [16, 8, 1, 256], strides = [1, 1, 1, 1]} : vector<16x8x2x256xf32> to vector<16x8x1x256xf32>
    %61 = vector.shape_cast %60 : vector<16x8x1x256xf32> to vector<16x8x256xf32>
    %62 = arith.maximumf %59, %61 : vector<16x8x256xf32>
    %63 = vector.shape_cast %62 : vector<16x8x256xf32> to vector<8x2x8x256xf32>
    %64 = vector.extract_strided_slice %63 {offsets = [0, 0, 0, 0], sizes = [8, 1, 8, 256], strides = [1, 1, 1, 1]} : vector<8x2x8x256xf32> to vector<8x1x8x256xf32>
    %65 = vector.shape_cast %64 : vector<8x1x8x256xf32> to vector<8x8x256xf32>
    %66 = vector.extract_strided_slice %63 {offsets = [0, 1, 0, 0], sizes = [8, 1, 8, 256], strides = [1, 1, 1, 1]} : vector<8x2x8x256xf32> to vector<8x1x8x256xf32>
    %67 = vector.shape_cast %66 : vector<8x1x8x256xf32> to vector<8x8x256xf32>
    %68 = arith.maximumf %65, %67 : vector<8x8x256xf32>
    %c0_75 = arith.constant 0 : index
    %c0_76 = arith.constant 0 : index
    %c0_77 = arith.constant 0 : index
    %c0_78 = arith.constant 0 : index
    %69 = vector.load %arg6[%c0_75, %c0_76, %c0_77, %c0_78] : memref<1x8x8x256xf32, #tpu.memory_space<vmem>>, vector<1x8x8x256xf32>
    %70 = vector.shape_cast %69 : vector<1x8x8x256xf32> to vector<8x8x256xf32>
    %71 = vector.shape_cast %68 : vector<8x8x256xf32> to vector<1x8x8x256xf32>
    tpu.vector_store %arg6[%c0_75, %c0_76, %c0_77, %c0_78], %71 {strides = array<i32>} : memref<1x8x8x256xf32, #tpu.memory_space<vmem>>, vector<1x8x8x256xf32>,
    return
  }
  func.func @transform_0(%arg0: i32, %arg1: i32) -> (i32, i32, i32, i32) {
    %c0_i32 = arith.constant 0 : i32
    %c0_i32_0 = arith.constant 0 : i32
    %c0_i32_1 = arith.constant 0 : i32
    %c0_i32_2 = arith.constant 0 : i32
    return %arg0, %c0_i32, %c0_i32_0, %c0_i32_1 : i32, i32, i32, i32
  }
  func.func @transform_1(%arg0: i32, %arg1: i32) -> (i32, i32, i32) {
    %c0_i32 = arith.constant 0 : i32
    %c0_i32_0 = arith.constant 0 : i32
    %c0_i32_1 = arith.constant 0 : i32
    %c0_i32_2 = arith.constant 0 : i32
    return %c0_i32, %c0_i32_0, %c0_i32_1 : i32, i32, i32
  }
  func.func @transform_2(%arg0: i32, %arg1: i32) -> (i32, i32, i32) {
    %c0_i32 = arith.constant 0 : i32
    %c0_i32_0 = arith.constant 0 : i32
    %c0_i32_1 = arith.constant 0 : i32
    %c0_i32_2 = arith.constant 0 : i32
    return %c0_i32, %c0_i32_0, %c0_i32_1 : i32, i32, i32
  }
  func.func @transform_3(%arg0: i32, %arg1: i32) -> (i32, i32) {
    %c0_i32 = arith.constant 0 : i32
    %c0_i32_0 = arith.constant 0 : i32
    %c0_i32_1 = arith.constant 0 : i32
    return %c0_i32, %c0_i32_0 : i32, i32
  }
  func.func @transform_4(%arg0: i32, %arg1: i32) -> (i32, i32, i32, i32) {
    %c0_i32 = arith.constant 0 : i32
    %c0_i32_0 = arith.constant 0 : i32
    %c0_i32_1 = arith.constant 0 : i32
    return %arg0, %arg1, %c0_i32, %c0_i32_0 : i32, i32, i32, i32
  }
}

</mosaic_0001>

<llo_original>
// kernel: tpu_custom_call.1
$region0: #{tpu_custom_call.1}
  #allocation0 [shape = 'u32[]', space=smem, size = 0x4, offset = 0x4, fixed_abs, tag = 'smem constant byte address 0x4 - core index']
  #allocation1 [shape = 'u32[144,128]{1,0:T(1,128)}', space=vmem, size = 0x12000, scoped, tag = 'internal scratch']
  #allocation2 [shape = 'bf16[18,18,128]{2,1,0:T(8,128)(2,1)}', space=vmem, size = 0x1b000, scoped, tag = 'scratch operand']
  #allocation3 [shape = 'bf16[16,16,1152]{2,1,0:T(16,128)(2,1)}', space=vmem, size = 0x90000, scoped, tag = 'scratch operand']
  %s0 = inlined_call_operand.hbm [shape: bf16[2,16,16,128], index: 0, kind: input, shape index: {}]
  %s1 = inlined_call_operand.hbm [shape: f32[1,1,128], index: 1, kind: input, shape index: {}]
  %s2 = inlined_call_operand.hbm [shape: f32[1,1,128], index: 2, kind: input, shape index: {}]
  %s3 = inlined_call_operand.hbm [shape: bf16[1152,512], index: 3, kind: input, shape index: {}]
  %s4 = inlined_call_operand.hbm [shape: f32[2,8,8,256], index: 4, kind: output, shape index: {}]
  %s5 = sld [smem:[#allocation0]]
  $region81: #{tpu_custom_call.1} parent=0
    _
  %s7 = ssub.s32 1, %s5
  %s8 = scalar_select 0, %s7, %s5
  $region1: #{tpu_custom_call.1} parent=0
    #allocation4 [shape = 'u8[131072]{0}', space=vmem, size = 0x20000, scoped, tag = 'input window, operand 0']
    #allocation5 [shape = 's32[2]{0}', space=sflag, size = 0x8, scoped, tag = 'scoped memory for tpu_custom_call.1']
    #allocation6 [shape = 's32[2]{0}', space=sflag, size = 0x8, scoped, tag = 'scoped memory for tpu_custom_call.1']
    #allocation7 [shape = 'u8[512]{0}', space=vmem, size = 0x400, scoped, tag = 'input window, operand 1, single buffered']
    #allocation8 [shape = 's32[1]{0}', space=sflag, size = 0x4, scoped, tag = 'scoped memory for tpu_custom_call.1']
    #allocation9 [shape = 'u8[512]{0}', space=vmem, size = 0x400, scoped, tag = 'input window, operand 2, single buffered']
    #allocation10 [shape = 'u8[1179648]{0}', space=vmem, size = 0x120000, scoped, tag = 'input window, operand 3, single buffered']
    #allocation11 [shape = 's32[1]{0}', space=sflag, size = 0x4, scoped, tag = 'scoped memory for tpu_custom_call.1']
    #allocation12 [shape = 'u8[131072]{0}', space=vmem, size = 0x20000, scoped, tag = 'output window, operand 0']
    %9 = vsyncpa [#allocation5], 0
    %s10 = scalar_lea.sflag [#allocation5], 1
    %11 = vsyncpa %s10, 0
    %12 = vsyncpa [#allocation8], 0
    %13 = vsyncpa [#allocation11], 0
    %14 = vsyncpa [#allocation6], 0
    %s15 = scalar_lea.sflag [#allocation6], 1
    %16 = vsyncpa %s15, 0
    loop: start=0, step=1, limit=4
    $region2: #{tpu_custom_call.1} parent=1 // loop_pre_header
      _
    $region3: #{tpu_custom_call.1} parent=1 // loop_header
      %s18 = sphi 0, %s22
      %p19 = scmp.ge.s32.totalorder %s18, 4
      %s25 = sphi 0, %s37
      %s26 = sphi 0, %s33
      %s27 = sphi 0, %s25
      %s28 = sphi 0, %s26
      %s29 = sphi 0, %s27
      %s30 = sphi 0, %s28
      %s40 = sphi 0, %s42
      %s43 = sphi 0, %s40
      %s44 = sphi 0, %s43
      %s60 = sphi 0, %s44
      %s64 = sphi 0, %s64
      %s66 = sphi 0, %s64
      %s67 = sphi 0, %s66
      %s81 = sphi 0, %s67
      %s85 = sphi 0, %s85
      %s87 = sphi 0, %s85
      %s88 = sphi 0, %s87
      %s102 = sphi 0, %s88
      %s106 = sphi 0, %s106
      %s108 = sphi 0, %s106
      %s109 = sphi 0, %s108
      %s123 = sphi 0, %s109
      %s131 = sphi 0, %s133
      %s134 = sphi 0, %s131
      %s135 = sphi 0, %s134
      %s151 = sphi 0, %s135
    $region4: #{tpu_custom_call.1} parent=1 // loop_header_branch
      %21 = sbr.rel (%p19) target = $region8
    $region5: #{tpu_custom_call.1} parent=1 // loop_body
      %s23 = ssub.s32 %s18, 1
      %s24 = ssub.s32 %s18, 2
      %s31 = sadd.s32 1, %s26
      %p32 = scmp.ge.s32.totalorder %s31, 1
      %s33 = scalar_select %p32, 0, %s31
      %s34 = sadd.s32 1, %s25
      %s35 = scalar_select %p32, %s34, %s25
      %p36 = scmp.ge.s32.totalorder %s35, 2
      %s37 = scalar_select %p36, 0, %s35
      %s38 = ssub.s32 %s25, %s37
      %p39 = scmp.eq.s32.totalorder %s38, 0
      %s41 = sadd.s32 %s40, 1
      %s42 = scalar_select %p39, %s40, %s41
      %p45 = pneg %p39
      %p46 = scmp.eq.s32.totalorder %s18, 1
      %p47 = por %p45, %p46
      %p48 = scmp.ne.s32.totalorder %s40, %s43
      %p49 = scmp.eq.s32.totalorder %s18, 0
      %p50 = por %p48, %p49
      %p51 = scmp.ne.s32.totalorder %s40, %s43
      %p52 = scmp.eq.s32.totalorder %s23, 1
      %p53 = por %p51, %p52
      %p54 = scmp.ne.s32.totalorder %s43, %s44
      %p55 = scmp.eq.s32.totalorder %s23, 0
      %p56 = por %p54, %p55
      %p57 = scmp.ne.s32.totalorder %s43, %s44
      %p58 = scmp.eq.s32.totalorder %s24, 1
      %p59 = por %p57, %p58
      %p61 = scmp.ne.s32.totalorder %s44, %s60
      %p62 = scmp.eq.s32.totalorder %s24, 0
      %p63 = por %p61, %p62
      %s65 = sadd.s32 %s64, 1
      %p68 = scmp.eq.s32.totalorder %s18, 1
      %p69 = scmp.ne.s32.totalorder %s64, %s66
      %p70 = scmp.eq.s32.totalorder %s18, 0
      %p71 = por %p69, %p70
      %p72 = scmp.ne.s32.totalorder %s64, %s66
      %p73 = scmp.eq.s32.totalorder %s23, 1
      %p74 = por %p72, %p73
      %p75 = scmp.ne.s32.totalorder %s66, %s67
      %p76 = scmp.eq.s32.totalorder %s23, 0
      %p77 = por %p75, %p76
      %p78 = scmp.ne.s32.totalorder %s66, %s67
      %p79 = scmp.eq.s32.totalorder %s24, 1
      %p80 = por %p78, %p79
      %p82 = scmp.ne.s32.totalorder %s67, %s81
      %p83 = scmp.eq.s32.totalorder %s24, 0
      %p84 = por %p82, %p83
      %s86 = sadd.s32 %s85, 1
      %p89 = scmp.eq.s32.totalorder %s18, 1
      %p90 = scmp.ne.s32.totalorder %s85, %s87
      %p91 = scmp.eq.s32.totalorder %s18, 0
      %p92 = por %p90, %p91
      %p93 = scmp.ne.s32.totalorder %s85, %s87
      %p94 = scmp.eq.s32.totalorder %s23, 1
      %p95 = por %p93, %p94
      %p96 = scmp.ne.s32.totalorder %s87, %s88
      %p97 = scmp.eq.s32.totalorder %s23, 0
      %p98 = por %p96, %p97
      %p99 = scmp.ne.s32.totalorder %s87, %s88
      %p100 = scmp.eq.s32.totalorder %s24, 1
      %p101 = por %p99, %p100
      %p103 = scmp.ne.s32.totalorder %s88, %s102
      %p104 = scmp.eq.s32.totalorder %s24, 0
      %p105 = por %p103, %p104
      %s107 = sadd.s32 %s106, 1
      %p110 = scmp.eq.s32.totalorder %s18, 1
      %p111 = scmp.ne.s32.totalorder %s106, %s108
      %p112 = scmp.eq.s32.totalorder %s18, 0
      %p113 = por %p111, %p112
      %p114 = scmp.ne.s32.totalorder %s106, %s108
      %p115 = scmp.eq.s32.totalorder %s23, 1
      %p116 = por %p114, %p115
      %p117 = scmp.ne.s32.totalorder %s108, %s109
      %p118 = scmp.eq.s32.totalorder %s23, 0
      %p119 = por %p117, %p118
      %p120 = scmp.ne.s32.totalorder %s108, %s109
      %p121 = scmp.eq.s32.totalorder %s24, 1
      %p122 = por %p120, %p121
      %p124 = scmp.ne.s32.totalorder %s109, %s123
      %p125 = scmp.eq.s32.totalorder %s24, 0
      %p126 = por %p124, %p125
      %s127 = ssub.s32 %s25, %s37
      %s128 = ssub.s32 %s26, %s33
      %s129 = sor.u32 %s127, %s128
      %p130 = scmp.eq.s32.totalorder %s129, 0
      %s132 = sadd.s32 %s131, 1
      %s133 = scalar_select %p130, %s131, %s132
      %p136 = pneg %p130
      %p137 = scmp.eq.s32.totalorder %s18, 1
      %p138 = por %p136, %p137
      %p139 = scmp.ne.s32.totalorder %s131, %s134
      %p140 = scmp.eq.s32.totalorder %s18, 0
      %p141 = por %p139, %p140
      %p142 = scmp.ne.s32.totalorder %s131, %s134
      %p143 = scmp.eq.s32.totalorder %s23, 1
      %p144 = por %p142, %p143
      %p145 = scmp.ne.s32.totalorder %s134, %s135
      %p146 = scmp.eq.s32.totalorder %s23, 0
      %p147 = por %p145, %p146
      %p148 = scmp.ne.s32.totalorder %s134, %s135
      %p149 = scmp.eq.s32.totalorder %s24, 1
      %p150 = por %p148, %p149
      %p152 = scmp.ne.s32.totalorder %s135, %s151
      %p153 = scmp.eq.s32.totalorder %s24, 0
      %p154 = por %p152, %p153
      %p155 = scmp.le.s32.totalorder 1, %s18
      %p156 = scmp.lt.s32.totalorder %s18, 3
      %p157 = pnand %p155, %p156
      %p158 = pneg %p157
      // Predicated region
      $region9: #{tpu_custom_call.1} parent=5 // pred_check
        _
      $region10: #{tpu_custom_call.1} parent=5 // pred_check_branch
        %160 = sbr.rel (%p157) target = $region12
      $region11: #{tpu_custom_call.1} parent=5 // pred_region
        %s161 = ssub.s32 %s18, 1
        // Predicated region
        $region13: #{tpu_custom_call.1} parent=11 // pred_check
          %p162 = pneg %p77
        $region14: #{tpu_custom_call.1} parent=11 // pred_check_branch
          %164 = sbr.rel (%p162) target = $region16
        $region15: #{tpu_custom_call.1} parent=11 // pred_region
          %s166 = ssub.s32 16, 16
          %167 = vsyncadd [#allocation8], %s166
          %s169 = sshll.u32 [#allocation7], 4
          %s170 = int_to_ptr.vmem [resolvable:$true] %s169
          %172 = dma.hbm_to_vmem [thread:$0]  %s1, 16, %s170, [#allocation8]
        $region16: #{tpu_custom_call.1} parent=11 // pred_fallthru
          _
        // Predicated region
        $region17: #{tpu_custom_call.1} parent=11 // pred_check
          %p173 = pneg %p98
        $region18: #{tpu_custom_call.1} parent=11 // pred_check_branch
          %175 = sbr.rel (%p173) target = $region20
        $region19: #{tpu_custom_call.1} parent=11 // pred_region
          %s177 = ssub.s32 16, 16
          %178 = vsyncadd [#allocation8], %s177
          %s180 = sshll.u32 [#allocation9], 4
          %s181 = int_to_ptr.vmem [resolvable:$true] %s180
          %183 = dma.hbm_to_vmem [thread:$0]  %s2, 16, %s181, [#allocation8]
        $region20: #{tpu_custom_call.1} parent=11 // pred_fallthru
          _
        // Predicated region
        $region21: #{tpu_custom_call.1} parent=11 // pred_check
          %p184 = pneg %p119
        $region22: #{tpu_custom_call.1} parent=11 // pred_check_branch
          %186 = sbr.rel (%p184) target = $region24
        $region23: #{tpu_custom_call.1} parent=11 // pred_region
          %s188 = ssub.s32 36864, 36864
          %189 = vsyncadd [#allocation11], %s188
          %s190 = sshll.u32 [#allocation10], 4
          %s191 = int_to_ptr.vmem [resolvable:$true] %s190
          %196 = dma.hbm_to_vmem [thread:$0]  %s3, 36864, %s191, [#allocation11], 256, 256, 16
        $region24: #{tpu_custom_call.1} parent=11 // pred_fallthru
          _
      $region12: #{tpu_custom_call.1} parent=5 // pred_fallthru
        _
      %p197 = scmp.lt.s32.totalorder %s18, 2
      // Predicated region
      $region25: #{tpu_custom_call.1} parent=5 // pred_check
        %p198 = pneg %p197
      $region26: #{tpu_custom_call.1} parent=5 // pred_check_branch
        %200 = sbr.rel (%p198) target = $region28
      $region27: #{tpu_custom_call.1} parent=5 // pred_region
        // Predicated region
        $region29: #{tpu_custom_call.1} parent=27 // pred_check
          %p201 = pneg %p50
        $region30: #{tpu_custom_call.1} parent=27 // pred_check_branch
          %203 = sbr.rel (%p201) target = $region32
        $region31: #{tpu_custom_call.1} parent=27 // pred_region
          %s204 = sand.u32 %s40, 1
          %s205 = scalar_lea.sflag [#allocation5], %s204
          %s206 = sand.u32 %s40, 1
          %s207 = smul.addr %s206, 128
          %s208 = scalar_lea.vmem [#allocation4], %s207
          %s210 = ssub.s32 2048, 2048
          %211 = vsyncadd %s205, %s210
          %s212 = smul.addr %s25, 32
          %s213 = smul.addr %s212, 64
          %s214 = scalar_lea.hbm %s0, %s213
          %s215 = sshll.u32 %s208, 4
          %s216 = int_to_ptr.vmem [resolvable:$true] %s215
          %221 = dma.hbm_to_vmem [thread:$0]  %s214, 2048, %s216, %s205, 64, 64, 4
        $region32: #{tpu_custom_call.1} parent=27 // pred_fallthru
          _
      $region28: #{tpu_custom_call.1} parent=5 // pred_fallthru
        _
      %p222 = scmp.le.s32.totalorder 1, %s18
      %p223 = scmp.lt.s32.totalorder %s18, 3
      %p224 = pnand %p222, %p223
      %p225 = pneg %p224
      // Predicated region
      $region33: #{tpu_custom_call.1} parent=5 // pred_check
        _
      $region34: #{tpu_custom_call.1} parent=5 // pred_check_branch
        %227 = sbr.rel (%p224) target = $region36
      $region35: #{tpu_custom_call.1} parent=5 // pred_region
        %s228 = ssub.s32 %s18, 1
        %s229 = sand.u32 %s43, 1
        %s230 = scalar_lea.sflag [#allocation5], %s229
        %s231 = sand.u32 %s43, 1
        %s232 = smul.addr %s231, 128
        %s233 = scalar_lea.vmem [#allocation4], %s232
        // Predicated region
        $region37: #{tpu_custom_call.1} parent=35 // pred_check
          %p234 = pneg %p56
        $region38: #{tpu_custom_call.1} parent=35 // pred_check_branch
          %236 = sbr.rel (%p234) target = $region40
        $region39: #{tpu_custom_call.1} parent=35 // pred_region
          %237 = dma.done %s230, 2048
        $region40: #{tpu_custom_call.1} parent=35 // pred_fallthru
          _
        // Predicated region
        $region41: #{tpu_custom_call.1} parent=35 // pred_check
          %p238 = pneg %p77
        $region42: #{tpu_custom_call.1} parent=35 // pred_check_branch
          %240 = sbr.rel (%p238) target = $region44
        $region43: #{tpu_custom_call.1} parent=35 // pred_region
          %241 = dma.done [#allocation8], 16
        $region44: #{tpu_custom_call.1} parent=35 // pred_fallthru
          _
        // Predicated region
        $region45: #{tpu_custom_call.1} parent=35 // pred_check
          %p242 = pneg %p98
        $region46: #{tpu_custom_call.1} parent=35 // pred_check_branch
          %244 = sbr.rel (%p242) target = $region48
        $region47: #{tpu_custom_call.1} parent=35 // pred_region
          %245 = dma.done [#allocation8], 16
        $region48: #{tpu_custom_call.1} parent=35 // pred_fallthru
          _
        // Predicated region
        $region49: #{tpu_custom_call.1} parent=35 // pred_check
          %p246 = pneg %p119
        $region50: #{tpu_custom_call.1} parent=35 // pred_check_branch
          %248 = sbr.rel (%p246) target = $region52
        $region51: #{tpu_custom_call.1} parent=35 // pred_region
          %249 = dma.done [#allocation11], 36864
        $region52: #{tpu_custom_call.1} parent=35 // pred_fallthru
          _
        %s250 = sand.u32 %s43, 1
        %s251 = scalar_lea.sflag [#allocation5], %s250
        %s252 = sand.u32 %s43, 1
        %s253 = smul.addr %s252, 128
        %s254 = scalar_lea.vmem [#allocation4], %s253
        %p255 = pneg %p56
        %p256 = pneg %p53
        %p257 = pneg %p77
        %p258 = pneg %p74
        %p259 = pneg %p98
        %p260 = pneg %p95
        %p261 = pneg %p119
        %p262 = pneg %p116
        %p263 = pneg %p147
        %p264 = pneg %p144
        %s265 = sand.u32 %s134, 1
        %s266 = scalar_lea.sflag [#allocation6], %s265
        %s267 = sand.u32 %s134, 1
        %s268 = smul.addr %s267, 128
        %s269 = scalar_lea.vmem [#allocation12], %s268
        %s270 = smul.u32 8, %s28
        %s272 = smul.u32 %s28, 16
        %v273 = vld [vmem:[#allocation7] sm:$0x1]
        %v274 = vld [vmem:[#allocation9] sm:$0x1]
        %vm275 = vcmask 1040384
        %vm276 = vsmask.f32 256
        %vm277 = vmand %vm275, %vm276
        %v278 = vld [vmem:[#allocation2] sm:$0x1]
        %v279 = vsel %vm277, 0, %v278
        %280 = vst [vmem:[#allocation2] sm:$0x1] %v279
        %v281 = vld [vmem:[#allocation2 + $0xc] sm:$0x1]
        %v282 = vsel %vm277, 0, %v281
        %283 = vst [vmem:[#allocation2 + $0xc] sm:$0x1] %v282
        %v284 = vld [vmem:[#allocation2 + $0x18] sm:$0x1]
        %v285 = vsel %vm277, 0, %v284
        %286 = vst [vmem:[#allocation2 + $0x18] sm:$0x1] %v285
        %v287 = vld [vmem:[#allocation2 + $0x24] sm:$0x1]
        %v288 = vsel %vm277, 0, %v287
        %289 = vst [vmem:[#allocation2 + $0x24] sm:$0x1] %v288
        %v290 = vld [vmem:[#allocation2 + $0x30] sm:$0x1]
        %v291 = vsel %vm277, 0, %v290
        %292 = vst [vmem:[#allocation2 + $0x30] sm:$0x1] %v291
        %v293 = vld [vmem:[#allocation2 + $0x3c] sm:$0x1]
        %v294 = vsel %vm277, 0, %v293
        %295 = vst [vmem:[#allocation2 + $0x3c] sm:$0x1] %v294
        %v296 = vld [vmem:[#allocation2 + $0x48] sm:$0x1]
        %v297 = vsel %vm277, 0, %v296
        %298 = vst [vmem:[#allocation2 + $0x48] sm:$0x1] %v297
        %v299 = vld [vmem:[#allocation2 + $0x54] sm:$0x1]
        %v300 = vsel %vm277, 0, %v299
        %301 = vst [vmem:[#allocation2 + $0x54] sm:$0x1] %v300
        %v302 = vld [vmem:[#allocation2 + $0x60] sm:$0x1]
        %v303 = vsel %vm277, 0, %v302
        %304 = vst [vmem:[#allocation2 + $0x60] sm:$0x1] %v303
        %v305 = vld [vmem:[#allocation2 + $0x6c] sm:$0x1]
        %v306 = vsel %vm277, 0, %v305
        %307 = vst [vmem:[#allocation2 + $0x6c] sm:$0x1] %v306
        %v308 = vld [vmem:[#allocation2 + $0x78] sm:$0x1]
        %v309 = vsel %vm277, 0, %v308
        %310 = vst [vmem:[#allocation2 + $0x78] sm:$0x1] %v309
        %v311 = vld [vmem:[#allocation2 + $0x84] sm:$0x1]
        %v312 = vsel %vm277, 0, %v311
        %313 = vst [vmem:[#allocation2 + $0x84] sm:$0x1] %v312
        %v314 = vld [vmem:[#allocation2 + $0x90] sm:$0x1]
        %v315 = vsel %vm277, 0, %v314
        %316 = vst [vmem:[#allocation2 + $0x90] sm:$0x1] %v315
        %v317 = vld [vmem:[#allocation2 + $0x9c] sm:$0x1]
        %v318 = vsel %vm277, 0, %v317
        %319 = vst [vmem:[#allocation2 + $0x9c] sm:$0x1] %v318
        %v320 = vld [vmem:[#allocation2 + $0xa8] sm:$0x1]
        %v321 = vsel %vm277, 0, %v320
        %322 = vst [vmem:[#allocation2 + $0xa8] sm:$0x1] %v321
        %v323 = vld [vmem:[#allocation2 + $0xb4] sm:$0x1]
        %v324 = vsel %vm277, 0, %v323
        %325 = vst [vmem:[#allocation2 + $0xb4] sm:$0x1] %v324
        %v326 = vld [vmem:[#allocation2 + $0xc0] sm:$0x1]
        %v327 = vsel %vm277, 0, %v326
        %328 = vst [vmem:[#allocation2 + $0xc0] sm:$0x1] %v327
        %v329 = vld [vmem:[#allocation2 + $0xcc] sm:$0x1]
        %v330 = vsel %vm277, 0, %v329
        %331 = vst [vmem:[#allocation2 + $0xcc] sm:$0x1] %v330
        %vm332 = vsmask.f32 7938
        %vm333 = vmand %vm275, %vm332
        %v334 = vld [vmem:[#allocation2 + $0x8] sm:$0x1]
        %v335 = vsel %vm333, 0, %v334
        %336 = vst [vmem:[#allocation2 + $0x8] sm:$0x1] %v335
        %v337 = vld [vmem:[#allocation2 + $0x14] sm:$0x1]
        %v338 = vsel %vm333, 0, %v337
        %339 = vst [vmem:[#allocation2 + $0x14] sm:$0x1] %v338
        %v340 = vld [vmem:[#allocation2 + $0x20] sm:$0x1]
        %v341 = vsel %vm333, 0, %v340
        %342 = vst [vmem:[#allocation2 + $0x20] sm:$0x1] %v341
        %v343 = vld [vmem:[#allocation2 + $0x2c] sm:$0x1]
        %v344 = vsel %vm333, 0, %v343
        %345 = vst [vmem:[#allocation2 + $0x2c] sm:$0x1] %v344
        %v346 = vld [vmem:[#allocation2 + $0x38] sm:$0x1]
        %v347 = vsel %vm333, 0, %v346
        %348 = vst [vmem:[#allocation2 + $0x38] sm:$0x1] %v347
        %v349 = vld [vmem:[#allocation2 + $0x44] sm:$0x1]
        %v350 = vsel %vm333, 0, %v349
        %351 = vst [vmem:[#allocation2 + $0x44] sm:$0x1] %v350
        %v352 = vld [vmem:[#allocation2 + $0x50] sm:$0x1]
        %v353 = vsel %vm333, 0, %v352
        %354 = vst [vmem:[#allocation2 + $0x50] sm:$0x1] %v353
        %v355 = vld [vmem:[#allocation2 + $0x5c] sm:$0x1]
        %v356 = vsel %vm333, 0, %v355
        %357 = vst [vmem:[#allocation2 + $0x5c] sm:$0x1] %v356
        %v358 = vld [vmem:[#allocation2 + $0x68] sm:$0x1]
        %v359 = vsel %vm333, 0, %v358
        %360 = vst [vmem:[#allocation2 + $0x68] sm:$0x1] %v359
        %v361 = vld [vmem:[#allocation2 + $0x74] sm:$0x1]
        %v362 = vsel %vm333, 0, %v361
        %363 = vst [vmem:[#allocation2 + $0x74] sm:$0x1] %v362
        %v364 = vld [vmem:[#allocation2 + $0x80] sm:$0x1]
        %v365 = vsel %vm333, 0, %v364
        %366 = vst [vmem:[#allocation2 + $0x80] sm:$0x1] %v365
        %v367 = vld [vmem:[#allocation2 + $0x8c] sm:$0x1]
        %v368 = vsel %vm333, 0, %v367
        %369 = vst [vmem:[#allocation2 + $0x8c] sm:$0x1] %v368
        %v370 = vld [vmem:[#allocation2 + $0x98] sm:$0x1]
        %v371 = vsel %vm333, 0, %v370
        %372 = vst [vmem:[#allocation2 + $0x98] sm:$0x1] %v371
        %v373 = vld [vmem:[#allocation2 + $0xa4] sm:$0x1]
        %v374 = vsel %vm333, 0, %v373
        %375 = vst [vmem:[#allocation2 + $0xa4] sm:$0x1] %v374
        %v376 = vld [vmem:[#allocation2 + $0xb0] sm:$0x1]
        %v377 = vsel %vm333, 0, %v376
        %378 = vst [vmem:[#allocation2 + $0xb0] sm:$0x1] %v377
        %v379 = vld [vmem:[#allocation2 + $0xbc] sm:$0x1]
        %v380 = vsel %vm333, 0, %v379
        %381 = vst [vmem:[#allocation2 + $0xbc] sm:$0x1] %v380
        %v382 = vld [vmem:[#allocation2 + $0xc8] sm:$0x1]
        %v383 = vsel %vm333, 0, %v382
        %384 = vst [vmem:[#allocation2 + $0xc8] sm:$0x1] %v383
        %v385 = vld [vmem:[#allocation2 + $0xd4] sm:$0x1]
        %v386 = vsel %vm333, 0, %v385
        %387 = vst [vmem:[#allocation2 + $0xd4] sm:$0x1] %v386
        %s388 = smul.u32 %s272, 2
        %s389 = smul.addr %s388, 4
        %s390 = scalar_lea.vmem %s233, %s389 [#allocation4]
        %v391 = vld [vmem:[%s390] sm:$0xf]
        %v392 = vld [vmem:[%s390 + $0x4] sm:$0xf]
        %v393 = vld [vmem:[%s390 + $0x8] sm:$0xf]
        %v394 = vld [vmem:[%s390 + $0xc] sm:$0xf]
        %v395 = vld [vmem:[%s390 + $0x10] sm:$0xf]
        %v396 = vld [vmem:[%s390 + $0x14] sm:$0xf]
        %v397 = vld [vmem:[%s390 + $0x18] sm:$0xf]
        %v398 = vld [vmem:[%s390 + $0x1c] sm:$0xf]
        %v399 = vld [vmem:[%s390 + $0x20] sm:$0xf]
        %v400 = vld [vmem:[%s390 + $0x24] sm:$0xf]
        %v401 = vld [vmem:[%s390 + $0x28] sm:$0xf]
        %v402 = vld [vmem:[%s390 + $0x2c] sm:$0xf]
        %v403 = vld [vmem:[%s390 + $0x30] sm:$0xf]
        %v404 = vld [vmem:[%s390 + $0x34] sm:$0xf]
        %v405 = vld [vmem:[%s390 + $0x38] sm:$0xf]
        %v406 = vld [vmem:[%s390 + $0x3c] sm:$0xf]
        %v407 = vld [vmem:[%s390 + $0x40] sm:$0xf]
        %v408 = vld [vmem:[%s390 + $0x44] sm:$0xf]
        %v409 = vld [vmem:[%s390 + $0x48] sm:$0xf]
        %v410 = vld [vmem:[%s390 + $0x4c] sm:$0xf]
        %v411 = vld [vmem:[%s390 + $0x50] sm:$0xf]
        %v412 = vld [vmem:[%s390 + $0x54] sm:$0xf]
        %v413 = vld [vmem:[%s390 + $0x58] sm:$0xf]
        %v414 = vld [vmem:[%s390 + $0x5c] sm:$0xf]
        %v415 = vld [vmem:[%s390 + $0x60] sm:$0xf]
        %v416 = vld [vmem:[%s390 + $0x64] sm:$0xf]
        %v417 = vld [vmem:[%s390 + $0x68] sm:$0xf]
        %v418 = vld [vmem:[%s390 + $0x6c] sm:$0xf]
        %v419 = vld [vmem:[%s390 + $0x70] sm:$0xf]
        %v420 = vld [vmem:[%s390 + $0x74] sm:$0xf]
        %v421 = vld [vmem:[%s390 + $0x78] sm:$0xf]
        %v422 = vld [vmem:[%s390 + $0x7c] sm:$0xf]
        %v423 = vunpack.c.l.bf16 %v391
        %v424 = vunpack.c.l.bf16 %v392
        %v425 = vunpack.c.l.bf16 %v393
        %v426 = vunpack.c.l.bf16 %v394
        %v427 = vunpack.c.l.bf16 %v395
        %v428 = vunpack.c.l.bf16 %v396
        %v429 = vunpack.c.l.bf16 %v397
        %v430 = vunpack.c.l.bf16 %v398
        %v431 = vunpack.c.l.bf16 %v399
        %v432 = vunpack.c.l.bf16 %v400
        %v433 = vunpack.c.l.bf16 %v401
        %v434 = vunpack.c.l.bf16 %v402
        %v435 = vunpack.c.l.bf16 %v403
        %v436 = vunpack.c.l.bf16 %v404
        %v437 = vunpack.c.l.bf16 %v405
        %v438 = vunpack.c.l.bf16 %v406
        %v439 = vunpack.c.l.bf16 %v407
        %v440 = vunpack.c.l.bf16 %v408
        %v441 = vunpack.c.l.bf16 %v409
        %v442 = vunpack.c.l.bf16 %v410
        %v443 = vunpack.c.l.bf16 %v411
        %v444 = vunpack.c.l.bf16 %v412
        %v445 = vunpack.c.l.bf16 %v413
        %v446 = vunpack.c.l.bf16 %v414
        %v447 = vunpack.c.l.bf16 %v415
        %v448 = vunpack.c.l.bf16 %v416
        %v449 = vunpack.c.l.bf16 %v417
        %v450 = vunpack.c.l.bf16 %v418
        %v451 = vunpack.c.l.bf16 %v419
        %v452 = vunpack.c.l.bf16 %v420
        %v453 = vunpack.c.l.bf16 %v421
        %v454 = vunpack.c.l.bf16 %v422
        %v456 = vlaneseq
        %v457 = vshrl.u32 %v456, 7
        %v458 = vsub.s32 0, %v457
        %v459 = vrot.slane %v273, %v458
        %v461 = vmul.f32 %v423, %v459
        %v462 = vmul.f32 %v424, %v459
        %v463 = vmul.f32 %v425, %v459
        %v464 = vmul.f32 %v426, %v459
        %v465 = vmul.f32 %v427, %v459
        %v466 = vmul.f32 %v428, %v459
        %v467 = vmul.f32 %v429, %v459
        %v468 = vmul.f32 %v430, %v459
        %v469 = vmul.f32 %v431, %v459
        %v470 = vmul.f32 %v432, %v459
        %v471 = vmul.f32 %v433, %v459
        %v472 = vmul.f32 %v434, %v459
        %v473 = vmul.f32 %v435, %v459
        %v474 = vmul.f32 %v436, %v459
        %v475 = vmul.f32 %v437, %v459
        %v476 = vmul.f32 %v438, %v459
        %v477 = vmul.f32 %v439, %v459
        %v478 = vmul.f32 %v440, %v459
        %v479 = vmul.f32 %v441, %v459
        %v480 = vmul.f32 %v442, %v459
        %v481 = vmul.f32 %v443, %v459
        %v482 = vmul.f32 %v444, %v459
        %v483 = vmul.f32 %v445, %v459
        %v484 = vmul.f32 %v446, %v459
        %v485 = vmul.f32 %v447, %v459
        %v486 = vmul.f32 %v448, %v459
        %v487 = vmul.f32 %v449, %v459
        %v488 = vmul.f32 %v450, %v459
        %v489 = vmul.f32 %v451, %v459
        %v490 = vmul.f32 %v452, %v459
        %v491 = vmul.f32 %v453, %v459
        %v492 = vmul.f32 %v454, %v459
        %v494 = vlaneseq
        %v495 = vshrl.u32 %v494, 7
        %v496 = vsub.s32 0, %v495
        %v497 = vrot.slane %v274, %v496
        %v499 = vadd.f32 %v461, %v497
        %v500 = vadd.f32 %v462, %v497
        %v501 = vadd.f32 %v463, %v497
        %v502 = vadd.f32 %v464, %v497
        %v503 = vadd.f32 %v465, %v497
        %v504 = vadd.f32 %v466, %v497
        %v505 = vadd.f32 %v467, %v497
        %v506 = vadd.f32 %v468, %v497
        %v507 = vadd.f32 %v469, %v497
        %v508 = vadd.f32 %v470, %v497
        %v509 = vadd.f32 %v471, %v497
        %v510 = vadd.f32 %v472, %v497
        %v511 = vadd.f32 %v473, %v497
        %v512 = vadd.f32 %v474, %v497
        %v513 = vadd.f32 %v475, %v497
        %v514 = vadd.f32 %v476, %v497
        %v515 = vadd.f32 %v477, %v497
        %v516 = vadd.f32 %v478, %v497
        %v517 = vadd.f32 %v479, %v497
        %v518 = vadd.f32 %v480, %v497
        %v519 = vadd.f32 %v481, %v497
        %v520 = vadd.f32 %v482, %v497
        %v521 = vadd.f32 %v483, %v497
        %v522 = vadd.f32 %v484, %v497
        %v523 = vadd.f32 %v485, %v497
        %v524 = vadd.f32 %v486, %v497
        %v525 = vadd.f32 %v487, %v497
        %v526 = vadd.f32 %v488, %v497
        %v527 = vadd.f32 %v489, %v497
        %v528 = vadd.f32 %v490, %v497
        %v529 = vadd.f32 %v491, %v497
        %v530 = vadd.f32 %v492, %v497
        %v531 = vmax.f32 %v499, 0.0
        %v532 = vmax.f32 %v500, 0.0
        %v533 = vmax.f32 %v501, 0.0
        %v534 = vmax.f32 %v502, 0.0
        %v535 = vmax.f32 %v503, 0.0
        %v536 = vmax.f32 %v504, 0.0
        %v537 = vmax.f32 %v505, 0.0
        %v538 = vmax.f32 %v506, 0.0
        %v539 = vmax.f32 %v507, 0.0
        %v540 = vmax.f32 %v508, 0.0
        %v541 = vmax.f32 %v509, 0.0
        %v542 = vmax.f32 %v510, 0.0
        %v543 = vmax.f32 %v511, 0.0
        %v544 = vmax.f32 %v512, 0.0
        %v545 = vmax.f32 %v513, 0.0
        %v546 = vmax.f32 %v514, 0.0
        %v547 = vmax.f32 %v515, 0.0
        %v548 = vmax.f32 %v516, 0.0
        %v549 = vmax.f32 %v517, 0.0
        %v550 = vmax.f32 %v518, 0.0
        %v551 = vmax.f32 %v519, 0.0
        %v552 = vmax.f32 %v520, 0.0
        %v553 = vmax.f32 %v521, 0.0
        %v554 = vmax.f32 %v522, 0.0
        %v555 = vmax.f32 %v523, 0.0
        %v556 = vmax.f32 %v524, 0.0
        %v557 = vmax.f32 %v525, 0.0
        %v558 = vmax.f32 %v526, 0.0
        %v559 = vmax.f32 %v527, 0.0
        %v560 = vmax.f32 %v528, 0.0
        %v561 = vmax.f32 %v529, 0.0
        %v562 = vmax.f32 %v530, 0.0
        %v563 = vpack.c.bf16 %v532, %v531
        %v564 = vpack.c.bf16 %v534, %v533
        %v565 = vpack.c.bf16 %v536, %v535
        %v566 = vpack.c.bf16 %v538, %v537
        %v567 = vpack.c.bf16 %v540, %v539
        %v568 = vpack.c.bf16 %v542, %v541
        %v569 = vpack.c.bf16 %v544, %v543
        %v570 = vpack.c.bf16 %v546, %v545
        %v571 = vpack.c.bf16 %v548, %v547
        %v572 = vpack.c.bf16 %v550, %v549
        %v573 = vpack.c.bf16 %v552, %v551
        %v574 = vpack.c.bf16 %v554, %v553
        %v575 = vpack.c.bf16 %v556, %v555
        %v576 = vpack.c.bf16 %v558, %v557
        %v577 = vpack.c.bf16 %v560, %v559
        %v578 = vpack.c.bf16 %v562, %v561
        %v595 = vunpack.c.l.b16 %v563
        %v596 = vunpack.c.h.b16 %v563
        %v597 = vunpack.c.l.b16 %v564
        %v598 = vunpack.c.h.b16 %v564
        %v599 = vunpack.c.l.b16 %v565
        %v600 = vunpack.c.h.b16 %v565
        %v601 = vunpack.c.l.b16 %v566
        %v602 = vunpack.c.h.b16 %v566
        %v603 = vunpack.c.l.b16 %v567
        %v604 = vunpack.c.h.b16 %v567
        %v605 = vunpack.c.l.b16 %v568
        %v606 = vunpack.c.h.b16 %v568
        %v607 = vunpack.c.l.b16 %v569
        %v608 = vunpack.c.h.b16 %v569
        %v609 = vunpack.c.l.b16 %v570
        %v610 = vunpack.c.h.b16 %v570
        %v611 = vunpack.c.l.b16 %v571
        %v612 = vunpack.c.h.b16 %v571
        %v613 = vunpack.c.l.b16 %v572
        %v614 = vunpack.c.h.b16 %v572
        %v615 = vunpack.c.l.b16 %v573
        %v616 = vunpack.c.h.b16 %v573
        %v617 = vunpack.c.l.b16 %v574
        %v618 = vunpack.c.h.b16 %v574
        %v619 = vunpack.c.l.b16 %v575
        %v620 = vunpack.c.h.b16 %v575
        %v621 = vunpack.c.l.b16 %v576
        %v622 = vunpack.c.h.b16 %v576
        %v623 = vunpack.c.l.b16 %v577
        %v624 = vunpack.c.h.b16 %v577
        %v625 = vunpack.c.l.b16 %v578
        %v626 = vunpack.c.h.b16 %v578
        %v627 = vpack.c.b16 %v595, %v595
        %v628 = vpack.c.b16 %v596, %v596
        %v629 = vpack.c.b16 %v597, %v597
        %v630 = vpack.c.b16 %v598, %v598
        %v631 = vpack.c.b16 %v599, %v599
        %v632 = vpack.c.b16 %v600, %v600
        %v633 = vpack.c.b16 %v601, %v601
        %v634 = vpack.c.b16 %v602, %v602
        %v635 = vpack.c.b16 %v603, %v603
        %v636 = vpack.c.b16 %v604, %v604
        %v637 = vpack.c.b16 %v605, %v605
        %v638 = vpack.c.b16 %v606, %v606
        %v639 = vpack.c.b16 %v607, %v607
        %v640 = vpack.c.b16 %v608, %v608
        %v641 = vpack.c.b16 %v609, %v609
        %v642 = vpack.c.b16 %v610, %v610
        %v643 = vpack.c.b16 %v611, %v611
        %v644 = vpack.c.b16 %v612, %v612
        %v645 = vpack.c.b16 %v613, %v613
        %v646 = vpack.c.b16 %v614, %v614
        %v647 = vpack.c.b16 %v615, %v615
        %v648 = vpack.c.b16 %v616, %v616
        %v649 = vpack.c.b16 %v617, %v617
        %v650 = vpack.c.b16 %v618, %v618
        %v651 = vpack.c.b16 %v619, %v619
        %v652 = vpack.c.b16 %v620, %v620
        %v653 = vpack.c.b16 %v621, %v621
        %v654 = vpack.c.b16 %v622, %v622
        %v655 = vpack.c.b16 %v623, %v623
        %v656 = vpack.c.b16 %v624, %v624
        %v657 = vpack.c.b16 %v625, %v625
        %v658 = vpack.c.b16 %v626, %v626
        %vm659 = vsmask.f32 4368
        %vm660 = vmor %vm276, %vm659
        %v662 = vshrl.u32 %v627, 16
        %v664 = vrot.slane %v662, 7
        %v665 = vshll.u32 %v627, 16
        %v667 = vor.u32 %v664, %v665
        %v668 = vrot.slane %v664, 4
        %v670 = vshrl.u32 %v628, 16
        %v672 = vrot.slane %v670, 7
        %v673 = vshll.u32 %v628, 16
        %v675 = vor.u32 %v672, %v673
        %v676 = vsel %vm660, %v668, %v675
        %v677 = vrot.slane %v672, 4
        %v679 = vshrl.u32 %v629, 16
        %v681 = vrot.slane %v679, 7
        %v682 = vshll.u32 %v629, 16
        %v684 = vor.u32 %v681, %v682
        %v685 = vrot.slane %v681, 4
        %v687 = vshrl.u32 %v630, 16
        %v689 = vrot.slane %v687, 7
        %v690 = vshll.u32 %v630, 16
        %v692 = vor.u32 %v689, %v690
        %v693 = vsel %vm660, %v685, %v692
        %v694 = vrot.slane %v689, 4
        %v696 = vshrl.u32 %v631, 16
        %v698 = vrot.slane %v696, 7
        %v699 = vshll.u32 %v631, 16
        %v701 = vor.u32 %v698, %v699
        %v702 = vrot.slane %v698, 4
        %v704 = vshrl.u32 %v632, 16
        %v706 = vrot.slane %v704, 7
        %v707 = vshll.u32 %v632, 16
        %v709 = vor.u32 %v706, %v707
        %v710 = vsel %vm660, %v702, %v709
        %v711 = vrot.slane %v706, 4
        %v713 = vshrl.u32 %v633, 16
        %v715 = vrot.slane %v713, 7
        %v716 = vshll.u32 %v633, 16
        %v718 = vor.u32 %v715, %v716
        %v719 = vrot.slane %v715, 4
        %v721 = vshrl.u32 %v634, 16
        %v723 = vrot.slane %v721, 7
        %v724 = vshll.u32 %v634, 16
        %v726 = vor.u32 %v723, %v724
        %v727 = vsel %vm660, %v719, %v726
        %v728 = vrot.slane %v723, 4
        %v730 = vshrl.u32 %v635, 16
        %v732 = vrot.slane %v730, 7
        %v733 = vshll.u32 %v635, 16
        %v735 = vor.u32 %v732, %v733
        %v736 = vrot.slane %v732, 4
        %v738 = vshrl.u32 %v636, 16
        %v740 = vrot.slane %v738, 7
        %v741 = vshll.u32 %v636, 16
        %v743 = vor.u32 %v740, %v741
        %v744 = vsel %vm660, %v736, %v743
        %v745 = vrot.slane %v740, 4
        %v747 = vshrl.u32 %v637, 16
        %v749 = vrot.slane %v747, 7
        %v750 = vshll.u32 %v637, 16
        %v752 = vor.u32 %v749, %v750
        %v753 = vrot.slane %v749, 4
        %v755 = vshrl.u32 %v638, 16
        %v757 = vrot.slane %v755, 7
        %v758 = vshll.u32 %v638, 16
        %v760 = vor.u32 %v757, %v758
        %v761 = vsel %vm660, %v753, %v760
        %v762 = vrot.slane %v757, 4
        %v764 = vshrl.u32 %v639, 16
        %v766 = vrot.slane %v764, 7
        %v767 = vshll.u32 %v639, 16
        %v769 = vor.u32 %v766, %v767
        %v770 = vrot.slane %v766, 4
        %v772 = vshrl.u32 %v640, 16
        %v774 = vrot.slane %v772, 7
        %v775 = vshll.u32 %v640, 16
        %v777 = vor.u32 %v774, %v775
        %v778 = vsel %vm660, %v770, %v777
        %v779 = vrot.slane %v774, 4
        %v781 = vshrl.u32 %v641, 16
        %v783 = vrot.slane %v781, 7
        %v784 = vshll.u32 %v641, 16
        %v786 = vor.u32 %v783, %v784
        %v787 = vrot.slane %v783, 4
        %v789 = vshrl.u32 %v642, 16
        %v791 = vrot.slane %v789, 7
        %v792 = vshll.u32 %v642, 16
        %v794 = vor.u32 %v791, %v792
        %v795 = vsel %vm660, %v787, %v794
        %v796 = vrot.slane %v791, 4
        %v798 = vshrl.u32 %v643, 16
        %v800 = vrot.slane %v798, 7
        %v801 = vshll.u32 %v643, 16
        %v803 = vor.u32 %v800, %v801
        %v804 = vrot.slane %v800, 4
        %v806 = vshrl.u32 %v644, 16
        %v808 = vrot.slane %v806, 7
        %v809 = vshll.u32 %v644, 16
        %v811 = vor.u32 %v808, %v809
        %v812 = vsel %vm660, %v804, %v811
        %v813 = vrot.slane %v808, 4
        %v815 = vshrl.u32 %v645, 16
        %v817 = vrot.slane %v815, 7
        %v818 = vshll.u32 %v645, 16
        %v820 = vor.u32 %v817, %v818
        %v821 = vrot.slane %v817, 4
        %v823 = vshrl.u32 %v646, 16
        %v825 = vrot.slane %v823, 7
        %v826 = vshll.u32 %v646, 16
        %v828 = vor.u32 %v825, %v826
        %v829 = vsel %vm660, %v821, %v828
        %v830 = vrot.slane %v825, 4
        %v832 = vshrl.u32 %v647, 16
        %v834 = vrot.slane %v832, 7
        %v835 = vshll.u32 %v647, 16
        %v837 = vor.u32 %v834, %v835
        %v838 = vrot.slane %v834, 4
        %v840 = vshrl.u32 %v648, 16
        %v842 = vrot.slane %v840, 7
        %v843 = vshll.u32 %v648, 16
        %v845 = vor.u32 %v842, %v843
        %v846 = vsel %vm660, %v838, %v845
        %v847 = vrot.slane %v842, 4
        %v849 = vshrl.u32 %v649, 16
        %v851 = vrot.slane %v849, 7
        %v852 = vshll.u32 %v649, 16
        %v854 = vor.u32 %v851, %v852
        %v855 = vrot.slane %v851, 4
        %v857 = vshrl.u32 %v650, 16
        %v859 = vrot.slane %v857, 7
        %v860 = vshll.u32 %v650, 16
        %v862 = vor.u32 %v859, %v860
        %v863 = vsel %vm660, %v855, %v862
        %v864 = vrot.slane %v859, 4
        %v866 = vshrl.u32 %v651, 16
        %v868 = vrot.slane %v866, 7
        %v869 = vshll.u32 %v651, 16
        %v871 = vor.u32 %v868, %v869
        %v872 = vrot.slane %v868, 4
        %v874 = vshrl.u32 %v652, 16
        %v876 = vrot.slane %v874, 7
        %v877 = vshll.u32 %v652, 16
        %v879 = vor.u32 %v876, %v877
        %v880 = vsel %vm660, %v872, %v879
        %v881 = vrot.slane %v876, 4
        %v883 = vshrl.u32 %v653, 16
        %v885 = vrot.slane %v883, 7
        %v886 = vshll.u32 %v653, 16
        %v888 = vor.u32 %v885, %v886
        %v889 = vrot.slane %v885, 4
        %v891 = vshrl.u32 %v654, 16
        %v893 = vrot.slane %v891, 7
        %v894 = vshll.u32 %v654, 16
        %v896 = vor.u32 %v893, %v894
        %v897 = vsel %vm660, %v889, %v896
        %v898 = vrot.slane %v893, 4
        %v900 = vshrl.u32 %v655, 16
        %v902 = vrot.slane %v900, 7
        %v903 = vshll.u32 %v655, 16
        %v905 = vor.u32 %v902, %v903
        %v906 = vrot.slane %v902, 4
        %v908 = vshrl.u32 %v656, 16
        %v910 = vrot.slane %v908, 7
        %v911 = vshll.u32 %v656, 16
        %v913 = vor.u32 %v910, %v911
        %v914 = vsel %vm660, %v906, %v913
        %v915 = vrot.slane %v910, 4
        %v917 = vshrl.u32 %v657, 16
        %v919 = vrot.slane %v917, 7
        %v920 = vshll.u32 %v657, 16
        %v922 = vor.u32 %v919, %v920
        %v923 = vrot.slane %v919, 4
        %v925 = vshrl.u32 %v658, 16
        %v927 = vrot.slane %v925, 7
        %v928 = vshll.u32 %v658, 16
        %v930 = vor.u32 %v927, %v928
        %v931 = vsel %vm660, %v923, %v930
        %v932 = vrot.slane %v927, 4
        %s981 = scalar_lea.vmem [#allocation2], 12
        %vm982 = vcmask 1043456
        %vm983 = vmand %vm982, %vm332
        %v984 = vld [vmem:[%s981] sm:$0xf]
        %v985 = vsel %vm983, %v667, %v984
        %986 = vst [vmem:[%s981] sm:$0xf] %v985
        %987 = vst [vmem:[%s981 + $0x4] sm:$0xf] %v676
        %v988 = vld [vmem:[%s981 + $0x8] sm:$0x1]
        %v989 = vsel %vm277, %v677, %v988
        %990 = vst [vmem:[%s981 + $0x8] sm:$0x1] %v989
        %v991 = vld [vmem:[%s981 + $0xc] sm:$0xf]
        %v992 = vsel %vm983, %v684, %v991
        %993 = vst [vmem:[%s981 + $0xc] sm:$0xf] %v992
        %994 = vst [vmem:[%s981 + $0x10] sm:$0xf] %v693
        %v995 = vld [vmem:[%s981 + $0x14] sm:$0x1]
        %v996 = vsel %vm277, %v694, %v995
        %997 = vst [vmem:[%s981 + $0x14] sm:$0x1] %v996
        %v998 = vld [vmem:[%s981 + $0x18] sm:$0xf]
        %v999 = vsel %vm983, %v701, %v998
        %1000 = vst [vmem:[%s981 + $0x18] sm:$0xf] %v999
        %1001 = vst [vmem:[%s981 + $0x1c] sm:$0xf] %v710
        %v1002 = vld [vmem:[%s981 + $0x20] sm:$0x1]
        %v1003 = vsel %vm277, %v711, %v1002
        %1004 = vst [vmem:[%s981 + $0x20] sm:$0x1] %v1003
        %v1005 = vld [vmem:[%s981 + $0x24] sm:$0xf]
        %v1006 = vsel %vm983, %v718, %v1005
        %1007 = vst [vmem:[%s981 + $0x24] sm:$0xf] %v1006
        %1008 = vst [vmem:[%s981 + $0x28] sm:$0xf] %v727
        %v1009 = vld [vmem:[%s981 + $0x2c] sm:$0x1]
        %v1010 = vsel %vm277, %v728, %v1009
        %1011 = vst [vmem:[%s981 + $0x2c] sm:$0x1] %v1010
        %v1012 = vld [vmem:[%s981 + $0x30] sm:$0xf]
        %v1013 = vsel %vm983, %v735, %v1012
        %1014 = vst [vmem:[%s981 + $0x30] sm:$0xf] %v1013
        %1015 = vst [vmem:[%s981 + $0x34] sm:$0xf] %v744
        %v1016 = vld [vmem:[%s981 + $0x38] sm:$0x1]
        %v1017 = vsel %vm277, %v745, %v1016
        %1018 = vst [vmem:[%s981 + $0x38] sm:$0x1] %v1017
        %v1019 = vld [vmem:[%s981 + $0x3c] sm:$0xf]
        %v1020 = vsel %vm983, %v752, %v1019
        %1021 = vst [vmem:[%s981 + $0x3c] sm:$0xf] %v1020
        %1022 = vst [vmem:[%s981 + $0x40] sm:$0xf] %v761
        %v1023 = vld [vmem:[%s981 + $0x44] sm:$0x1]
        %v1024 = vsel %vm277, %v762, %v1023
        %1025 = vst [vmem:[%s981 + $0x44] sm:$0x1] %v1024
        %v1026 = vld [vmem:[%s981 + $0x48] sm:$0xf]
        %v1027 = vsel %vm983, %v769, %v1026
        %1028 = vst [vmem:[%s981 + $0x48] sm:$0xf] %v1027
        %1029 = vst [vmem:[%s981 + $0x4c] sm:$0xf] %v778
        %v1030 = vld [vmem:[%s981 + $0x50] sm:$0x1]
        %v1031 = vsel %vm277, %v779, %v1030
        %1032 = vst [vmem:[%s981 + $0x50] sm:$0x1] %v1031
        %v1033 = vld [vmem:[%s981 + $0x54] sm:$0xf]
        %v1034 = vsel %vm983, %v786, %v1033
        %1035 = vst [vmem:[%s981 + $0x54] sm:$0xf] %v1034
        %1036 = vst [vmem:[%s981 + $0x58] sm:$0xf] %v795
        %v1037 = vld [vmem:[%s981 + $0x5c] sm:$0x1]
        %v1038 = vsel %vm277, %v796, %v1037
        %1039 = vst [vmem:[%s981 + $0x5c] sm:$0x1] %v1038
        %v1040 = vld [vmem:[%s981 + $0x60] sm:$0xf]
        %v1041 = vsel %vm983, %v803, %v1040
        %1042 = vst [vmem:[%s981 + $0x60] sm:$0xf] %v1041
        %1043 = vst [vmem:[%s981 + $0x64] sm:$0xf] %v812
        %v1044 = vld [vmem:[%s981 + $0x68] sm:$0x1]
        %v1045 = vsel %vm277, %v813, %v1044
        %1046 = vst [vmem:[%s981 + $0x68] sm:$0x1] %v1045
        %v1047 = vld [vmem:[%s981 + $0x6c] sm:$0xf]
        %v1048 = vsel %vm983, %v820, %v1047
        %1049 = vst [vmem:[%s981 + $0x6c] sm:$0xf] %v1048
        %1050 = vst [vmem:[%s981 + $0x70] sm:$0xf] %v829
        %v1051 = vld [vmem:[%s981 + $0x74] sm:$0x1]
        %v1052 = vsel %vm277, %v830, %v1051
        %1053 = vst [vmem:[%s981 + $0x74] sm:$0x1] %v1052
        %v1054 = vld [vmem:[%s981 + $0x78] sm:$0xf]
        %v1055 = vsel %vm983, %v837, %v1054
        %1056 = vst [vmem:[%s981 + $0x78] sm:$0xf] %v1055
        %1057 = vst [vmem:[%s981 + $0x7c] sm:$0xf] %v846
        %v1058 = vld [vmem:[%s981 + $0x80] sm:$0x1]
        %v1059 = vsel %vm277, %v847, %v1058
        %1060 = vst [vmem:[%s981 + $0x80] sm:$0x1] %v1059
        %v1061 = vld [vmem:[%s981 + $0x84] sm:$0xf]
        %v1062 = vsel %vm983, %v854, %v1061
        %1063 = vst [vmem:[%s981 + $0x84] sm:$0xf] %v1062
        %1064 = vst [vmem:[%s981 + $0x88] sm:$0xf] %v863
        %v1065 = vld [vmem:[%s981 + $0x8c] sm:$0x1]
        %v1066 = vsel %vm277, %v864, %v1065
        %1067 = vst [vmem:[%s981 + $0x8c] sm:$0x1] %v1066
        %v1068 = vld [vmem:[%s981 + $0x90] sm:$0xf]
        %v1069 = vsel %vm983, %v871, %v1068
        %1070 = vst [vmem:[%s981 + $0x90] sm:$0xf] %v1069
        %1071 = vst [vmem:[%s981 + $0x94] sm:$0xf] %v880
        %v1072 = vld [vmem:[%s981 + $0x98] sm:$0x1]
        %v1073 = vsel %vm277, %v881, %v1072
        %1074 = vst [vmem:[%s981 + $0x98] sm:$0x1] %v1073
        %v1075 = vld [vmem:[%s981 + $0x9c] sm:$0xf]
        %v1076 = vsel %vm983, %v888, %v1075
        %1077 = vst [vmem:[%s981 + $0x9c] sm:$0xf] %v1076
        %1078 = vst [vmem:[%s981 + $0xa0] sm:$0xf] %v897
        %v1079 = vld [vmem:[%s981 + $0xa4] sm:$0x1]
        %v1080 = vsel %vm277, %v898, %v1079
        %1081 = vst [vmem:[%s981 + $0xa4] sm:$0x1] %v1080
        %v1082 = vld [vmem:[%s981 + $0xa8] sm:$0xf]
        %v1083 = vsel %vm983, %v905, %v1082
        %1084 = vst [vmem:[%s981 + $0xa8] sm:$0xf] %v1083
        %1085 = vst [vmem:[%s981 + $0xac] sm:$0xf] %v914
        %v1086 = vld [vmem:[%s981 + $0xb0] sm:$0x1]
        %v1087 = vsel %vm277, %v915, %v1086
        %1088 = vst [vmem:[%s981 + $0xb0] sm:$0x1] %v1087
        %v1089 = vld [vmem:[%s981 + $0xb4] sm:$0xf]
        %v1090 = vsel %vm983, %v922, %v1089
        %1091 = vst [vmem:[%s981 + $0xb4] sm:$0xf] %v1090
        %1092 = vst [vmem:[%s981 + $0xb8] sm:$0xf] %v931
        %v1093 = vld [vmem:[%s981 + $0xbc] sm:$0x1]
        %v1094 = vsel %vm277, %v932, %v1093
        %1095 = vst [vmem:[%s981 + $0xbc] sm:$0x1] %v1094
        %p1096 = scmp.eq.s32.totalorder %s28, 0
        // Predicated region
        $region53: #{tpu_custom_call.1} parent=35 // pred_check
          %p1097 = pneg %p1096
        $region54: #{tpu_custom_call.1} parent=35 // pred_check_branch
          %1099 = sbr.rel (%p1097) target = $region56
        $region55: #{tpu_custom_call.1} parent=35 // pred_region
          %v1100 = vld [vmem:[#allocation2] sm:$0xf]
          %v1101 = vsel %vm983, 0, %v1100
          %1102 = vst [vmem:[#allocation2] sm:$0xf] %v1101
          %1103 = vst [vmem:[#allocation2 + $0x4] sm:$0xf] 0
          %v1104 = vld [vmem:[#allocation2 + $0x8] sm:$0x1]
          %v1105 = vsel %vm277, 0, %v1104
          %1106 = vst [vmem:[#allocation2 + $0x8] sm:$0x1] %v1105
        $region56: #{tpu_custom_call.1} parent=35 // pred_fallthru
          _
        %p1107 = scmp.gt.s32.totalorder %s28, 0
        // Predicated region
        $region57: #{tpu_custom_call.1} parent=35 // pred_check
          %p1108 = pneg %p1107
        $region58: #{tpu_custom_call.1} parent=35 // pred_check_branch
          %1110 = sbr.rel (%p1108) target = $region60
        $region59: #{tpu_custom_call.1} parent=35 // pred_region
          %s1111 = ssub.s32 %s272, 1
          %s1112 = smul.u32 %s1111, 2
          %s1113 = smul.addr %s1112, 4
          %s1114 = scalar_lea.vmem %s233, %s1113 [#allocation4]
          %v1115 = vld [vmem:[%s1114] sm:$0xf]
          %v1116 = vld [vmem:[%s1114 + $0x4] sm:$0xf]
          %v1117 = vunpack.c.l.bf16 %v1115
          %v1118 = vunpack.c.l.bf16 %v1116
          %v1119 = vmul.f32 %v1117, %v459
          %v1120 = vmul.f32 %v1118, %v459
          %v1121 = vadd.f32 %v1119, %v497
          %v1122 = vadd.f32 %v1120, %v497
          %v1123 = vmax.f32 %v1121, 0.0
          %v1124 = vmax.f32 %v1122, 0.0
          %v1125 = vpack.c.bf16 %v1124, %v1123
          %v1127 = vunpack.c.l.b16 %v1125
          %v1128 = vunpack.c.h.b16 %v1125
          %v1129 = vpack.c.b16 %v1127, %v1127
          %v1130 = vpack.c.b16 %v1128, %v1128
          %v1132 = vshrl.u32 %v1129, 16
          %v1134 = vrot.slane %v1132, 7
          %v1135 = vshll.u32 %v1129, 16
          %v1137 = vor.u32 %v1134, %v1135
          %v1138 = vrot.slane %v1134, 4
          %v1140 = vshrl.u32 %v1130, 16
          %v1142 = vrot.slane %v1140, 7
          %v1143 = vshll.u32 %v1130, 16
          %v1145 = vor.u32 %v1142, %v1143
          %v1146 = vsel %vm660, %v1138, %v1145
          %v1147 = vrot.slane %v1142, 4
          %v1151 = vld [vmem:[#allocation2] sm:$0xf]
          %v1152 = vsel %vm983, %v1137, %v1151
          %1153 = vst [vmem:[#allocation2] sm:$0xf] %v1152
          %1154 = vst [vmem:[#allocation2 + $0x4] sm:$0xf] %v1146
          %v1155 = vld [vmem:[#allocation2 + $0x8] sm:$0x1]
          %v1156 = vsel %vm277, %v1147, %v1155
          %1157 = vst [vmem:[#allocation2 + $0x8] sm:$0x1] %v1156
        $region60: #{tpu_custom_call.1} parent=35 // pred_fallthru
          _
        // Predicated region
        $region61: #{tpu_custom_call.1} parent=35 // pred_check
          %p1158 = pneg %p1096
        $region62: #{tpu_custom_call.1} parent=35 // pred_check_branch
          %1160 = sbr.rel (%p1158) target = $region64
        $region63: #{tpu_custom_call.1} parent=35 // pred_region
          %s1161 = scalar_lea.vmem [#allocation2], 204
          %v1162 = vld [vmem:[%s1161] sm:$0xf]
          %v1163 = vsel %vm983, 0, %v1162
          %1164 = vst [vmem:[%s1161] sm:$0xf] %v1163
          %1165 = vst [vmem:[%s1161 + $0x4] sm:$0xf] 0
          %v1166 = vld [vmem:[%s1161 + $0x8] sm:$0x1]
          %v1167 = vsel %vm277, 0, %v1166
          %1168 = vst [vmem:[%s1161 + $0x8] sm:$0x1] %v1167
        $region64: #{tpu_custom_call.1} parent=35 // pred_fallthru
          _
        %p1169 = scmp.lt.s32.totalorder %s28, 0
        // Predicated region
        $region65: #{tpu_custom_call.1} parent=35 // pred_check
          %p1170 = pneg %p1169
        $region66: #{tpu_custom_call.1} parent=35 // pred_check_branch
          %1172 = sbr.rel (%p1170) target = $region68
        $region67: #{tpu_custom_call.1} parent=35 // pred_region
          %s1173 = sadd.s32 %s272, 16
          %s1174 = smul.u32 %s1173, 2
          %s1175 = smul.addr %s1174, 4
          %s1176 = scalar_lea.vmem %s233, %s1175 [#allocation4]
          %v1177 = vld [vmem:[%s1176] sm:$0xf]
          %v1178 = vld [vmem:[%s1176 + $0x4] sm:$0xf]
          %v1179 = vunpack.c.l.bf16 %v1177
          %v1180 = vunpack.c.l.bf16 %v1178
          %v1181 = vmul.f32 %v1179, %v459
          %v1182 = vmul.f32 %v1180, %v459
          %v1183 = vadd.f32 %v1181, %v497
          %v1184 = vadd.f32 %v1182, %v497
          %v1185 = vmax.f32 %v1183, 0.0
          %v1186 = vmax.f32 %v1184, 0.0
          %v1187 = vpack.c.bf16 %v1186, %v1185
          %v1189 = vunpack.c.l.b16 %v1187
          %v1190 = vunpack.c.h.b16 %v1187
          %v1191 = vpack.c.b16 %v1189, %v1189
          %v1192 = vpack.c.b16 %v1190, %v1190
          %v1194 = vshrl.u32 %v1191, 16
          %v1196 = vrot.slane %v1194, 7
          %v1197 = vshll.u32 %v1191, 16
          %v1199 = vor.u32 %v1196, %v1197
          %v1200 = vrot.slane %v1196, 4
          %v1202 = vshrl.u32 %v1192, 16
          %v1204 = vrot.slane %v1202, 7
          %v1205 = vshll.u32 %v1192, 16
          %v1207 = vor.u32 %v1204, %v1205
          %v1208 = vsel %vm660, %v1200, %v1207
          %v1209 = vrot.slane %v1204, 4
          %s1213 = scalar_lea.vmem [#allocation2], 204
          %v1214 = vld [vmem:[%s1213] sm:$0xf]
          %v1215 = vsel %vm983, %v1199, %v1214
          %1216 = vst [vmem:[%s1213] sm:$0xf] %v1215
          %1217 = vst [vmem:[%s1213 + $0x4] sm:$0xf] %v1208
          %v1218 = vld [vmem:[%s1213 + $0x8] sm:$0x1]
          %v1219 = vsel %vm277, %v1209, %v1218
          %1220 = vst [vmem:[%s1213 + $0x8] sm:$0x1] %v1219
        $region68: #{tpu_custom_call.1} parent=35 // pred_fallthru
          _
        %v1221 = vld [vmem:[#allocation2] sm:$0xf]
        %v1222 = vld [vmem:[#allocation2 + $0x4] sm:$0xf]
        %v1223 = vld [vmem:[#allocation2 + $0xc] sm:$0xf]
        %v1224 = vld [vmem:[#allocation2 + $0x10] sm:$0xf]
        %v1225 = vld [vmem:[#allocation2 + $0x18] sm:$0xf]
        %v1226 = vld [vmem:[#allocation2 + $0x1c] sm:$0xf]
        %v1227 = vld [vmem:[#allocation2 + $0x24] sm:$0xf]
        %v1228 = vld [vmem:[#allocation2 + $0x28] sm:$0xf]
        %v1229 = vld [vmem:[#allocation2 + $0x30] sm:$0xf]
        %v1230 = vld [vmem:[#allocation2 + $0x34] sm:$0xf]
        %v1231 = vld [vmem:[#allocation2 + $0x3c] sm:$0xf]
        %v1232 = vld [vmem:[#allocation2 + $0x40] sm:$0xf]
        %v1233 = vld [vmem:[#allocation2 + $0x48] sm:$0xf]
        %v1234 = vld [vmem:[#allocation2 + $0x4c] sm:$0xf]
        %v1235 = vld [vmem:[#allocation2 + $0x54] sm:$0xf]
        %v1236 = vld [vmem:[#allocation2 + $0x58] sm:$0xf]
        %v1237 = vld [vmem:[#allocation2 + $0x60] sm:$0xf]
        %v1238 = vld [vmem:[#allocation2 + $0x64] sm:$0xf]
        %v1239 = vld [vmem:[#allocation2 + $0x6c] sm:$0xf]
        %v1240 = vld [vmem:[#allocation2 + $0x70] sm:$0xf]
        %v1241 = vld [vmem:[#allocation2 + $0x78] sm:$0xf]
        %v1242 = vld [vmem:[#allocation2 + $0x7c] sm:$0xf]
        %v1243 = vld [vmem:[#allocation2 + $0x84] sm:$0xf]
        %v1244 = vld [vmem:[#allocation2 + $0x88] sm:$0xf]
        %v1245 = vld [vmem:[#allocation2 + $0x90] sm:$0xf]
        %v1246 = vld [vmem:[#allocation2 + $0x94] sm:$0xf]
        %v1247 = vld [vmem:[#allocation2 + $0x9c] sm:$0xf]
        %v1248 = vld [vmem:[#allocation2 + $0xa0] sm:$0xf]
        %v1249 = vld [vmem:[#allocation2 + $0xa8] sm:$0xf]
        %v1250 = vld [vmem:[#allocation2 + $0xac] sm:$0xf]
        %v1251 = vld [vmem:[#allocation2 + $0xb4] sm:$0xf]
        %v1252 = vld [vmem:[#allocation2 + $0xb8] sm:$0xf]
        %v1285 = vunpack.c.l.b16 %v1221
        %v1286 = vunpack.c.l.b16 %v1222
        %v1287 = vunpack.c.l.b16 %v1223
        %v1288 = vunpack.c.l.b16 %v1224
        %v1289 = vunpack.c.l.b16 %v1225
        %v1290 = vunpack.c.l.b16 %v1226
        %v1291 = vunpack.c.l.b16 %v1227
        %v1292 = vunpack.c.l.b16 %v1228
        %v1293 = vunpack.c.l.b16 %v1229
        %v1294 = vunpack.c.l.b16 %v1230
        %v1295 = vunpack.c.l.b16 %v1231
        %v1296 = vunpack.c.l.b16 %v1232
        %v1297 = vunpack.c.l.b16 %v1233
        %v1298 = vunpack.c.l.b16 %v1234
        %v1299 = vunpack.c.l.b16 %v1235
        %v1300 = vunpack.c.l.b16 %v1236
        %v1301 = vunpack.c.l.b16 %v1237
        %v1302 = vunpack.c.l.b16 %v1238
        %v1303 = vunpack.c.l.b16 %v1239
        %v1304 = vunpack.c.l.b16 %v1240
        %v1305 = vunpack.c.l.b16 %v1241
        %v1306 = vunpack.c.l.b16 %v1242
        %v1307 = vunpack.c.l.b16 %v1243
        %v1308 = vunpack.c.l.b16 %v1244
        %v1309 = vunpack.c.l.b16 %v1245
        %v1310 = vunpack.c.l.b16 %v1246
        %v1311 = vunpack.c.l.b16 %v1247
        %v1312 = vunpack.c.l.b16 %v1248
        %v1313 = vunpack.c.l.b16 %v1249
        %v1314 = vunpack.c.l.b16 %v1250
        %v1315 = vunpack.c.l.b16 %v1251
        %v1316 = vunpack.c.l.b16 %v1252
        %v1317 = vpack.c.b16 %v1286, %v1285
        %v1318 = vpack.c.b16 %v1288, %v1287
        %v1319 = vpack.c.b16 %v1290, %v1289
        %v1320 = vpack.c.b16 %v1292, %v1291
        %v1321 = vpack.c.b16 %v1294, %v1293
        %v1322 = vpack.c.b16 %v1296, %v1295
        %v1323 = vpack.c.b16 %v1298, %v1297
        %v1324 = vpack.c.b16 %v1300, %v1299
        %v1325 = vpack.c.b16 %v1302, %v1301
        %v1326 = vpack.c.b16 %v1304, %v1303
        %v1327 = vpack.c.b16 %v1306, %v1305
        %v1328 = vpack.c.b16 %v1308, %v1307
        %v1329 = vpack.c.b16 %v1310, %v1309
        %v1330 = vpack.c.b16 %v1312, %v1311
        %v1331 = vpack.c.b16 %v1314, %v1313
        %v1332 = vpack.c.b16 %v1316, %v1315
        %1349 = vst [vmem:[#allocation3] sm:$0xff] %v1317
        %1350 = vst [vmem:[#allocation3 + $0x48] sm:$0xff] %v1318
        %1351 = vst [vmem:[#allocation3 + $0x90] sm:$0xff] %v1319
        %1352 = vst [vmem:[#allocation3 + $0xd8] sm:$0xff] %v1320
        %1353 = vst [vmem:[#allocation3 + $0x120] sm:$0xff] %v1321
        %1354 = vst [vmem:[#allocation3 + $0x168] sm:$0xff] %v1322
        %1355 = vst [vmem:[#allocation3 + $0x1b0] sm:$0xff] %v1323
        %1356 = vst [vmem:[#allocation3 + $0x1f8] sm:$0xff] %v1324
        %1357 = vst [vmem:[#allocation3 + $0x240] sm:$0xff] %v1325
        %1358 = vst [vmem:[#allocation3 + $0x288] sm:$0xff] %v1326
        %1359 = vst [vmem:[#allocation3 + $0x2d0] sm:$0xff] %v1327
        %1360 = vst [vmem:[#allocation3 + $0x318] sm:$0xff] %v1328
        %1361 = vst [vmem:[#allocation3 + $0x360] sm:$0xff] %v1329
        %1362 = vst [vmem:[#allocation3 + $0x3a8] sm:$0xff] %v1330
        %1363 = vst [vmem:[#allocation3 + $0x3f0] sm:$0xff] %v1331
        %1364 = vst [vmem:[#allocation3 + $0x438] sm:$0xff] %v1332
        %v1365 = vld [vmem:[#allocation2] sm:$0xf]
        %v1366 = vld [vmem:[#allocation2 + $0x4] sm:$0xf]
        %v1367 = vld [vmem:[#allocation2 + $0x8] sm:$0x1]
        %v1368 = vld [vmem:[#allocation2 + $0xc] sm:$0xf]
        %v1369 = vld [vmem:[#allocation2 + $0x10] sm:$0xf]
        %v1370 = vld [vmem:[#allocation2 + $0x14] sm:$0x1]
        %v1371 = vld [vmem:[#allocation2 + $0x18] sm:$0xf]
        %v1372 = vld [vmem:[#allocation2 + $0x1c] sm:$0xf]
        %v1373 = vld [vmem:[#allocation2 + $0x20] sm:$0x1]
        %v1374 = vld [vmem:[#allocation2 + $0x24] sm:$0xf]
        %v1375 = vld [vmem:[#allocation2 + $0x28] sm:$0xf]
        %v1376 = vld [vmem:[#allocation2 + $0x2c] sm:$0x1]
        %v1377 = vld [vmem:[#allocation2 + $0x30] sm:$0xf]
        %v1378 = vld [vmem:[#allocation2 + $0x34] sm:$0xf]
        %v1379 = vld [vmem:[#allocation2 + $0x38] sm:$0x1]
        %v1380 = vld [vmem:[#allocation2 + $0x3c] sm:$0xf]
        %v1381 = vld [vmem:[#allocation2 + $0x40] sm:$0xf]
        %v1382 = vld [vmem:[#allocation2 + $0x44] sm:$0x1]
        %v1383 = vld [vmem:[#allocation2 + $0x48] sm:$0xf]
        %v1384 = vld [vmem:[#allocation2 + $0x4c] sm:$0xf]
        %v1385 = vld [vmem:[#allocation2 + $0x50] sm:$0x1]
        %v1386 = vld [vmem:[#allocation2 + $0x54] sm:$0xf]
        %v1387 = vld [vmem:[#allocation2 + $0x58] sm:$0xf]
        %v1388 = vld [vmem:[#allocation2 + $0x5c] sm:$0x1]
        %v1389 = vld [vmem:[#allocation2 + $0x60] sm:$0xf]
        %v1390 = vld [vmem:[#allocation2 + $0x64] sm:$0xf]
        %v1391 = vld [vmem:[#allocation2 + $0x68] sm:$0x1]
        %v1392 = vld [vmem:[#allocation2 + $0x6c] sm:$0xf]
        %v1393 = vld [vmem:[#allocation2 + $0x70] sm:$0xf]
        %v1394 = vld [vmem:[#allocation2 + $0x74] sm:$0x1]
        %v1395 = vld [vmem:[#allocation2 + $0x78] sm:$0xf]
        %v1396 = vld [vmem:[#allocation2 + $0x7c] sm:$0xf]
        %v1397 = vld [vmem:[#allocation2 + $0x80] sm:$0x1]
        %v1398 = vld [vmem:[#allocation2 + $0x84] sm:$0xf]
        %v1399 = vld [vmem:[#allocation2 + $0x88] sm:$0xf]
        %v1400 = vld [vmem:[#allocation2 + $0x8c] sm:$0x1]
        %v1401 = vld [vmem:[#allocation2 + $0x90] sm:$0xf]
        %v1402 = vld [vmem:[#allocation2 + $0x94] sm:$0xf]
        %v1403 = vld [vmem:[#allocation2 + $0x98] sm:$0x1]
        %v1404 = vld [vmem:[#allocation2 + $0x9c] sm:$0xf]
        %v1405 = vld [vmem:[#allocation2 + $0xa0] sm:$0xf]
        %v1406 = vld [vmem:[#allocation2 + $0xa4] sm:$0x1]
        %v1407 = vld [vmem:[#allocation2 + $0xa8] sm:$0xf]
        %v1408 = vld [vmem:[#allocation2 + $0xac] sm:$0xf]
        %v1409 = vld [vmem:[#allocation2 + $0xb0] sm:$0x1]
        %v1410 = vld [vmem:[#allocation2 + $0xb4] sm:$0xf]
        %v1411 = vld [vmem:[#allocation2 + $0xb8] sm:$0xf]
        %v1412 = vld [vmem:[#allocation2 + $0xbc] sm:$0x1]
        %v1461 = vunpack.c.l.b16 %v1365
        %v1462 = vunpack.c.l.b16 %v1366
        %v1463 = vunpack.c.l.b16 %v1367
        %v1464 = vunpack.c.l.b16 %v1368
        %v1465 = vunpack.c.l.b16 %v1369
        %v1466 = vunpack.c.l.b16 %v1370
        %v1467 = vunpack.c.l.b16 %v1371
        %v1468 = vunpack.c.l.b16 %v1372
        %v1469 = vunpack.c.l.b16 %v1373
        %v1470 = vunpack.c.l.b16 %v1374
        %v1471 = vunpack.c.l.b16 %v1375
        %v1472 = vunpack.c.l.b16 %v1376
        %v1473 = vunpack.c.l.b16 %v1377
        %v1474 = vunpack.c.l.b16 %v1378
        %v1475 = vunpack.c.l.b16 %v1379
        %v1476 = vunpack.c.l.b16 %v1380
        %v1477 = vunpack.c.l.b16 %v1381
        %v1478 = vunpack.c.l.b16 %v1382
        %v1479 = vunpack.c.l.b16 %v1383
        %v1480 = vunpack.c.l.b16 %v1384
        %v1481 = vunpack.c.l.b16 %v1385
        %v1482 = vunpack.c.l.b16 %v1386
        %v1483 = vunpack.c.l.b16 %v1387
        %v1484 = vunpack.c.l.b16 %v1388
        %v1485 = vunpack.c.l.b16 %v1389
        %v1486 = vunpack.c.l.b16 %v1390
        %v1487 = vunpack.c.l.b16 %v1391
        %v1488 = vunpack.c.l.b16 %v1392
        %v1489 = vunpack.c.l.b16 %v1393
        %v1490 = vunpack.c.l.b16 %v1394
        %v1491 = vunpack.c.l.b16 %v1395
        %v1492 = vunpack.c.l.b16 %v1396
        %v1493 = vunpack.c.l.b16 %v1397
        %v1494 = vunpack.c.l.b16 %v1398
        %v1495 = vunpack.c.l.b16 %v1399
        %v1496 = vunpack.c.l.b16 %v1400
        %v1497 = vunpack.c.l.b16 %v1401
        %v1498 = vunpack.c.l.b16 %v1402
        %v1499 = vunpack.c.l.b16 %v1403
        %v1500 = vunpack.c.l.b16 %v1404
        %v1501 = vunpack.c.l.b16 %v1405
        %v1502 = vunpack.c.l.b16 %v1406
        %v1503 = vunpack.c.l.b16 %v1407
        %v1504 = vunpack.c.l.b16 %v1408
        %v1505 = vunpack.c.l.b16 %v1409
        %v1506 = vunpack.c.l.b16 %v1410
        %v1507 = vunpack.c.l.b16 %v1411
        %v1508 = vunpack.c.l.b16 %v1412
        %v1509 = vpack.c.b16 %v1462, %v1461
        %v1510 = vpack.c.b16 %v1463, %v1463
        %v1511 = vpack.c.b16 %v1465, %v1464
        %v1512 = vpack.c.b16 %v1466, %v1466
        %v1513 = vpack.c.b16 %v1468, %v1467
        %v1514 = vpack.c.b16 %v1469, %v1469
        %v1515 = vpack.c.b16 %v1471, %v1470
        %v1516 = vpack.c.b16 %v1472, %v1472
        %v1517 = vpack.c.b16 %v1474, %v1473
        %v1518 = vpack.c.b16 %v1475, %v1475
        %v1519 = vpack.c.b16 %v1477, %v1476
        %v1520 = vpack.c.b16 %v1478, %v1478
        %v1521 = vpack.c.b16 %v1480, %v1479
        %v1522 = vpack.c.b16 %v1481, %v1481
        %v1523 = vpack.c.b16 %v1483, %v1482
        %v1524 = vpack.c.b16 %v1484, %v1484
        %v1525 = vpack.c.b16 %v1486, %v1485
        %v1526 = vpack.c.b16 %v1487, %v1487
        %v1527 = vpack.c.b16 %v1489, %v1488
        %v1528 = vpack.c.b16 %v1490, %v1490
        %v1529 = vpack.c.b16 %v1492, %v1491
        %v1530 = vpack.c.b16 %v1493, %v1493
        %v1531 = vpack.c.b16 %v1495, %v1494
        %v1532 = vpack.c.b16 %v1496, %v1496
        %v1533 = vpack.c.b16 %v1498, %v1497
        %v1534 = vpack.c.b16 %v1499, %v1499
        %v1535 = vpack.c.b16 %v1501, %v1500
        %v1536 = vpack.c.b16 %v1502, %v1502
        %v1537 = vpack.c.b16 %v1504, %v1503
        %v1538 = vpack.c.b16 %v1505, %v1505
        %v1539 = vpack.c.b16 %v1507, %v1506
        %v1540 = vpack.c.b16 %v1508, %v1508
        %vm1541 = vsmask.f32 7424
        %v1543 = vshrl.u32 %v1509, 16
        %v1545 = vshll.u32 %v1509, 16
        %v1547 = vrot.slane %v1545, 1
        %v1548 = vor.u32 %v1543, %v1547
        %v1550 = vshll.u32 %v1510, 16
        %v1552 = vrot.slane %v1550, 1
        %v1553 = vsel %vm1541, %v1548, %v1552
        %v1555 = vshrl.u32 %v1511, 16
        %v1557 = vshll.u32 %v1511, 16
        %v1559 = vrot.slane %v1557, 1
        %v1560 = vor.u32 %v1555, %v1559
        %v1562 = vshll.u32 %v1512, 16
        %v1564 = vrot.slane %v1562, 1
        %v1565 = vsel %vm1541, %v1560, %v1564
        %v1567 = vshrl.u32 %v1513, 16
        %v1569 = vshll.u32 %v1513, 16
        %v1571 = vrot.slane %v1569, 1
        %v1572 = vor.u32 %v1567, %v1571
        %v1574 = vshll.u32 %v1514, 16
        %v1576 = vrot.slane %v1574, 1
        %v1577 = vsel %vm1541, %v1572, %v1576
        %v1579 = vshrl.u32 %v1515, 16
        %v1581 = vshll.u32 %v1515, 16
        %v1583 = vrot.slane %v1581, 1
        %v1584 = vor.u32 %v1579, %v1583
        %v1586 = vshll.u32 %v1516, 16
        %v1588 = vrot.slane %v1586, 1
        %v1589 = vsel %vm1541, %v1584, %v1588
        %v1591 = vshrl.u32 %v1517, 16
        %v1593 = vshll.u32 %v1517, 16
        %v1595 = vrot.slane %v1593, 1
        %v1596 = vor.u32 %v1591, %v1595
        %v1598 = vshll.u32 %v1518, 16
        %v1600 = vrot.slane %v1598, 1
        %v1601 = vsel %vm1541, %v1596, %v1600
        %v1603 = vshrl.u32 %v1519, 16
        %v1605 = vshll.u32 %v1519, 16
        %v1607 = vrot.slane %v1605, 1
        %v1608 = vor.u32 %v1603, %v1607
        %v1610 = vshll.u32 %v1520, 16
        %v1612 = vrot.slane %v1610, 1
        %v1613 = vsel %vm1541, %v1608, %v1612
        %v1615 = vshrl.u32 %v1521, 16
        %v1617 = vshll.u32 %v1521, 16
        %v1619 = vrot.slane %v1617, 1
        %v1620 = vor.u32 %v1615, %v1619
        %v1622 = vshll.u32 %v1522, 16
        %v1624 = vrot.slane %v1622, 1
        %v1625 = vsel %vm1541, %v1620, %v1624
        %v1627 = vshrl.u32 %v1523, 16
        %v1629 = vshll.u32 %v1523, 16
        %v1631 = vrot.slane %v1629, 1
        %v1632 = vor.u32 %v1627, %v1631
        %v1634 = vshll.u32 %v1524, 16
        %v1636 = vrot.slane %v1634, 1
        %v1637 = vsel %vm1541, %v1632, %v1636
        %v1639 = vshrl.u32 %v1525, 16
        %v1641 = vshll.u32 %v1525, 16
        %v1643 = vrot.slane %v1641, 1
        %v1644 = vor.u32 %v1639, %v1643
        %v1646 = vshll.u32 %v1526, 16
        %v1648 = vrot.slane %v1646, 1
        %v1649 = vsel %vm1541, %v1644, %v1648
        %v1651 = vshrl.u32 %v1527, 16
        %v1653 = vshll.u32 %v1527, 16
        %v1655 = vrot.slane %v1653, 1
        %v1656 = vor.u32 %v1651, %v1655
        %v1658 = vshll.u32 %v1528, 16
        %v1660 = vrot.slane %v1658, 1
        %v1661 = vsel %vm1541, %v1656, %v1660
        %v1663 = vshrl.u32 %v1529, 16
        %v1665 = vshll.u32 %v1529, 16
        %v1667 = vrot.slane %v1665, 1
        %v1668 = vor.u32 %v1663, %v1667
        %v1670 = vshll.u32 %v1530, 16
        %v1672 = vrot.slane %v1670, 1
        %v1673 = vsel %vm1541, %v1668, %v1672
        %v1675 = vshrl.u32 %v1531, 16
        %v1677 = vshll.u32 %v1531, 16
        %v1679 = vrot.slane %v1677, 1
        %v1680 = vor.u32 %v1675, %v1679
        %v1682 = vshll.u32 %v1532, 16
        %v1684 = vrot.slane %v1682, 1
        %v1685 = vsel %vm1541, %v1680, %v1684
        %v1687 = vshrl.u32 %v1533, 16
        %v1689 = vshll.u32 %v1533, 16
        %v1691 = vrot.slane %v1689, 1
        %v1692 = vor.u32 %v1687, %v1691
        %v1694 = vshll.u32 %v1534, 16
        %v1696 = vrot.slane %v1694, 1
        %v1697 = vsel %vm1541, %v1692, %v1696
        %v1699 = vshrl.u32 %v1535, 16
        %v1701 = vshll.u32 %v1535, 16
        %v1703 = vrot.slane %v1701, 1
        %v1704 = vor.u32 %v1699, %v1703
        %v1706 = vshll.u32 %v1536, 16
        %v1708 = vrot.slane %v1706, 1
        %v1709 = vsel %vm1541, %v1704, %v1708
        %v1711 = vshrl.u32 %v1537, 16
        %v1713 = vshll.u32 %v1537, 16
        %v1715 = vrot.slane %v1713, 1
        %v1716 = vor.u32 %v1711, %v1715
        %v1718 = vshll.u32 %v1538, 16
        %v1720 = vrot.slane %v1718, 1
        %v1721 = vsel %vm1541, %v1716, %v1720
        %v1723 = vshrl.u32 %v1539, 16
        %v1725 = vshll.u32 %v1539, 16
        %v1727 = vrot.slane %v1725, 1
        %v1728 = vor.u32 %v1723, %v1727
        %v1730 = vshll.u32 %v1540, 16
        %v1732 = vrot.slane %v1730, 1
        %v1733 = vsel %vm1541, %v1728, %v1732
        %1750 = vst [vmem:[#allocation3 + $0x8] sm:$0xff] %v1553
        %1751 = vst [vmem:[#allocation3 + $0x50] sm:$0xff] %v1565
        %1752 = vst [vmem:[#allocation3 + $0x98] sm:$0xff] %v1577
        %1753 = vst [vmem:[#allocation3 + $0xe0] sm:$0xff] %v1589
        %1754 = vst [vmem:[#allocation3 + $0x128] sm:$0xff] %v1601
        %1755 = vst [vmem:[#allocation3 + $0x170] sm:$0xff] %v1613
        %1756 = vst [vmem:[#allocation3 + $0x1b8] sm:$0xff] %v1625
        %1757 = vst [vmem:[#allocation3 + $0x200] sm:$0xff] %v1637
        %1758 = vst [vmem:[#allocation3 + $0x248] sm:$0xff] %v1649
        %1759 = vst [vmem:[#allocation3 + $0x290] sm:$0xff] %v1661
        %1760 = vst [vmem:[#allocation3 + $0x2d8] sm:$0xff] %v1673
        %1761 = vst [vmem:[#allocation3 + $0x320] sm:$0xff] %v1685
        %1762 = vst [vmem:[#allocation3 + $0x368] sm:$0xff] %v1697
        %1763 = vst [vmem:[#allocation3 + $0x3b0] sm:$0xff] %v1709
        %1764 = vst [vmem:[#allocation3 + $0x3f8] sm:$0xff] %v1721
        %1765 = vst [vmem:[#allocation3 + $0x440] sm:$0xff] %v1733
        %v1766 = vld [vmem:[#allocation2] sm:$0xe]
        %v1767 = vld [vmem:[#allocation2 + $0x4] sm:$0xf]
        %v1768 = vld [vmem:[#allocation2 + $0x8] sm:$0x1]
        %v1769 = vld [vmem:[#allocation2 + $0xc] sm:$0xe]
        %v1770 = vld [vmem:[#allocation2 + $0x10] sm:$0xf]
        %v1771 = vld [vmem:[#allocation2 + $0x14] sm:$0x1]
        %v1772 = vld [vmem:[#allocation2 + $0x18] sm:$0xe]
        %v1773 = vld [vmem:[#allocation2 + $0x1c] sm:$0xf]
        %v1774 = vld [vmem:[#allocation2 + $0x20] sm:$0x1]
        %v1775 = vld [vmem:[#allocation2 + $0x24] sm:$0xe]
        %v1776 = vld [vmem:[#allocation2 + $0x28] sm:$0xf]
        %v1777 = vld [vmem:[#allocation2 + $0x2c] sm:$0x1]
        %v1778 = vld [vmem:[#allocation2 + $0x30] sm:$0xe]
        %v1779 = vld [vmem:[#allocation2 + $0x34] sm:$0xf]
        %v1780 = vld [vmem:[#allocation2 + $0x38] sm:$0x1]
        %v1781 = vld [vmem:[#allocation2 + $0x3c] sm:$0xe]
        %v1782 = vld [vmem:[#allocation2 + $0x40] sm:$0xf]
        %v1783 = vld [vmem:[#allocation2 + $0x44] sm:$0x1]
        %v1784 = vld [vmem:[#allocation2 + $0x48] sm:$0xe]
        %v1785 = vld [vmem:[#allocation2 + $0x4c] sm:$0xf]
        %v1786 = vld [vmem:[#allocation2 + $0x50] sm:$0x1]
        %v1787 = vld [vmem:[#allocation2 + $0x54] sm:$0xe]
        %v1788 = vld [vmem:[#allocation2 + $0x58] sm:$0xf]
        %v1789 = vld [vmem:[#allocation2 + $0x5c] sm:$0x1]
        %v1790 = vld [vmem:[#allocation2 + $0x60] sm:$0xe]
        %v1791 = vld [vmem:[#allocation2 + $0x64] sm:$0xf]
        %v1792 = vld [vmem:[#allocation2 + $0x68] sm:$0x1]
        %v1793 = vld [vmem:[#allocation2 + $0x6c] sm:$0xe]
        %v1794 = vld [vmem:[#allocation2 + $0x70] sm:$0xf]
        %v1795 = vld [vmem:[#allocation2 + $0x74] sm:$0x1]
        %v1796 = vld [vmem:[#allocation2 + $0x78] sm:$0xe]
        %v1797 = vld [vmem:[#allocation2 + $0x7c] sm:$0xf]
        %v1798 = vld [vmem:[#allocation2 + $0x80] sm:$0x1]
        %v1799 = vld [vmem:[#allocation2 + $0x84] sm:$0xe]
        %v1800 = vld [vmem:[#allocation2 + $0x88] sm:$0xf]
        %v1801 = vld [vmem:[#allocation2 + $0x8c] sm:$0x1]
        %v1802 = vld [vmem:[#allocation2 + $0x90] sm:$0xe]
        %v1803 = vld [vmem:[#allocation2 + $0x94] sm:$0xf]
        %v1804 = vld [vmem:[#allocation2 + $0x98] sm:$0x1]
        %v1805 = vld [vmem:[#allocation2 + $0x9c] sm:$0xe]
        %v1806 = vld [vmem:[#allocation2 + $0xa0] sm:$0xf]
        %v1807 = vld [vmem:[#allocation2 + $0xa4] sm:$0x1]
        %v1808 = vld [vmem:[#allocation2 + $0xa8] sm:$0xe]
        %v1809 = vld [vmem:[#allocation2 + $0xac] sm:$0xf]
        %v1810 = vld [vmem:[#allocation2 + $0xb0] sm:$0x1]
        %v1811 = vld [vmem:[#allocation2 + $0xb4] sm:$0xe]
        %v1812 = vld [vmem:[#allocation2 + $0xb8] sm:$0xf]
        %v1813 = vld [vmem:[#allocation2 + $0xbc] sm:$0x1]
        %v1862 = vunpack.c.l.b16 %v1766
        %v1863 = vunpack.c.l.b16 %v1767
        %v1864 = vunpack.c.l.b16 %v1768
        %v1865 = vunpack.c.l.b16 %v1769
        %v1866 = vunpack.c.l.b16 %v1770
        %v1867 = vunpack.c.l.b16 %v1771
        %v1868 = vunpack.c.l.b16 %v1772
        %v1869 = vunpack.c.l.b16 %v1773
        %v1870 = vunpack.c.l.b16 %v1774
        %v1871 = vunpack.c.l.b16 %v1775
        %v1872 = vunpack.c.l.b16 %v1776
        %v1873 = vunpack.c.l.b16 %v1777
        %v1874 = vunpack.c.l.b16 %v1778
        %v1875 = vunpack.c.l.b16 %v1779
        %v1876 = vunpack.c.l.b16 %v1780
        %v1877 = vunpack.c.l.b16 %v1781
        %v1878 = vunpack.c.l.b16 %v1782
        %v1879 = vunpack.c.l.b16 %v1783
        %v1880 = vunpack.c.l.b16 %v1784
        %v1881 = vunpack.c.l.b16 %v1785
        %v1882 = vunpack.c.l.b16 %v1786
        %v1883 = vunpack.c.l.b16 %v1787
        %v1884 = vunpack.c.l.b16 %v1788
        %v1885 = vunpack.c.l.b16 %v1789
        %v1886 = vunpack.c.l.b16 %v1790
        %v1887 = vunpack.c.l.b16 %v1791
        %v1888 = vunpack.c.l.b16 %v1792
        %v1889 = vunpack.c.l.b16 %v1793
        %v1890 = vunpack.c.l.b16 %v1794
        %v1891 = vunpack.c.l.b16 %v1795
        %v1892 = vunpack.c.l.b16 %v1796
        %v1893 = vunpack.c.l.b16 %v1797
        %v1894 = vunpack.c.l.b16 %v1798
        %v1895 = vunpack.c.l.b16 %v1799
        %v1896 = vunpack.c.l.b16 %v1800
        %v1897 = vunpack.c.l.b16 %v1801
        %v1898 = vunpack.c.l.b16 %v1802
        %v1899 = vunpack.c.l.b16 %v1803
        %v1900 = vunpack.c.l.b16 %v1804
        %v1901 = vunpack.c.l.b16 %v1805
        %v1902 = vunpack.c.l.b16 %v1806
        %v1903 = vunpack.c.l.b16 %v1807
        %v1904 = vunpack.c.l.b16 %v1808
        %v1905 = vunpack.c.l.b16 %v1809
        %v1906 = vunpack.c.l.b16 %v1810
        %v1907 = vunpack.c.l.b16 %v1811
        %v1908 = vunpack.c.l.b16 %v1812
        %v1909 = vunpack.c.l.b16 %v1813
        %v1910 = vpack.c.b16 %v1863, %v1862
        %v1911 = vpack.c.b16 %v1864, %v1864
        %v1912 = vpack.c.b16 %v1866, %v1865
        %v1913 = vpack.c.b16 %v1867, %v1867
        %v1914 = vpack.c.b16 %v1869, %v1868
        %v1915 = vpack.c.b16 %v1870, %v1870
        %v1916 = vpack.c.b16 %v1872, %v1871
        %v1917 = vpack.c.b16 %v1873, %v1873
        %v1918 = vpack.c.b16 %v1875, %v1874
        %v1919 = vpack.c.b16 %v1876, %v1876
        %v1920 = vpack.c.b16 %v1878, %v1877
        %v1921 = vpack.c.b16 %v1879, %v1879
        %v1922 = vpack.c.b16 %v1881, %v1880
        %v1923 = vpack.c.b16 %v1882, %v1882
        %v1924 = vpack.c.b16 %v1884, %v1883
        %v1925 = vpack.c.b16 %v1885, %v1885
        %v1926 = vpack.c.b16 %v1887, %v1886
        %v1927 = vpack.c.b16 %v1888, %v1888
        %v1928 = vpack.c.b16 %v1890, %v1889
        %v1929 = vpack.c.b16 %v1891, %v1891
        %v1930 = vpack.c.b16 %v1893, %v1892
        %v1931 = vpack.c.b16 %v1894, %v1894
        %v1932 = vpack.c.b16 %v1896, %v1895
        %v1933 = vpack.c.b16 %v1897, %v1897
        %v1934 = vpack.c.b16 %v1899, %v1898
        %v1935 = vpack.c.b16 %v1900, %v1900
        %v1936 = vpack.c.b16 %v1902, %v1901
        %v1937 = vpack.c.b16 %v1903, %v1903
        %v1938 = vpack.c.b16 %v1905, %v1904
        %v1939 = vpack.c.b16 %v1906, %v1906
        %v1940 = vpack.c.b16 %v1908, %v1907
        %v1941 = vpack.c.b16 %v1909, %v1909
        %vm1942 = vcmask 1046528
        %v1943 = vrot.slane %v1910, 1
        %v1944 = vrot.slane %v1911, 1
        %v1945 = vsel %vm1942, %v1943, %v1944
        %v1946 = vrot.slane %v1912, 1
        %v1947 = vrot.slane %v1913, 1
        %v1948 = vsel %vm1942, %v1946, %v1947
        %v1949 = vrot.slane %v1914, 1
        %v1950 = vrot.slane %v1915, 1
        %v1951 = vsel %vm1942, %v1949, %v1950
        %v1952 = vrot.slane %v1916, 1
        %v1953 = vrot.slane %v1917, 1
        %v1954 = vsel %vm1942, %v1952, %v1953
        %v1955 = vrot.slane %v1918, 1
        %v1956 = vrot.slane %v1919, 1
        %v1957 = vsel %vm1942, %v1955, %v1956
        %v1958 = vrot.slane %v1920, 1
        %v1959 = vrot.slane %v1921, 1
        %v1960 = vsel %vm1942, %v1958, %v1959
        %v1961 = vrot.slane %v1922, 1
        %v1962 = vrot.slane %v1923, 1
        %v1963 = vsel %vm1942, %v1961, %v1962
        %v1964 = vrot.slane %v1924, 1
        %v1965 = vrot.slane %v1925, 1
        %v1966 = vsel %vm1942, %v1964, %v1965
        %v1967 = vrot.slane %v1926, 1
        %v1968 = vrot.slane %v1927, 1
        %v1969 = vsel %vm1942, %v1967, %v1968
        %v1970 = vrot.slane %v1928, 1
        %v1971 = vrot.slane %v1929, 1
        %v1972 = vsel %vm1942, %v1970, %v1971
        %v1973 = vrot.slane %v1930, 1
        %v1974 = vrot.slane %v1931, 1
        %v1975 = vsel %vm1942, %v1973, %v1974
        %v1976 = vrot.slane %v1932, 1
        %v1977 = vrot.slane %v1933, 1
        %v1978 = vsel %vm1942, %v1976, %v1977
        %v1979 = vrot.slane %v1934, 1
        %v1980 = vrot.slane %v1935, 1
        %v1981 = vsel %vm1942, %v1979, %v1980
        %v1982 = vrot.slane %v1936, 1
        %v1983 = vrot.slane %v1937, 1
        %v1984 = vsel %vm1942, %v1982, %v1983
        %v1985 = vrot.slane %v1938, 1
        %v1986 = vrot.slane %v1939, 1
        %v1987 = vsel %vm1942, %v1985, %v1986
        %v1988 = vrot.slane %v1940, 1
        %v1989 = vrot.slane %v1941, 1
        %v1990 = vsel %vm1942, %v1988, %v1989
        %2007 = vst [vmem:[#allocation3 + $0x10] sm:$0xff] %v1945
        %2008 = vst [vmem:[#allocation3 + $0x58] sm:$0xff] %v1948
        %2009 = vst [vmem:[#allocation3 + $0xa0] sm:$0xff] %v1951
        %2010 = vst [vmem:[#allocation3 + $0xe8] sm:$0xff] %v1954
        %2011 = vst [vmem:[#allocation3 + $0x130] sm:$0xff] %v1957
        %2012 = vst [vmem:[#allocation3 + $0x178] sm:$0xff] %v1960
        %2013 = vst [vmem:[#allocation3 + $0x1c0] sm:$0xff] %v1963
        %2014 = vst [vmem:[#allocation3 + $0x208] sm:$0xff] %v1966
        %2015 = vst [vmem:[#allocation3 + $0x250] sm:$0xff] %v1969
        %2016 = vst [vmem:[#allocation3 + $0x298] sm:$0xff] %v1972
        %2017 = vst [vmem:[#allocation3 + $0x2e0] sm:$0xff] %v1975
        %2018 = vst [vmem:[#allocation3 + $0x328] sm:$0xff] %v1978
        %2019 = vst [vmem:[#allocation3 + $0x370] sm:$0xff] %v1981
        %2020 = vst [vmem:[#allocation3 + $0x3b8] sm:$0xff] %v1984
        %2021 = vst [vmem:[#allocation3 + $0x400] sm:$0xff] %v1987
        %2022 = vst [vmem:[#allocation3 + $0x448] sm:$0xff] %v1990
        %v2023 = vld [vmem:[%s981] sm:$0xf]
        %v2024 = vld [vmem:[%s981 + $0x4] sm:$0xf]
        %v2025 = vld [vmem:[%s981 + $0xc] sm:$0xf]
        %v2026 = vld [vmem:[%s981 + $0x10] sm:$0xf]
        %v2027 = vld [vmem:[%s981 + $0x18] sm:$0xf]
        %v2028 = vld [vmem:[%s981 + $0x1c] sm:$0xf]
        %v2029 = vld [vmem:[%s981 + $0x24] sm:$0xf]
        %v2030 = vld [vmem:[%s981 + $0x28] sm:$0xf]
        %v2031 = vld [vmem:[%s981 + $0x30] sm:$0xf]
        %v2032 = vld [vmem:[%s981 + $0x34] sm:$0xf]
        %v2033 = vld [vmem:[%s981 + $0x3c] sm:$0xf]
        %v2034 = vld [vmem:[%s981 + $0x40] sm:$0xf]
        %v2035 = vld [vmem:[%s981 + $0x48] sm:$0xf]
        %v2036 = vld [vmem:[%s981 + $0x4c] sm:$0xf]
        %v2037 = vld [vmem:[%s981 + $0x54] sm:$0xf]
        %v2038 = vld [vmem:[%s981 + $0x58] sm:$0xf]
        %v2039 = vld [vmem:[%s981 + $0x60] sm:$0xf]
        %v2040 = vld [vmem:[%s981 + $0x64] sm:$0xf]
        %v2041 = vld [vmem:[%s981 + $0x6c] sm:$0xf]
        %v2042 = vld [vmem:[%s981 + $0x70] sm:$0xf]
        %v2043 = vld [vmem:[%s981 + $0x78] sm:$0xf]
        %v2044 = vld [vmem:[%s981 + $0x7c] sm:$0xf]
        %v2045 = vld [vmem:[%s981 + $0x84] sm:$0xf]
        %v2046 = vld [vmem:[%s981 + $0x88] sm:$0xf]
        %v2047 = vld [vmem:[%s981 + $0x90] sm:$0xf]
        %v2048 = vld [vmem:[%s981 + $0x94] sm:$0xf]
        %v2049 = vld [vmem:[%s981 + $0x9c] sm:$0xf]
        %v2050 = vld [vmem:[%s981 + $0xa0] sm:$0xf]
        %v2051 = vld [vmem:[%s981 + $0xa8] sm:$0xf]
        %v2052 = vld [vmem:[%s981 + $0xac] sm:$0xf]
        %v2053 = vld [vmem:[%s981 + $0xb4] sm:$0xf]
        %v2054 = vld [vmem:[%s981 + $0xb8] sm:$0xf]
        %v2087 = vunpack.c.l.b16 %v2023
        %v2088 = vunpack.c.l.b16 %v2024
        %v2089 = vunpack.c.l.b16 %v2025
        %v2090 = vunpack.c.l.b16 %v2026
        %v2091 = vunpack.c.l.b16 %v2027
        %v2092 = vunpack.c.l.b16 %v2028
        %v2093 = vunpack.c.l.b16 %v2029
        %v2094 = vunpack.c.l.b16 %v2030
        %v2095 = vunpack.c.l.b16 %v2031
        %v2096 = vunpack.c.l.b16 %v2032
        %v2097 = vunpack.c.l.b16 %v2033
        %v2098 = vunpack.c.l.b16 %v2034
        %v2099 = vunpack.c.l.b16 %v2035
        %v2100 = vunpack.c.l.b16 %v2036
        %v2101 = vunpack.c.l.b16 %v2037
        %v2102 = vunpack.c.l.b16 %v2038
        %v2103 = vunpack.c.l.b16 %v2039
        %v2104 = vunpack.c.l.b16 %v2040
        %v2105 = vunpack.c.l.b16 %v2041
        %v2106 = vunpack.c.l.b16 %v2042
        %v2107 = vunpack.c.l.b16 %v2043
        %v2108 = vunpack.c.l.b16 %v2044
        %v2109 = vunpack.c.l.b16 %v2045
        %v2110 = vunpack.c.l.b16 %v2046
        %v2111 = vunpack.c.l.b16 %v2047
        %v2112 = vunpack.c.l.b16 %v2048
        %v2113 = vunpack.c.l.b16 %v2049
        %v2114 = vunpack.c.l.b16 %v2050
        %v2115 = vunpack.c.l.b16 %v2051
        %v2116 = vunpack.c.l.b16 %v2052
        %v2117 = vunpack.c.l.b16 %v2053
        %v2118 = vunpack.c.l.b16 %v2054
        %v2119 = vpack.c.b16 %v2088, %v2087
        %v2120 = vpack.c.b16 %v2090, %v2089
        %v2121 = vpack.c.b16 %v2092, %v2091
        %v2122 = vpack.c.b16 %v2094, %v2093
        %v2123 = vpack.c.b16 %v2096, %v2095
        %v2124 = vpack.c.b16 %v2098, %v2097
        %v2125 = vpack.c.b16 %v2100, %v2099
        %v2126 = vpack.c.b16 %v2102, %v2101
        %v2127 = vpack.c.b16 %v2104, %v2103
        %v2128 = vpack.c.b16 %v2106, %v2105
        %v2129 = vpack.c.b16 %v2108, %v2107
        %v2130 = vpack.c.b16 %v2110, %v2109
        %v2131 = vpack.c.b16 %v2112, %v2111
        %v2132 = vpack.c.b16 %v2114, %v2113
        %v2133 = vpack.c.b16 %v2116, %v2115
        %v2134 = vpack.c.b16 %v2118, %v2117
        %2151 = vst [vmem:[#allocation3 + $0x18] sm:$0xff] %v2119
        %2152 = vst [vmem:[#allocation3 + $0x60] sm:$0xff] %v2120
        %2153 = vst [vmem:[#allocation3 + $0xa8] sm:$0xff] %v2121
        %2154 = vst [vmem:[#allocation3 + $0xf0] sm:$0xff] %v2122
        %2155 = vst [vmem:[#allocation3 + $0x138] sm:$0xff] %v2123
        %2156 = vst [vmem:[#allocation3 + $0x180] sm:$0xff] %v2124
        %2157 = vst [vmem:[#allocation3 + $0x1c8] sm:$0xff] %v2125
        %2158 = vst [vmem:[#allocation3 + $0x210] sm:$0xff] %v2126
        %2159 = vst [vmem:[#allocation3 + $0x258] sm:$0xff] %v2127
        %2160 = vst [vmem:[#allocation3 + $0x2a0] sm:$0xff] %v2128
        %2161 = vst [vmem:[#allocation3 + $0x2e8] sm:$0xff] %v2129
        %2162 = vst [vmem:[#allocation3 + $0x330] sm:$0xff] %v2130
        %2163 = vst [vmem:[#allocation3 + $0x378] sm:$0xff] %v2131
        %2164 = vst [vmem:[#allocation3 + $0x3c0] sm:$0xff] %v2132
        %2165 = vst [vmem:[#allocation3 + $0x408] sm:$0xff] %v2133
        %2166 = vst [vmem:[#allocation3 + $0x450] sm:$0xff] %v2134
        %v2167 = vld [vmem:[%s981] sm:$0xf]
        %v2168 = vld [vmem:[%s981 + $0x4] sm:$0xf]
        %v2169 = vld [vmem:[%s981 + $0x8] sm:$0x1]
        %v2170 = vld [vmem:[%s981 + $0xc] sm:$0xf]
        %v2171 = vld [vmem:[%s981 + $0x10] sm:$0xf]
        %v2172 = vld [vmem:[%s981 + $0x14] sm:$0x1]
        %v2173 = vld [vmem:[%s981 + $0x18] sm:$0xf]
        %v2174 = vld [vmem:[%s981 + $0x1c] sm:$0xf]
        %v2175 = vld [vmem:[%s981 + $0x20] sm:$0x1]
        %v2176 = vld [vmem:[%s981 + $0x24] sm:$0xf]
        %v2177 = vld [vmem:[%s981 + $0x28] sm:$0xf]
        %v2178 = vld [vmem:[%s981 + $0x2c] sm:$0x1]
        %v2179 = vld [vmem:[%s981 + $0x30] sm:$0xf]
        %v2180 = vld [vmem:[%s981 + $0x34] sm:$0xf]
        %v2181 = vld [vmem:[%s981 + $0x38] sm:$0x1]
        %v2182 = vld [vmem:[%s981 + $0x3c] sm:$0xf]
        %v2183 = vld [vmem:[%s981 + $0x40] sm:$0xf]
        %v2184 = vld [vmem:[%s981 + $0x44] sm:$0x1]
        %v2185 = vld [vmem:[%s981 + $0x48] sm:$0xf]
        %v2186 = vld [vmem:[%s981 + $0x4c] sm:$0xf]
        %v2187 = vld [vmem:[%s981 + $0x50] sm:$0x1]
        %v2188 = vld [vmem:[%s981 + $0x54] sm:$0xf]
        %v2189 = vld [vmem:[%s981 + $0x58] sm:$0xf]
        %v2190 = vld [vmem:[%s981 + $0x5c] sm:$0x1]
        %v2191 = vld [vmem:[%s981 + $0x60] sm:$0xf]
        %v2192 = vld [vmem:[%s981 + $0x64] sm:$0xf]
        %v2193 = vld [vmem:[%s981 + $0x68] sm:$0x1]
        %v2194 = vld [vmem:[%s981 + $0x6c] sm:$0xf]
        %v2195 = vld [vmem:[%s981 + $0x70] sm:$0xf]
        %v2196 = vld [vmem:[%s981 + $0x74] sm:$0x1]
        %v2197 = vld [vmem:[%s981 + $0x78] sm:$0xf]
        %v2198 = vld [vmem:[%s981 + $0x7c] sm:$0xf]
        %v2199 = vld [vmem:[%s981 + $0x80] sm:$0x1]
        %v2200 = vld [vmem:[%s981 + $0x84] sm:$0xf]
        %v2201 = vld [vmem:[%s981 + $0x88] sm:$0xf]
        %v2202 = vld [vmem:[%s981 + $0x8c] sm:$0x1]
        %v2203 = vld [vmem:[%s981 + $0x90] sm:$0xf]
        %v2204 = vld [vmem:[%s981 + $0x94] sm:$0xf]
        %v2205 = vld [vmem:[%s981 + $0x98] sm:$0x1]
        %v2206 = vld [vmem:[%s981 + $0x9c] sm:$0xf]
        %v2207 = vld [vmem:[%s981 + $0xa0] sm:$0xf]
        %v2208 = vld [vmem:[%s981 + $0xa4] sm:$0x1]
        %v2209 = vld [vmem:[%s981 + $0xa8] sm:$0xf]
        %v2210 = vld [vmem:[%s981 + $0xac] sm:$0xf]
        %v2211 = vld [vmem:[%s981 + $0xb0] sm:$0x1]
        %v2212 = vld [vmem:[%s981 + $0xb4] sm:$0xf]
        %v2213 = vld [vmem:[%s981 + $0xb8] sm:$0xf]
        %v2214 = vld [vmem:[%s981 + $0xbc] sm:$0x1]
        %v2263 = vunpack.c.l.b16 %v2167
        %v2264 = vunpack.c.l.b16 %v2168
        %v2265 = vunpack.c.l.b16 %v2169
        %v2266 = vunpack.c.l.b16 %v2170
        %v2267 = vunpack.c.l.b16 %v2171
        %v2268 = vunpack.c.l.b16 %v2172
        %v2269 = vunpack.c.l.b16 %v2173
        %v2270 = vunpack.c.l.b16 %v2174
        %v2271 = vunpack.c.l.b16 %v2175
        %v2272 = vunpack.c.l.b16 %v2176
        %v2273 = vunpack.c.l.b16 %v2177
        %v2274 = vunpack.c.l.b16 %v2178
        %v2275 = vunpack.c.l.b16 %v2179
        %v2276 = vunpack.c.l.b16 %v2180
        %v2277 = vunpack.c.l.b16 %v2181
        %v2278 = vunpack.c.l.b16 %v2182
        %v2279 = vunpack.c.l.b16 %v2183
        %v2280 = vunpack.c.l.b16 %v2184
        %v2281 = vunpack.c.l.b16 %v2185
        %v2282 = vunpack.c.l.b16 %v2186
        %v2283 = vunpack.c.l.b16 %v2187
        %v2284 = vunpack.c.l.b16 %v2188
        %v2285 = vunpack.c.l.b16 %v2189
        %v2286 = vunpack.c.l.b16 %v2190
        %v2287 = vunpack.c.l.b16 %v2191
        %v2288 = vunpack.c.l.b16 %v2192
        %v2289 = vunpack.c.l.b16 %v2193
        %v2290 = vunpack.c.l.b16 %v2194
        %v2291 = vunpack.c.l.b16 %v2195
        %v2292 = vunpack.c.l.b16 %v2196
        %v2293 = vunpack.c.l.b16 %v2197
        %v2294 = vunpack.c.l.b16 %v2198
        %v2295 = vunpack.c.l.b16 %v2199
        %v2296 = vunpack.c.l.b16 %v2200
        %v2297 = vunpack.c.l.b16 %v2201
        %v2298 = vunpack.c.l.b16 %v2202
        %v2299 = vunpack.c.l.b16 %v2203
        %v2300 = vunpack.c.l.b16 %v2204
        %v2301 = vunpack.c.l.b16 %v2205
        %v2302 = vunpack.c.l.b16 %v2206
        %v2303 = vunpack.c.l.b16 %v2207
        %v2304 = vunpack.c.l.b16 %v2208
        %v2305 = vunpack.c.l.b16 %v2209
        %v2306 = vunpack.c.l.b16 %v2210
        %v2307 = vunpack.c.l.b16 %v2211
        %v2308 = vunpack.c.l.b16 %v2212
        %v2309 = vunpack.c.l.b16 %v2213
        %v2310 = vunpack.c.l.b16 %v2214
        %v2311 = vpack.c.b16 %v2264, %v2263
        %v2312 = vpack.c.b16 %v2265, %v2265
        %v2313 = vpack.c.b16 %v2267, %v2266
        %v2314 = vpack.c.b16 %v2268, %v2268
        %v2315 = vpack.c.b16 %v2270, %v2269
        %v2316 = vpack.c.b16 %v2271, %v2271
        %v2317 = vpack.c.b16 %v2273, %v2272
        %v2318 = vpack.c.b16 %v2274, %v2274
        %v2319 = vpack.c.b16 %v2276, %v2275
        %v2320 = vpack.c.b16 %v2277, %v2277
        %v2321 = vpack.c.b16 %v2279, %v2278
        %v2322 = vpack.c.b16 %v2280, %v2280
        %v2323 = vpack.c.b16 %v2282, %v2281
        %v2324 = vpack.c.b16 %v2283, %v2283
        %v2325 = vpack.c.b16 %v2285, %v2284
        %v2326 = vpack.c.b16 %v2286, %v2286
        %v2327 = vpack.c.b16 %v2288, %v2287
        %v2328 = vpack.c.b16 %v2289, %v2289
        %v2329 = vpack.c.b16 %v2291, %v2290
        %v2330 = vpack.c.b16 %v2292, %v2292
        %v2331 = vpack.c.b16 %v2294, %v2293
        %v2332 = vpack.c.b16 %v2295, %v2295
        %v2333 = vpack.c.b16 %v2297, %v2296
        %v2334 = vpack.c.b16 %v2298, %v2298
        %v2335 = vpack.c.b16 %v2300, %v2299
        %v2336 = vpack.c.b16 %v2301, %v2301
        %v2337 = vpack.c.b16 %v2303, %v2302
        %v2338 = vpack.c.b16 %v2304, %v2304
        %v2339 = vpack.c.b16 %v2306, %v2305
        %v2340 = vpack.c.b16 %v2307, %v2307
        %v2341 = vpack.c.b16 %v2309, %v2308
        %v2342 = vpack.c.b16 %v2310, %v2310
        %v2344 = vshrl.u32 %v2311, 16
        %v2346 = vshll.u32 %v2311, 16
        %v2348 = vrot.slane %v2346, 1
        %v2349 = vor.u32 %v2344, %v2348
        %v2351 = vshll.u32 %v2312, 16
        %v2353 = vrot.slane %v2351, 1
        %v2354 = vsel %vm1541, %v2349, %v2353
        %v2356 = vshrl.u32 %v2313, 16
        %v2358 = vshll.u32 %v2313, 16
        %v2360 = vrot.slane %v2358, 1
        %v2361 = vor.u32 %v2356, %v2360
        %v2363 = vshll.u32 %v2314, 16
        %v2365 = vrot.slane %v2363, 1
        %v2366 = vsel %vm1541, %v2361, %v2365
        %v2368 = vshrl.u32 %v2315, 16
        %v2370 = vshll.u32 %v2315, 16
        %v2372 = vrot.slane %v2370, 1
        %v2373 = vor.u32 %v2368, %v2372
        %v2375 = vshll.u32 %v2316, 16
        %v2377 = vrot.slane %v2375, 1
        %v2378 = vsel %vm1541, %v2373, %v2377
        %v2380 = vshrl.u32 %v2317, 16
        %v2382 = vshll.u32 %v2317, 16
        %v2384 = vrot.slane %v2382, 1
        %v2385 = vor.u32 %v2380, %v2384
        %v2387 = vshll.u32 %v2318, 16
        %v2389 = vrot.slane %v2387, 1
        %v2390 = vsel %vm1541, %v2385, %v2389
        %v2392 = vshrl.u32 %v2319, 16
        %v2394 = vshll.u32 %v2319, 16
        %v2396 = vrot.slane %v2394, 1
        %v2397 = vor.u32 %v2392, %v2396
        %v2399 = vshll.u32 %v2320, 16
        %v2401 = vrot.slane %v2399, 1
        %v2402 = vsel %vm1541, %v2397, %v2401
        %v2404 = vshrl.u32 %v2321, 16
        %v2406 = vshll.u32 %v2321, 16
        %v2408 = vrot.slane %v2406, 1
        %v2409 = vor.u32 %v2404, %v2408
        %v2411 = vshll.u32 %v2322, 16
        %v2413 = vrot.slane %v2411, 1
        %v2414 = vsel %vm1541, %v2409, %v2413
        %v2416 = vshrl.u32 %v2323, 16
        %v2418 = vshll.u32 %v2323, 16
        %v2420 = vrot.slane %v2418, 1
        %v2421 = vor.u32 %v2416, %v2420
        %v2423 = vshll.u32 %v2324, 16
        %v2425 = vrot.slane %v2423, 1
        %v2426 = vsel %vm1541, %v2421, %v2425
        %v2428 = vshrl.u32 %v2325, 16
        %v2430 = vshll.u32 %v2325, 16
        %v2432 = vrot.slane %v2430, 1
        %v2433 = vor.u32 %v2428, %v2432
        %v2435 = vshll.u32 %v2326, 16
        %v2437 = vrot.slane %v2435, 1
        %v2438 = vsel %vm1541, %v2433, %v2437
        %v2440 = vshrl.u32 %v2327, 16
        %v2442 = vshll.u32 %v2327, 16
        %v2444 = vrot.slane %v2442, 1
        %v2445 = vor.u32 %v2440, %v2444
        %v2447 = vshll.u32 %v2328, 16
        %v2449 = vrot.slane %v2447, 1
        %v2450 = vsel %vm1541, %v2445, %v2449
        %v2452 = vshrl.u32 %v2329, 16
        %v2454 = vshll.u32 %v2329, 16
        %v2456 = vrot.slane %v2454, 1
        %v2457 = vor.u32 %v2452, %v2456
        %v2459 = vshll.u32 %v2330, 16
        %v2461 = vrot.slane %v2459, 1
        %v2462 = vsel %vm1541, %v2457, %v2461
        %v2464 = vshrl.u32 %v2331, 16
        %v2466 = vshll.u32 %v2331, 16
        %v2468 = vrot.slane %v2466, 1
        %v2469 = vor.u32 %v2464, %v2468
        %v2471 = vshll.u32 %v2332, 16
        %v2473 = vrot.slane %v2471, 1
        %v2474 = vsel %vm1541, %v2469, %v2473
        %v2476 = vshrl.u32 %v2333, 16
        %v2478 = vshll.u32 %v2333, 16
        %v2480 = vrot.slane %v2478, 1
        %v2481 = vor.u32 %v2476, %v2480
        %v2483 = vshll.u32 %v2334, 16
        %v2485 = vrot.slane %v2483, 1
        %v2486 = vsel %vm1541, %v2481, %v2485
        %v2488 = vshrl.u32 %v2335, 16
        %v2490 = vshll.u32 %v2335, 16
        %v2492 = vrot.slane %v2490, 1
        %v2493 = vor.u32 %v2488, %v2492
        %v2495 = vshll.u32 %v2336, 16
        %v2497 = vrot.slane %v2495, 1
        %v2498 = vsel %vm1541, %v2493, %v2497
        %v2500 = vshrl.u32 %v2337, 16
        %v2502 = vshll.u32 %v2337, 16
        %v2504 = vrot.slane %v2502, 1
        %v2505 = vor.u32 %v2500, %v2504
        %v2507 = vshll.u32 %v2338, 16
        %v2509 = vrot.slane %v2507, 1
        %v2510 = vsel %vm1541, %v2505, %v2509
        %v2512 = vshrl.u32 %v2339, 16
        %v2514 = vshll.u32 %v2339, 16
        %v2516 = vrot.slane %v2514, 1
        %v2517 = vor.u32 %v2512, %v2516
        %v2519 = vshll.u32 %v2340, 16
        %v2521 = vrot.slane %v2519, 1
        %v2522 = vsel %vm1541, %v2517, %v2521
        %v2524 = vshrl.u32 %v2341, 16
        %v2526 = vshll.u32 %v2341, 16
        %v2528 = vrot.slane %v2526, 1
        %v2529 = vor.u32 %v2524, %v2528
        %v2531 = vshll.u32 %v2342, 16
        %v2533 = vrot.slane %v2531, 1
        %v2534 = vsel %vm1541, %v2529, %v2533
        %2551 = vst [vmem:[#allocation3 + $0x20] sm:$0xff] %v2354
        %2552 = vst [vmem:[#allocation3 + $0x68] sm:$0xff] %v2366
        %2553 = vst [vmem:[#allocation3 + $0xb0] sm:$0xff] %v2378
        %2554 = vst [vmem:[#allocation3 + $0xf8] sm:$0xff] %v2390
        %2555 = vst [vmem:[#allocation3 + $0x140] sm:$0xff] %v2402
        %2556 = vst [vmem:[#allocation3 + $0x188] sm:$0xff] %v2414
        %2557 = vst [vmem:[#allocation3 + $0x1d0] sm:$0xff] %v2426
        %2558 = vst [vmem:[#allocation3 + $0x218] sm:$0xff] %v2438
        %2559 = vst [vmem:[#allocation3 + $0x260] sm:$0xff] %v2450
        %2560 = vst [vmem:[#allocation3 + $0x2a8] sm:$0xff] %v2462
        %2561 = vst [vmem:[#allocation3 + $0x2f0] sm:$0xff] %v2474
        %2562 = vst [vmem:[#allocation3 + $0x338] sm:$0xff] %v2486
        %2563 = vst [vmem:[#allocation3 + $0x380] sm:$0xff] %v2498
        %2564 = vst [vmem:[#allocation3 + $0x3c8] sm:$0xff] %v2510
        %2565 = vst [vmem:[#allocation3 + $0x410] sm:$0xff] %v2522
        %2566 = vst [vmem:[#allocation3 + $0x458] sm:$0xff] %v2534
        %v2567 = vld [vmem:[%s981] sm:$0xe]
        %v2568 = vld [vmem:[%s981 + $0x4] sm:$0xf]
        %v2569 = vld [vmem:[%s981 + $0x8] sm:$0x1]
        %v2570 = vld [vmem:[%s981 + $0xc] sm:$0xe]
        %v2571 = vld [vmem:[%s981 + $0x10] sm:$0xf]
        %v2572 = vld [vmem:[%s981 + $0x14] sm:$0x1]
        %v2573 = vld [vmem:[%s981 + $0x18] sm:$0xe]
        %v2574 = vld [vmem:[%s981 + $0x1c] sm:$0xf]
        %v2575 = vld [vmem:[%s981 + $0x20] sm:$0x1]
        %v2576 = vld [vmem:[%s981 + $0x24] sm:$0xe]
        %v2577 = vld [vmem:[%s981 + $0x28] sm:$0xf]
        %v2578 = vld [vmem:[%s981 + $0x2c] sm:$0x1]
        %v2579 = vld [vmem:[%s981 + $0x30] sm:$0xe]
        %v2580 = vld [vmem:[%s981 + $0x34] sm:$0xf]
        %v2581 = vld [vmem:[%s981 + $0x38] sm:$0x1]
        %v2582 = vld [vmem:[%s981 + $0x3c] sm:$0xe]
        %v2583 = vld [vmem:[%s981 + $0x40] sm:$0xf]
        %v2584 = vld [vmem:[%s981 + $0x44] sm:$0x1]
        %v2585 = vld [vmem:[%s981 + $0x48] sm:$0xe]
        %v2586 = vld [vmem:[%s981 + $0x4c] sm:$0xf]
        %v2587 = vld [vmem:[%s981 + $0x50] sm:$0x1]
        %v2588 = vld [vmem:[%s981 + $0x54] sm:$0xe]
        %v2589 = vld [vmem:[%s981 + $0x58] sm:$0xf]
        %v2590 = vld [vmem:[%s981 + $0x5c] sm:$0x1]
        %v2591 = vld [vmem:[%s981 + $0x60] sm:$0xe]
        %v2592 = vld [vmem:[%s981 + $0x64] sm:$0xf]
        %v2593 = vld [vmem:[%s981 + $0x68] sm:$0x1]
        %v2594 = vld [vmem:[%s981 + $0x6c] sm:$0xe]
        %v2595 = vld [vmem:[%s981 + $0x70] sm:$0xf]
        %v2596 = vld [vmem:[%s981 + $0x74] sm:$0x1]
        %v2597 = vld [vmem:[%s981 + $0x78] sm:$0xe]
        %v2598 = vld [vmem:[%s981 + $0x7c] sm:$0xf]
        %v2599 = vld [vmem:[%s981 + $0x80] sm:$0x1]
        %v2600 = vld [vmem:[%s981 + $0x84] sm:$0xe]
        %v2601 = vld [vmem:[%s981 + $0x88] sm:$0xf]
        %v2602 = vld [vmem:[%s981 + $0x8c] sm:$0x1]
        %v2603 = vld [vmem:[%s981 + $0x90] sm:$0xe]
        %v2604 = vld [vmem:[%s981 + $0x94] sm:$0xf]
        %v2605 = vld [vmem:[%s981 + $0x98] sm:$0x1]
        %v2606 = vld [vmem:[%s981 + $0x9c] sm:$0xe]
        %v2607 = vld [vmem:[%s981 + $0xa0] sm:$0xf]
        %v2608 = vld [vmem:[%s981 + $0xa4] sm:$0x1]
        %v2609 = vld [vmem:[%s981 + $0xa8] sm:$0xe]
        %v2610 = vld [vmem:[%s981 + $0xac] sm:$0xf]
        %v2611 = vld [vmem:[%s981 + $0xb0] sm:$0x1]
        %v2612 = vld [vmem:[%s981 + $0xb4] sm:$0xe]
        %v2613 = vld [vmem:[%s981 + $0xb8] sm:$0xf]
        %v2614 = vld [vmem:[%s981 + $0xbc] sm:$0x1]
        %v2663 = vunpack.c.l.b16 %v2567
        %v2664 = vunpack.c.l.b16 %v2568
        %v2665 = vunpack.c.l.b16 %v2569
        %v2666 = vunpack.c.l.b16 %v2570
        %v2667 = vunpack.c.l.b16 %v2571
        %v2668 = vunpack.c.l.b16 %v2572
        %v2669 = vunpack.c.l.b16 %v2573
        %v2670 = vunpack.c.l.b16 %v2574
        %v2671 = vunpack.c.l.b16 %v2575
        %v2672 = vunpack.c.l.b16 %v2576
        %v2673 = vunpack.c.l.b16 %v2577
        %v2674 = vunpack.c.l.b16 %v2578
        %v2675 = vunpack.c.l.b16 %v2579
        %v2676 = vunpack.c.l.b16 %v2580
        %v2677 = vunpack.c.l.b16 %v2581
        %v2678 = vunpack.c.l.b16 %v2582
        %v2679 = vunpack.c.l.b16 %v2583
        %v2680 = vunpack.c.l.b16 %v2584
        %v2681 = vunpack.c.l.b16 %v2585
        %v2682 = vunpack.c.l.b16 %v2586
        %v2683 = vunpack.c.l.b16 %v2587
        %v2684 = vunpack.c.l.b16 %v2588
        %v2685 = vunpack.c.l.b16 %v2589
        %v2686 = vunpack.c.l.b16 %v2590
        %v2687 = vunpack.c.l.b16 %v2591
        %v2688 = vunpack.c.l.b16 %v2592
        %v2689 = vunpack.c.l.b16 %v2593
        %v2690 = vunpack.c.l.b16 %v2594
        %v2691 = vunpack.c.l.b16 %v2595
        %v2692 = vunpack.c.l.b16 %v2596
        %v2693 = vunpack.c.l.b16 %v2597
        %v2694 = vunpack.c.l.b16 %v2598
        %v2695 = vunpack.c.l.b16 %v2599
        %v2696 = vunpack.c.l.b16 %v2600
        %v2697 = vunpack.c.l.b16 %v2601
        %v2698 = vunpack.c.l.b16 %v2602
        %v2699 = vunpack.c.l.b16 %v2603
        %v2700 = vunpack.c.l.b16 %v2604
        %v2701 = vunpack.c.l.b16 %v2605
        %v2702 = vunpack.c.l.b16 %v2606
        %v2703 = vunpack.c.l.b16 %v2607
        %v2704 = vunpack.c.l.b16 %v2608
        %v2705 = vunpack.c.l.b16 %v2609
        %v2706 = vunpack.c.l.b16 %v2610
        %v2707 = vunpack.c.l.b16 %v2611
        %v2708 = vunpack.c.l.b16 %v2612
        %v2709 = vunpack.c.l.b16 %v2613
        %v2710 = vunpack.c.l.b16 %v2614
        %v2711 = vpack.c.b16 %v2664, %v2663
        %v2712 = vpack.c.b16 %v2665, %v2665
        %v2713 = vpack.c.b16 %v2667, %v2666
        %v2714 = vpack.c.b16 %v2668, %v2668
        %v2715 = vpack.c.b16 %v2670, %v2669
        %v2716 = vpack.c.b16 %v2671, %v2671
        %v2717 = vpack.c.b16 %v2673, %v2672
        %v2718 = vpack.c.b16 %v2674, %v2674
        %v2719 = vpack.c.b16 %v2676, %v2675
        %v2720 = vpack.c.b16 %v2677, %v2677
        %v2721 = vpack.c.b16 %v2679, %v2678
        %v2722 = vpack.c.b16 %v2680, %v2680
        %v2723 = vpack.c.b16 %v2682, %v2681
        %v2724 = vpack.c.b16 %v2683, %v2683
        %v2725 = vpack.c.b16 %v2685, %v2684
        %v2726 = vpack.c.b16 %v2686, %v2686
        %v2727 = vpack.c.b16 %v2688, %v2687
        %v2728 = vpack.c.b16 %v2689, %v2689
        %v2729 = vpack.c.b16 %v2691, %v2690
        %v2730 = vpack.c.b16 %v2692, %v2692
        %v2731 = vpack.c.b16 %v2694, %v2693
        %v2732 = vpack.c.b16 %v2695, %v2695
        %v2733 = vpack.c.b16 %v2697, %v2696
        %v2734 = vpack.c.b16 %v2698, %v2698
        %v2735 = vpack.c.b16 %v2700, %v2699
        %v2736 = vpack.c.b16 %v2701, %v2701
        %v2737 = vpack.c.b16 %v2703, %v2702
        %v2738 = vpack.c.b16 %v2704, %v2704
        %v2739 = vpack.c.b16 %v2706, %v2705
        %v2740 = vpack.c.b16 %v2707, %v2707
        %v2741 = vpack.c.b16 %v2709, %v2708
        %v2742 = vpack.c.b16 %v2710, %v2710
        %v2743 = vrot.slane %v2711, 1
        %v2744 = vrot.slane %v2712, 1
        %v2745 = vsel %vm1942, %v2743, %v2744
        %v2746 = vrot.slane %v2713, 1
        %v2747 = vrot.slane %v2714, 1
        %v2748 = vsel %vm1942, %v2746, %v2747
        %v2749 = vrot.slane %v2715, 1
        %v2750 = vrot.slane %v2716, 1
        %v2751 = vsel %vm1942, %v2749, %v2750
        %v2752 = vrot.slane %v2717, 1
        %v2753 = vrot.slane %v2718, 1
        %v2754 = vsel %vm1942, %v2752, %v2753
        %v2755 = vrot.slane %v2719, 1
        %v2756 = vrot.slane %v2720, 1
        %v2757 = vsel %vm1942, %v2755, %v2756
        %v2758 = vrot.slane %v2721, 1
        %v2759 = vrot.slane %v2722, 1
        %v2760 = vsel %vm1942, %v2758, %v2759
        %v2761 = vrot.slane %v2723, 1
        %v2762 = vrot.slane %v2724, 1
        %v2763 = vsel %vm1942, %v2761, %v2762
        %v2764 = vrot.slane %v2725, 1
        %v2765 = vrot.slane %v2726, 1
        %v2766 = vsel %vm1942, %v2764, %v2765
        %v2767 = vrot.slane %v2727, 1
        %v2768 = vrot.slane %v2728, 1
        %v2769 = vsel %vm1942, %v2767, %v2768
        %v2770 = vrot.slane %v2729, 1
        %v2771 = vrot.slane %v2730, 1
        %v2772 = vsel %vm1942, %v2770, %v2771
        %v2773 = vrot.slane %v2731, 1
        %v2774 = vrot.slane %v2732, 1
        %v2775 = vsel %vm1942, %v2773, %v2774
        %v2776 = vrot.slane %v2733, 1
        %v2777 = vrot.slane %v2734, 1
        %v2778 = vsel %vm1942, %v2776, %v2777
        %v2779 = vrot.slane %v2735, 1
        %v2780 = vrot.slane %v2736, 1
        %v2781 = vsel %vm1942, %v2779, %v2780
        %v2782 = vrot.slane %v2737, 1
        %v2783 = vrot.slane %v2738, 1
        %v2784 = vsel %vm1942, %v2782, %v2783
        %v2785 = vrot.slane %v2739, 1
        %v2786 = vrot.slane %v2740, 1
        %v2787 = vsel %vm1942, %v2785, %v2786
        %v2788 = vrot.slane %v2741, 1
        %v2789 = vrot.slane %v2742, 1
        %v2790 = vsel %vm1942, %v2788, %v2789
        %2807 = vst [vmem:[#allocation3 + $0x28] sm:$0xff] %v2745
        %2808 = vst [vmem:[#allocation3 + $0x70] sm:$0xff] %v2748
        %2809 = vst [vmem:[#allocation3 + $0xb8] sm:$0xff] %v2751
        %2810 = vst [vmem:[#allocation3 + $0x100] sm:$0xff] %v2754
        %2811 = vst [vmem:[#allocation3 + $0x148] sm:$0xff] %v2757
        %2812 = vst [vmem:[#allocation3 + $0x190] sm:$0xff] %v2760
        %2813 = vst [vmem:[#allocation3 + $0x1d8] sm:$0xff] %v2763
        %2814 = vst [vmem:[#allocation3 + $0x220] sm:$0xff] %v2766
        %2815 = vst [vmem:[#allocation3 + $0x268] sm:$0xff] %v2769
        %2816 = vst [vmem:[#allocation3 + $0x2b0] sm:$0xff] %v2772
        %2817 = vst [vmem:[#allocation3 + $0x2f8] sm:$0xff] %v2775
        %2818 = vst [vmem:[#allocation3 + $0x340] sm:$0xff] %v2778
        %2819 = vst [vmem:[#allocation3 + $0x388] sm:$0xff] %v2781
        %2820 = vst [vmem:[#allocation3 + $0x3d0] sm:$0xff] %v2784
        %2821 = vst [vmem:[#allocation3 + $0x418] sm:$0xff] %v2787
        %2822 = vst [vmem:[#allocation3 + $0x460] sm:$0xff] %v2790
        %s2823 = scalar_lea.vmem [#allocation2], 24
        %v2824 = vld [vmem:[%s2823] sm:$0xf]
        %v2825 = vld [vmem:[%s2823 + $0x4] sm:$0xf]
        %v2826 = vld [vmem:[%s2823 + $0xc] sm:$0xf]
        %v2827 = vld [vmem:[%s2823 + $0x10] sm:$0xf]
        %v2828 = vld [vmem:[%s2823 + $0x18] sm:$0xf]
        %v2829 = vld [vmem:[%s2823 + $0x1c] sm:$0xf]
        %v2830 = vld [vmem:[%s2823 + $0x24] sm:$0xf]
        %v2831 = vld [vmem:[%s2823 + $0x28] sm:$0xf]
        %v2832 = vld [vmem:[%s2823 + $0x30] sm:$0xf]
        %v2833 = vld [vmem:[%s2823 + $0x34] sm:$0xf]
        %v2834 = vld [vmem:[%s2823 + $0x3c] sm:$0xf]
        %v2835 = vld [vmem:[%s2823 + $0x40] sm:$0xf]
        %v2836 = vld [vmem:[%s2823 + $0x48] sm:$0xf]
        %v2837 = vld [vmem:[%s2823 + $0x4c] sm:$0xf]
        %v2838 = vld [vmem:[%s2823 + $0x54] sm:$0xf]
        %v2839 = vld [vmem:[%s2823 + $0x58] sm:$0xf]
        %v2840 = vld [vmem:[%s2823 + $0x60] sm:$0xf]
        %v2841 = vld [vmem:[%s2823 + $0x64] sm:$0xf]
        %v2842 = vld [vmem:[%s2823 + $0x6c] sm:$0xf]
        %v2843 = vld [vmem:[%s2823 + $0x70] sm:$0xf]
        %v2844 = vld [vmem:[%s2823 + $0x78] sm:$0xf]
        %v2845 = vld [vmem:[%s2823 + $0x7c] sm:$0xf]
        %v2846 = vld [vmem:[%s2823 + $0x84] sm:$0xf]
        %v2847 = vld [vmem:[%s2823 + $0x88] sm:$0xf]
        %v2848 = vld [vmem:[%s2823 + $0x90] sm:$0xf]
        %v2849 = vld [vmem:[%s2823 + $0x94] sm:$0xf]
        %v2850 = vld [vmem:[%s2823 + $0x9c] sm:$0xf]
        %v2851 = vld [vmem:[%s2823 + $0xa0] sm:$0xf]
        %v2852 = vld [vmem:[%s2823 + $0xa8] sm:$0xf]
        %v2853 = vld [vmem:[%s2823 + $0xac] sm:$0xf]
        %v2854 = vld [vmem:[%s2823 + $0xb4] sm:$0xf]
        %v2855 = vld [vmem:[%s2823 + $0xb8] sm:$0xf]
        %v2888 = vunpack.c.l.b16 %v2824
        %v2889 = vunpack.c.l.b16 %v2825
        %v2890 = vunpack.c.l.b16 %v2826
        %v2891 = vunpack.c.l.b16 %v2827
        %v2892 = vunpack.c.l.b16 %v2828
        %v2893 = vunpack.c.l.b16 %v2829
        %v2894 = vunpack.c.l.b16 %v2830
        %v2895 = vunpack.c.l.b16 %v2831
        %v2896 = vunpack.c.l.b16 %v2832
        %v2897 = vunpack.c.l.b16 %v2833
        %v2898 = vunpack.c.l.b16 %v2834
        %v2899 = vunpack.c.l.b16 %v2835
        %v2900 = vunpack.c.l.b16 %v2836
        %v2901 = vunpack.c.l.b16 %v2837
        %v2902 = vunpack.c.l.b16 %v2838
        %v2903 = vunpack.c.l.b16 %v2839
        %v2904 = vunpack.c.l.b16 %v2840
        %v2905 = vunpack.c.l.b16 %v2841
        %v2906 = vunpack.c.l.b16 %v2842
        %v2907 = vunpack.c.l.b16 %v2843
        %v2908 = vunpack.c.l.b16 %v2844
        %v2909 = vunpack.c.l.b16 %v2845
        %v2910 = vunpack.c.l.b16 %v2846
        %v2911 = vunpack.c.l.b16 %v2847
        %v2912 = vunpack.c.l.b16 %v2848
        %v2913 = vunpack.c.l.b16 %v2849
        %v2914 = vunpack.c.l.b16 %v2850
        %v2915 = vunpack.c.l.b16 %v2851
        %v2916 = vunpack.c.l.b16 %v2852
        %v2917 = vunpack.c.l.b16 %v2853
        %v2918 = vunpack.c.l.b16 %v2854
        %v2919 = vunpack.c.l.b16 %v2855
        %v2920 = vpack.c.b16 %v2889, %v2888
        %v2921 = vpack.c.b16 %v2891, %v2890
        %v2922 = vpack.c.b16 %v2893, %v2892
        %v2923 = vpack.c.b16 %v2895, %v2894
        %v2924 = vpack.c.b16 %v2897, %v2896
        %v2925 = vpack.c.b16 %v2899, %v2898
        %v2926 = vpack.c.b16 %v2901, %v2900
        %v2927 = vpack.c.b16 %v2903, %v2902
        %v2928 = vpack.c.b16 %v2905, %v2904
        %v2929 = vpack.c.b16 %v2907, %v2906
        %v2930 = vpack.c.b16 %v2909, %v2908
        %v2931 = vpack.c.b16 %v2911, %v2910
        %v2932 = vpack.c.b16 %v2913, %v2912
        %v2933 = vpack.c.b16 %v2915, %v2914
        %v2934 = vpack.c.b16 %v2917, %v2916
        %v2935 = vpack.c.b16 %v2919, %v2918
        %2952 = vst [vmem:[#allocation3 + $0x30] sm:$0xff] %v2920
        %2953 = vst [vmem:[#allocation3 + $0x78] sm:$0xff] %v2921
        %2954 = vst [vmem:[#allocation3 + $0xc0] sm:$0xff] %v2922
        %2955 = vst [vmem:[#allocation3 + $0x108] sm:$0xff] %v2923
        %2956 = vst [vmem:[#allocation3 + $0x150] sm:$0xff] %v2924
        %2957 = vst [vmem:[#allocation3 + $0x198] sm:$0xff] %v2925
        %2958 = vst [vmem:[#allocation3 + $0x1e0] sm:$0xff] %v2926
        %2959 = vst [vmem:[#allocation3 + $0x228] sm:$0xff] %v2927
        %2960 = vst [vmem:[#allocation3 + $0x270] sm:$0xff] %v2928
        %2961 = vst [vmem:[#allocation3 + $0x2b8] sm:$0xff] %v2929
        %2962 = vst [vmem:[#allocation3 + $0x300] sm:$0xff] %v2930
        %2963 = vst [vmem:[#allocation3 + $0x348] sm:$0xff] %v2931
        %2964 = vst [vmem:[#allocation3 + $0x390] sm:$0xff] %v2932
        %2965 = vst [vmem:[#allocation3 + $0x3d8] sm:$0xff] %v2933
        %2966 = vst [vmem:[#allocation3 + $0x420] sm:$0xff] %v2934
        %2967 = vst [vmem:[#allocation3 + $0x468] sm:$0xff] %v2935
        %v2968 = vld [vmem:[%s2823] sm:$0xf]
        %v2969 = vld [vmem:[%s2823 + $0x4] sm:$0xf]
        %v2970 = vld [vmem:[%s2823 + $0x8] sm:$0x1]
        %v2971 = vld [vmem:[%s2823 + $0xc] sm:$0xf]
        %v2972 = vld [vmem:[%s2823 + $0x10] sm:$0xf]
        %v2973 = vld [vmem:[%s2823 + $0x14] sm:$0x1]
        %v2974 = vld [vmem:[%s2823 + $0x18] sm:$0xf]
        %v2975 = vld [vmem:[%s2823 + $0x1c] sm:$0xf]
        %v2976 = vld [vmem:[%s2823 + $0x20] sm:$0x1]
        %v2977 = vld [vmem:[%s2823 + $0x24] sm:$0xf]
        %v2978 = vld [vmem:[%s2823 + $0x28] sm:$0xf]
        %v2979 = vld [vmem:[%s2823 + $0x2c] sm:$0x1]
        %v2980 = vld [vmem:[%s2823 + $0x30] sm:$0xf]
        %v2981 = vld [vmem:[%s2823 + $0x34] sm:$0xf]
        %v2982 = vld [vmem:[%s2823 + $0x38] sm:$0x1]
        %v2983 = vld [vmem:[%s2823 + $0x3c] sm:$0xf]
        %v2984 = vld [vmem:[%s2823 + $0x40] sm:$0xf]
        %v2985 = vld [vmem:[%s2823 + $0x44] sm:$0x1]
        %v2986 = vld [vmem:[%s2823 + $0x48] sm:$0xf]
        %v2987 = vld [vmem:[%s2823 + $0x4c] sm:$0xf]
        %v2988 = vld [vmem:[%s2823 + $0x50] sm:$0x1]
        %v2989 = vld [vmem:[%s2823 + $0x54] sm:$0xf]
        %v2990 = vld [vmem:[%s2823 + $0x58] sm:$0xf]
        %v2991 = vld [vmem:[%s2823 + $0x5c] sm:$0x1]
        %v2992 = vld [vmem:[%s2823 + $0x60] sm:$0xf]
        %v2993 = vld [vmem:[%s2823 + $0x64] sm:$0xf]
        %v2994 = vld [vmem:[%s2823 + $0x68] sm:$0x1]
        %v2995 = vld [vmem:[%s2823 + $0x6c] sm:$0xf]
        %v2996 = vld [vmem:[%s2823 + $0x70] sm:$0xf]
        %v2997 = vld [vmem:[%s2823 + $0x74] sm:$0x1]
        %v2998 = vld [vmem:[%s2823 + $0x78] sm:$0xf]
        %v2999 = vld [vmem:[%s2823 + $0x7c] sm:$0xf]
        %v3000 = vld [vmem:[%s2823 + $0x80] sm:$0x1]
        %v3001 = vld [vmem:[%s2823 + $0x84] sm:$0xf]
        %v3002 = vld [vmem:[%s2823 + $0x88] sm:$0xf]
        %v3003 = vld [vmem:[%s2823 + $0x8c] sm:$0x1]
        %v3004 = vld [vmem:[%s2823 + $0x90] sm:$0xf]
        %v3005 = vld [vmem:[%s2823 + $0x94] sm:$0xf]
        %v3006 = vld [vmem:[%s2823 + $0x98] sm:$0x1]
        %v3007 = vld [vmem:[%s2823 + $0x9c] sm:$0xf]
        %v3008 = vld [vmem:[%s2823 + $0xa0] sm:$0xf]
        %v3009 = vld [vmem:[%s2823 + $0xa4] sm:$0x1]
        %v3010 = vld [vmem:[%s2823 + $0xa8] sm:$0xf]
        %v3011 = vld [vmem:[%s2823 + $0xac] sm:$0xf]
        %v3012 = vld [vmem:[%s2823 + $0xb0] sm:$0x1]
        %v3013 = vld [vmem:[%s2823 + $0xb4] sm:$0xf]
        %v3014 = vld [vmem:[%s2823 + $0xb8] sm:$0xf]
        %v3015 = vld [vmem:[%s2823 + $0xbc] sm:$0x1]
        %v3064 = vunpack.c.l.b16 %v2968
        %v3065 = vunpack.c.l.b16 %v2969
        %v3066 = vunpack.c.l.b16 %v2970
        %v3067 = vunpack.c.l.b16 %v2971
        %v3068 = vunpack.c.l.b16 %v2972
        %v3069 = vunpack.c.l.b16 %v2973
        %v3070 = vunpack.c.l.b16 %v2974
        %v3071 = vunpack.c.l.b16 %v2975
        %v3072 = vunpack.c.l.b16 %v2976
        %v3073 = vunpack.c.l.b16 %v2977
        %v3074 = vunpack.c.l.b16 %v2978
        %v3075 = vunpack.c.l.b16 %v2979
        %v3076 = vunpack.c.l.b16 %v2980
        %v3077 = vunpack.c.l.b16 %v2981
        %v3078 = vunpack.c.l.b16 %v2982
        %v3079 = vunpack.c.l.b16 %v2983
        %v3080 = vunpack.c.l.b16 %v2984
        %v3081 = vunpack.c.l.b16 %v2985
        %v3082 = vunpack.c.l.b16 %v2986
        %v3083 = vunpack.c.l.b16 %v2987
        %v3084 = vunpack.c.l.b16 %v2988
        %v3085 = vunpack.c.l.b16 %v2989
        %v3086 = vunpack.c.l.b16 %v2990
        %v3087 = vunpack.c.l.b16 %v2991
        %v3088 = vunpack.c.l.b16 %v2992
        %v3089 = vunpack.c.l.b16 %v2993
        %v3090 = vunpack.c.l.b16 %v2994
        %v3091 = vunpack.c.l.b16 %v2995
        %v3092 = vunpack.c.l.b16 %v2996
        %v3093 = vunpack.c.l.b16 %v2997
        %v3094 = vunpack.c.l.b16 %v2998
        %v3095 = vunpack.c.l.b16 %v2999
        %v3096 = vunpack.c.l.b16 %v3000
        %v3097 = vunpack.c.l.b16 %v3001
        %v3098 = vunpack.c.l.b16 %v3002
        %v3099 = vunpack.c.l.b16 %v3003
        %v3100 = vunpack.c.l.b16 %v3004
        %v3101 = vunpack.c.l.b16 %v3005
        %v3102 = vunpack.c.l.b16 %v3006
        %v3103 = vunpack.c.l.b16 %v3007
        %v3104 = vunpack.c.l.b16 %v3008
        %v3105 = vunpack.c.l.b16 %v3009
        %v3106 = vunpack.c.l.b16 %v3010
        %v3107 = vunpack.c.l.b16 %v3011
        %v3108 = vunpack.c.l.b16 %v3012
        %v3109 = vunpack.c.l.b16 %v3013
        %v3110 = vunpack.c.l.b16 %v3014
        %v3111 = vunpack.c.l.b16 %v3015
        %v3112 = vpack.c.b16 %v3065, %v3064
        %v3113 = vpack.c.b16 %v3066, %v3066
        %v3114 = vpack.c.b16 %v3068, %v3067
        %v3115 = vpack.c.b16 %v3069, %v3069
        %v3116 = vpack.c.b16 %v3071, %v3070
        %v3117 = vpack.c.b16 %v3072, %v3072
        %v3118 = vpack.c.b16 %v3074, %v3073
        %v3119 = vpack.c.b16 %v3075, %v3075
        %v3120 = vpack.c.b16 %v3077, %v3076
        %v3121 = vpack.c.b16 %v3078, %v3078
        %v3122 = vpack.c.b16 %v3080, %v3079
        %v3123 = vpack.c.b16 %v3081, %v3081
        %v3124 = vpack.c.b16 %v3083, %v3082
        %v3125 = vpack.c.b16 %v3084, %v3084
        %v3126 = vpack.c.b16 %v3086, %v3085
        %v3127 = vpack.c.b16 %v3087, %v3087
        %v3128 = vpack.c.b16 %v3089, %v3088
        %v3129 = vpack.c.b16 %v3090, %v3090
        %v3130 = vpack.c.b16 %v3092, %v3091
        %v3131 = vpack.c.b16 %v3093, %v3093
        %v3132 = vpack.c.b16 %v3095, %v3094
        %v3133 = vpack.c.b16 %v3096, %v3096
        %v3134 = vpack.c.b16 %v3098, %v3097
        %v3135 = vpack.c.b16 %v3099, %v3099
        %v3136 = vpack.c.b16 %v3101, %v3100
        %v3137 = vpack.c.b16 %v3102, %v3102
        %v3138 = vpack.c.b16 %v3104, %v3103
        %v3139 = vpack.c.b16 %v3105, %v3105
        %v3140 = vpack.c.b16 %v3107, %v3106
        %v3141 = vpack.c.b16 %v3108, %v3108
        %v3142 = vpack.c.b16 %v3110, %v3109
        %v3143 = vpack.c.b16 %v3111, %v3111
        %v3145 = vshrl.u32 %v3112, 16
        %v3147 = vshll.u32 %v3112, 16
        %v3149 = vrot.slane %v3147, 1
        %v3150 = vor.u32 %v3145, %v3149
        %v3152 = vshll.u32 %v3113, 16
        %v3154 = vrot.slane %v3152, 1
        %v3155 = vsel %vm1541, %v3150, %v3154
        %v3157 = vshrl.u32 %v3114, 16
        %v3159 = vshll.u32 %v3114, 16
        %v3161 = vrot.slane %v3159, 1
        %v3162 = vor.u32 %v3157, %v3161
        %v3164 = vshll.u32 %v3115, 16
        %v3166 = vrot.slane %v3164, 1
        %v3167 = vsel %vm1541, %v3162, %v3166
        %v3169 = vshrl.u32 %v3116, 16
        %v3171 = vshll.u32 %v3116, 16
        %v3173 = vrot.slane %v3171, 1
        %v3174 = vor.u32 %v3169, %v3173
        %v3176 = vshll.u32 %v3117, 16
        %v3178 = vrot.slane %v3176, 1
        %v3179 = vsel %vm1541, %v3174, %v3178
        %v3181 = vshrl.u32 %v3118, 16
        %v3183 = vshll.u32 %v3118, 16
        %v3185 = vrot.slane %v3183, 1
        %v3186 = vor.u32 %v3181, %v3185
        %v3188 = vshll.u32 %v3119, 16
        %v3190 = vrot.slane %v3188, 1
        %v3191 = vsel %vm1541, %v3186, %v3190
        %v3193 = vshrl.u32 %v3120, 16
        %v3195 = vshll.u32 %v3120, 16
        %v3197 = vrot.slane %v3195, 1
        %v3198 = vor.u32 %v3193, %v3197
        %v3200 = vshll.u32 %v3121, 16
        %v3202 = vrot.slane %v3200, 1
        %v3203 = vsel %vm1541, %v3198, %v3202
        %v3205 = vshrl.u32 %v3122, 16
        %v3207 = vshll.u32 %v3122, 16
        %v3209 = vrot.slane %v3207, 1
        %v3210 = vor.u32 %v3205, %v3209
        %v3212 = vshll.u32 %v3123, 16
        %v3214 = vrot.slane %v3212, 1
        %v3215 = vsel %vm1541, %v3210, %v3214
        %v3217 = vshrl.u32 %v3124, 16
        %v3219 = vshll.u32 %v3124, 16
        %v3221 = vrot.slane %v3219, 1
        %v3222 = vor.u32 %v3217, %v3221
        %v3224 = vshll.u32 %v3125, 16
        %v3226 = vrot.slane %v3224, 1
        %v3227 = vsel %vm1541, %v3222, %v3226
        %v3229 = vshrl.u32 %v3126, 16
        %v3231 = vshll.u32 %v3126, 16
        %v3233 = vrot.slane %v3231, 1
        %v3234 = vor.u32 %v3229, %v3233
        %v3236 = vshll.u32 %v3127, 16
        %v3238 = vrot.slane %v3236, 1
        %v3239 = vsel %vm1541, %v3234, %v3238
        %v3241 = vshrl.u32 %v3128, 16
        %v3243 = vshll.u32 %v3128, 16
        %v3245 = vrot.slane %v3243, 1
        %v3246 = vor.u32 %v3241, %v3245
        %v3248 = vshll.u32 %v3129, 16
        %v3250 = vrot.slane %v3248, 1
        %v3251 = vsel %vm1541, %v3246, %v3250
        %v3253 = vshrl.u32 %v3130, 16
        %v3255 = vshll.u32 %v3130, 16
        %v3257 = vrot.slane %v3255, 1
        %v3258 = vor.u32 %v3253, %v3257
        %v3260 = vshll.u32 %v3131, 16
        %v3262 = vrot.slane %v3260, 1
        %v3263 = vsel %vm1541, %v3258, %v3262
        %v3265 = vshrl.u32 %v3132, 16
        %v3267 = vshll.u32 %v3132, 16
        %v3269 = vrot.slane %v3267, 1
        %v3270 = vor.u32 %v3265, %v3269
        %v3272 = vshll.u32 %v3133, 16
        %v3274 = vrot.slane %v3272, 1
        %v3275 = vsel %vm1541, %v3270, %v3274
        %v3277 = vshrl.u32 %v3134, 16
        %v3279 = vshll.u32 %v3134, 16
        %v3281 = vrot.slane %v3279, 1
        %v3282 = vor.u32 %v3277, %v3281
        %v3284 = vshll.u32 %v3135, 16
        %v3286 = vrot.slane %v3284, 1
        %v3287 = vsel %vm1541, %v3282, %v3286
        %v3289 = vshrl.u32 %v3136, 16
        %v3291 = vshll.u32 %v3136, 16
        %v3293 = vrot.slane %v3291, 1
        %v3294 = vor.u32 %v3289, %v3293
        %v3296 = vshll.u32 %v3137, 16
        %v3298 = vrot.slane %v3296, 1
        %v3299 = vsel %vm1541, %v3294, %v3298
        %v3301 = vshrl.u32 %v3138, 16
        %v3303 = vshll.u32 %v3138, 16
        %v3305 = vrot.slane %v3303, 1
        %v3306 = vor.u32 %v3301, %v3305
        %v3308 = vshll.u32 %v3139, 16
        %v3310 = vrot.slane %v3308, 1
        %v3311 = vsel %vm1541, %v3306, %v3310
        %v3313 = vshrl.u32 %v3140, 16
        %v3315 = vshll.u32 %v3140, 16
        %v3317 = vrot.slane %v3315, 1
        %v3318 = vor.u32 %v3313, %v3317
        %v3320 = vshll.u32 %v3141, 16
        %v3322 = vrot.slane %v3320, 1
        %v3323 = vsel %vm1541, %v3318, %v3322
        %v3325 = vshrl.u32 %v3142, 16
        %v3327 = vshll.u32 %v3142, 16
        %v3329 = vrot.slane %v3327, 1
        %v3330 = vor.u32 %v3325, %v3329
        %v3332 = vshll.u32 %v3143, 16
        %v3334 = vrot.slane %v3332, 1
        %v3335 = vsel %vm1541, %v3330, %v3334
        %3352 = vst [vmem:[#allocation3 + $0x38] sm:$0xff] %v3155
        %3353 = vst [vmem:[#allocation3 + $0x80] sm:$0xff] %v3167
        %3354 = vst [vmem:[#allocation3 + $0xc8] sm:$0xff] %v3179
        %3355 = vst [vmem:[#allocation3 + $0x110] sm:$0xff] %v3191
        %3356 = vst [vmem:[#allocation3 + $0x158] sm:$0xff] %v3203
        %3357 = vst [vmem:[#allocation3 + $0x1a0] sm:$0xff] %v3215
        %3358 = vst [vmem:[#allocation3 + $0x1e8] sm:$0xff] %v3227
        %3359 = vst [vmem:[#allocation3 + $0x230] sm:$0xff] %v3239
        %3360 = vst [vmem:[#allocation3 + $0x278] sm:$0xff] %v3251
        %3361 = vst [vmem:[#allocation3 + $0x2c0] sm:$0xff] %v3263
        %3362 = vst [vmem:[#allocation3 + $0x308] sm:$0xff] %v3275
        %3363 = vst [vmem:[#allocation3 + $0x350] sm:$0xff] %v3287
        %3364 = vst [vmem:[#allocation3 + $0x398] sm:$0xff] %v3299
        %3365 = vst [vmem:[#allocation3 + $0x3e0] sm:$0xff] %v3311
        %3366 = vst [vmem:[#allocation3 + $0x428] sm:$0xff] %v3323
        %3367 = vst [vmem:[#allocation3 + $0x470] sm:$0xff] %v3335
        %v3368 = vld [vmem:[%s2823] sm:$0xe]
        %v3369 = vld [vmem:[%s2823 + $0x4] sm:$0xf]
        %v3370 = vld [vmem:[%s2823 + $0x8] sm:$0x1]
        %v3371 = vld [vmem:[%s2823 + $0xc] sm:$0xe]
        %v3372 = vld [vmem:[%s2823 + $0x10] sm:$0xf]
        %v3373 = vld [vmem:[%s2823 + $0x14] sm:$0x1]
        %v3374 = vld [vmem:[%s2823 + $0x18] sm:$0xe]
        %v3375 = vld [vmem:[%s2823 + $0x1c] sm:$0xf]
        %v3376 = vld [vmem:[%s2823 + $0x20] sm:$0x1]
        %v3377 = vld [vmem:[%s2823 + $0x24] sm:$0xe]
        %v3378 = vld [vmem:[%s2823 + $0x28] sm:$0xf]
        %v3379 = vld [vmem:[%s2823 + $0x2c] sm:$0x1]
        %v3380 = vld [vmem:[%s2823 + $0x30] sm:$0xe]
        %v3381 = vld [vmem:[%s2823 + $0x34] sm:$0xf]
        %v3382 = vld [vmem:[%s2823 + $0x38] sm:$0x1]
        %v3383 = vld [vmem:[%s2823 + $0x3c] sm:$0xe]
        %v3384 = vld [vmem:[%s2823 + $0x40] sm:$0xf]
        %v3385 = vld [vmem:[%s2823 + $0x44] sm:$0x1]
        %v3386 = vld [vmem:[%s2823 + $0x48] sm:$0xe]
        %v3387 = vld [vmem:[%s2823 + $0x4c] sm:$0xf]
        %v3388 = vld [vmem:[%s2823 + $0x50] sm:$0x1]
        %v3389 = vld [vmem:[%s2823 + $0x54] sm:$0xe]
        %v3390 = vld [vmem:[%s2823 + $0x58] sm:$0xf]
        %v3391 = vld [vmem:[%s2823 + $0x5c] sm:$0x1]
        %v3392 = vld [vmem:[%s2823 + $0x60] sm:$0xe]
        %v3393 = vld [vmem:[%s2823 + $0x64] sm:$0xf]
        %v3394 = vld [vmem:[%s2823 + $0x68] sm:$0x1]
        %v3395 = vld [vmem:[%s2823 + $0x6c] sm:$0xe]
        %v3396 = vld [vmem:[%s2823 + $0x70] sm:$0xf]
        %v3397 = vld [vmem:[%s2823 + $0x74] sm:$0x1]
        %v3398 = vld [vmem:[%s2823 + $0x78] sm:$0xe]
        %v3399 = vld [vmem:[%s2823 + $0x7c] sm:$0xf]
        %v3400 = vld [vmem:[%s2823 + $0x80] sm:$0x1]
        %v3401 = vld [vmem:[%s2823 + $0x84] sm:$0xe]
        %v3402 = vld [vmem:[%s2823 + $0x88] sm:$0xf]
        %v3403 = vld [vmem:[%s2823 + $0x8c] sm:$0x1]
        %v3404 = vld [vmem:[%s2823 + $0x90] sm:$0xe]
        %v3405 = vld [vmem:[%s2823 + $0x94] sm:$0xf]
        %v3406 = vld [vmem:[%s2823 + $0x98] sm:$0x1]
        %v3407 = vld [vmem:[%s2823 + $0x9c] sm:$0xe]
        %v3408 = vld [vmem:[%s2823 + $0xa0] sm:$0xf]
        %v3409 = vld [vmem:[%s2823 + $0xa4] sm:$0x1]
        %v3410 = vld [vmem:[%s2823 + $0xa8] sm:$0xe]
        %v3411 = vld [vmem:[%s2823 + $0xac] sm:$0xf]
        %v3412 = vld [vmem:[%s2823 + $0xb0] sm:$0x1]
        %v3413 = vld [vmem:[%s2823 + $0xb4] sm:$0xe]
        %v3414 = vld [vmem:[%s2823 + $0xb8] sm:$0xf]
        %v3415 = vld [vmem:[%s2823 + $0xbc] sm:$0x1]
        %v3464 = vunpack.c.l.b16 %v3368
        %v3465 = vunpack.c.l.b16 %v3369
        %v3466 = vunpack.c.l.b16 %v3370
        %v3467 = vunpack.c.l.b16 %v3371
        %v3468 = vunpack.c.l.b16 %v3372
        %v3469 = vunpack.c.l.b16 %v3373
        %v3470 = vunpack.c.l.b16 %v3374
        %v3471 = vunpack.c.l.b16 %v3375
        %v3472 = vunpack.c.l.b16 %v3376
        %v3473 = vunpack.c.l.b16 %v3377
        %v3474 = vunpack.c.l.b16 %v3378
        %v3475 = vunpack.c.l.b16 %v3379
        %v3476 = vunpack.c.l.b16 %v3380
        %v3477 = vunpack.c.l.b16 %v3381
        %v3478 = vunpack.c.l.b16 %v3382
        %v3479 = vunpack.c.l.b16 %v3383
        %v3480 = vunpack.c.l.b16 %v3384
        %v3481 = vunpack.c.l.b16 %v3385
        %v3482 = vunpack.c.l.b16 %v3386
        %v3483 = vunpack.c.l.b16 %v3387
        %v3484 = vunpack.c.l.b16 %v3388
        %v3485 = vunpack.c.l.b16 %v3389
        %v3486 = vunpack.c.l.b16 %v3390
        %v3487 = vunpack.c.l.b16 %v3391
        %v3488 = vunpack.c.l.b16 %v3392
        %v3489 = vunpack.c.l.b16 %v3393
        %v3490 = vunpack.c.l.b16 %v3394
        %v3491 = vunpack.c.l.b16 %v3395
        %v3492 = vunpack.c.l.b16 %v3396
        %v3493 = vunpack.c.l.b16 %v3397
        %v3494 = vunpack.c.l.b16 %v3398
        %v3495 = vunpack.c.l.b16 %v3399
        %v3496 = vunpack.c.l.b16 %v3400
        %v3497 = vunpack.c.l.b16 %v3401
        %v3498 = vunpack.c.l.b16 %v3402
        %v3499 = vunpack.c.l.b16 %v3403
        %v3500 = vunpack.c.l.b16 %v3404
        %v3501 = vunpack.c.l.b16 %v3405
        %v3502 = vunpack.c.l.b16 %v3406
        %v3503 = vunpack.c.l.b16 %v3407
        %v3504 = vunpack.c.l.b16 %v3408
        %v3505 = vunpack.c.l.b16 %v3409
        %v3506 = vunpack.c.l.b16 %v3410
        %v3507 = vunpack.c.l.b16 %v3411
        %v3508 = vunpack.c.l.b16 %v3412
        %v3509 = vunpack.c.l.b16 %v3413
        %v3510 = vunpack.c.l.b16 %v3414
        %v3511 = vunpack.c.l.b16 %v3415
        %v3512 = vpack.c.b16 %v3465, %v3464
        %v3513 = vpack.c.b16 %v3466, %v3466
        %v3514 = vpack.c.b16 %v3468, %v3467
        %v3515 = vpack.c.b16 %v3469, %v3469
        %v3516 = vpack.c.b16 %v3471, %v3470
        %v3517 = vpack.c.b16 %v3472, %v3472
        %v3518 = vpack.c.b16 %v3474, %v3473
        %v3519 = vpack.c.b16 %v3475, %v3475
        %v3520 = vpack.c.b16 %v3477, %v3476
        %v3521 = vpack.c.b16 %v3478, %v3478
        %v3522 = vpack.c.b16 %v3480, %v3479
        %v3523 = vpack.c.b16 %v3481, %v3481
        %v3524 = vpack.c.b16 %v3483, %v3482
        %v3525 = vpack.c.b16 %v3484, %v3484
        %v3526 = vpack.c.b16 %v3486, %v3485
        %v3527 = vpack.c.b16 %v3487, %v3487
        %v3528 = vpack.c.b16 %v3489, %v3488
        %v3529 = vpack.c.b16 %v3490, %v3490
        %v3530 = vpack.c.b16 %v3492, %v3491
        %v3531 = vpack.c.b16 %v3493, %v3493
        %v3532 = vpack.c.b16 %v3495, %v3494
        %v3533 = vpack.c.b16 %v3496, %v3496
        %v3534 = vpack.c.b16 %v3498, %v3497
        %v3535 = vpack.c.b16 %v3499, %v3499
        %v3536 = vpack.c.b16 %v3501, %v3500
        %v3537 = vpack.c.b16 %v3502, %v3502
        %v3538 = vpack.c.b16 %v3504, %v3503
        %v3539 = vpack.c.b16 %v3505, %v3505
        %v3540 = vpack.c.b16 %v3507, %v3506
        %v3541 = vpack.c.b16 %v3508, %v3508
        %v3542 = vpack.c.b16 %v3510, %v3509
        %v3543 = vpack.c.b16 %v3511, %v3511
        %v3544 = vrot.slane %v3512, 1
        %v3545 = vrot.slane %v3513, 1
        %v3546 = vsel %vm1942, %v3544, %v3545
        %v3547 = vrot.slane %v3514, 1
        %v3548 = vrot.slane %v3515, 1
        %v3549 = vsel %vm1942, %v3547, %v3548
        %v3550 = vrot.slane %v3516, 1
        %v3551 = vrot.slane %v3517, 1
        %v3552 = vsel %vm1942, %v3550, %v3551
        %v3553 = vrot.slane %v3518, 1
        %v3554 = vrot.slane %v3519, 1
        %v3555 = vsel %vm1942, %v3553, %v3554
        %v3556 = vrot.slane %v3520, 1
        %v3557 = vrot.slane %v3521, 1
        %v3558 = vsel %vm1942, %v3556, %v3557
        %v3559 = vrot.slane %v3522, 1
        %v3560 = vrot.slane %v3523, 1
        %v3561 = vsel %vm1942, %v3559, %v3560
        %v3562 = vrot.slane %v3524, 1
        %v3563 = vrot.slane %v3525, 1
        %v3564 = vsel %vm1942, %v3562, %v3563
        %v3565 = vrot.slane %v3526, 1
        %v3566 = vrot.slane %v3527, 1
        %v3567 = vsel %vm1942, %v3565, %v3566
        %v3568 = vrot.slane %v3528, 1
        %v3569 = vrot.slane %v3529, 1
        %v3570 = vsel %vm1942, %v3568, %v3569
        %v3571 = vrot.slane %v3530, 1
        %v3572 = vrot.slane %v3531, 1
        %v3573 = vsel %vm1942, %v3571, %v3572
        %v3574 = vrot.slane %v3532, 1
        %v3575 = vrot.slane %v3533, 1
        %v3576 = vsel %vm1942, %v3574, %v3575
        %v3577 = vrot.slane %v3534, 1
        %v3578 = vrot.slane %v3535, 1
        %v3579 = vsel %vm1942, %v3577, %v3578
        %v3580 = vrot.slane %v3536, 1
        %v3581 = vrot.slane %v3537, 1
        %v3582 = vsel %vm1942, %v3580, %v3581
        %v3583 = vrot.slane %v3538, 1
        %v3584 = vrot.slane %v3539, 1
        %v3585 = vsel %vm1942, %v3583, %v3584
        %v3586 = vrot.slane %v3540, 1
        %v3587 = vrot.slane %v3541, 1
        %v3588 = vsel %vm1942, %v3586, %v3587
        %v3589 = vrot.slane %v3542, 1
        %v3590 = vrot.slane %v3543, 1
        %v3591 = vsel %vm1942, %v3589, %v3590
        %3608 = vst [vmem:[#allocation3 + $0x40] sm:$0xff] %v3546
        %3609 = vst [vmem:[#allocation3 + $0x88] sm:$0xff] %v3549
        %3610 = vst [vmem:[#allocation3 + $0xd0] sm:$0xff] %v3552
        %3611 = vst [vmem:[#allocation3 + $0x118] sm:$0xff] %v3555
        %3612 = vst [vmem:[#allocation3 + $0x160] sm:$0xff] %v3558
        %3613 = vst [vmem:[#allocation3 + $0x1a8] sm:$0xff] %v3561
        %3614 = vst [vmem:[#allocation3 + $0x1f0] sm:$0xff] %v3564
        %3615 = vst [vmem:[#allocation3 + $0x238] sm:$0xff] %v3567
        %3616 = vst [vmem:[#allocation3 + $0x280] sm:$0xff] %v3570
        %3617 = vst [vmem:[#allocation3 + $0x2c8] sm:$0xff] %v3573
        %3618 = vst [vmem:[#allocation3 + $0x310] sm:$0xff] %v3576
        %3619 = vst [vmem:[#allocation3 + $0x358] sm:$0xff] %v3579
        %3620 = vst [vmem:[#allocation3 + $0x3a0] sm:$0xff] %v3582
        %3621 = vst [vmem:[#allocation3 + $0x3e8] sm:$0xff] %v3585
        %3622 = vst [vmem:[#allocation3 + $0x430] sm:$0xff] %v3588
        %3623 = vst [vmem:[#allocation3 + $0x478] sm:$0xff] %v3591
        %v3624 = vld [vmem:[#allocation3] sm:$0xff]
        %v3625 = vld [vmem:[#allocation3 + $0x8] sm:$0xff]
        %v3626 = vld [vmem:[#allocation3 + $0x10] sm:$0xff]
        %v3627 = vld [vmem:[#allocation3 + $0x18] sm:$0xff]
        %v3628 = vld [vmem:[#allocation3 + $0x20] sm:$0xff]
        %v3629 = vld [vmem:[#allocation3 + $0x28] sm:$0xff]
        %v3630 = vld [vmem:[#allocation3 + $0x30] sm:$0xff]
        %v3631 = vld [vmem:[#allocation3 + $0x38] sm:$0xff]
        %v3632 = vld [vmem:[#allocation3 + $0x40] sm:$0xff]
        %v3633 = vld [vmem:[#allocation3 + $0x48] sm:$0xff]
        %v3634 = vld [vmem:[#allocation3 + $0x50] sm:$0xff]
        %v3635 = vld [vmem:[#allocation3 + $0x58] sm:$0xff]
        %v3636 = vld [vmem:[#allocation3 + $0x60] sm:$0xff]
        %v3637 = vld [vmem:[#allocation3 + $0x68] sm:$0xff]
        %v3638 = vld [vmem:[#allocation3 + $0x70] sm:$0xff]
        %v3639 = vld [vmem:[#allocation3 + $0x78] sm:$0xff]
        %v3640 = vld [vmem:[#allocation3 + $0x80] sm:$0xff]
        %v3641 = vld [vmem:[#allocation3 + $0x88] sm:$0xff]
        %v3642 = vld [vmem:[#allocation3 + $0x90] sm:$0xff]
        %v3643 = vld [vmem:[#allocation3 + $0x98] sm:$0xff]
        %v3644 = vld [vmem:[#allocation3 + $0xa0] sm:$0xff]
        %v3645 = vld [vmem:[#allocation3 + $0xa8] sm:$0xff]
        %v3646 = vld [vmem:[#allocation3 + $0xb0] sm:$0xff]
        %v3647 = vld [vmem:[#allocation3 + $0xb8] sm:$0xff]
        %v3648 = vld [vmem:[#allocation3 + $0xc0] sm:$0xff]
        %v3649 = vld [vmem:[#allocation3 + $0xc8] sm:$0xff]
        %v3650 = vld [vmem:[#allocation3 + $0xd0] sm:$0xff]
        %v3651 = vld [vmem:[#allocation3 + $0xd8] sm:$0xff]
        %v3652 = vld [vmem:[#allocation3 + $0xe0] sm:$0xff]
        %v3653 = vld [vmem:[#allocation3 + $0xe8] sm:$0xff]
        %v3654 = vld [vmem:[#allocation3 + $0xf0] sm:$0xff]
        %v3655 = vld [vmem:[#allocation3 + $0xf8] sm:$0xff]
        %v3656 = vld [vmem:[#allocation3 + $0x100] sm:$0xff]
        %v3657 = vld [vmem:[#allocation3 + $0x108] sm:$0xff]
        %v3658 = vld [vmem:[#allocation3 + $0x110] sm:$0xff]
        %v3659 = vld [vmem:[#allocation3 + $0x118] sm:$0xff]
        %v3660 = vld [vmem:[#allocation3 + $0x120] sm:$0xff]
        %v3661 = vld [vmem:[#allocation3 + $0x128] sm:$0xff]
        %v3662 = vld [vmem:[#allocation3 + $0x130] sm:$0xff]
        %v3663 = vld [vmem:[#allocation3 + $0x138] sm:$0xff]
        %v3664 = vld [vmem:[#allocation3 + $0x140] sm:$0xff]
        %v3665 = vld [vmem:[#allocation3 + $0x148] sm:$0xff]
        %v3666 = vld [vmem:[#allocation3 + $0x150] sm:$0xff]
        %v3667 = vld [vmem:[#allocation3 + $0x158] sm:$0xff]
        %v3668 = vld [vmem:[#allocation3 + $0x160] sm:$0xff]
        %v3669 = vld [vmem:[#allocation3 + $0x168] sm:$0xff]
        %v3670 = vld [vmem:[#allocation3 + $0x170] sm:$0xff]
        %v3671 = vld [vmem:[#allocation3 + $0x178] sm:$0xff]
        %v3672 = vld [vmem:[#allocation3 + $0x180] sm:$0xff]
        %v3673 = vld [vmem:[#allocation3 + $0x188] sm:$0xff]
        %v3674 = vld [vmem:[#allocation3 + $0x190] sm:$0xff]
        %v3675 = vld [vmem:[#allocation3 + $0x198] sm:$0xff]
        %v3676 = vld [vmem:[#allocation3 + $0x1a0] sm:$0xff]
        %v3677 = vld [vmem:[#allocation3 + $0x1a8] sm:$0xff]
        %v3678 = vld [vmem:[#allocation3 + $0x1b0] sm:$0xff]
        %v3679 = vld [vmem:[#allocation3 + $0x1b8] sm:$0xff]
        %v3680 = vld [vmem:[#allocation3 + $0x1c0] sm:$0xff]
        %v3681 = vld [vmem:[#allocation3 + $0x1c8] sm:$0xff]
        %v3682 = vld [vmem:[#allocation3 + $0x1d0] sm:$0xff]
        %v3683 = vld [vmem:[#allocation3 + $0x1d8] sm:$0xff]
        %v3684 = vld [vmem:[#allocation3 + $0x1e0] sm:$0xff]
        %v3685 = vld [vmem:[#allocation3 + $0x1e8] sm:$0xff]
        %v3686 = vld [vmem:[#allocation3 + $0x1f0] sm:$0xff]
        %v3687 = vld [vmem:[#allocation3 + $0x1f8] sm:$0xff]
        %v3688 = vld [vmem:[#allocation3 + $0x200] sm:$0xff]
        %v3689 = vld [vmem:[#allocation3 + $0x208] sm:$0xff]
        %v3690 = vld [vmem:[#allocation3 + $0x210] sm:$0xff]
        %v3691 = vld [vmem:[#allocation3 + $0x218] sm:$0xff]
        %v3692 = vld [vmem:[#allocation3 + $0x220] sm:$0xff]
        %v3693 = vld [vmem:[#allocation3 + $0x228] sm:$0xff]
        %v3694 = vld [vmem:[#allocation3 + $0x230] sm:$0xff]
        %v3695 = vld [vmem:[#allocation3 + $0x238] sm:$0xff]
        %v3696 = vld [vmem:[#allocation3 + $0x240] sm:$0xff]
        %v3697 = vld [vmem:[#allocation3 + $0x248] sm:$0xff]
        %v3698 = vld [vmem:[#allocation3 + $0x250] sm:$0xff]
        %v3699 = vld [vmem:[#allocation3 + $0x258] sm:$0xff]
        %v3700 = vld [vmem:[#allocation3 + $0x260] sm:$0xff]
        %v3701 = vld [vmem:[#allocation3 + $0x268] sm:$0xff]
        %v3702 = vld [vmem:[#allocation3 + $0x270] sm:$0xff]
        %v3703 = vld [vmem:[#allocation3 + $0x278] sm:$0xff]
        %v3704 = vld [vmem:[#allocation3 + $0x280] sm:$0xff]
        %v3705 = vld [vmem:[#allocation3 + $0x288] sm:$0xff]
        %v3706 = vld [vmem:[#allocation3 + $0x290] sm:$0xff]
        %v3707 = vld [vmem:[#allocation3 + $0x298] sm:$0xff]
        %v3708 = vld [vmem:[#allocation3 + $0x2a0] sm:$0xff]
        %v3709 = vld [vmem:[#allocation3 + $0x2a8] sm:$0xff]
        %v3710 = vld [vmem:[#allocation3 + $0x2b0] sm:$0xff]
        %v3711 = vld [vmem:[#allocation3 + $0x2b8] sm:$0xff]
        %v3712 = vld [vmem:[#allocation3 + $0x2c0] sm:$0xff]
        %v3713 = vld [vmem:[#allocation3 + $0x2c8] sm:$0xff]
        %v3714 = vld [vmem:[#allocation3 + $0x2d0] sm:$0xff]
        %v3715 = vld [vmem:[#allocation3 + $0x2d8] sm:$0xff]
        %v3716 = vld [vmem:[#allocation3 + $0x2e0] sm:$0xff]
        %v3717 = vld [vmem:[#allocation3 + $0x2e8] sm:$0xff]
        %v3718 = vld [vmem:[#allocation3 + $0x2f0] sm:$0xff]
        %v3719 = vld [vmem:[#allocation3 + $0x2f8] sm:$0xff]
        %v3720 = vld [vmem:[#allocation3 + $0x300] sm:$0xff]
        %v3721 = vld [vmem:[#allocation3 + $0x308] sm:$0xff]
        %v3722 = vld [vmem:[#allocation3 + $0x310] sm:$0xff]
        %v3723 = vld [vmem:[#allocation3 + $0x318] sm:$0xff]
        %v3724 = vld [vmem:[#allocation3 + $0x320] sm:$0xff]
        %v3725 = vld [vmem:[#allocation3 + $0x328] sm:$0xff]
        %v3726 = vld [vmem:[#allocation3 + $0x330] sm:$0xff]
        %v3727 = vld [vmem:[#allocation3 + $0x338] sm:$0xff]
        %v3728 = vld [vmem:[#allocation3 + $0x340] sm:$0xff]
        %v3729 = vld [vmem:[#allocation3 + $0x348] sm:$0xff]
        %v3730 = vld [vmem:[#allocation3 + $0x350] sm:$0xff]
        %v3731 = vld [vmem:[#allocation3 + $0x358] sm:$0xff]
        %v3732 = vld [vmem:[#allocation3 + $0x360] sm:$0xff]
        %v3733 = vld [vmem:[#allocation3 + $0x368] sm:$0xff]
        %v3734 = vld [vmem:[#allocation3 + $0x370] sm:$0xff]
        %v3735 = vld [vmem:[#allocation3 + $0x378] sm:$0xff]
        %v3736 = vld [vmem:[#allocation3 + $0x380] sm:$0xff]
        %v3737 = vld [vmem:[#allocation3 + $0x388] sm:$0xff]
        %v3738 = vld [vmem:[#allocation3 + $0x390] sm:$0xff]
        %v3739 = vld [vmem:[#allocation3 + $0x398] sm:$0xff]
        %v3740 = vld [vmem:[#allocation3 + $0x3a0] sm:$0xff]
        %v3741 = vld [vmem:[#allocation3 + $0x3a8] sm:$0xff]
        %v3742 = vld [vmem:[#allocation3 + $0x3b0] sm:$0xff]
        %v3743 = vld [vmem:[#allocation3 + $0x3b8] sm:$0xff]
        %v3744 = vld [vmem:[#allocation3 + $0x3c0] sm:$0xff]
        %v3745 = vld [vmem:[#allocation3 + $0x3c8] sm:$0xff]
        %v3746 = vld [vmem:[#allocation3 + $0x3d0] sm:$0xff]
        %v3747 = vld [vmem:[#allocation3 + $0x3d8] sm:$0xff]
        %v3748 = vld [vmem:[#allocation3 + $0x3e0] sm:$0xff]
        %v3749 = vld [vmem:[#allocation3 + $0x3e8] sm:$0xff]
        %v3750 = vld [vmem:[#allocation3 + $0x3f0] sm:$0xff]
        %v3751 = vld [vmem:[#allocation3 + $0x3f8] sm:$0xff]
        %v3752 = vld [vmem:[#allocation3 + $0x400] sm:$0xff]
        %v3753 = vld [vmem:[#allocation3 + $0x408] sm:$0xff]
        %v3754 = vld [vmem:[#allocation3 + $0x410] sm:$0xff]
        %v3755 = vld [vmem:[#allocation3 + $0x418] sm:$0xff]
        %v3756 = vld [vmem:[#allocation3 + $0x420] sm:$0xff]
        %v3757 = vld [vmem:[#allocation3 + $0x428] sm:$0xff]
        %v3758 = vld [vmem:[#allocation3 + $0x430] sm:$0xff]
        %v3759 = vld [vmem:[#allocation3 + $0x438] sm:$0xff]
        %v3760 = vld [vmem:[#allocation3 + $0x440] sm:$0xff]
        %v3761 = vld [vmem:[#allocation3 + $0x448] sm:$0xff]
        %v3762 = vld [vmem:[#allocation3 + $0x450] sm:$0xff]
        %v3763 = vld [vmem:[#allocation3 + $0x458] sm:$0xff]
        %v3764 = vld [vmem:[#allocation3 + $0x460] sm:$0xff]
        %v3765 = vld [vmem:[#allocation3 + $0x468] sm:$0xff]
        %v3766 = vld [vmem:[#allocation3 + $0x470] sm:$0xff]
        %v3767 = vld [vmem:[#allocation3 + $0x478] sm:$0xff]
        %v3768 = vld [vmem:[#allocation10] sm:$0xff]
        %v3769 = vld [vmem:[#allocation10 + $0x8] sm:$0xff]
        %v3770 = vld [vmem:[#allocation10 + $0x10] sm:$0xff]
        %v3771 = vld [vmem:[#allocation10 + $0x18] sm:$0xff]
        %v3772 = vld [vmem:[#allocation10 + $0x20] sm:$0xff]
        %v3773 = vld [vmem:[#allocation10 + $0x28] sm:$0xff]
        %v3774 = vld [vmem:[#allocation10 + $0x30] sm:$0xff]
        %v3775 = vld [vmem:[#allocation10 + $0x38] sm:$0xff]
        %v3776 = vld [vmem:[#allocation10 + $0x40] sm:$0xff]
        %v3777 = vld [vmem:[#allocation10 + $0x48] sm:$0xff]
        %v3778 = vld [vmem:[#allocation10 + $0x50] sm:$0xff]
        %v3779 = vld [vmem:[#allocation10 + $0x58] sm:$0xff]
        %v3780 = vld [vmem:[#allocation10 + $0x60] sm:$0xff]
        %v3781 = vld [vmem:[#allocation10 + $0x68] sm:$0xff]
        %v3782 = vld [vmem:[#allocation10 + $0x70] sm:$0xff]
        %v3783 = vld [vmem:[#allocation10 + $0x78] sm:$0xff]
        %v3784 = vld [vmem:[#allocation10 + $0x80] sm:$0xff]
        %v3785 = vld [vmem:[#allocation10 + $0x88] sm:$0xff]
        %v3786 = vld [vmem:[#allocation10 + $0x90] sm:$0xff]
        %v3787 = vld [vmem:[#allocation10 + $0x98] sm:$0xff]
        %v3788 = vld [vmem:[#allocation10 + $0xa0] sm:$0xff]
        %v3789 = vld [vmem:[#allocation10 + $0xa8] sm:$0xff]
        %v3790 = vld [vmem:[#allocation10 + $0xb0] sm:$0xff]
        %v3791 = vld [vmem:[#allocation10 + $0xb8] sm:$0xff]
        %v3792 = vld [vmem:[#allocation10 + $0xc0] sm:$0xff]
        %v3793 = vld [vmem:[#allocation10 + $0xc8] sm:$0xff]
        %v3794 = vld [vmem:[#allocation10 + $0xd0] sm:$0xff]
        %v3795 = vld [vmem:[#allocation10 + $0xd8] sm:$0xff]
        %v3796 = vld [vmem:[#allocation10 + $0xe0] sm:$0xff]
        %v3797 = vld [vmem:[#allocation10 + $0xe8] sm:$0xff]
        %v3798 = vld [vmem:[#allocation10 + $0xf0] sm:$0xff]
        %v3799 = vld [vmem:[#allocation10 + $0xf8] sm:$0xff]
        %v3800 = vld [vmem:[#allocation10 + $0x100] sm:$0xff]
        %v3801 = vld [vmem:[#allocation10 + $0x108] sm:$0xff]
        %v3802 = vld [vmem:[#allocation10 + $0x110] sm:$0xff]
        %v3803 = vld [vmem:[#allocation10 + $0x118] sm:$0xff]
        %v3804 = vld [vmem:[#allocation10 + $0x120] sm:$0xff]
        %v3805 = vld [vmem:[#allocation10 + $0x128] sm:$0xff]
        %v3806 = vld [vmem:[#allocation10 + $0x130] sm:$0xff]
        %v3807 = vld [vmem:[#allocation10 + $0x138] sm:$0xff]
        %v3808 = vld [vmem:[#allocation10 + $0x140] sm:$0xff]
        %v3809 = vld [vmem:[#allocation10 + $0x148] sm:$0xff]
        %v3810 = vld [vmem:[#allocation10 + $0x150] sm:$0xff]
        %v3811 = vld [vmem:[#allocation10 + $0x158] sm:$0xff]
        %v3812 = vld [vmem:[#allocation10 + $0x160] sm:$0xff]
        %v3813 = vld [vmem:[#allocation10 + $0x168] sm:$0xff]
        %v3814 = vld [vmem:[#allocation10 + $0x170] sm:$0xff]
        %v3815 = vld [vmem:[#allocation10 + $0x178] sm:$0xff]
        %v3816 = vld [vmem:[#allocation10 + $0x180] sm:$0xff]
        %v3817 = vld [vmem:[#allocation10 + $0x188] sm:$0xff]
        %v3818 = vld [vmem:[#allocation10 + $0x190] sm:$0xff]
        %v3819 = vld [vmem:[#allocation10 + $0x198] sm:$0xff]
        %v3820 = vld [vmem:[#allocation10 + $0x1a0] sm:$0xff]
        %v3821 = vld [vmem:[#allocation10 + $0x1a8] sm:$0xff]
        %v3822 = vld [vmem:[#allocation10 + $0x1b0] sm:$0xff]
        %v3823 = vld [vmem:[#allocation10 + $0x1b8] sm:$0xff]
        %v3824 = vld [vmem:[#allocation10 + $0x1c0] sm:$0xff]
        %v3825 = vld [vmem:[#allocation10 + $0x1c8] sm:$0xff]
        %v3826 = vld [vmem:[#allocation10 + $0x1d0] sm:$0xff]
        %v3827 = vld [vmem:[#allocation10 + $0x1d8] sm:$0xff]
        %v3828 = vld [vmem:[#allocation10 + $0x1e0] sm:$0xff]
        %v3829 = vld [vmem:[#allocation10 + $0x1e8] sm:$0xff]
        %v3830 = vld [vmem:[#allocation10 + $0x1f0] sm:$0xff]
        %v3831 = vld [vmem:[#allocation10 + $0x1f8] sm:$0xff]
        %v3832 = vld [vmem:[#allocation10 + $0x200] sm:$0xff]
        %v3833 = vld [vmem:[#allocation10 + $0x208] sm:$0xff]
        %v3834 = vld [vmem:[#allocation10 + $0x210] sm:$0xff]
        %v3835 = vld [vmem:[#allocation10 + $0x218] sm:$0xff]
        %v3836 = vld [vmem:[#allocation10 + $0x220] sm:$0xff]
        %v3837 = vld [vmem:[#allocation10 + $0x228] sm:$0xff]
        %v3838 = vld [vmem:[#allocation10 + $0x230] sm:$0xff]
        %v3839 = vld [vmem:[#allocation10 + $0x238] sm:$0xff]
        %v3840 = vld [vmem:[#allocation10 + $0x240] sm:$0xff]
        %v3841 = vld [vmem:[#allocation10 + $0x248] sm:$0xff]
        %v3842 = vld [vmem:[#allocation10 + $0x250] sm:$0xff]
        %v3843 = vld [vmem:[#allocation10 + $0x258] sm:$0xff]
        %v3844 = vld [vmem:[#allocation10 + $0x260] sm:$0xff]
        %v3845 = vld [vmem:[#allocation10 + $0x268] sm:$0xff]
        %v3846 = vld [vmem:[#allocation10 + $0x270] sm:$0xff]
        %v3847 = vld [vmem:[#allocation10 + $0x278] sm:$0xff]
        %v3848 = vld [vmem:[#allocation10 + $0x280] sm:$0xff]
        %v3849 = vld [vmem:[#allocation10 + $0x288] sm:$0xff]
        %v3850 = vld [vmem:[#allocation10 + $0x290] sm:$0xff]
        %v3851 = vld [vmem:[#allocation10 + $0x298] sm:$0xff]
        %v3852 = vld [vmem:[#allocation10 + $0x2a0] sm:$0xff]
        %v3853 = vld [vmem:[#allocation10 + $0x2a8] sm:$0xff]
        %v3854 = vld [vmem:[#allocation10 + $0x2b0] sm:$0xff]
        %v3855 = vld [vmem:[#allocation10 + $0x2b8] sm:$0xff]
        %v3856 = vld [vmem:[#allocation10 + $0x2c0] sm:$0xff]
        %v3857 = vld [vmem:[#allocation10 + $0x2c8] sm:$0xff]
        %v3858 = vld [vmem:[#allocation10 + $0x2d0] sm:$0xff]
        %v3859 = vld [vmem:[#allocation10 + $0x2d8] sm:$0xff]
        %v3860 = vld [vmem:[#allocation10 + $0x2e0] sm:$0xff]
        %v3861 = vld [vmem:[#allocation10 + $0x2e8] sm:$0xff]
        %v3862 = vld [vmem:[#allocation10 + $0x2f0] sm:$0xff]
        %v3863 = vld [vmem:[#allocation10 + $0x2f8] sm:$0xff]
        %v3864 = vld [vmem:[#allocation10 + $0x300] sm:$0xff]
        %v3865 = vld [vmem:[#allocation10 + $0x308] sm:$0xff]
        %v3866 = vld [vmem:[#allocation10 + $0x310] sm:$0xff]
        %v3867 = vld [vmem:[#allocation10 + $0x318] sm:$0xff]
        %v3868 = vld [vmem:[#allocation10 + $0x320] sm:$0xff]
        %v3869 = vld [vmem:[#allocation10 + $0x328] sm:$0xff]
        %v3870 = vld [vmem:[#allocation10 + $0x330] sm:$0xff]
        %v3871 = vld [vmem:[#allocation10 + $0x338] sm:$0xff]
        %v3872 = vld [vmem:[#allocation10 + $0x340] sm:$0xff]
        %v3873 = vld [vmem:[#allocation10 + $0x348] sm:$0xff]
        %v3874 = vld [vmem:[#allocation10 + $0x350] sm:$0xff]
        %v3875 = vld [vmem:[#allocation10 + $0x358] sm:$0xff]
        %v3876 = vld [vmem:[#allocation10 + $0x360] sm:$0xff]
        %v3877 = vld [vmem:[#allocation10 + $0x368] sm:$0xff]
        %v3878 = vld [vmem:[#allocation10 + $0x370] sm:$0xff]
        %v3879 = vld [vmem:[#allocation10 + $0x378] sm:$0xff]
        %v3880 = vld [vmem:[#allocation10 + $0x380] sm:$0xff]
        %v3881 = vld [vmem:[#allocation10 + $0x388] sm:$0xff]
        %v3882 = vld [vmem:[#allocation10 + $0x390] sm:$0xff]
        %v3883 = vld [vmem:[#allocation10 + $0x398] sm:$0xff]
        %v3884 = vld [vmem:[#allocation10 + $0x3a0] sm:$0xff]
        %v3885 = vld [vmem:[#allocation10 + $0x3a8] sm:$0xff]
        %v3886 = vld [vmem:[#allocation10 + $0x3b0] sm:$0xff]
        %v3887 = vld [vmem:[#allocation10 + $0x3b8] sm:$0xff]
        %v3888 = vld [vmem:[#allocation10 + $0x3c0] sm:$0xff]
        %v3889 = vld [vmem:[#allocation10 + $0x3c8] sm:$0xff]
        %v3890 = vld [vmem:[#allocation10 + $0x3d0] sm:$0xff]
        %v3891 = vld [vmem:[#allocation10 + $0x3d8] sm:$0xff]
        %v3892 = vld [vmem:[#allocation10 + $0x3e0] sm:$0xff]
        %v3893 = vld [vmem:[#allocation10 + $0x3e8] sm:$0xff]
        %v3894 = vld [vmem:[#allocation10 + $0x3f0] sm:$0xff]
        %v3895 = vld [vmem:[#allocation10 + $0x3f8] sm:$0xff]
        %v3896 = vld [vmem:[#allocation10 + $0x400] sm:$0xff]
        %v3897 = vld [vmem:[#allocation10 + $0x408] sm:$0xff]
        %v3898 = vld [vmem:[#allocation10 + $0x410] sm:$0xff]
        %v3899 = vld [vmem:[#allocation10 + $0x418] sm:$0xff]
        %v3900 = vld [vmem:[#allocation10 + $0x420] sm:$0xff]
        %v3901 = vld [vmem:[#allocation10 + $0x428] sm:$0xff]
        %v3902 = vld [vmem:[#allocation10 + $0x430] sm:$0xff]
        %v3903 = vld [vmem:[#allocation10 + $0x438] sm:$0xff]
        %v3904 = vld [vmem:[#allocation10 + $0x440] sm:$0xff]
        %v3905 = vld [vmem:[#allocation10 + $0x448] sm:$0xff]
        %v3906 = vld [vmem:[#allocation10 + $0x450] sm:$0xff]
        %v3907 = vld [vmem:[#allocation10 + $0x458] sm:$0xff]
        %v3908 = vld [vmem:[#allocation10 + $0x460] sm:$0xff]
        %v3909 = vld [vmem:[#allocation10 + $0x468] sm:$0xff]
        %v3910 = vld [vmem:[#allocation10 + $0x470] sm:$0xff]
        %v3911 = vld [vmem:[#allocation10 + $0x478] sm:$0xff]
        %v3912 = vld [vmem:[#allocation10 + $0x480] sm:$0xff]
        %v3913 = vld [vmem:[#allocation10 + $0x488] sm:$0xff]
        %v3914 = vld [vmem:[#allocation10 + $0x490] sm:$0xff]
        %v3915 = vld [vmem:[#allocation10 + $0x498] sm:$0xff]
        %v3916 = vld [vmem:[#allocation10 + $0x4a0] sm:$0xff]
        %v3917 = vld [vmem:[#allocation10 + $0x4a8] sm:$0xff]
        %v3918 = vld [vmem:[#allocation10 + $0x4b0] sm:$0xff]
        %v3919 = vld [vmem:[#allocation10 + $0x4b8] sm:$0xff]
        %v3920 = vld [vmem:[#allocation10 + $0x4c0] sm:$0xff]
        %v3921 = vld [vmem:[#allocation10 + $0x4c8] sm:$0xff]
        %v3922 = vld [vmem:[#allocation10 + $0x4d0] sm:$0xff]
        %v3923 = vld [vmem:[#allocation10 + $0x4d8] sm:$0xff]
        %v3924 = vld [vmem:[#allocation10 + $0x4e0] sm:$0xff]
        %v3925 = vld [vmem:[#allocation10 + $0x4e8] sm:$0xff]
        %v3926 = vld [vmem:[#allocation10 + $0x4f0] sm:$0xff]
        %v3927 = vld [vmem:[#allocation10 + $0x4f8] sm:$0xff]
        %v3928 = vld [vmem:[#allocation10 + $0x500] sm:$0xff]
        %v3929 = vld [vmem:[#allocation10 + $0x508] sm:$0xff]
        %v3930 = vld [vmem:[#allocation10 + $0x510] sm:$0xff]
        %v3931 = vld [vmem:[#allocation10 + $0x518] sm:$0xff]
        %v3932 = vld [vmem:[#allocation10 + $0x520] sm:$0xff]
        %v3933 = vld [vmem:[#allocation10 + $0x528] sm:$0xff]
        %v3934 = vld [vmem:[#allocation10 + $0x530] sm:$0xff]
        %v3935 = vld [vmem:[#allocation10 + $0x538] sm:$0xff]
        %v3936 = vld [vmem:[#allocation10 + $0x540] sm:$0xff]
        %v3937 = vld [vmem:[#allocation10 + $0x548] sm:$0xff]
        %v3938 = vld [vmem:[#allocation10 + $0x550] sm:$0xff]
        %v3939 = vld [vmem:[#allocation10 + $0x558] sm:$0xff]
        %v3940 = vld [vmem:[#allocation10 + $0x560] sm:$0xff]
        %v3941 = vld [vmem:[#allocation10 + $0x568] sm:$0xff]
        %v3942 = vld [vmem:[#allocation10 + $0x570] sm:$0xff]
        %v3943 = vld [vmem:[#allocation10 + $0x578] sm:$0xff]
        %v3944 = vld [vmem:[#allocation10 + $0x580] sm:$0xff]
        %v3945 = vld [vmem:[#allocation10 + $0x588] sm:$0xff]
        %v3946 = vld [vmem:[#allocation10 + $0x590] sm:$0xff]
        %v3947 = vld [vmem:[#allocation10 + $0x598] sm:$0xff]
        %v3948 = vld [vmem:[#allocation10 + $0x5a0] sm:$0xff]
        %v3949 = vld [vmem:[#allocation10 + $0x5a8] sm:$0xff]
        %v3950 = vld [vmem:[#allocation10 + $0x5b0] sm:$0xff]
        %v3951 = vld [vmem:[#allocation10 + $0x5b8] sm:$0xff]
        %v3952 = vld [vmem:[#allocation10 + $0x5c0] sm:$0xff]
        %v3953 = vld [vmem:[#allocation10 + $0x5c8] sm:$0xff]
        %v3954 = vld [vmem:[#allocation10 + $0x5d0] sm:$0xff]
        %v3955 = vld [vmem:[#allocation10 + $0x5d8] sm:$0xff]
        %v3956 = vld [vmem:[#allocation10 + $0x5e0] sm:$0xff]
        %v3957 = vld [vmem:[#allocation10 + $0x5e8] sm:$0xff]
        %v3958 = vld [vmem:[#allocation10 + $0x5f0] sm:$0xff]
        %v3959 = vld [vmem:[#allocation10 + $0x5f8] sm:$0xff]
        %v3960 = vld [vmem:[#allocation10 + $0x600] sm:$0xff]
        %v3961 = vld [vmem:[#allocation10 + $0x608] sm:$0xff]
        %v3962 = vld [vmem:[#allocation10 + $0x610] sm:$0xff]
        %v3963 = vld [vmem:[#allocation10 + $0x618] sm:$0xff]
        %v3964 = vld [vmem:[#allocation10 + $0x620] sm:$0xff]
        %v3965 = vld [vmem:[#allocation10 + $0x628] sm:$0xff]
        %v3966 = vld [vmem:[#allocation10 + $0x630] sm:$0xff]
        %v3967 = vld [vmem:[#allocation10 + $0x638] sm:$0xff]
        %v3968 = vld [vmem:[#allocation10 + $0x640] sm:$0xff]
        %v3969 = vld [vmem:[#allocation10 + $0x648] sm:$0xff]
        %v3970 = vld [vmem:[#allocation10 + $0x650] sm:$0xff]
        %v3971 = vld [vmem:[#allocation10 + $0x658] sm:$0xff]
        %v3972 = vld [vmem:[#allocation10 + $0x660] sm:$0xff]
        %v3973 = vld [vmem:[#allocation10 + $0x668] sm:$0xff]
        %v3974 = vld [vmem:[#allocation10 + $0x670] sm:$0xff]
        %v3975 = vld [vmem:[#allocation10 + $0x678] sm:$0xff]
        %v3976 = vld [vmem:[#allocation10 + $0x680] sm:$0xff]
        %v3977 = vld [vmem:[#allocation10 + $0x688] sm:$0xff]
        %v3978 = vld [vmem:[#allocation10 + $0x690] sm:$0xff]
        %v3979 = vld [vmem:[#allocation10 + $0x698] sm:$0xff]
        %v3980 = vld [vmem:[#allocation10 + $0x6a0] sm:$0xff]
        %v3981 = vld [vmem:[#allocation10 + $0x6a8] sm:$0xff]
        %v3982 = vld [vmem:[#allocation10 + $0x6b0] sm:$0xff]
        %v3983 = vld [vmem:[#allocation10 + $0x6b8] sm:$0xff]
        %v3984 = vld [vmem:[#allocation10 + $0x6c0] sm:$0xff]
        %v3985 = vld [vmem:[#allocation10 + $0x6c8] sm:$0xff]
        %v3986 = vld [vmem:[#allocation10 + $0x6d0] sm:$0xff]
        %v3987 = vld [vmem:[#allocation10 + $0x6d8] sm:$0xff]
        %v3988 = vld [vmem:[#allocation10 + $0x6e0] sm:$0xff]
        %v3989 = vld [vmem:[#allocation10 + $0x6e8] sm:$0xff]
        %v3990 = vld [vmem:[#allocation10 + $0x6f0] sm:$0xff]
        %v3991 = vld [vmem:[#allocation10 + $0x6f8] sm:$0xff]
        %v3992 = vld [vmem:[#allocation10 + $0x700] sm:$0xff]
        %v3993 = vld [vmem:[#allocation10 + $0x708] sm:$0xff]
        %v3994 = vld [vmem:[#allocation10 + $0x710] sm:$0xff]
        %v3995 = vld [vmem:[#allocation10 + $0x718] sm:$0xff]
        %v3996 = vld [vmem:[#allocation10 + $0x720] sm:$0xff]
        %v3997 = vld [vmem:[#allocation10 + $0x728] sm:$0xff]
        %v3998 = vld [vmem:[#allocation10 + $0x730] sm:$0xff]
        %v3999 = vld [vmem:[#allocation10 + $0x738] sm:$0xff]
        %v4000 = vld [vmem:[#allocation10 + $0x740] sm:$0xff]
        %v4001 = vld [vmem:[#allocation10 + $0x748] sm:$0xff]
        %v4002 = vld [vmem:[#allocation10 + $0x750] sm:$0xff]
        %v4003 = vld [vmem:[#allocation10 + $0x758] sm:$0xff]
        %v4004 = vld [vmem:[#allocation10 + $0x760] sm:$0xff]
        %v4005 = vld [vmem:[#allocation10 + $0x768] sm:$0xff]
        %v4006 = vld [vmem:[#allocation10 + $0x770] sm:$0xff]
        %v4007 = vld [vmem:[#allocation10 + $0x778] sm:$0xff]
        %v4008 = vld [vmem:[#allocation10 + $0x780] sm:$0xff]
        %v4009 = vld [vmem:[#allocation10 + $0x788] sm:$0xff]
        %v4010 = vld [vmem:[#allocation10 + $0x790] sm:$0xff]
        %v4011 = vld [vmem:[#allocation10 + $0x798] sm:$0xff]
        %v4012 = vld [vmem:[#allocation10 + $0x7a0] sm:$0xff]
        %v4013 = vld [vmem:[#allocation10 + $0x7a8] sm:$0xff]
        %v4014 = vld [vmem:[#allocation10 + $0x7b0] sm:$0xff]
        %v4015 = vld [vmem:[#allocation10 + $0x7b8] sm:$0xff]
        %v4016 = vld [vmem:[#allocation10 + $0x7c0] sm:$0xff]
        %v4017 = vld [vmem:[#allocation10 + $0x7c8] sm:$0xff]
        %v4018 = vld [vmem:[#allocation10 + $0x7d0] sm:$0xff]
        %v4019 = vld [vmem:[#allocation10 + $0x7d8] sm:$0xff]
        %v4020 = vld [vmem:[#allocation10 + $0x7e0] sm:$0xff]
        %v4021 = vld [vmem:[#allocation10 + $0x7e8] sm:$0xff]
        %v4022 = vld [vmem:[#allocation10 + $0x7f0] sm:$0xff]
        %v4023 = vld [vmem:[#allocation10 + $0x7f8] sm:$0xff]
        %v4024 = vld [vmem:[#allocation10 + $0x800] sm:$0xff]
        %v4025 = vld [vmem:[#allocation10 + $0x808] sm:$0xff]
        %v4026 = vld [vmem:[#allocation10 + $0x810] sm:$0xff]
        %v4027 = vld [vmem:[#allocation10 + $0x818] sm:$0xff]
        %v4028 = vld [vmem:[#allocation10 + $0x820] sm:$0xff]
        %v4029 = vld [vmem:[#allocation10 + $0x828] sm:$0xff]
        %v4030 = vld [vmem:[#allocation10 + $0x830] sm:$0xff]
        %v4031 = vld [vmem:[#allocation10 + $0x838] sm:$0xff]
        %v4032 = vld [vmem:[#allocation10 + $0x840] sm:$0xff]
        %v4033 = vld [vmem:[#allocation10 + $0x848] sm:$0xff]
        %v4034 = vld [vmem:[#allocation10 + $0x850] sm:$0xff]
        %v4035 = vld [vmem:[#allocation10 + $0x858] sm:$0xff]
        %v4036 = vld [vmem:[#allocation10 + $0x860] sm:$0xff]
        %v4037 = vld [vmem:[#allocation10 + $0x868] sm:$0xff]
        %v4038 = vld [vmem:[#allocation10 + $0x870] sm:$0xff]
        %v4039 = vld [vmem:[#allocation10 + $0x878] sm:$0xff]
        %v4040 = vld [vmem:[#allocation10 + $0x880] sm:$0xff]
        %v4041 = vld [vmem:[#allocation10 + $0x888] sm:$0xff]
        %v4042 = vld [vmem:[#allocation10 + $0x890] sm:$0xff]
        %v4043 = vld [vmem:[#allocation10 + $0x898] sm:$0xff]
        %v4044 = vld [vmem:[#allocation10 + $0x8a0] sm:$0xff]
        %v4045 = vld [vmem:[#allocation10 + $0x8a8] sm:$0xff]
        %v4046 = vld [vmem:[#allocation10 + $0x8b0] sm:$0xff]
        %v4047 = vld [vmem:[#allocation10 + $0x8b8] sm:$0xff]
        %v4048 = vld [vmem:[#allocation10 + $0x8c0] sm:$0xff]
        %v4049 = vld [vmem:[#allocation10 + $0x8c8] sm:$0xff]
        %v4050 = vld [vmem:[#allocation10 + $0x8d0] sm:$0xff]
        %v4051 = vld [vmem:[#allocation10 + $0x8d8] sm:$0xff]
        %v4052 = vld [vmem:[#allocation10 + $0x8e0] sm:$0xff]
        %v4053 = vld [vmem:[#allocation10 + $0x8e8] sm:$0xff]
        %v4054 = vld [vmem:[#allocation10 + $0x8f0] sm:$0xff]
        %v4055 = vld [vmem:[#allocation10 + $0x8f8] sm:$0xff]
        %v4344 = vunpack.c.l.b16 %v3768
        %v4345 = vunpack.c.h.b16 %v3768
        %v4346 = vunpack.c.l.b16 %v3769
        %v4347 = vunpack.c.h.b16 %v3769
        %v4348 = vunpack.c.l.b16 %v3770
        %v4349 = vunpack.c.h.b16 %v3770
        %v4350 = vunpack.c.l.b16 %v3771
        %v4351 = vunpack.c.h.b16 %v3771
        %v4352 = vunpack.c.l.b16 %v3772
        %v4353 = vunpack.c.h.b16 %v3772
        %v4354 = vunpack.c.l.b16 %v3773
        %v4355 = vunpack.c.h.b16 %v3773
        %v4356 = vunpack.c.l.b16 %v3774
        %v4357 = vunpack.c.h.b16 %v3774
        %v4358 = vunpack.c.l.b16 %v3775
        %v4359 = vunpack.c.h.b16 %v3775
        %v4360 = vunpack.c.l.b16 %v3776
        %v4361 = vunpack.c.h.b16 %v3776
        %v4362 = vunpack.c.l.b16 %v3777
        %v4363 = vunpack.c.h.b16 %v3777
        %v4364 = vunpack.c.l.b16 %v3778
        %v4365 = vunpack.c.h.b16 %v3778
        %v4366 = vunpack.c.l.b16 %v3779
        %v4367 = vunpack.c.h.b16 %v3779
        %v4368 = vunpack.c.l.b16 %v3780
        %v4369 = vunpack.c.h.b16 %v3780
        %v4370 = vunpack.c.l.b16 %v3781
        %v4371 = vunpack.c.h.b16 %v3781
        %v4372 = vunpack.c.l.b16 %v3782
        %v4373 = vunpack.c.h.b16 %v3782
        %v4374 = vunpack.c.l.b16 %v3783
        %v4375 = vunpack.c.h.b16 %v3783
        %v4376 = vunpack.c.l.b16 %v3784
        %v4377 = vunpack.c.h.b16 %v3784
        %v4378 = vunpack.c.l.b16 %v3785
        %v4379 = vunpack.c.h.b16 %v3785
        %v4380 = vunpack.c.l.b16 %v3786
        %v4381 = vunpack.c.h.b16 %v3786
        %v4382 = vunpack.c.l.b16 %v3787
        %v4383 = vunpack.c.h.b16 %v3787
        %v4384 = vunpack.c.l.b16 %v3788
        %v4385 = vunpack.c.h.b16 %v3788
        %v4386 = vunpack.c.l.b16 %v3789
        %v4387 = vunpack.c.h.b16 %v3789
        %v4388 = vunpack.c.l.b16 %v3790
        %v4389 = vunpack.c.h.b16 %v3790
        %v4390 = vunpack.c.l.b16 %v3791
        %v4391 = vunpack.c.h.b16 %v3791
        %v4392 = vunpack.c.l.b16 %v3792
        %v4393 = vunpack.c.h.b16 %v3792
        %v4394 = vunpack.c.l.b16 %v3793
        %v4395 = vunpack.c.h.b16 %v3793
        %v4396 = vunpack.c.l.b16 %v3794
        %v4397 = vunpack.c.h.b16 %v3794
        %v4398 = vunpack.c.l.b16 %v3795
        %v4399 = vunpack.c.h.b16 %v3795
        %v4400 = vunpack.c.l.b16 %v3796
        %v4401 = vunpack.c.h.b16 %v3796
        %v4402 = vunpack.c.l.b16 %v3797
        %v4403 = vunpack.c.h.b16 %v3797
        %v4404 = vunpack.c.l.b16 %v3798
        %v4405 = vunpack.c.h.b16 %v3798
        %v4406 = vunpack.c.l.b16 %v3799
        %v4407 = vunpack.c.h.b16 %v3799
        %v4408 = vunpack.c.l.b16 %v3800
        %v4409 = vunpack.c.h.b16 %v3800
        %v4410 = vunpack.c.l.b16 %v3801
        %v4411 = vunpack.c.h.b16 %v3801
        %v4412 = vunpack.c.l.b16 %v3802
        %v4413 = vunpack.c.h.b16 %v3802
        %v4414 = vunpack.c.l.b16 %v3803
        %v4415 = vunpack.c.h.b16 %v3803
        %v4416 = vunpack.c.l.b16 %v3804
        %v4417 = vunpack.c.h.b16 %v3804
        %v4418 = vunpack.c.l.b16 %v3805
        %v4419 = vunpack.c.h.b16 %v3805
        %v4420 = vunpack.c.l.b16 %v3806
        %v4421 = vunpack.c.h.b16 %v3806
        %v4422 = vunpack.c.l.b16 %v3807
        %v4423 = vunpack.c.h.b16 %v3807
        %v4424 = vunpack.c.l.b16 %v3808
        %v4425 = vunpack.c.h.b16 %v3808
        %v4426 = vunpack.c.l.b16 %v3809
        %v4427 = vunpack.c.h.b16 %v3809
        %v4428 = vunpack.c.l.b16 %v3810
        %v4429 = vunpack.c.h.b16 %v3810
        %v4430 = vunpack.c.l.b16 %v3811
        %v4431 = vunpack.c.h.b16 %v3811
        %v4432 = vunpack.c.l.b16 %v3812
        %v4433 = vunpack.c.h.b16 %v3812
        %v4434 = vunpack.c.l.b16 %v3813
        %v4435 = vunpack.c.h.b16 %v3813
        %v4436 = vunpack.c.l.b16 %v3814
        %v4437 = vunpack.c.h.b16 %v3814
        %v4438 = vunpack.c.l.b16 %v3815
        %v4439 = vunpack.c.h.b16 %v3815
        %v4440 = vunpack.c.l.b16 %v3816
        %v4441 = vunpack.c.h.b16 %v3816
        %v4442 = vunpack.c.l.b16 %v3817
        %v4443 = vunpack.c.h.b16 %v3817
        %v4444 = vunpack.c.l.b16 %v3818
        %v4445 = vunpack.c.h.b16 %v3818
        %v4446 = vunpack.c.l.b16 %v3819
        %v4447 = vunpack.c.h.b16 %v3819
        %v4448 = vunpack.c.l.b16 %v3820
        %v4449 = vunpack.c.h.b16 %v3820
        %v4450 = vunpack.c.l.b16 %v3821
        %v4451 = vunpack.c.h.b16 %v3821
        %v4452 = vunpack.c.l.b16 %v3822
        %v4453 = vunpack.c.h.b16 %v3822
        %v4454 = vunpack.c.l.b16 %v3823
        %v4455 = vunpack.c.h.b16 %v3823
        %v4456 = vunpack.c.l.b16 %v3824
        %v4457 = vunpack.c.h.b16 %v3824
        %v4458 = vunpack.c.l.b16 %v3825
        %v4459 = vunpack.c.h.b16 %v3825
        %v4460 = vunpack.c.l.b16 %v3826
        %v4461 = vunpack.c.h.b16 %v3826
        %v4462 = vunpack.c.l.b16 %v3827
        %v4463 = vunpack.c.h.b16 %v3827
        %v4464 = vunpack.c.l.b16 %v3828
        %v4465 = vunpack.c.h.b16 %v3828
        %v4466 = vunpack.c.l.b16 %v3829
        %v4467 = vunpack.c.h.b16 %v3829
        %v4468 = vunpack.c.l.b16 %v3830
        %v4469 = vunpack.c.h.b16 %v3830
        %v4470 = vunpack.c.l.b16 %v3831
        %v4471 = vunpack.c.h.b16 %v3831
        %v4472 = vunpack.c.l.b16 %v3832
        %v4473 = vunpack.c.h.b16 %v3832
        %v4474 = vunpack.c.l.b16 %v3833
        %v4475 = vunpack.c.h.b16 %v3833
        %v4476 = vunpack.c.l.b16 %v3834
        %v4477 = vunpack.c.h.b16 %v3834
        %v4478 = vunpack.c.l.b16 %v3835
        %v4479 = vunpack.c.h.b16 %v3835
        %v4480 = vunpack.c.l.b16 %v3836
        %v4481 = vunpack.c.h.b16 %v3836
        %v4482 = vunpack.c.l.b16 %v3837
        %v4483 = vunpack.c.h.b16 %v3837
        %v4484 = vunpack.c.l.b16 %v3838
        %v4485 = vunpack.c.h.b16 %v3838
        %v4486 = vunpack.c.l.b16 %v3839
        %v4487 = vunpack.c.h.b16 %v3839
        %v4488 = vunpack.c.l.b16 %v3840
        %v4489 = vunpack.c.h.b16 %v3840
        %v4490 = vunpack.c.l.b16 %v3841
        %v4491 = vunpack.c.h.b16 %v3841
        %v4492 = vunpack.c.l.b16 %v3842
        %v4493 = vunpack.c.h.b16 %v3842
        %v4494 = vunpack.c.l.b16 %v3843
        %v4495 = vunpack.c.h.b16 %v3843
        %v4496 = vunpack.c.l.b16 %v3844
        %v4497 = vunpack.c.h.b16 %v3844
        %v4498 = vunpack.c.l.b16 %v3845
        %v4499 = vunpack.c.h.b16 %v3845
        %v4500 = vunpack.c.l.b16 %v3846
        %v4501 = vunpack.c.h.b16 %v3846
        %v4502 = vunpack.c.l.b16 %v3847
        %v4503 = vunpack.c.h.b16 %v3847
        %v4504 = vunpack.c.l.b16 %v3848
        %v4505 = vunpack.c.h.b16 %v3848
        %v4506 = vunpack.c.l.b16 %v3849
        %v4507 = vunpack.c.h.b16 %v3849
        %v4508 = vunpack.c.l.b16 %v3850
        %v4509 = vunpack.c.h.b16 %v3850
        %v4510 = vunpack.c.l.b16 %v3851
        %v4511 = vunpack.c.h.b16 %v3851
        %v4512 = vunpack.c.l.b16 %v3852
        %v4513 = vunpack.c.h.b16 %v3852
        %v4514 = vunpack.c.l.b16 %v3853
        %v4515 = vunpack.c.h.b16 %v3853
        %v4516 = vunpack.c.l.b16 %v3854
        %v4517 = vunpack.c.h.b16 %v3854
        %v4518 = vunpack.c.l.b16 %v3855
        %v4519 = vunpack.c.h.b16 %v3855
        %v4520 = vunpack.c.l.b16 %v3856
        %v4521 = vunpack.c.h.b16 %v3856
        %v4522 = vunpack.c.l.b16 %v3857
        %v4523 = vunpack.c.h.b16 %v3857
        %v4524 = vunpack.c.l.b16 %v3858
        %v4525 = vunpack.c.h.b16 %v3858
        %v4526 = vunpack.c.l.b16 %v3859
        %v4527 = vunpack.c.h.b16 %v3859
        %v4528 = vunpack.c.l.b16 %v3860
        %v4529 = vunpack.c.h.b16 %v3860
        %v4530 = vunpack.c.l.b16 %v3861
        %v4531 = vunpack.c.h.b16 %v3861
        %v4532 = vunpack.c.l.b16 %v3862
        %v4533 = vunpack.c.h.b16 %v3862
        %v4534 = vunpack.c.l.b16 %v3863
        %v4535 = vunpack.c.h.b16 %v3863
        %v4536 = vunpack.c.l.b16 %v3864
        %v4537 = vunpack.c.h.b16 %v3864
        %v4538 = vunpack.c.l.b16 %v3865
        %v4539 = vunpack.c.h.b16 %v3865
        %v4540 = vunpack.c.l.b16 %v3866
        %v4541 = vunpack.c.h.b16 %v3866
        %v4542 = vunpack.c.l.b16 %v3867
        %v4543 = vunpack.c.h.b16 %v3867
        %v4544 = vunpack.c.l.b16 %v3868
        %v4545 = vunpack.c.h.b16 %v3868
        %v4546 = vunpack.c.l.b16 %v3869
        %v4547 = vunpack.c.h.b16 %v3869
        %v4548 = vunpack.c.l.b16 %v3870
        %v4549 = vunpack.c.h.b16 %v3870
        %v4550 = vunpack.c.l.b16 %v3871
        %v4551 = vunpack.c.h.b16 %v3871
        %v4552 = vunpack.c.l.b16 %v3872
        %v4553 = vunpack.c.h.b16 %v3872
        %v4554 = vunpack.c.l.b16 %v3873
        %v4555 = vunpack.c.h.b16 %v3873
        %v4556 = vunpack.c.l.b16 %v3874
        %v4557 = vunpack.c.h.b16 %v3874
        %v4558 = vunpack.c.l.b16 %v3875
        %v4559 = vunpack.c.h.b16 %v3875
        %v4560 = vunpack.c.l.b16 %v3876
        %v4561 = vunpack.c.h.b16 %v3876
        %v4562 = vunpack.c.l.b16 %v3877
        %v4563 = vunpack.c.h.b16 %v3877
        %v4564 = vunpack.c.l.b16 %v3878
        %v4565 = vunpack.c.h.b16 %v3878
        %v4566 = vunpack.c.l.b16 %v3879
        %v4567 = vunpack.c.h.b16 %v3879
        %v4568 = vunpack.c.l.b16 %v3880
        %v4569 = vunpack.c.h.b16 %v3880
        %v4570 = vunpack.c.l.b16 %v3881
        %v4571 = vunpack.c.h.b16 %v3881
        %v4572 = vunpack.c.l.b16 %v3882
        %v4573 = vunpack.c.h.b16 %v3882
        %v4574 = vunpack.c.l.b16 %v3883
        %v4575 = vunpack.c.h.b16 %v3883
        %v4576 = vunpack.c.l.b16 %v3884
        %v4577 = vunpack.c.h.b16 %v3884
        %v4578 = vunpack.c.l.b16 %v3885
        %v4579 = vunpack.c.h.b16 %v3885
        %v4580 = vunpack.c.l.b16 %v3886
        %v4581 = vunpack.c.h.b16 %v3886
        %v4582 = vunpack.c.l.b16 %v3887
        %v4583 = vunpack.c.h.b16 %v3887
        %v4584 = vunpack.c.l.b16 %v3888
        %v4585 = vunpack.c.h.b16 %v3888
        %v4586 = vunpack.c.l.b16 %v3889
        %v4587 = vunpack.c.h.b16 %v3889
        %v4588 = vunpack.c.l.b16 %v3890
        %v4589 = vunpack.c.h.b16 %v3890
        %v4590 = vunpack.c.l.b16 %v3891
        %v4591 = vunpack.c.h.b16 %v3891
        %v4592 = vunpack.c.l.b16 %v3892
        %v4593 = vunpack.c.h.b16 %v3892
        %v4594 = vunpack.c.l.b16 %v3893
        %v4595 = vunpack.c.h.b16 %v3893
        %v4596 = vunpack.c.l.b16 %v3894
        %v4597 = vunpack.c.h.b16 %v3894
        %v4598 = vunpack.c.l.b16 %v3895
        %v4599 = vunpack.c.h.b16 %v3895
        %v4600 = vunpack.c.l.b16 %v3896
        %v4601 = vunpack.c.h.b16 %v3896
        %v4602 = vunpack.c.l.b16 %v3897
        %v4603 = vunpack.c.h.b16 %v3897
        %v4604 = vunpack.c.l.b16 %v3898
        %v4605 = vunpack.c.h.b16 %v3898
        %v4606 = vunpack.c.l.b16 %v3899
        %v4607 = vunpack.c.h.b16 %v3899
        %v4608 = vunpack.c.l.b16 %v3900
        %v4609 = vunpack.c.h.b16 %v3900
        %v4610 = vunpack.c.l.b16 %v3901
        %v4611 = vunpack.c.h.b16 %v3901
        %v4612 = vunpack.c.l.b16 %v3902
        %v4613 = vunpack.c.h.b16 %v3902
        %v4614 = vunpack.c.l.b16 %v3903
        %v4615 = vunpack.c.h.b16 %v3903
        %v4616 = vunpack.c.l.b16 %v3904
        %v4617 = vunpack.c.h.b16 %v3904
        %v4618 = vunpack.c.l.b16 %v3905
        %v4619 = vunpack.c.h.b16 %v3905
        %v4620 = vunpack.c.l.b16 %v3906
        %v4621 = vunpack.c.h.b16 %v3906
        %v4622 = vunpack.c.l.b16 %v3907
        %v4623 = vunpack.c.h.b16 %v3907
        %v4624 = vunpack.c.l.b16 %v3908
        %v4625 = vunpack.c.h.b16 %v3908
        %v4626 = vunpack.c.l.b16 %v3909
        %v4627 = vunpack.c.h.b16 %v3909
        %v4628 = vunpack.c.l.b16 %v3910
        %v4629 = vunpack.c.h.b16 %v3910
        %v4630 = vunpack.c.l.b16 %v3911
        %v4631 = vunpack.c.h.b16 %v3911
        %v4632 = vunpack.c.l.b16 %v3912
        %v4633 = vunpack.c.h.b16 %v3912
        %v4634 = vunpack.c.l.b16 %v3913
        %v4635 = vunpack.c.h.b16 %v3913
        %v4636 = vunpack.c.l.b16 %v3914
        %v4637 = vunpack.c.h.b16 %v3914
        %v4638 = vunpack.c.l.b16 %v3915
        %v4639 = vunpack.c.h.b16 %v3915
        %v4640 = vunpack.c.l.b16 %v3916
        %v4641 = vunpack.c.h.b16 %v3916
        %v4642 = vunpack.c.l.b16 %v3917
        %v4643 = vunpack.c.h.b16 %v3917
        %v4644 = vunpack.c.l.b16 %v3918
        %v4645 = vunpack.c.h.b16 %v3918
        %v4646 = vunpack.c.l.b16 %v3919
        %v4647 = vunpack.c.h.b16 %v3919
        %v4648 = vunpack.c.l.b16 %v3920
        %v4649 = vunpack.c.h.b16 %v3920
        %v4650 = vunpack.c.l.b16 %v3921
        %v4651 = vunpack.c.h.b16 %v3921
        %v4652 = vunpack.c.l.b16 %v3922
        %v4653 = vunpack.c.h.b16 %v3922
        %v4654 = vunpack.c.l.b16 %v3923
        %v4655 = vunpack.c.h.b16 %v3923
        %v4656 = vunpack.c.l.b16 %v3924
        %v4657 = vunpack.c.h.b16 %v3924
        %v4658 = vunpack.c.l.b16 %v3925
        %v4659 = vunpack.c.h.b16 %v3925
        %v4660 = vunpack.c.l.b16 %v3926
        %v4661 = vunpack.c.h.b16 %v3926
        %v4662 = vunpack.c.l.b16 %v3927
        %v4663 = vunpack.c.h.b16 %v3927
        %v4664 = vunpack.c.l.b16 %v3928
        %v4665 = vunpack.c.h.b16 %v3928
        %v4666 = vunpack.c.l.b16 %v3929
        %v4667 = vunpack.c.h.b16 %v3929
        %v4668 = vunpack.c.l.b16 %v3930
        %v4669 = vunpack.c.h.b16 %v3930
        %v4670 = vunpack.c.l.b16 %v3931
        %v4671 = vunpack.c.h.b16 %v3931
        %v4672 = vunpack.c.l.b16 %v3932
        %v4673 = vunpack.c.h.b16 %v3932
        %v4674 = vunpack.c.l.b16 %v3933
        %v4675 = vunpack.c.h.b16 %v3933
        %v4676 = vunpack.c.l.b16 %v3934
        %v4677 = vunpack.c.h.b16 %v3934
        %v4678 = vunpack.c.l.b16 %v3935
        %v4679 = vunpack.c.h.b16 %v3935
        %v4680 = vunpack.c.l.b16 %v3936
        %v4681 = vunpack.c.h.b16 %v3936
        %v4682 = vunpack.c.l.b16 %v3937
        %v4683 = vunpack.c.h.b16 %v3937
        %v4684 = vunpack.c.l.b16 %v3938
        %v4685 = vunpack.c.h.b16 %v3938
        %v4686 = vunpack.c.l.b16 %v3939
        %v4687 = vunpack.c.h.b16 %v3939
        %v4688 = vunpack.c.l.b16 %v3940
        %v4689 = vunpack.c.h.b16 %v3940
        %v4690 = vunpack.c.l.b16 %v3941
        %v4691 = vunpack.c.h.b16 %v3941
        %v4692 = vunpack.c.l.b16 %v3942
        %v4693 = vunpack.c.h.b16 %v3942
        %v4694 = vunpack.c.l.b16 %v3943
        %v4695 = vunpack.c.h.b16 %v3943
        %v4696 = vunpack.c.l.b16 %v3944
        %v4697 = vunpack.c.h.b16 %v3944
        %v4698 = vunpack.c.l.b16 %v3945
        %v4699 = vunpack.c.h.b16 %v3945
        %v4700 = vunpack.c.l.b16 %v3946
        %v4701 = vunpack.c.h.b16 %v3946
        %v4702 = vunpack.c.l.b16 %v3947
        %v4703 = vunpack.c.h.b16 %v3947
        %v4704 = vunpack.c.l.b16 %v3948
        %v4705 = vunpack.c.h.b16 %v3948
        %v4706 = vunpack.c.l.b16 %v3949
        %v4707 = vunpack.c.h.b16 %v3949
        %v4708 = vunpack.c.l.b16 %v3950
        %v4709 = vunpack.c.h.b16 %v3950
        %v4710 = vunpack.c.l.b16 %v3951
        %v4711 = vunpack.c.h.b16 %v3951
        %v4712 = vunpack.c.l.b16 %v3952
        %v4713 = vunpack.c.h.b16 %v3952
        %v4714 = vunpack.c.l.b16 %v3953
        %v4715 = vunpack.c.h.b16 %v3953
        %v4716 = vunpack.c.l.b16 %v3954
        %v4717 = vunpack.c.h.b16 %v3954
        %v4718 = vunpack.c.l.b16 %v3955
        %v4719 = vunpack.c.h.b16 %v3955
        %v4720 = vunpack.c.l.b16 %v3956
        %v4721 = vunpack.c.h.b16 %v3956
        %v4722 = vunpack.c.l.b16 %v3957
        %v4723 = vunpack.c.h.b16 %v3957
        %v4724 = vunpack.c.l.b16 %v3958
        %v4725 = vunpack.c.h.b16 %v3958
        %v4726 = vunpack.c.l.b16 %v3959
        %v4727 = vunpack.c.h.b16 %v3959
        %v4728 = vunpack.c.l.b16 %v3960
        %v4729 = vunpack.c.h.b16 %v3960
        %v4730 = vunpack.c.l.b16 %v3961
        %v4731 = vunpack.c.h.b16 %v3961
        %v4732 = vunpack.c.l.b16 %v3962
        %v4733 = vunpack.c.h.b16 %v3962
        %v4734 = vunpack.c.l.b16 %v3963
        %v4735 = vunpack.c.h.b16 %v3963
        %v4736 = vunpack.c.l.b16 %v3964
        %v4737 = vunpack.c.h.b16 %v3964
        %v4738 = vunpack.c.l.b16 %v3965
        %v4739 = vunpack.c.h.b16 %v3965
        %v4740 = vunpack.c.l.b16 %v3966
        %v4741 = vunpack.c.h.b16 %v3966
        %v4742 = vunpack.c.l.b16 %v3967
        %v4743 = vunpack.c.h.b16 %v3967
        %v4744 = vunpack.c.l.b16 %v3968
        %v4745 = vunpack.c.h.b16 %v3968
        %v4746 = vunpack.c.l.b16 %v3969
        %v4747 = vunpack.c.h.b16 %v3969
        %v4748 = vunpack.c.l.b16 %v3970
        %v4749 = vunpack.c.h.b16 %v3970
        %v4750 = vunpack.c.l.b16 %v3971
        %v4751 = vunpack.c.h.b16 %v3971
        %v4752 = vunpack.c.l.b16 %v3972
        %v4753 = vunpack.c.h.b16 %v3972
        %v4754 = vunpack.c.l.b16 %v3973
        %v4755 = vunpack.c.h.b16 %v3973
        %v4756 = vunpack.c.l.b16 %v3974
        %v4757 = vunpack.c.h.b16 %v3974
        %v4758 = vunpack.c.l.b16 %v3975
        %v4759 = vunpack.c.h.b16 %v3975
        %v4760 = vunpack.c.l.b16 %v3976
        %v4761 = vunpack.c.h.b16 %v3976
        %v4762 = vunpack.c.l.b16 %v3977
        %v4763 = vunpack.c.h.b16 %v3977
        %v4764 = vunpack.c.l.b16 %v3978
        %v4765 = vunpack.c.h.b16 %v3978
        %v4766 = vunpack.c.l.b16 %v3979
        %v4767 = vunpack.c.h.b16 %v3979
        %v4768 = vunpack.c.l.b16 %v3980
        %v4769 = vunpack.c.h.b16 %v3980
        %v4770 = vunpack.c.l.b16 %v3981
        %v4771 = vunpack.c.h.b16 %v3981
        %v4772 = vunpack.c.l.b16 %v3982
        %v4773 = vunpack.c.h.b16 %v3982
        %v4774 = vunpack.c.l.b16 %v3983
        %v4775 = vunpack.c.h.b16 %v3983
        %v4776 = vunpack.c.l.b16 %v3984
        %v4777 = vunpack.c.h.b16 %v3984
        %v4778 = vunpack.c.l.b16 %v3985
        %v4779 = vunpack.c.h.b16 %v3985
        %v4780 = vunpack.c.l.b16 %v3986
        %v4781 = vunpack.c.h.b16 %v3986
        %v4782 = vunpack.c.l.b16 %v3987
        %v4783 = vunpack.c.h.b16 %v3987
        %v4784 = vunpack.c.l.b16 %v3988
        %v4785 = vunpack.c.h.b16 %v3988
        %v4786 = vunpack.c.l.b16 %v3989
        %v4787 = vunpack.c.h.b16 %v3989
        %v4788 = vunpack.c.l.b16 %v3990
        %v4789 = vunpack.c.h.b16 %v3990
        %v4790 = vunpack.c.l.b16 %v3991
        %v4791 = vunpack.c.h.b16 %v3991
        %v4792 = vunpack.c.l.b16 %v3992
        %v4793 = vunpack.c.h.b16 %v3992
        %v4794 = vunpack.c.l.b16 %v3993
        %v4795 = vunpack.c.h.b16 %v3993
        %v4796 = vunpack.c.l.b16 %v3994
        %v4797 = vunpack.c.h.b16 %v3994
        %v4798 = vunpack.c.l.b16 %v3995
        %v4799 = vunpack.c.h.b16 %v3995
        %v4800 = vunpack.c.l.b16 %v3996
        %v4801 = vunpack.c.h.b16 %v3996
        %v4802 = vunpack.c.l.b16 %v3997
        %v4803 = vunpack.c.h.b16 %v3997
        %v4804 = vunpack.c.l.b16 %v3998
        %v4805 = vunpack.c.h.b16 %v3998
        %v4806 = vunpack.c.l.b16 %v3999
        %v4807 = vunpack.c.h.b16 %v3999
        %v4808 = vunpack.c.l.b16 %v4000
        %v4809 = vunpack.c.h.b16 %v4000
        %v4810 = vunpack.c.l.b16 %v4001
        %v4811 = vunpack.c.h.b16 %v4001
        %v4812 = vunpack.c.l.b16 %v4002
        %v4813 = vunpack.c.h.b16 %v4002
        %v4814 = vunpack.c.l.b16 %v4003
        %v4815 = vunpack.c.h.b16 %v4003
        %v4816 = vunpack.c.l.b16 %v4004
        %v4817 = vunpack.c.h.b16 %v4004
        %v4818 = vunpack.c.l.b16 %v4005
        %v4819 = vunpack.c.h.b16 %v4005
        %v4820 = vunpack.c.l.b16 %v4006
        %v4821 = vunpack.c.h.b16 %v4006
        %v4822 = vunpack.c.l.b16 %v4007
        %v4823 = vunpack.c.h.b16 %v4007
        %v4824 = vunpack.c.l.b16 %v4008
        %v4825 = vunpack.c.h.b16 %v4008
        %v4826 = vunpack.c.l.b16 %v4009
        %v4827 = vunpack.c.h.b16 %v4009
        %v4828 = vunpack.c.l.b16 %v4010
        %v4829 = vunpack.c.h.b16 %v4010
        %v4830 = vunpack.c.l.b16 %v4011
        %v4831 = vunpack.c.h.b16 %v4011
        %v4832 = vunpack.c.l.b16 %v4012
        %v4833 = vunpack.c.h.b16 %v4012
        %v4834 = vunpack.c.l.b16 %v4013
        %v4835 = vunpack.c.h.b16 %v4013
        %v4836 = vunpack.c.l.b16 %v4014
        %v4837 = vunpack.c.h.b16 %v4014
        %v4838 = vunpack.c.l.b16 %v4015
        %v4839 = vunpack.c.h.b16 %v4015
        %v4840 = vunpack.c.l.b16 %v4016
        %v4841 = vunpack.c.h.b16 %v4016
        %v4842 = vunpack.c.l.b16 %v4017
        %v4843 = vunpack.c.h.b16 %v4017
        %v4844 = vunpack.c.l.b16 %v4018
        %v4845 = vunpack.c.h.b16 %v4018
        %v4846 = vunpack.c.l.b16 %v4019
        %v4847 = vunpack.c.h.b16 %v4019
        %v4848 = vunpack.c.l.b16 %v4020
        %v4849 = vunpack.c.h.b16 %v4020
        %v4850 = vunpack.c.l.b16 %v4021
        %v4851 = vunpack.c.h.b16 %v4021
        %v4852 = vunpack.c.l.b16 %v4022
        %v4853 = vunpack.c.h.b16 %v4022
        %v4854 = vunpack.c.l.b16 %v4023
        %v4855 = vunpack.c.h.b16 %v4023
        %v4856 = vunpack.c.l.b16 %v4024
        %v4857 = vunpack.c.h.b16 %v4024
        %v4858 = vunpack.c.l.b16 %v4025
        %v4859 = vunpack.c.h.b16 %v4025
        %v4860 = vunpack.c.l.b16 %v4026
        %v4861 = vunpack.c.h.b16 %v4026
        %v4862 = vunpack.c.l.b16 %v4027
        %v4863 = vunpack.c.h.b16 %v4027
        %v4864 = vunpack.c.l.b16 %v4028
        %v4865 = vunpack.c.h.b16 %v4028
        %v4866 = vunpack.c.l.b16 %v4029
        %v4867 = vunpack.c.h.b16 %v4029
        %v4868 = vunpack.c.l.b16 %v4030
        %v4869 = vunpack.c.h.b16 %v4030
        %v4870 = vunpack.c.l.b16 %v4031
        %v4871 = vunpack.c.h.b16 %v4031
        %v4872 = vunpack.c.l.b16 %v4032
        %v4873 = vunpack.c.h.b16 %v4032
        %v4874 = vunpack.c.l.b16 %v4033
        %v4875 = vunpack.c.h.b16 %v4033
        %v4876 = vunpack.c.l.b16 %v4034
        %v4877 = vunpack.c.h.b16 %v4034
        %v4878 = vunpack.c.l.b16 %v4035
        %v4879 = vunpack.c.h.b16 %v4035
        %v4880 = vunpack.c.l.b16 %v4036
        %v4881 = vunpack.c.h.b16 %v4036
        %v4882 = vunpack.c.l.b16 %v4037
        %v4883 = vunpack.c.h.b16 %v4037
        %v4884 = vunpack.c.l.b16 %v4038
        %v4885 = vunpack.c.h.b16 %v4038
        %v4886 = vunpack.c.l.b16 %v4039
        %v4887 = vunpack.c.h.b16 %v4039
        %v4888 = vunpack.c.l.b16 %v4040
        %v4889 = vunpack.c.h.b16 %v4040
        %v4890 = vunpack.c.l.b16 %v4041
        %v4891 = vunpack.c.h.b16 %v4041
        %v4892 = vunpack.c.l.b16 %v4042
        %v4893 = vunpack.c.h.b16 %v4042
        %v4894 = vunpack.c.l.b16 %v4043
        %v4895 = vunpack.c.h.b16 %v4043
        %v4896 = vunpack.c.l.b16 %v4044
        %v4897 = vunpack.c.h.b16 %v4044
        %v4898 = vunpack.c.l.b16 %v4045
        %v4899 = vunpack.c.h.b16 %v4045
        %v4900 = vunpack.c.l.b16 %v4046
        %v4901 = vunpack.c.h.b16 %v4046
        %v4902 = vunpack.c.l.b16 %v4047
        %v4903 = vunpack.c.h.b16 %v4047
        %v4904 = vunpack.c.l.b16 %v4048
        %v4905 = vunpack.c.h.b16 %v4048
        %v4906 = vunpack.c.l.b16 %v4049
        %v4907 = vunpack.c.h.b16 %v4049
        %v4908 = vunpack.c.l.b16 %v4050
        %v4909 = vunpack.c.h.b16 %v4050
        %v4910 = vunpack.c.l.b16 %v4051
        %v4911 = vunpack.c.h.b16 %v4051
        %v4912 = vunpack.c.l.b16 %v4052
        %v4913 = vunpack.c.h.b16 %v4052
        %v4914 = vunpack.c.l.b16 %v4053
        %v4915 = vunpack.c.h.b16 %v4053
        %v4916 = vunpack.c.l.b16 %v4054
        %v4917 = vunpack.c.h.b16 %v4054
        %v4918 = vunpack.c.l.b16 %v4055
        %v4919 = vunpack.c.h.b16 %v4055
        %v4920 = vpack.c.b16 %v4348, %v4344
        %v4921 = vpack.c.b16 %v4349, %v4345
        %v4922 = vpack.c.b16 %v4350, %v4346
        %v4923 = vpack.c.b16 %v4351, %v4347
        %v4924 = vpack.c.b16 %v4356, %v4352
        %v4925 = vpack.c.b16 %v4357, %v4353
        %v4926 = vpack.c.b16 %v4358, %v4354
        %v4927 = vpack.c.b16 %v4359, %v4355
        %v4928 = vpack.c.b16 %v4364, %v4360
        %v4929 = vpack.c.b16 %v4365, %v4361
        %v4930 = vpack.c.b16 %v4366, %v4362
        %v4931 = vpack.c.b16 %v4367, %v4363
        %v4932 = vpack.c.b16 %v4372, %v4368
        %v4933 = vpack.c.b16 %v4373, %v4369
        %v4934 = vpack.c.b16 %v4374, %v4370
        %v4935 = vpack.c.b16 %v4375, %v4371
        %v4936 = vpack.c.b16 %v4380, %v4376
        %v4937 = vpack.c.b16 %v4381, %v4377
        %v4938 = vpack.c.b16 %v4382, %v4378
        %v4939 = vpack.c.b16 %v4383, %v4379
        %v4940 = vpack.c.b16 %v4388, %v4384
        %v4941 = vpack.c.b16 %v4389, %v4385
        %v4942 = vpack.c.b16 %v4390, %v4386
        %v4943 = vpack.c.b16 %v4391, %v4387
        %v4944 = vpack.c.b16 %v4396, %v4392
        %v4945 = vpack.c.b16 %v4397, %v4393
        %v4946 = vpack.c.b16 %v4398, %v4394
        %v4947 = vpack.c.b16 %v4399, %v4395
        %v4948 = vpack.c.b16 %v4404, %v4400
        %v4949 = vpack.c.b16 %v4405, %v4401
        %v4950 = vpack.c.b16 %v4406, %v4402
        %v4951 = vpack.c.b16 %v4407, %v4403
        %v4952 = vpack.c.b16 %v4412, %v4408
        %v4953 = vpack.c.b16 %v4413, %v4409
        %v4954 = vpack.c.b16 %v4414, %v4410
        %v4955 = vpack.c.b16 %v4415, %v4411
        %v4956 = vpack.c.b16 %v4420, %v4416
        %v4957 = vpack.c.b16 %v4421, %v4417
        %v4958 = vpack.c.b16 %v4422, %v4418
        %v4959 = vpack.c.b16 %v4423, %v4419
        %v4960 = vpack.c.b16 %v4428, %v4424
        %v4961 = vpack.c.b16 %v4429, %v4425
        %v4962 = vpack.c.b16 %v4430, %v4426
        %v4963 = vpack.c.b16 %v4431, %v4427
        %v4964 = vpack.c.b16 %v4436, %v4432
        %v4965 = vpack.c.b16 %v4437, %v4433
        %v4966 = vpack.c.b16 %v4438, %v4434
        %v4967 = vpack.c.b16 %v4439, %v4435
        %v4968 = vpack.c.b16 %v4444, %v4440
        %v4969 = vpack.c.b16 %v4445, %v4441
        %v4970 = vpack.c.b16 %v4446, %v4442
        %v4971 = vpack.c.b16 %v4447, %v4443
        %v4972 = vpack.c.b16 %v4452, %v4448
        %v4973 = vpack.c.b16 %v4453, %v4449
        %v4974 = vpack.c.b16 %v4454, %v4450
        %v4975 = vpack.c.b16 %v4455, %v4451
        %v4976 = vpack.c.b16 %v4460, %v4456
        %v4977 = vpack.c.b16 %v4461, %v4457
        %v4978 = vpack.c.b16 %v4462, %v4458
        %v4979 = vpack.c.b16 %v4463, %v4459
        %v4980 = vpack.c.b16 %v4468, %v4464
        %v4981 = vpack.c.b16 %v4469, %v4465
        %v4982 = vpack.c.b16 %v4470, %v4466
        %v4983 = vpack.c.b16 %v4471, %v4467
        %v4984 = vpack.c.b16 %v4476, %v4472
        %v4985 = vpack.c.b16 %v4477, %v4473
        %v4986 = vpack.c.b16 %v4478, %v4474
        %v4987 = vpack.c.b16 %v4479, %v4475
        %v4988 = vpack.c.b16 %v4484, %v4480
        %v4989 = vpack.c.b16 %v4485, %v4481
        %v4990 = vpack.c.b16 %v4486, %v4482
        %v4991 = vpack.c.b16 %v4487, %v4483
        %v4992 = vpack.c.b16 %v4492, %v4488
        %v4993 = vpack.c.b16 %v4493, %v4489
        %v4994 = vpack.c.b16 %v4494, %v4490
        %v4995 = vpack.c.b16 %v4495, %v4491
        %v4996 = vpack.c.b16 %v4500, %v4496
        %v4997 = vpack.c.b16 %v4501, %v4497
        %v4998 = vpack.c.b16 %v4502, %v4498
        %v4999 = vpack.c.b16 %v4503, %v4499
        %v5000 = vpack.c.b16 %v4508, %v4504
        %v5001 = vpack.c.b16 %v4509, %v4505
        %v5002 = vpack.c.b16 %v4510, %v4506
        %v5003 = vpack.c.b16 %v4511, %v4507
        %v5004 = vpack.c.b16 %v4516, %v4512
        %v5005 = vpack.c.b16 %v4517, %v4513
        %v5006 = vpack.c.b16 %v4518, %v4514
        %v5007 = vpack.c.b16 %v4519, %v4515
        %v5008 = vpack.c.b16 %v4524, %v4520
        %v5009 = vpack.c.b16 %v4525, %v4521
        %v5010 = vpack.c.b16 %v4526, %v4522
        %v5011 = vpack.c.b16 %v4527, %v4523
        %v5012 = vpack.c.b16 %v4532, %v4528
        %v5013 = vpack.c.b16 %v4533, %v4529
        %v5014 = vpack.c.b16 %v4534, %v4530
        %v5015 = vpack.c.b16 %v4535, %v4531
        %v5016 = vpack.c.b16 %v4540, %v4536
        %v5017 = vpack.c.b16 %v4541, %v4537
        %v5018 = vpack.c.b16 %v4542, %v4538
        %v5019 = vpack.c.b16 %v4543, %v4539
        %v5020 = vpack.c.b16 %v4548, %v4544
        %v5021 = vpack.c.b16 %v4549, %v4545
        %v5022 = vpack.c.b16 %v4550, %v4546
        %v5023 = vpack.c.b16 %v4551, %v4547
        %v5024 = vpack.c.b16 %v4556, %v4552
        %v5025 = vpack.c.b16 %v4557, %v4553
        %v5026 = vpack.c.b16 %v4558, %v4554
        %v5027 = vpack.c.b16 %v4559, %v4555
        %v5028 = vpack.c.b16 %v4564, %v4560
        %v5029 = vpack.c.b16 %v4565, %v4561
        %v5030 = vpack.c.b16 %v4566, %v4562
        %v5031 = vpack.c.b16 %v4567, %v4563
        %v5032 = vpack.c.b16 %v4572, %v4568
        %v5033 = vpack.c.b16 %v4573, %v4569
        %v5034 = vpack.c.b16 %v4574, %v4570
        %v5035 = vpack.c.b16 %v4575, %v4571
        %v5036 = vpack.c.b16 %v4580, %v4576
        %v5037 = vpack.c.b16 %v4581, %v4577
        %v5038 = vpack.c.b16 %v4582, %v4578
        %v5039 = vpack.c.b16 %v4583, %v4579
        %v5040 = vpack.c.b16 %v4588, %v4584
        %v5041 = vpack.c.b16 %v4589, %v4585
        %v5042 = vpack.c.b16 %v4590, %v4586
        %v5043 = vpack.c.b16 %v4591, %v4587
        %v5044 = vpack.c.b16 %v4596, %v4592
        %v5045 = vpack.c.b16 %v4597, %v4593
        %v5046 = vpack.c.b16 %v4598, %v4594
        %v5047 = vpack.c.b16 %v4599, %v4595
        %v5048 = vpack.c.b16 %v4604, %v4600
        %v5049 = vpack.c.b16 %v4605, %v4601
        %v5050 = vpack.c.b16 %v4606, %v4602
        %v5051 = vpack.c.b16 %v4607, %v4603
        %v5052 = vpack.c.b16 %v4612, %v4608
        %v5053 = vpack.c.b16 %v4613, %v4609
        %v5054 = vpack.c.b16 %v4614, %v4610
        %v5055 = vpack.c.b16 %v4615, %v4611
        %v5056 = vpack.c.b16 %v4620, %v4616
        %v5057 = vpack.c.b16 %v4621, %v4617
        %v5058 = vpack.c.b16 %v4622, %v4618
        %v5059 = vpack.c.b16 %v4623, %v4619
        %v5060 = vpack.c.b16 %v4628, %v4624
        %v5061 = vpack.c.b16 %v4629, %v4625
        %v5062 = vpack.c.b16 %v4630, %v4626
        %v5063 = vpack.c.b16 %v4631, %v4627
        %v5064 = vpack.c.b16 %v4636, %v4632
        %v5065 = vpack.c.b16 %v4637, %v4633
        %v5066 = vpack.c.b16 %v4638, %v4634
        %v5067 = vpack.c.b16 %v4639, %v4635
        %v5068 = vpack.c.b16 %v4644, %v4640
        %v5069 = vpack.c.b16 %v4645, %v4641
        %v5070 = vpack.c.b16 %v4646, %v4642
        %v5071 = vpack.c.b16 %v4647, %v4643
        %v5072 = vpack.c.b16 %v4652, %v4648
        %v5073 = vpack.c.b16 %v4653, %v4649
        %v5074 = vpack.c.b16 %v4654, %v4650
        %v5075 = vpack.c.b16 %v4655, %v4651
        %v5076 = vpack.c.b16 %v4660, %v4656
        %v5077 = vpack.c.b16 %v4661, %v4657
        %v5078 = vpack.c.b16 %v4662, %v4658
        %v5079 = vpack.c.b16 %v4663, %v4659
        %v5080 = vpack.c.b16 %v4668, %v4664
        %v5081 = vpack.c.b16 %v4669, %v4665
        %v5082 = vpack.c.b16 %v4670, %v4666
        %v5083 = vpack.c.b16 %v4671, %v4667
        %v5084 = vpack.c.b16 %v4676, %v4672
        %v5085 = vpack.c.b16 %v4677, %v4673
        %v5086 = vpack.c.b16 %v4678, %v4674
        %v5087 = vpack.c.b16 %v4679, %v4675
        %v5088 = vpack.c.b16 %v4684, %v4680
        %v5089 = vpack.c.b16 %v4685, %v4681
        %v5090 = vpack.c.b16 %v4686, %v4682
        %v5091 = vpack.c.b16 %v4687, %v4683
        %v5092 = vpack.c.b16 %v4692, %v4688
        %v5093 = vpack.c.b16 %v4693, %v4689
        %v5094 = vpack.c.b16 %v4694, %v4690
        %v5095 = vpack.c.b16 %v4695, %v4691
        %v5096 = vpack.c.b16 %v4700, %v4696
        %v5097 = vpack.c.b16 %v4701, %v4697
        %v5098 = vpack.c.b16 %v4702, %v4698
        %v5099 = vpack.c.b16 %v4703, %v4699
        %v5100 = vpack.c.b16 %v4708, %v4704
        %v5101 = vpack.c.b16 %v4709, %v4705
        %v5102 = vpack.c.b16 %v4710, %v4706
        %v5103 = vpack.c.b16 %v4711, %v4707
        %v5104 = vpack.c.b16 %v4716, %v4712
        %v5105 = vpack.c.b16 %v4717, %v4713
        %v5106 = vpack.c.b16 %v4718, %v4714
        %v5107 = vpack.c.b16 %v4719, %v4715
        %v5108 = vpack.c.b16 %v4724, %v4720
        %v5109 = vpack.c.b16 %v4725, %v4721
        %v5110 = vpack.c.b16 %v4726, %v4722
        %v5111 = vpack.c.b16 %v4727, %v4723
        %v5112 = vpack.c.b16 %v4732, %v4728
        %v5113 = vpack.c.b16 %v4733, %v4729
        %v5114 = vpack.c.b16 %v4734, %v4730
        %v5115 = vpack.c.b16 %v4735, %v4731
        %v5116 = vpack.c.b16 %v4740, %v4736
        %v5117 = vpack.c.b16 %v4741, %v4737
        %v5118 = vpack.c.b16 %v4742, %v4738
        %v5119 = vpack.c.b16 %v4743, %v4739
        %v5120 = vpack.c.b16 %v4748, %v4744
        %v5121 = vpack.c.b16 %v4749, %v4745
        %v5122 = vpack.c.b16 %v4750, %v4746
        %v5123 = vpack.c.b16 %v4751, %v4747
        %v5124 = vpack.c.b16 %v4756, %v4752
        %v5125 = vpack.c.b16 %v4757, %v4753
        %v5126 = vpack.c.b16 %v4758, %v4754
        %v5127 = vpack.c.b16 %v4759, %v4755
        %v5128 = vpack.c.b16 %v4764, %v4760
        %v5129 = vpack.c.b16 %v4765, %v4761
        %v5130 = vpack.c.b16 %v4766, %v4762
        %v5131 = vpack.c.b16 %v4767, %v4763
        %v5132 = vpack.c.b16 %v4772, %v4768
        %v5133 = vpack.c.b16 %v4773, %v4769
        %v5134 = vpack.c.b16 %v4774, %v4770
        %v5135 = vpack.c.b16 %v4775, %v4771
        %v5136 = vpack.c.b16 %v4780, %v4776
        %v5137 = vpack.c.b16 %v4781, %v4777
        %v5138 = vpack.c.b16 %v4782, %v4778
        %v5139 = vpack.c.b16 %v4783, %v4779
        %v5140 = vpack.c.b16 %v4788, %v4784
        %v5141 = vpack.c.b16 %v4789, %v4785
        %v5142 = vpack.c.b16 %v4790, %v4786
        %v5143 = vpack.c.b16 %v4791, %v4787
        %v5144 = vpack.c.b16 %v4796, %v4792
        %v5145 = vpack.c.b16 %v4797, %v4793
        %v5146 = vpack.c.b16 %v4798, %v4794
        %v5147 = vpack.c.b16 %v4799, %v4795
        %v5148 = vpack.c.b16 %v4804, %v4800
        %v5149 = vpack.c.b16 %v4805, %v4801
        %v5150 = vpack.c.b16 %v4806, %v4802
        %v5151 = vpack.c.b16 %v4807, %v4803
        %v5152 = vpack.c.b16 %v4812, %v4808
        %v5153 = vpack.c.b16 %v4813, %v4809
        %v5154 = vpack.c.b16 %v4814, %v4810
        %v5155 = vpack.c.b16 %v4815, %v4811
        %v5156 = vpack.c.b16 %v4820, %v4816
        %v5157 = vpack.c.b16 %v4821, %v4817
        %v5158 = vpack.c.b16 %v4822, %v4818
        %v5159 = vpack.c.b16 %v4823, %v4819
        %v5160 = vpack.c.b16 %v4828, %v4824
        %v5161 = vpack.c.b16 %v4829, %v4825
        %v5162 = vpack.c.b16 %v4830, %v4826
        %v5163 = vpack.c.b16 %v4831, %v4827
        %v5164 = vpack.c.b16 %v4836, %v4832
        %v5165 = vpack.c.b16 %v4837, %v4833
        %v5166 = vpack.c.b16 %v4838, %v4834
        %v5167 = vpack.c.b16 %v4839, %v4835
        %v5168 = vpack.c.b16 %v4844, %v4840
        %v5169 = vpack.c.b16 %v4845, %v4841
        %v5170 = vpack.c.b16 %v4846, %v4842
        %v5171 = vpack.c.b16 %v4847, %v4843
        %v5172 = vpack.c.b16 %v4852, %v4848
        %v5173 = vpack.c.b16 %v4853, %v4849
        %v5174 = vpack.c.b16 %v4854, %v4850
        %v5175 = vpack.c.b16 %v4855, %v4851
        %v5176 = vpack.c.b16 %v4860, %v4856
        %v5177 = vpack.c.b16 %v4861, %v4857
        %v5178 = vpack.c.b16 %v4862, %v4858
        %v5179 = vpack.c.b16 %v4863, %v4859
        %v5180 = vpack.c.b16 %v4868, %v4864
        %v5181 = vpack.c.b16 %v4869, %v4865
        %v5182 = vpack.c.b16 %v4870, %v4866
        %v5183 = vpack.c.b16 %v4871, %v4867
        %v5184 = vpack.c.b16 %v4876, %v4872
        %v5185 = vpack.c.b16 %v4877, %v4873
        %v5186 = vpack.c.b16 %v4878, %v4874
        %v5187 = vpack.c.b16 %v4879, %v4875
        %v5188 = vpack.c.b16 %v4884, %v4880
        %v5189 = vpack.c.b16 %v4885, %v4881
        %v5190 = vpack.c.b16 %v4886, %v4882
        %v5191 = vpack.c.b16 %v4887, %v4883
        %v5192 = vpack.c.b16 %v4892, %v4888
        %v5193 = vpack.c.b16 %v4893, %v4889
        %v5194 = vpack.c.b16 %v4894, %v4890
        %v5195 = vpack.c.b16 %v4895, %v4891
        %v5196 = vpack.c.b16 %v4900, %v4896
        %v5197 = vpack.c.b16 %v4901, %v4897
        %v5198 = vpack.c.b16 %v4902, %v4898
        %v5199 = vpack.c.b16 %v4903, %v4899
        %v5200 = vpack.c.b16 %v4908, %v4904
        %v5201 = vpack.c.b16 %v4909, %v4905
        %v5202 = vpack.c.b16 %v4910, %v4906
        %v5203 = vpack.c.b16 %v4911, %v4907
        %v5204 = vpack.c.b16 %v4916, %v4912
        %v5205 = vpack.c.b16 %v4917, %v4913
        %v5206 = vpack.c.b16 %v4918, %v4914
        %v5207 = vpack.c.b16 %v4919, %v4915
        %5496 = vmatprep.subr.bf16.mxu0 %v4921
        %5497 = vmatpush1.bf16.msra.mxu0 %v4920
        %5498 = vmatprep.subr.bf16.mxu0 %v4925
        %5499 = vmatpush1.bf16.msra.mxu0 %v4924
        %5500 = vmatprep.subr.bf16.mxu0 %v4929
        %5501 = vmatpush1.bf16.msra.mxu0 %v4928
        %5502 = vmatprep.subr.bf16.mxu0 %v4933
        %5503 = vmatpush1.bf16.msra.mxu0 %v4932
        %5504 = vmatprep.subr.bf16.mxu0 %v4937
        %5505 = vmatpush1.bf16.msra.mxu0 %v4936
        %5506 = vmatprep.subr.bf16.mxu0 %v4941
        %5507 = vmatpush1.bf16.msra.mxu0 %v4940
        %5508 = vmatprep.subr.bf16.mxu0 %v4945
        %5509 = vmatpush1.bf16.msra.mxu0 %v4944
        %5510 = vmatprep.subr.bf16.mxu0 %v4949
        %5511 = vmatpush1.bf16.msra.mxu0 %v4948
        %5512 = vmatprep.subr.bf16.mxu0 %v4953
        %5513 = vmatpush1.bf16.msra.mxu0 %v4952
        %5514 = vmatprep.subr.bf16.mxu0 %v4957
        %5515 = vmatpush1.bf16.msra.mxu0 %v4956
        %5516 = vmatprep.subr.bf16.mxu0 %v4961
        %5517 = vmatpush1.bf16.msra.mxu0 %v4960
        %5518 = vmatprep.subr.bf16.mxu0 %v4965
        %5519 = vmatpush1.bf16.msra.mxu0 %v4964
        %5520 = vmatprep.subr.bf16.mxu0 %v4969
        %5521 = vmatpush1.bf16.msra.mxu0 %v4968
        %5522 = vmatprep.subr.bf16.mxu0 %v4973
        %5523 = vmatpush1.bf16.msra.mxu0 %v4972
        %5524 = vmatprep.subr.bf16.mxu0 %v4977
        %5525 = vmatpush1.bf16.msra.mxu0 %v4976
        %5526 = vmatprep.subr.bf16.mxu0 %v4981
        %5527 = vmatpush1.bf16.msra.mxu0 %v4980
        %5528 = vmatprep.mubr.bf16.mxu0 %v3625
        %5529 = vmatmul.mubr.bf16.gmra.mrb[0].mxu0 %v3624
        %v5530 = vpop.f32.mrb[0].mxu0
        %v5531 = vadd.f32 0.0, %v5530
        %v5532 = vpop.f32.mrb[0].mxu0
        %v5533 = vadd.f32 0.0, %v5532
        %v5534 = vpop.f32.mrb[0].mxu0
        %v5535 = vadd.f32 0.0, %v5534
        %v5536 = vpop.f32.mrb[0].mxu0
        %v5537 = vadd.f32 0.0, %v5536
        %5538 = vmatprep.mubr.bf16.mxu0 %v3634
        %5539 = vmatmul.mubr.bf16.gmra.mrb[0].mxu0 %v3633
        %v5540 = vpop.f32.mrb[0].mxu0
        %v5541 = vadd.f32 0.0, %v5540
        %v5542 = vpop.f32.mrb[0].mxu0
        %v5543 = vadd.f32 0.0, %v5542
        %v5544 = vpop.f32.mrb[0].mxu0
        %v5545 = vadd.f32 0.0, %v5544
        %v5546 = vpop.f32.mrb[0].mxu0
        %v5547 = vadd.f32 0.0, %v5546
        %5548 = vmatprep.mubr.bf16.mxu0 %v3643
        %5549 = vmatmul.mubr.bf16.gmra.mrb[0].mxu0 %v3642
        %v5550 = vpop.f32.mrb[0].mxu0
        %v5551 = vadd.f32 0.0, %v5550
        %v5552 = vpop.f32.mrb[0].mxu0
        %v5553 = vadd.f32 0.0, %v5552
        %v5554 = vpop.f32.mrb[0].mxu0
        %v5555 = vadd.f32 0.0, %v5554
        %v5556 = vpop.f32.mrb[0].mxu0
        %v5557 = vadd.f32 0.0, %v5556
        %5558 = vmatprep.mubr.bf16.mxu0 %v3652
        %5559 = vmatmul.mubr.bf16.gmra.mrb[0].mxu0 %v3651
        %v5560 = vpop.f32.mrb[0].mxu0
        %v5561 = vadd.f32 0.0, %v5560
        %v5562 = vpop.f32.mrb[0].mxu0
        %v5563 = vadd.f32 0.0, %v5562
        %v5564 = vpop.f32.mrb[0].mxu0
        %v5565 = vadd.f32 0.0, %v5564
        %v5566 = vpop.f32.mrb[0].mxu0
        %v5567 = vadd.f32 0.0, %v5566
        %5568 = vmatprep.mubr.bf16.mxu0 %v3661
        %5569 = vmatmul.mubr.bf16.gmra.mrb[0].mxu0 %v3660
        %v5570 = vpop.f32.mrb[0].mxu0
        %v5571 = vadd.f32 0.0, %v5570
        %v5572 = vpop.f32.mrb[0].mxu0
        %v5573 = vadd.f32 0.0, %v5572
        %v5574 = vpop.f32.mrb[0].mxu0
        %v5575 = vadd.f32 0.0, %v5574
        %v5576 = vpop.f32.mrb[0].mxu0
        %v5577 = vadd.f32 0.0, %v5576
        %5578 = vmatprep.mubr.bf16.mxu0 %v3670
        %5579 = vmatmul.mubr.bf16.gmra.mrb[0].mxu0 %v3669
        %v5580 = vpop.f32.mrb[0].mxu0
        %v5581 = vadd.f32 0.0, %v5580
        %v5582 = vpop.f32.mrb[0].mxu0
        %v5583 = vadd.f32 0.0, %v5582
        %v5584 = vpop.f32.mrb[0].mxu0
        %v5585 = vadd.f32 0.0, %v5584
        %v5586 = vpop.f32.mrb[0].mxu0
        %v5587 = vadd.f32 0.0, %v5586
        %5588 = vmatprep.mubr.bf16.mxu0 %v3679
        %5589 = vmatmul.mubr.bf16.gmra.mrb[0].mxu0 %v3678
        %v5590 = vpop.f32.mrb[0].mxu0
        %v5591 = vadd.f32 0.0, %v5590
        %v5592 = vpop.f32.mrb[0].mxu0
        %v5593 = vadd.f32 0.0, %v5592
        %v5594 = vpop.f32.mrb[0].mxu0
        %v5595 = vadd.f32 0.0, %v5594
        %v5596 = vpop.f32.mrb[0].mxu0
        %v5597 = vadd.f32 0.0, %v5596
        %5598 = vmatprep.mubr.bf16.mxu0 %v3688
        %5599 = vmatmul.mubr.bf16.gmra.mrb[0].mxu0 %v3687
        %v5600 = vpop.f32.mrb[0].mxu0
        %v5601 = vadd.f32 0.0, %v5600
        %v5602 = vpop.f32.mrb[0].mxu0
        %v5603 = vadd.f32 0.0, %v5602
        %v5604 = vpop.f32.mrb[0].mxu0
        %v5605 = vadd.f32 0.0, %v5604
        %v5606 = vpop.f32.mrb[0].mxu0
        %v5607 = vadd.f32 0.0, %v5606
        %5608 = vmatprep.mubr.bf16.mxu0 %v3697
        %5609 = vmatmul.mubr.bf16.gmra.mrb[0].mxu0 %v3696
        %v5610 = vpop.f32.mrb[0].mxu0
        %v5611 = vadd.f32 0.0, %v5610
        %v5612 = vpop.f32.mrb[0].mxu0
        %v5613 = vadd.f32 0.0, %v5612
        %v5614 = vpop.f32.mrb[0].mxu0
        %v5615 = vadd.f32 0.0, %v5614
        %v5616 = vpop.f32.mrb[0].mxu0
        %v5617 = vadd.f32 0.0, %v5616
        %5618 = vmatprep.mubr.bf16.mxu0 %v3706
        %5619 = vmatmul.mubr.bf16.gmra.mrb[0].mxu0 %v3705
        %v5620 = vpop.f32.mrb[0].mxu0
        %v5621 = vadd.f32 0.0, %v5620
        %v5622 = vpop.f32.mrb[0].mxu0
        %v5623 = vadd.f32 0.0, %v5622
        %v5624 = vpop.f32.mrb[0].mxu0
        %v5625 = vadd.f32 0.0, %v5624
        %v5626 = vpop.f32.mrb[0].mxu0
        %v5627 = vadd.f32 0.0, %v5626
        %5628 = vmatprep.mubr.bf16.mxu0 %v3715
        %5629 = vmatmul.mubr.bf16.gmra.mrb[0].mxu0 %v3714
        %v5630 = vpop.f32.mrb[0].mxu0
        %v5631 = vadd.f32 0.0, %v5630
        %v5632 = vpop.f32.mrb[0].mxu0
        %v5633 = vadd.f32 0.0, %v5632
        %v5634 = vpop.f32.mrb[0].mxu0
        %v5635 = vadd.f32 0.0, %v5634
        %v5636 = vpop.f32.mrb[0].mxu0
        %v5637 = vadd.f32 0.0, %v5636
        %5638 = vmatprep.mubr.bf16.mxu0 %v3724
        %5639 = vmatmul.mubr.bf16.gmra.mrb[0].mxu0 %v3723
        %v5640 = vpop.f32.mrb[0].mxu0
        %v5641 = vadd.f32 0.0, %v5640
        %v5642 = vpop.f32.mrb[0].mxu0
        %v5643 = vadd.f32 0.0, %v5642
        %v5644 = vpop.f32.mrb[0].mxu0
        %v5645 = vadd.f32 0.0, %v5644
        %v5646 = vpop.f32.mrb[0].mxu0
        %v5647 = vadd.f32 0.0, %v5646
        %5648 = vmatprep.mubr.bf16.mxu0 %v3733
        %5649 = vmatmul.mubr.bf16.gmra.mrb[0].mxu0 %v3732
        %v5650 = vpop.f32.mrb[0].mxu0
        %v5651 = vadd.f32 0.0, %v5650
        %v5652 = vpop.f32.mrb[0].mxu0
        %v5653 = vadd.f32 0.0, %v5652
        %v5654 = vpop.f32.mrb[0].mxu0
        %v5655 = vadd.f32 0.0, %v5654
        %v5656 = vpop.f32.mrb[0].mxu0
        %v5657 = vadd.f32 0.0, %v5656
        %5658 = vmatprep.mubr.bf16.mxu0 %v3742
        %5659 = vmatmul.mubr.bf16.gmra.mrb[0].mxu0 %v3741
        %v5660 = vpop.f32.mrb[0].mxu0
        %v5661 = vadd.f32 0.0, %v5660
        %v5662 = vpop.f32.mrb[0].mxu0
        %v5663 = vadd.f32 0.0, %v5662
        %v5664 = vpop.f32.mrb[0].mxu0
        %v5665 = vadd.f32 0.0, %v5664
        %v5666 = vpop.f32.mrb[0].mxu0
        %v5667 = vadd.f32 0.0, %v5666
        %5668 = vmatprep.mubr.bf16.mxu0 %v3751
        %5669 = vmatmul.mubr.bf16.gmra.mrb[0].mxu0 %v3750
        %v5670 = vpop.f32.mrb[0].mxu0
        %v5671 = vadd.f32 0.0, %v5670
        %v5672 = vpop.f32.mrb[0].mxu0
        %v5673 = vadd.f32 0.0, %v5672
        %v5674 = vpop.f32.mrb[0].mxu0
        %v5675 = vadd.f32 0.0, %v5674
        %v5676 = vpop.f32.mrb[0].mxu0
        %v5677 = vadd.f32 0.0, %v5676
        %5678 = vmatprep.mubr.bf16.mxu0 %v3760
        %5679 = vmatmul.mubr.bf16.gmra.mrb[0].mxu0 %v3759
        %v5680 = vpop.f32.mrb[0].mxu0
        %v5681 = vadd.f32 0.0, %v5680
        %v5682 = vpop.f32.mrb[0].mxu0
        %v5683 = vadd.f32 0.0, %v5682
        %v5684 = vpop.f32.mrb[0].mxu0
        %v5685 = vadd.f32 0.0, %v5684
        %v5686 = vpop.f32.mrb[0].mxu0
        %v5687 = vadd.f32 0.0, %v5686
        %5688 = vdwg.mxu0
        %5689 = vmatprep.subr.bf16.mxu0 %v4985
        %5690 = vmatpush1.bf16.msra.mxu0 %v4984
        %5691 = vmatprep.subr.bf16.mxu0 %v4989
        %5692 = vmatpush1.bf16.msra.mxu0 %v4988
        %5693 = vmatprep.subr.bf16.mxu0 %v4993
        %5694 = vmatpush1.bf16.msra.mxu0 %v4992
        %5695 = vmatprep.subr.bf16.mxu0 %v4997
        %5696 = vmatpush1.bf16.msra.mxu0 %v4996
        %5697 = vmatprep.subr.bf16.mxu0 %v5001
        %5698 = vmatpush1.bf16.msra.mxu0 %v5000
        %5699 = vmatprep.subr.bf16.mxu0 %v5005
        %5700 = vmatpush1.bf16.msra.mxu0 %v5004
        %5701 = vmatprep.subr.bf16.mxu0 %v5009
        %5702 = vmatpush1.bf16.msra.mxu0 %v5008
        %5703 = vmatprep.subr.bf16.mxu0 %v5013
        %5704 = vmatpush1.bf16.msra.mxu0 %v5012
        %5705 = vmatprep.subr.bf16.mxu0 %v5017
        %5706 = vmatpush1.bf16.msra.mxu0 %v5016
        %5707 = vmatprep.subr.bf16.mxu0 %v5021
        %5708 = vmatpush1.bf16.msra.mxu0 %v5020
        %5709 = vmatprep.subr.bf16.mxu0 %v5025
        %5710 = vmatpush1.bf16.msra.mxu0 %v5024
        %5711 = vmatprep.subr.bf16.mxu0 %v5029
        %5712 = vmatpush1.bf16.msra.mxu0 %v5028
        %5713 = vmatprep.subr.bf16.mxu0 %v5033
        %5714 = vmatpush1.bf16.msra.mxu0 %v5032
        %5715 = vmatprep.subr.bf16.mxu0 %v5037
        %5716 = vmatpush1.bf16.msra.mxu0 %v5036
        %5717 = vmatprep.subr.bf16.mxu0 %v5041
        %5718 = vmatpush1.bf16.msra.mxu0 %v5040
        %5719 = vmatprep.subr.bf16.mxu0 %v5045
        %5720 = vmatpush1.bf16.msra.mxu0 %v5044
        %5721 = vmatprep.mubr.bf16.mxu0 %v3627
        %5722 = vmatmul.mubr.bf16.gmra.mrb[0].mxu0 %v3626
        %v5723 = vpop.f32.mrb[0].mxu0
        %v5724 = vadd.f32 %v5531, %v5723
        %v5725 = vpop.f32.mrb[0].mxu0
        %v5726 = vadd.f32 %v5533, %v5725
        %v5727 = vpop.f32.mrb[0].mxu0
        %v5728 = vadd.f32 %v5535, %v5727
        %v5729 = vpop.f32.mrb[0].mxu0
        %v5730 = vadd.f32 %v5537, %v5729
        %5731 = vmatprep.mubr.bf16.mxu0 %v3636
        %5732 = vmatmul.mubr.bf16.gmra.mrb[0].mxu0 %v3635
        %v5733 = vpop.f32.mrb[0].mxu0
        %v5734 = vadd.f32 %v5541, %v5733
        %v5735 = vpop.f32.mrb[0].mxu0
        %v5736 = vadd.f32 %v5543, %v5735
        %v5737 = vpop.f32.mrb[0].mxu0
        %v5738 = vadd.f32 %v5545, %v5737
        %v5739 = vpop.f32.mrb[0].mxu0
        %v5740 = vadd.f32 %v5547, %v5739
        %5741 = vmatprep.mubr.bf16.mxu0 %v3645
        %5742 = vmatmul.mubr.bf16.gmra.mrb[0].mxu0 %v3644
        %v5743 = vpop.f32.mrb[0].mxu0
        %v5744 = vadd.f32 %v5551, %v5743
        %v5745 = vpop.f32.mrb[0].mxu0
        %v5746 = vadd.f32 %v5553, %v5745
        %v5747 = vpop.f32.mrb[0].mxu0
        %v5748 = vadd.f32 %v5555, %v5747
        %v5749 = vpop.f32.mrb[0].mxu0
        %v5750 = vadd.f32 %v5557, %v5749
        %5751 = vmatprep.mubr.bf16.mxu0 %v3654
        %5752 = vmatmul.mubr.bf16.gmra.mrb[0].mxu0 %v3653
        %v5753 = vpop.f32.mrb[0].mxu0
        %v5754 = vadd.f32 %v5561, %v5753
        %v5755 = vpop.f32.mrb[0].mxu0
        %v5756 = vadd.f32 %v5563, %v5755
        %v5757 = vpop.f32.mrb[0].mxu0
        %v5758 = vadd.f32 %v5565, %v5757
        %v5759 = vpop.f32.mrb[0].mxu0
        %v5760 = vadd.f32 %v5567, %v5759
        %5761 = vmatprep.mubr.bf16.mxu0 %v3663
        %5762 = vmatmul.mubr.bf16.gmra.mrb[0].mxu0 %v3662
        %v5763 = vpop.f32.mrb[0].mxu0
        %v5764 = vadd.f32 %v5571, %v5763
        %v5765 = vpop.f32.mrb[0].mxu0
        %v5766 = vadd.f32 %v5573, %v5765
        %v5767 = vpop.f32.mrb[0].mxu0
        %v5768 = vadd.f32 %v5575, %v5767
        %v5769 = vpop.f32.mrb[0].mxu0
        %v5770 = vadd.f32 %v5577, %v5769
        %5771 = vmatprep.mubr.bf16.mxu0 %v3672
        %5772 = vmatmul.mubr.bf16.gmra.mrb[0].mxu0 %v3671
        %v5773 = vpop.f32.mrb[0].mxu0
        %v5774 = vadd.f32 %v5581, %v5773
        %v5775 = vpop.f32.mrb[0].mxu0
        %v5776 = vadd.f32 %v5583, %v5775
        %v5777 = vpop.f32.mrb[0].mxu0
        %v5778 = vadd.f32 %v5585, %v5777
        %v5779 = vpop.f32.mrb[0].mxu0
        %v5780 = vadd.f32 %v5587, %v5779
        %5781 = vmatprep.mubr.bf16.mxu0 %v3681
        %5782 = vmatmul.mubr.bf16.gmra.mrb[0].mxu0 %v3680
        %v5783 = vpop.f32.mrb[0].mxu0
        %v5784 = vadd.f32 %v5591, %v5783
        %v5785 = vpop.f32.mrb[0].mxu0
        %v5786 = vadd.f32 %v5593, %v5785
        %v5787 = vpop.f32.mrb[0].mxu0
        %v5788 = vadd.f32 %v5595, %v5787
        %v5789 = vpop.f32.mrb[0].mxu0
        %v5790 = vadd.f32 %v5597, %v5789
        %5791 = vmatprep.mubr.bf16.mxu0 %v3690
        %5792 = vmatmul.mubr.bf16.gmra.mrb[0].mxu0 %v3689
        %v5793 = vpop.f32.mrb[0].mxu0
        %v5794 = vadd.f32 %v5601, %v5793
        %v5795 = vpop.f32.mrb[0].mxu0
        %v5796 = vadd.f32 %v5603, %v5795
        %v5797 = vpop.f32.mrb[0].mxu0
        %v5798 = vadd.f32 %v5605, %v5797
        %v5799 = vpop.f32.mrb[0].mxu0
        %v5800 = vadd.f32 %v5607, %v5799
        %5801 = vmatprep.mubr.bf16.mxu0 %v3699
        %5802 = vmatmul.mubr.bf16.gmra.mrb[0].mxu0 %v3698
        %v5803 = vpop.f32.mrb[0].mxu0
        %v5804 = vadd.f32 %v5611, %v5803
        %v5805 = vpop.f32.mrb[0].mxu0
        %v5806 = vadd.f32 %v5613, %v5805
        %v5807 = vpop.f32.mrb[0].mxu0
        %v5808 = vadd.f32 %v5615, %v5807
        %v5809 = vpop.f32.mrb[0].mxu0
        %v5810 = vadd.f32 %v5617, %v5809
        %5811 = vmatprep.mubr.bf16.mxu0 %v3708
        %5812 = vmatmul.mubr.bf16.gmra.mrb[0].mxu0 %v3707
        %v5813 = vpop.f32.mrb[0].mxu0
        %v5814 = vadd.f32 %v5621, %v5813
        %v5815 = vpop.f32.mrb[0].mxu0
        %v5816 = vadd.f32 %v5623, %v5815
        %v5817 = vpop.f32.mrb[0].mxu0
        %v5818 = vadd.f32 %v5625, %v5817
        %v5819 = vpop.f32.mrb[0].mxu0
        %v5820 = vadd.f32 %v5627, %v5819
        %5821 = vmatprep.mubr.bf16.mxu0 %v3717
        %5822 = vmatmul.mubr.bf16.gmra.mrb[0].mxu0 %v3716
        %v5823 = vpop.f32.mrb[0].mxu0
        %v5824 = vadd.f32 %v5631, %v5823
        %v5825 = vpop.f32.mrb[0].mxu0
        %v5826 = vadd.f32 %v5633, %v5825
        %v5827 = vpop.f32.mrb[0].mxu0
        %v5828 = vadd.f32 %v5635, %v5827
        %v5829 = vpop.f32.mrb[0].mxu0
        %v5830 = vadd.f32 %v5637, %v5829
        %5831 = vmatprep.mubr.bf16.mxu0 %v3726
        %5832 = vmatmul.mubr.bf16.gmra.mrb[0].mxu0 %v3725
        %v5833 = vpop.f32.mrb[0].mxu0
        %v5834 = vadd.f32 %v5641, %v5833
        %v5835 = vpop.f32.mrb[0].mxu0
        %v5836 = vadd.f32 %v5643, %v5835
        %v5837 = vpop.f32.mrb[0].mxu0
        %v5838 = vadd.f32 %v5645, %v5837
        %v5839 = vpop.f32.mrb[0].mxu0
        %v5840 = vadd.f32 %v5647, %v5839
        %5841 = vmatprep.mubr.bf16.mxu0 %v3735
        %5842 = vmatmul.mubr.bf16.gmra.mrb[0].mxu0 %v3734
        %v5843 = vpop.f32.mrb[0].mxu0
        %v5844 = vadd.f32 %v5651, %v5843
        %v5845 = vpop.f32.mrb[0].mxu0
        %v5846 = vadd.f32 %v5653, %v5845
        %v5847 = vpop.f32.mrb[0].mxu0
        %v5848 = vadd.f32 %v5655, %v5847
        %v5849 = vpop.f32.mrb[0].mxu0
        %v5850 = vadd.f32 %v5657, %v5849
        %5851 = vmatprep.mubr.bf16.mxu0 %v3744
        %5852 = vmatmul.mubr.bf16.gmra.mrb[0].mxu0 %v3743
        %v5853 = vpop.f32.mrb[0].mxu0
        %v5854 = vadd.f32 %v5661, %v5853
        %v5855 = vpop.f32.mrb[0].mxu0
        %v5856 = vadd.f32 %v5663, %v5855
        %v5857 = vpop.f32.mrb[0].mxu0
        %v5858 = vadd.f32 %v5665, %v5857
        %v5859 = vpop.f32.mrb[0].mxu0
        %v5860 = vadd.f32 %v5667, %v5859
        %5861 = vmatprep.mubr.bf16.mxu0 %v3753
        %5862 = vmatmul.mubr.bf16.gmra.mrb[0].mxu0 %v3752
        %v5863 = vpop.f32.mrb[0].mxu0
        %v5864 = vadd.f32 %v5671, %v5863
        %v5865 = vpop.f32.mrb[0].mxu0
        %v5866 = vadd.f32 %v5673, %v5865
        %v5867 = vpop.f32.mrb[0].mxu0
        %v5868 = vadd.f32 %v5675, %v5867
        %v5869 = vpop.f32.mrb[0].mxu0
        %v5870 = vadd.f32 %v5677, %v5869
        %5871 = vmatprep.mubr.bf16.mxu0 %v3762
        %5872 = vmatmul.mubr.bf16.gmra.mrb[0].mxu0 %v3761
        %v5873 = vpop.f32.mrb[0].mxu0
        %v5874 = vadd.f32 %v5681, %v5873
        %v5875 = vpop.f32.mrb[0].mxu0
        %v5876 = vadd.f32 %v5683, %v5875
        %v5877 = vpop.f32.mrb[0].mxu0
        %v5878 = vadd.f32 %v5685, %v5877
        %v5879 = vpop.f32.mrb[0].mxu0
        %v5880 = vadd.f32 %v5687, %v5879
        %5881 = vdwg.mxu0
        %5882 = vmatprep.subr.bf16.mxu0 %v5049
        %5883 = vmatpush1.bf16.msra.mxu0 %v5048
        %5884 = vmatprep.subr.bf16.mxu0 %v5053
        %5885 = vmatpush1.bf16.msra.mxu0 %v5052
        %5886 = vmatprep.subr.bf16.mxu0 %v5057
        %5887 = vmatpush1.bf16.msra.mxu0 %v5056
        %5888 = vmatprep.subr.bf16.mxu0 %v5061
        %5889 = vmatpush1.bf16.msra.mxu0 %v5060
        %5890 = vmatprep.subr.bf16.mxu0 %v5065
        %5891 = vmatpush1.bf16.msra.mxu0 %v5064
        %5892 = vmatprep.subr.bf16.mxu0 %v5069
        %5893 = vmatpush1.bf16.msra.mxu0 %v5068
        %5894 = vmatprep.subr.bf16.mxu0 %v5073
        %5895 = vmatpush1.bf16.msra.mxu0 %v5072
        %5896 = vmatprep.subr.bf16.mxu0 %v5077
        %5897 = vmatpush1.bf16.msra.mxu0 %v5076
        %5898 = vmatprep.subr.bf16.mxu0 %v5081
        %5899 = vmatpush1.bf16.msra.mxu0 %v5080
        %5900 = vmatprep.subr.bf16.mxu0 %v5085
        %5901 = vmatpush1.bf16.msra.mxu0 %v5084
        %5902 = vmatprep.subr.bf16.mxu0 %v5089
        %5903 = vmatpush1.bf16.msra.mxu0 %v5088
        %5904 = vmatprep.subr.bf16.mxu0 %v5093
        %5905 = vmatpush1.bf16.msra.mxu0 %v5092
        %5906 = vmatprep.subr.bf16.mxu0 %v5097
        %5907 = vmatpush1.bf16.msra.mxu0 %v5096
        %5908 = vmatprep.subr.bf16.mxu0 %v5101
        %5909 = vmatpush1.bf16.msra.mxu0 %v5100
        %5910 = vmatprep.subr.bf16.mxu0 %v5105
        %5911 = vmatpush1.bf16.msra.mxu0 %v5104
        %5912 = vmatprep.subr.bf16.mxu0 %v5109
        %5913 = vmatpush1.bf16.msra.mxu0 %v5108
        %5914 = vmatprep.mubr.bf16.mxu0 %v3629
        %5915 = vmatmul.mubr.bf16.gmra.mrb[0].mxu0 %v3628
        %v5916 = vpop.f32.mrb[0].mxu0
        %v5917 = vadd.f32 %v5724, %v5916
        %v5918 = vpop.f32.mrb[0].mxu0
        %v5919 = vadd.f32 %v5726, %v5918
        %v5920 = vpop.f32.mrb[0].mxu0
        %v5921 = vadd.f32 %v5728, %v5920
        %v5922 = vpop.f32.mrb[0].mxu0
        %v5923 = vadd.f32 %v5730, %v5922
        %5924 = vmatprep.mubr.bf16.mxu0 %v3638
        %5925 = vmatmul.mubr.bf16.gmra.mrb[0].mxu0 %v3637
        %v5926 = vpop.f32.mrb[0].mxu0
        %v5927 = vadd.f32 %v5734, %v5926
        %v5928 = vpop.f32.mrb[0].mxu0
        %v5929 = vadd.f32 %v5736, %v5928
        %v5930 = vpop.f32.mrb[0].mxu0
        %v5931 = vadd.f32 %v5738, %v5930
        %v5932 = vpop.f32.mrb[0].mxu0
        %v5933 = vadd.f32 %v5740, %v5932
        %5934 = vmatprep.mubr.bf16.mxu0 %v3647
        %5935 = vmatmul.mubr.bf16.gmra.mrb[0].mxu0 %v3646
        %v5936 = vpop.f32.mrb[0].mxu0
        %v5937 = vadd.f32 %v5744, %v5936
        %v5938 = vpop.f32.mrb[0].mxu0
        %v5939 = vadd.f32 %v5746, %v5938
        %v5940 = vpop.f32.mrb[0].mxu0
        %v5941 = vadd.f32 %v5748, %v5940
        %v5942 = vpop.f32.mrb[0].mxu0
        %v5943 = vadd.f32 %v5750, %v5942
        %5944 = vmatprep.mubr.bf16.mxu0 %v3656
        %5945 = vmatmul.mubr.bf16.gmra.mrb[0].mxu0 %v3655
        %v5946 = vpop.f32.mrb[0].mxu0
        %v5947 = vadd.f32 %v5754, %v5946
        %v5948 = vpop.f32.mrb[0].mxu0
        %v5949 = vadd.f32 %v5756, %v5948
        %v5950 = vpop.f32.mrb[0].mxu0
        %v5951 = vadd.f32 %v5758, %v5950
        %v5952 = vpop.f32.mrb[0].mxu0
        %v5953 = vadd.f32 %v5760, %v5952
        %5954 = vmatprep.mubr.bf16.mxu0 %v3665
        %5955 = vmatmul.mubr.bf16.gmra.mrb[0].mxu0 %v3664
        %v5956 = vpop.f32.mrb[0].mxu0
        %v5957 = vadd.f32 %v5764, %v5956
        %v5958 = vpop.f32.mrb[0].mxu0
        %v5959 = vadd.f32 %v5766, %v5958
        %v5960 = vpop.f32.mrb[0].mxu0
        %v5961 = vadd.f32 %v5768, %v5960
        %v5962 = vpop.f32.mrb[0].mxu0
        %v5963 = vadd.f32 %v5770, %v5962
        %5964 = vmatprep.mubr.bf16.mxu0 %v3674
        %5965 = vmatmul.mubr.bf16.gmra.mrb[0].mxu0 %v3673
        %v5966 = vpop.f32.mrb[0].mxu0
        %v5967 = vadd.f32 %v5774, %v5966
        %v5968 = vpop.f32.mrb[0].mxu0
        %v5969 = vadd.f32 %v5776, %v5968
        %v5970 = vpop.f32.mrb[0].mxu0
        %v5971 = vadd.f32 %v5778, %v5970
        %v5972 = vpop.f32.mrb[0].mxu0
        %v5973 = vadd.f32 %v5780, %v5972
        %5974 = vmatprep.mubr.bf16.mxu0 %v3683
        %5975 = vmatmul.mubr.bf16.gmra.mrb[0].mxu0 %v3682
        %v5976 = vpop.f32.mrb[0].mxu0
        %v5977 = vadd.f32 %v5784, %v5976
        %v5978 = vpop.f32.mrb[0].mxu0
        %v5979 = vadd.f32 %v5786, %v5978
        %v5980 = vpop.f32.mrb[0].mxu0
        %v5981 = vadd.f32 %v5788, %v5980
        %v5982 = vpop.f32.mrb[0].mxu0
        %v5983 = vadd.f32 %v5790, %v5982
        %5984 = vmatprep.mubr.bf16.mxu0 %v3692
        %5985 = vmatmul.mubr.bf16.gmra.mrb[0].mxu0 %v3691
        %v5986 = vpop.f32.mrb[0].mxu0
        %v5987 = vadd.f32 %v5794, %v5986
        %v5988 = vpop.f32.mrb[0].mxu0
        %v5989 = vadd.f32 %v5796, %v5988
        %v5990 = vpop.f32.mrb[0].mxu0
        %v5991 = vadd.f32 %v5798, %v5990
        %v5992 = vpop.f32.mrb[0].mxu0
        %v5993 = vadd.f32 %v5800, %v5992
        %5994 = vmatprep.mubr.bf16.mxu0 %v3701
        %5995 = vmatmul.mubr.bf16.gmra.mrb[0].mxu0 %v3700
        %v5996 = vpop.f32.mrb[0].mxu0
        %v5997 = vadd.f32 %v5804, %v5996
        %v5998 = vpop.f32.mrb[0].mxu0
        %v5999 = vadd.f32 %v5806, %v5998
        %v6000 = vpop.f32.mrb[0].mxu0
        %v6001 = vadd.f32 %v5808, %v6000
        %v6002 = vpop.f32.mrb[0].mxu0
        %v6003 = vadd.f32 %v5810, %v6002
        %6004 = vmatprep.mubr.bf16.mxu0 %v3710
        %6005 = vmatmul.mubr.bf16.gmra.mrb[0].mxu0 %v3709
        %v6006 = vpop.f32.mrb[0].mxu0
        %v6007 = vadd.f32 %v5814, %v6006
        %v6008 = vpop.f32.mrb[0].mxu0
        %v6009 = vadd.f32 %v5816, %v6008
        %v6010 = vpop.f32.mrb[0].mxu0
        %v6011 = vadd.f32 %v5818, %v6010
        %v6012 = vpop.f32.mrb[0].mxu0
        %v6013 = vadd.f32 %v5820, %v6012
        %6014 = vmatprep.mubr.bf16.mxu0 %v3719
        %6015 = vmatmul.mubr.bf16.gmra.mrb[0].mxu0 %v3718
        %v6016 = vpop.f32.mrb[0].mxu0
        %v6017 = vadd.f32 %v5824, %v6016
        %v6018 = vpop.f32.mrb[0].mxu0
        %v6019 = vadd.f32 %v5826, %v6018
        %v6020 = vpop.f32.mrb[0].mxu0
        %v6021 = vadd.f32 %v5828, %v6020
        %v6022 = vpop.f32.mrb[0].mxu0
        %v6023 = vadd.f32 %v5830, %v6022
        %6024 = vmatprep.mubr.bf16.mxu0 %v3728
        %6025 = vmatmul.mubr.bf16.gmra.mrb[0].mxu0 %v3727
        %v6026 = vpop.f32.mrb[0].mxu0
        %v6027 = vadd.f32 %v5834, %v6026
        %v6028 = vpop.f32.mrb[0].mxu0
        %v6029 = vadd.f32 %v5836, %v6028
        %v6030 = vpop.f32.mrb[0].mxu0
        %v6031 = vadd.f32 %v5838, %v6030
        %v6032 = vpop.f32.mrb[0].mxu0
        %v6033 = vadd.f32 %v5840, %v6032
        %6034 = vmatprep.mubr.bf16.mxu0 %v3737
        %6035 = vmatmul.mubr.bf16.gmra.mrb[0].mxu0 %v3736
        %v6036 = vpop.f32.mrb[0].mxu0
        %v6037 = vadd.f32 %v5844, %v6036
        %v6038 = vpop.f32.mrb[0].mxu0
        %v6039 = vadd.f32 %v5846, %v6038
        %v6040 = vpop.f32.mrb[0].mxu0
        %v6041 = vadd.f32 %v5848, %v6040
        %v6042 = vpop.f32.mrb[0].mxu0
        %v6043 = vadd.f32 %v5850, %v6042
        %6044 = vmatprep.mubr.bf16.mxu0 %v3746
        %6045 = vmatmul.mubr.bf16.gmra.mrb[0].mxu0 %v3745
        %v6046 = vpop.f32.mrb[0].mxu0
        %v6047 = vadd.f32 %v5854, %v6046
        %v6048 = vpop.f32.mrb[0].mxu0
        %v6049 = vadd.f32 %v5856, %v6048
        %v6050 = vpop.f32.mrb[0].mxu0
        %v6051 = vadd.f32 %v5858, %v6050
        %v6052 = vpop.f32.mrb[0].mxu0
        %v6053 = vadd.f32 %v5860, %v6052
        %6054 = vmatprep.mubr.bf16.mxu0 %v3755
        %6055 = vmatmul.mubr.bf16.gmra.mrb[0].mxu0 %v3754
        %v6056 = vpop.f32.mrb[0].mxu0
        %v6057 = vadd.f32 %v5864, %v6056
        %v6058 = vpop.f32.mrb[0].mxu0
        %v6059 = vadd.f32 %v5866, %v6058
        %v6060 = vpop.f32.mrb[0].mxu0
        %v6061 = vadd.f32 %v5868, %v6060
        %v6062 = vpop.f32.mrb[0].mxu0
        %v6063 = vadd.f32 %v5870, %v6062
        %6064 = vmatprep.mubr.bf16.mxu0 %v3764
        %6065 = vmatmul.mubr.bf16.gmra.mrb[0].mxu0 %v3763
        %v6066 = vpop.f32.mrb[0].mxu0
        %v6067 = vadd.f32 %v5874, %v6066
        %v6068 = vpop.f32.mrb[0].mxu0
        %v6069 = vadd.f32 %v5876, %v6068
        %v6070 = vpop.f32.mrb[0].mxu0
        %v6071 = vadd.f32 %v5878, %v6070
        %v6072 = vpop.f32.mrb[0].mxu0
        %v6073 = vadd.f32 %v5880, %v6072
        %6074 = vdwg.mxu0
        %6075 = vmatprep.subr.bf16.mxu0 %v5113
        %6076 = vmatpush1.bf16.msra.mxu0 %v5112
        %6077 = vmatprep.subr.bf16.mxu0 %v5117
        %6078 = vmatpush1.bf16.msra.mxu0 %v5116
        %6079 = vmatprep.subr.bf16.mxu0 %v5121
        %6080 = vmatpush1.bf16.msra.mxu0 %v5120
        %6081 = vmatprep.subr.bf16.mxu0 %v5125
        %6082 = vmatpush1.bf16.msra.mxu0 %v5124
        %6083 = vmatprep.subr.bf16.mxu0 %v5129
        %6084 = vmatpush1.bf16.msra.mxu0 %v5128
        %6085 = vmatprep.subr.bf16.mxu0 %v5133
        %6086 = vmatpush1.bf16.msra.mxu0 %v5132
        %6087 = vmatprep.subr.bf16.mxu0 %v5137
        %6088 = vmatpush1.bf16.msra.mxu0 %v5136
        %6089 = vmatprep.subr.bf16.mxu0 %v5141
        %6090 = vmatpush1.bf16.msra.mxu0 %v5140
        %6091 = vmatprep.subr.bf16.mxu0 %v5145
        %6092 = vmatpush1.bf16.msra.mxu0 %v5144
        %6093 = vmatprep.subr.bf16.mxu0 %v5149
        %6094 = vmatpush1.bf16.msra.mxu0 %v5148
        %6095 = vmatprep.subr.bf16.mxu0 %v5153
        %6096 = vmatpush1.bf16.msra.mxu0 %v5152
        %6097 = vmatprep.subr.bf16.mxu0 %v5157
        %6098 = vmatpush1.bf16.msra.mxu0 %v5156
        %6099 = vmatprep.subr.bf16.mxu0 %v5161
        %6100 = vmatpush1.bf16.msra.mxu0 %v5160
        %6101 = vmatprep.subr.bf16.mxu0 %v5165
        %6102 = vmatpush1.bf16.msra.mxu0 %v5164
        %6103 = vmatprep.subr.bf16.mxu0 %v5169
        %6104 = vmatpush1.bf16.msra.mxu0 %v5168
        %6105 = vmatprep.subr.bf16.mxu0 %v5173
        %6106 = vmatpush1.bf16.msra.mxu0 %v5172
        %6107 = vmatprep.mubr.bf16.mxu0 %v3631
        %6108 = vmatmul.mubr.bf16.gmra.mrb[0].mxu0 %v3630
        %v6109 = vpop.f32.mrb[0].mxu0
        %v6110 = vadd.f32 %v5917, %v6109
        %v6111 = vpop.f32.mrb[0].mxu0
        %v6112 = vadd.f32 %v5919, %v6111
        %v6113 = vpop.f32.mrb[0].mxu0
        %v6114 = vadd.f32 %v5921, %v6113
        %v6115 = vpop.f32.mrb[0].mxu0
        %v6116 = vadd.f32 %v5923, %v6115
        %6117 = vmatprep.mubr.bf16.mxu0 %v3640
        %6118 = vmatmul.mubr.bf16.gmra.mrb[0].mxu0 %v3639
        %v6119 = vpop.f32.mrb[0].mxu0
        %v6120 = vadd.f32 %v5927, %v6119
        %v6121 = vpop.f32.mrb[0].mxu0
        %v6122 = vadd.f32 %v5929, %v6121
        %v6123 = vpop.f32.mrb[0].mxu0
        %v6124 = vadd.f32 %v5931, %v6123
        %v6125 = vpop.f32.mrb[0].mxu0
        %v6126 = vadd.f32 %v5933, %v6125
        %6127 = vmatprep.mubr.bf16.mxu0 %v3649
        %6128 = vmatmul.mubr.bf16.gmra.mrb[0].mxu0 %v3648
        %v6129 = vpop.f32.mrb[0].mxu0
        %v6130 = vadd.f32 %v5937, %v6129
        %v6131 = vpop.f32.mrb[0].mxu0
        %v6132 = vadd.f32 %v5939, %v6131
        %v6133 = vpop.f32.mrb[0].mxu0
        %v6134 = vadd.f32 %v5941, %v6133
        %v6135 = vpop.f32.mrb[0].mxu0
        %v6136 = vadd.f32 %v5943, %v6135
        %6137 = vmatprep.mubr.bf16.mxu0 %v3658
        %6138 = vmatmul.mubr.bf16.gmra.mrb[0].mxu0 %v3657
        %v6139 = vpop.f32.mrb[0].mxu0
        %v6140 = vadd.f32 %v5947, %v6139
        %v6141 = vpop.f32.mrb[0].mxu0
        %v6142 = vadd.f32 %v5949, %v6141
        %v6143 = vpop.f32.mrb[0].mxu0
        %v6144 = vadd.f32 %v5951, %v6143
        %v6145 = vpop.f32.mrb[0].mxu0
        %v6146 = vadd.f32 %v5953, %v6145
        %6147 = vmatprep.mubr.bf16.mxu0 %v3667
        %6148 = vmatmul.mubr.bf16.gmra.mrb[0].mxu0 %v3666
        %v6149 = vpop.f32.mrb[0].mxu0
        %v6150 = vadd.f32 %v5957, %v6149
        %v6151 = vpop.f32.mrb[0].mxu0
        %v6152 = vadd.f32 %v5959, %v6151
        %v6153 = vpop.f32.mrb[0].mxu0
        %v6154 = vadd.f32 %v5961, %v6153
        %v6155 = vpop.f32.mrb[0].mxu0
        %v6156 = vadd.f32 %v5963, %v6155
        %6157 = vmatprep.mubr.bf16.mxu0 %v3676
        %6158 = vmatmul.mubr.bf16.gmra.mrb[0].mxu0 %v3675
        %v6159 = vpop.f32.mrb[0].mxu0
        %v6160 = vadd.f32 %v5967, %v6159
        %v6161 = vpop.f32.mrb[0].mxu0
        %v6162 = vadd.f32 %v5969, %v6161
        %v6163 = vpop.f32.mrb[0].mxu0
        %v6164 = vadd.f32 %v5971, %v6163
        %v6165 = vpop.f32.mrb[0].mxu0
        %v6166 = vadd.f32 %v5973, %v6165
        %6167 = vmatprep.mubr.bf16.mxu0 %v3685
        %6168 = vmatmul.mubr.bf16.gmra.mrb[0].mxu0 %v3684
        %v6169 = vpop.f32.mrb[0].mxu0
        %v6170 = vadd.f32 %v5977, %v6169
        %v6171 = vpop.f32.mrb[0].mxu0
        %v6172 = vadd.f32 %v5979, %v6171
        %v6173 = vpop.f32.mrb[0].mxu0
        %v6174 = vadd.f32 %v5981, %v6173
        %v6175 = vpop.f32.mrb[0].mxu0
        %v6176 = vadd.f32 %v5983, %v6175
        %6177 = vmatprep.mubr.bf16.mxu0 %v3694
        %6178 = vmatmul.mubr.bf16.gmra.mrb[0].mxu0 %v3693
        %v6179 = vpop.f32.mrb[0].mxu0
        %v6180 = vadd.f32 %v5987, %v6179
        %v6181 = vpop.f32.mrb[0].mxu0
        %v6182 = vadd.f32 %v5989, %v6181
        %v6183 = vpop.f32.mrb[0].mxu0
        %v6184 = vadd.f32 %v5991, %v6183
        %v6185 = vpop.f32.mrb[0].mxu0
        %v6186 = vadd.f32 %v5993, %v6185
        %6187 = vmatprep.mubr.bf16.mxu0 %v3703
        %6188 = vmatmul.mubr.bf16.gmra.mrb[0].mxu0 %v3702
        %v6189 = vpop.f32.mrb[0].mxu0
        %v6190 = vadd.f32 %v5997, %v6189
        %v6191 = vpop.f32.mrb[0].mxu0
        %v6192 = vadd.f32 %v5999, %v6191
        %v6193 = vpop.f32.mrb[0].mxu0
        %v6194 = vadd.f32 %v6001, %v6193
        %v6195 = vpop.f32.mrb[0].mxu0
        %v6196 = vadd.f32 %v6003, %v6195
        %6197 = vmatprep.mubr.bf16.mxu0 %v3712
        %6198 = vmatmul.mubr.bf16.gmra.mrb[0].mxu0 %v3711
        %v6199 = vpop.f32.mrb[0].mxu0
        %v6200 = vadd.f32 %v6007, %v6199
        %v6201 = vpop.f32.mrb[0].mxu0
        %v6202 = vadd.f32 %v6009, %v6201
        %v6203 = vpop.f32.mrb[0].mxu0
        %v6204 = vadd.f32 %v6011, %v6203
        %v6205 = vpop.f32.mrb[0].mxu0
        %v6206 = vadd.f32 %v6013, %v6205
        %6207 = vmatprep.mubr.bf16.mxu0 %v3721
        %6208 = vmatmul.mubr.bf16.gmra.mrb[0].mxu0 %v3720
        %v6209 = vpop.f32.mrb[0].mxu0
        %v6210 = vadd.f32 %v6017, %v6209
        %v6211 = vpop.f32.mrb[0].mxu0
        %v6212 = vadd.f32 %v6019, %v6211
        %v6213 = vpop.f32.mrb[0].mxu0
        %v6214 = vadd.f32 %v6021, %v6213
        %v6215 = vpop.f32.mrb[0].mxu0
        %v6216 = vadd.f32 %v6023, %v6215
        %6217 = vmatprep.mubr.bf16.mxu0 %v3730
        %6218 = vmatmul.mubr.bf16.gmra.mrb[0].mxu0 %v3729
        %v6219 = vpop.f32.mrb[0].mxu0
        %v6220 = vadd.f32 %v6027, %v6219
        %v6221 = vpop.f32.mrb[0].mxu0
        %v6222 = vadd.f32 %v6029, %v6221
        %v6223 = vpop.f32.mrb[0].mxu0
        %v6224 = vadd.f32 %v6031, %v6223
        %v6225 = vpop.f32.mrb[0].mxu0
        %v6226 = vadd.f32 %v6033, %v6225
        %6227 = vmatprep.mubr.bf16.mxu0 %v3739
        %6228 = vmatmul.mubr.bf16.gmra.mrb[0].mxu0 %v3738
        %v6229 = vpop.f32.mrb[0].mxu0
        %v6230 = vadd.f32 %v6037, %v6229
        %v6231 = vpop.f32.mrb[0].mxu0
        %v6232 = vadd.f32 %v6039, %v6231
        %v6233 = vpop.f32.mrb[0].mxu0
        %v6234 = vadd.f32 %v6041, %v6233
        %v6235 = vpop.f32.mrb[0].mxu0
        %v6236 = vadd.f32 %v6043, %v6235
        %6237 = vmatprep.mubr.bf16.mxu0 %v3748
        %6238 = vmatmul.mubr.bf16.gmra.mrb[0].mxu0 %v3747
        %v6239 = vpop.f32.mrb[0].mxu0
        %v6240 = vadd.f32 %v6047, %v6239
        %v6241 = vpop.f32.mrb[0].mxu0
        %v6242 = vadd.f32 %v6049, %v6241
        %v6243 = vpop.f32.mrb[0].mxu0
        %v6244 = vadd.f32 %v6051, %v6243
        %v6245 = vpop.f32.mrb[0].mxu0
        %v6246 = vadd.f32 %v6053, %v6245
        %6247 = vmatprep.mubr.bf16.mxu0 %v3757
        %6248 = vmatmul.mubr.bf16.gmra.mrb[0].mxu0 %v3756
        %v6249 = vpop.f32.mrb[0].mxu0
        %v6250 = vadd.f32 %v6057, %v6249
        %v6251 = vpop.f32.mrb[0].mxu0
        %v6252 = vadd.f32 %v6059, %v6251
        %v6253 = vpop.f32.mrb[0].mxu0
        %v6254 = vadd.f32 %v6061, %v6253
        %v6255 = vpop.f32.mrb[0].mxu0
        %v6256 = vadd.f32 %v6063, %v6255
        %6257 = vmatprep.mubr.bf16.mxu0 %v3766
        %6258 = vmatmul.mubr.bf16.gmra.mrb[0].mxu0 %v3765
        %v6259 = vpop.f32.mrb[0].mxu0
        %v6260 = vadd.f32 %v6067, %v6259
        %v6261 = vpop.f32.mrb[0].mxu0
        %v6262 = vadd.f32 %v6069, %v6261
        %v6263 = vpop.f32.mrb[0].mxu0
        %v6264 = vadd.f32 %v6071, %v6263
        %v6265 = vpop.f32.mrb[0].mxu0
        %v6266 = vadd.f32 %v6073, %v6265
        %6267 = vdwg.mxu0
        %6268 = vmatprep.subr.bf16.mxu0 %v5177
        %6269 = vmatpush1.bf16.msra.mxu0 %v5176
        %6270 = vmatprep.subr.bf16.mxu0 %v5181
        %6271 = vmatpush1.bf16.msra.mxu0 %v5180
        %6272 = vmatprep.subr.bf16.mxu0 %v5185
        %6273 = vmatpush1.bf16.msra.mxu0 %v5184
        %6274 = vmatprep.subr.bf16.mxu0 %v5189
        %6275 = vmatpush1.bf16.msra.mxu0 %v5188
        %6276 = vmatprep.subr.bf16.mxu0 %v5193
        %6277 = vmatpush1.bf16.msra.mxu0 %v5192
        %6278 = vmatprep.subr.bf16.mxu0 %v5197
        %6279 = vmatpush1.bf16.msra.mxu0 %v5196
        %6280 = vmatprep.subr.bf16.mxu0 %v5201
        %6281 = vmatpush1.bf16.msra.mxu0 %v5200
        %6282 = vmatprep.subr.bf16.mxu0 %v5205
        %6283 = vmatpush1.bf16.msra.mxu0 %v5204
        %6284 = vmatprep.subr.bf16.mxu0 0
        %6285 = vmatpush1.bf16.msra.mxu0 0
        %6286 = vmatprep.subr.bf16.mxu0 0
        %6287 = vmatpush1.bf16.msra.mxu0 0
        %6288 = vmatprep.subr.bf16.mxu0 0
        %6289 = vmatpush1.bf16.msra.mxu0 0
        %6290 = vmatprep.subr.bf16.mxu0 0
        %6291 = vmatpush1.bf16.msra.mxu0 0
        %6292 = vmatprep.subr.bf16.mxu0 0
        %6293 = vmatpush1.bf16.msra.mxu0 0
        %6294 = vmatprep.subr.bf16.mxu0 0
        %6295 = vmatpush1.bf16.msra.mxu0 0
        %6296 = vmatprep.subr.bf16.mxu0 0
        %6297 = vmatpush1.bf16.msra.mxu0 0
        %6298 = vmatprep.subr.bf16.mxu0 0
        %6299 = vmatpush1.bf16.msra.mxu0 0
        %6300 = vmatprep.mubr.bf16.mxu0 0
        %6301 = vmatmul.mubr.bf16.gmra.mrb[0].mxu0 %v3632
        %v6302 = vpop.f32.mrb[0].mxu0
        %v6303 = vadd.f32 %v6110, %v6302
        %v6304 = vpop.f32.mrb[0].mxu0
        %v6305 = vadd.f32 %v6112, %v6304
        %v6306 = vpop.f32.mrb[0].mxu0
        %v6307 = vadd.f32 %v6114, %v6306
        %v6308 = vpop.f32.mrb[0].mxu0
        %v6309 = vadd.f32 %v6116, %v6308
        %6310 = vmatprep.mubr.bf16.mxu0 0
        %6311 = vmatmul.mubr.bf16.gmra.mrb[0].mxu0 %v3641
        %v6312 = vpop.f32.mrb[0].mxu0
        %v6313 = vadd.f32 %v6120, %v6312
        %v6314 = vpop.f32.mrb[0].mxu0
        %v6315 = vadd.f32 %v6122, %v6314
        %v6316 = vpop.f32.mrb[0].mxu0
        %v6317 = vadd.f32 %v6124, %v6316
        %v6318 = vpop.f32.mrb[0].mxu0
        %v6319 = vadd.f32 %v6126, %v6318
        %6320 = vmatprep.mubr.bf16.mxu0 0
        %6321 = vmatmul.mubr.bf16.gmra.mrb[0].mxu0 %v3650
        %v6322 = vpop.f32.mrb[0].mxu0
        %v6323 = vadd.f32 %v6130, %v6322
        %v6324 = vpop.f32.mrb[0].mxu0
        %v6325 = vadd.f32 %v6132, %v6324
        %v6326 = vpop.f32.mrb[0].mxu0
        %v6327 = vadd.f32 %v6134, %v6326
        %v6328 = vpop.f32.mrb[0].mxu0
        %v6329 = vadd.f32 %v6136, %v6328
        %6330 = vmatprep.mubr.bf16.mxu0 0
        %6331 = vmatmul.mubr.bf16.gmra.mrb[0].mxu0 %v3659
        %v6332 = vpop.f32.mrb[0].mxu0
        %v6333 = vadd.f32 %v6140, %v6332
        %v6334 = vpop.f32.mrb[0].mxu0
        %v6335 = vadd.f32 %v6142, %v6334
        %v6336 = vpop.f32.mrb[0].mxu0
        %v6337 = vadd.f32 %v6144, %v6336
        %v6338 = vpop.f32.mrb[0].mxu0
        %v6339 = vadd.f32 %v6146, %v6338
        %6340 = vmatprep.mubr.bf16.mxu0 0
        %6341 = vmatmul.mubr.bf16.gmra.mrb[0].mxu0 %v3668
        %v6342 = vpop.f32.mrb[0].mxu0
        %v6343 = vadd.f32 %v6150, %v6342
        %v6344 = vpop.f32.mrb[0].mxu0
        %v6345 = vadd.f32 %v6152, %v6344
        %v6346 = vpop.f32.mrb[0].mxu0
        %v6347 = vadd.f32 %v6154, %v6346
        %v6348 = vpop.f32.mrb[0].mxu0
        %v6349 = vadd.f32 %v6156, %v6348
        %6350 = vmatprep.mubr.bf16.mxu0 0
        %6351 = vmatmul.mubr.bf16.gmra.mrb[0].mxu0 %v3677
        %v6352 = vpop.f32.mrb[0].mxu0
        %v6353 = vadd.f32 %v6160, %v6352
        %v6354 = vpop.f32.mrb[0].mxu0
        %v6355 = vadd.f32 %v6162, %v6354
        %v6356 = vpop.f32.mrb[0].mxu0
        %v6357 = vadd.f32 %v6164, %v6356
        %v6358 = vpop.f32.mrb[0].mxu0
        %v6359 = vadd.f32 %v6166, %v6358
        %6360 = vmatprep.mubr.bf16.mxu0 0
        %6361 = vmatmul.mubr.bf16.gmra.mrb[0].mxu0 %v3686
        %v6362 = vpop.f32.mrb[0].mxu0
        %v6363 = vadd.f32 %v6170, %v6362
        %v6364 = vpop.f32.mrb[0].mxu0
        %v6365 = vadd.f32 %v6172, %v6364
        %v6366 = vpop.f32.mrb[0].mxu0
        %v6367 = vadd.f32 %v6174, %v6366
        %v6368 = vpop.f32.mrb[0].mxu0
        %v6369 = vadd.f32 %v6176, %v6368
        %6370 = vmatprep.mubr.bf16.mxu0 0
        %6371 = vmatmul.mubr.bf16.gmra.mrb[0].mxu0 %v3695
        %v6372 = vpop.f32.mrb[0].mxu0
        %v6373 = vadd.f32 %v6180, %v6372
        %v6374 = vpop.f32.mrb[0].mxu0
        %v6375 = vadd.f32 %v6182, %v6374
        %v6376 = vpop.f32.mrb[0].mxu0
        %v6377 = vadd.f32 %v6184, %v6376
        %v6378 = vpop.f32.mrb[0].mxu0
        %v6379 = vadd.f32 %v6186, %v6378
        %6380 = vmatprep.mubr.bf16.mxu0 0
        %6381 = vmatmul.mubr.bf16.gmra.mrb[0].mxu0 %v3704
        %v6382 = vpop.f32.mrb[0].mxu0
        %v6383 = vadd.f32 %v6190, %v6382
        %v6384 = vpop.f32.mrb[0].mxu0
        %v6385 = vadd.f32 %v6192, %v6384
        %v6386 = vpop.f32.mrb[0].mxu0
        %v6387 = vadd.f32 %v6194, %v6386
        %v6388 = vpop.f32.mrb[0].mxu0
        %v6389 = vadd.f32 %v6196, %v6388
        %6390 = vmatprep.mubr.bf16.mxu0 0
        %6391 = vmatmul.mubr.bf16.gmra.mrb[0].mxu0 %v3713
        %v6392 = vpop.f32.mrb[0].mxu0
        %v6393 = vadd.f32 %v6200, %v6392
        %v6394 = vpop.f32.mrb[0].mxu0
        %v6395 = vadd.f32 %v6202, %v6394
        %v6396 = vpop.f32.mrb[0].mxu0
        %v6397 = vadd.f32 %v6204, %v6396
        %v6398 = vpop.f32.mrb[0].mxu0
        %v6399 = vadd.f32 %v6206, %v6398
        %6400 = vmatprep.mubr.bf16.mxu0 0
        %6401 = vmatmul.mubr.bf16.gmra.mrb[0].mxu0 %v3722
        %v6402 = vpop.f32.mrb[0].mxu0
        %v6403 = vadd.f32 %v6210, %v6402
        %v6404 = vpop.f32.mrb[0].mxu0
        %v6405 = vadd.f32 %v6212, %v6404
        %v6406 = vpop.f32.mrb[0].mxu0
        %v6407 = vadd.f32 %v6214, %v6406
        %v6408 = vpop.f32.mrb[0].mxu0
        %v6409 = vadd.f32 %v6216, %v6408
        %6410 = vmatprep.mubr.bf16.mxu0 0
        %6411 = vmatmul.mubr.bf16.gmra.mrb[0].mxu0 %v3731
        %v6412 = vpop.f32.mrb[0].mxu0
        %v6413 = vadd.f32 %v6220, %v6412
        %v6414 = vpop.f32.mrb[0].mxu0
        %v6415 = vadd.f32 %v6222, %v6414
        %v6416 = vpop.f32.mrb[0].mxu0
        %v6417 = vadd.f32 %v6224, %v6416
        %v6418 = vpop.f32.mrb[0].mxu0
        %v6419 = vadd.f32 %v6226, %v6418
        %6420 = vmatprep.mubr.bf16.mxu0 0
        %6421 = vmatmul.mubr.bf16.gmra.mrb[0].mxu0 %v3740
        %v6422 = vpop.f32.mrb[0].mxu0
        %v6423 = vadd.f32 %v6230, %v6422
        %v6424 = vpop.f32.mrb[0].mxu0
        %v6425 = vadd.f32 %v6232, %v6424
        %v6426 = vpop.f32.mrb[0].mxu0
        %v6427 = vadd.f32 %v6234, %v6426
        %v6428 = vpop.f32.mrb[0].mxu0
        %v6429 = vadd.f32 %v6236, %v6428
        %6430 = vmatprep.mubr.bf16.mxu0 0
        %6431 = vmatmul.mubr.bf16.gmra.mrb[0].mxu0 %v3749
        %v6432 = vpop.f32.mrb[0].mxu0
        %v6433 = vadd.f32 %v6240, %v6432
        %v6434 = vpop.f32.mrb[0].mxu0
        %v6435 = vadd.f32 %v6242, %v6434
        %v6436 = vpop.f32.mrb[0].mxu0
        %v6437 = vadd.f32 %v6244, %v6436
        %v6438 = vpop.f32.mrb[0].mxu0
        %v6439 = vadd.f32 %v6246, %v6438
        %6440 = vmatprep.mubr.bf16.mxu0 0
        %6441 = vmatmul.mubr.bf16.gmra.mrb[0].mxu0 %v3758
        %v6442 = vpop.f32.mrb[0].mxu0
        %v6443 = vadd.f32 %v6250, %v6442
        %v6444 = vpop.f32.mrb[0].mxu0
        %v6445 = vadd.f32 %v6252, %v6444
        %v6446 = vpop.f32.mrb[0].mxu0
        %v6447 = vadd.f32 %v6254, %v6446
        %v6448 = vpop.f32.mrb[0].mxu0
        %v6449 = vadd.f32 %v6256, %v6448
        %6450 = vmatprep.mubr.bf16.mxu0 0
        %6451 = vmatmul.mubr.bf16.gmra.mrb[0].mxu0 %v3767
        %v6452 = vpop.f32.mrb[0].mxu0
        %v6453 = vadd.f32 %v6260, %v6452
        %v6454 = vpop.f32.mrb[0].mxu0
        %v6455 = vadd.f32 %v6262, %v6454
        %v6456 = vpop.f32.mrb[0].mxu0
        %v6457 = vadd.f32 %v6264, %v6456
        %v6458 = vpop.f32.mrb[0].mxu0
        %v6459 = vadd.f32 %v6266, %v6458
        %6460 = vdwg.mxu0
        %6461 = vmatprep.subr.bf16.mxu0 %v4923
        %6462 = vmatpush1.bf16.msra.mxu0 %v4922
        %6463 = vmatprep.subr.bf16.mxu0 %v4927
        %6464 = vmatpush1.bf16.msra.mxu0 %v4926
        %6465 = vmatprep.subr.bf16.mxu0 %v4931
        %6466 = vmatpush1.bf16.msra.mxu0 %v4930
        %6467 = vmatprep.subr.bf16.mxu0 %v4935
        %6468 = vmatpush1.bf16.msra.mxu0 %v4934
        %6469 = vmatprep.subr.bf16.mxu0 %v4939
        %6470 = vmatpush1.bf16.msra.mxu0 %v4938
        %6471 = vmatprep.subr.bf16.mxu0 %v4943
        %6472 = vmatpush1.bf16.msra.mxu0 %v4942
        %6473 = vmatprep.subr.bf16.mxu0 %v4947
        %6474 = vmatpush1.bf16.msra.mxu0 %v4946
        %6475 = vmatprep.subr.bf16.mxu0 %v4951
        %6476 = vmatpush1.bf16.msra.mxu0 %v4950
        %6477 = vmatprep.subr.bf16.mxu0 %v4955
        %6478 = vmatpush1.bf16.msra.mxu0 %v4954
        %6479 = vmatprep.subr.bf16.mxu0 %v4959
        %6480 = vmatpush1.bf16.msra.mxu0 %v4958
        %6481 = vmatprep.subr.bf16.mxu0 %v4963
        %6482 = vmatpush1.bf16.msra.mxu0 %v4962
        %6483 = vmatprep.subr.bf16.mxu0 %v4967
        %6484 = vmatpush1.bf16.msra.mxu0 %v4966
        %6485 = vmatprep.subr.bf16.mxu0 %v4971
        %6486 = vmatpush1.bf16.msra.mxu0 %v4970
        %6487 = vmatprep.subr.bf16.mxu0 %v4975
        %6488 = vmatpush1.bf16.msra.mxu0 %v4974
        %6489 = vmatprep.subr.bf16.mxu0 %v4979
        %6490 = vmatpush1.bf16.msra.mxu0 %v4978
        %6491 = vmatprep.subr.bf16.mxu0 %v4983
        %6492 = vmatpush1.bf16.msra.mxu0 %v4982
        %6493 = vmatprep.mubr.bf16.mxu0 %v3625
        %6494 = vmatmul.mubr.bf16.gmra.mrb[0].mxu0 %v3624
        %v6495 = vpop.f32.mrb[0].mxu0
        %v6496 = vadd.f32 0.0, %v6495
        %v6497 = vpop.f32.mrb[0].mxu0
        %v6498 = vadd.f32 0.0, %v6497
        %v6499 = vpop.f32.mrb[0].mxu0
        %v6500 = vadd.f32 0.0, %v6499
        %v6501 = vpop.f32.mrb[0].mxu0
        %v6502 = vadd.f32 0.0, %v6501
        %6503 = vmatprep.mubr.bf16.mxu0 %v3634
        %6504 = vmatmul.mubr.bf16.gmra.mrb[0].mxu0 %v3633
        %v6505 = vpop.f32.mrb[0].mxu0
        %v6506 = vadd.f32 0.0, %v6505
        %v6507 = vpop.f32.mrb[0].mxu0
        %v6508 = vadd.f32 0.0, %v6507
        %v6509 = vpop.f32.mrb[0].mxu0
        %v6510 = vadd.f32 0.0, %v6509
        %v6511 = vpop.f32.mrb[0].mxu0
        %v6512 = vadd.f32 0.0, %v6511
        %6513 = vmatprep.mubr.bf16.mxu0 %v3643
        %6514 = vmatmul.mubr.bf16.gmra.mrb[0].mxu0 %v3642
        %v6515 = vpop.f32.mrb[0].mxu0
        %v6516 = vadd.f32 0.0, %v6515
        %v6517 = vpop.f32.mrb[0].mxu0
        %v6518 = vadd.f32 0.0, %v6517
        %v6519 = vpop.f32.mrb[0].mxu0
        %v6520 = vadd.f32 0.0, %v6519
        %v6521 = vpop.f32.mrb[0].mxu0
        %v6522 = vadd.f32 0.0, %v6521
        %6523 = vmatprep.mubr.bf16.mxu0 %v3652
        %6524 = vmatmul.mubr.bf16.gmra.mrb[0].mxu0 %v3651
        %v6525 = vpop.f32.mrb[0].mxu0
        %v6526 = vadd.f32 0.0, %v6525
        %v6527 = vpop.f32.mrb[0].mxu0
        %v6528 = vadd.f32 0.0, %v6527
        %v6529 = vpop.f32.mrb[0].mxu0
        %v6530 = vadd.f32 0.0, %v6529
        %v6531 = vpop.f32.mrb[0].mxu0
        %v6532 = vadd.f32 0.0, %v6531
        %6533 = vmatprep.mubr.bf16.mxu0 %v3661
        %6534 = vmatmul.mubr.bf16.gmra.mrb[0].mxu0 %v3660
        %v6535 = vpop.f32.mrb[0].mxu0
        %v6536 = vadd.f32 0.0, %v6535
        %v6537 = vpop.f32.mrb[0].mxu0
        %v6538 = vadd.f32 0.0, %v6537
        %v6539 = vpop.f32.mrb[0].mxu0
        %v6540 = vadd.f32 0.0, %v6539
        %v6541 = vpop.f32.mrb[0].mxu0
        %v6542 = vadd.f32 0.0, %v6541
        %6543 = vmatprep.mubr.bf16.mxu0 %v3670
        %6544 = vmatmul.mubr.bf16.gmra.mrb[0].mxu0 %v3669
        %v6545 = vpop.f32.mrb[0].mxu0
        %v6546 = vadd.f32 0.0, %v6545
        %v6547 = vpop.f32.mrb[0].mxu0
        %v6548 = vadd.f32 0.0, %v6547
        %v6549 = vpop.f32.mrb[0].mxu0
        %v6550 = vadd.f32 0.0, %v6549
        %v6551 = vpop.f32.mrb[0].mxu0
        %v6552 = vadd.f32 0.0, %v6551
        %6553 = vmatprep.mubr.bf16.mxu0 %v3679
        %6554 = vmatmul.mubr.bf16.gmra.mrb[0].mxu0 %v3678
        %v6555 = vpop.f32.mrb[0].mxu0
        %v6556 = vadd.f32 0.0, %v6555
        %v6557 = vpop.f32.mrb[0].mxu0
        %v6558 = vadd.f32 0.0, %v6557
        %v6559 = vpop.f32.mrb[0].mxu0
        %v6560 = vadd.f32 0.0, %v6559
        %v6561 = vpop.f32.mrb[0].mxu0
        %v6562 = vadd.f32 0.0, %v6561
        %6563 = vmatprep.mubr.bf16.mxu0 %v3688
        %6564 = vmatmul.mubr.bf16.gmra.mrb[0].mxu0 %v3687
        %v6565 = vpop.f32.mrb[0].mxu0
        %v6566 = vadd.f32 0.0, %v6565
        %v6567 = vpop.f32.mrb[0].mxu0
        %v6568 = vadd.f32 0.0, %v6567
        %v6569 = vpop.f32.mrb[0].mxu0
        %v6570 = vadd.f32 0.0, %v6569
        %v6571 = vpop.f32.mrb[0].mxu0
        %v6572 = vadd.f32 0.0, %v6571
        %6573 = vmatprep.mubr.bf16.mxu0 %v3697
        %6574 = vmatmul.mubr.bf16.gmra.mrb[0].mxu0 %v3696
        %v6575 = vpop.f32.mrb[0].mxu0
        %v6576 = vadd.f32 0.0, %v6575
        %v6577 = vpop.f32.mrb[0].mxu0
        %v6578 = vadd.f32 0.0, %v6577
        %v6579 = vpop.f32.mrb[0].mxu0
        %v6580 = vadd.f32 0.0, %v6579
        %v6581 = vpop.f32.mrb[0].mxu0
        %v6582 = vadd.f32 0.0, %v6581
        %6583 = vmatprep.mubr.bf16.mxu0 %v3706
        %6584 = vmatmul.mubr.bf16.gmra.mrb[0].mxu0 %v3705
        %v6585 = vpop.f32.mrb[0].mxu0
        %v6586 = vadd.f32 0.0, %v6585
        %v6587 = vpop.f32.mrb[0].mxu0
        %v6588 = vadd.f32 0.0, %v6587
        %v6589 = vpop.f32.mrb[0].mxu0
        %v6590 = vadd.f32 0.0, %v6589
        %v6591 = vpop.f32.mrb[0].mxu0
        %v6592 = vadd.f32 0.0, %v6591
        %6593 = vmatprep.mubr.bf16.mxu0 %v3715
        %6594 = vmatmul.mubr.bf16.gmra.mrb[0].mxu0 %v3714
        %v6595 = vpop.f32.mrb[0].mxu0
        %v6596 = vadd.f32 0.0, %v6595
        %v6597 = vpop.f32.mrb[0].mxu0
        %v6598 = vadd.f32 0.0, %v6597
        %v6599 = vpop.f32.mrb[0].mxu0
        %v6600 = vadd.f32 0.0, %v6599
        %v6601 = vpop.f32.mrb[0].mxu0
        %v6602 = vadd.f32 0.0, %v6601
        %6603 = vmatprep.mubr.bf16.mxu0 %v3724
        %6604 = vmatmul.mubr.bf16.gmra.mrb[0].mxu0 %v3723
        %v6605 = vpop.f32.mrb[0].mxu0
        %v6606 = vadd.f32 0.0, %v6605
        %v6607 = vpop.f32.mrb[0].mxu0
        %v6608 = vadd.f32 0.0, %v6607
        %v6609 = vpop.f32.mrb[0].mxu0
        %v6610 = vadd.f32 0.0, %v6609
        %v6611 = vpop.f32.mrb[0].mxu0
        %v6612 = vadd.f32 0.0, %v6611
        %6613 = vmatprep.mubr.bf16.mxu0 %v3733
        %6614 = vmatmul.mubr.bf16.gmra.mrb[0].mxu0 %v3732
        %v6615 = vpop.f32.mrb[0].mxu0
        %v6616 = vadd.f32 0.0, %v6615
        %v6617 = vpop.f32.mrb[0].mxu0
        %v6618 = vadd.f32 0.0, %v6617
        %v6619 = vpop.f32.mrb[0].mxu0
        %v6620 = vadd.f32 0.0, %v6619
        %v6621 = vpop.f32.mrb[0].mxu0
        %v6622 = vadd.f32 0.0, %v6621
        %6623 = vmatprep.mubr.bf16.mxu0 %v3742
        %6624 = vmatmul.mubr.bf16.gmra.mrb[0].mxu0 %v3741
        %v6625 = vpop.f32.mrb[0].mxu0
        %v6626 = vadd.f32 0.0, %v6625
        %v6627 = vpop.f32.mrb[0].mxu0
        %v6628 = vadd.f32 0.0, %v6627
        %v6629 = vpop.f32.mrb[0].mxu0
        %v6630 = vadd.f32 0.0, %v6629
        %v6631 = vpop.f32.mrb[0].mxu0
        %v6632 = vadd.f32 0.0, %v6631
        %6633 = vmatprep.mubr.bf16.mxu0 %v3751
        %6634 = vmatmul.mubr.bf16.gmra.mrb[0].mxu0 %v3750
        %v6635 = vpop.f32.mrb[0].mxu0
        %v6636 = vadd.f32 0.0, %v6635
        %v6637 = vpop.f32.mrb[0].mxu0
        %v6638 = vadd.f32 0.0, %v6637
        %v6639 = vpop.f32.mrb[0].mxu0
        %v6640 = vadd.f32 0.0, %v6639
        %v6641 = vpop.f32.mrb[0].mxu0
        %v6642 = vadd.f32 0.0, %v6641
        %6643 = vmatprep.mubr.bf16.mxu0 %v3760
        %6644 = vmatmul.mubr.bf16.gmra.mrb[0].mxu0 %v3759
        %v6645 = vpop.f32.mrb[0].mxu0
        %v6646 = vadd.f32 0.0, %v6645
        %v6647 = vpop.f32.mrb[0].mxu0
        %v6648 = vadd.f32 0.0, %v6647
        %v6649 = vpop.f32.mrb[0].mxu0
        %v6650 = vadd.f32 0.0, %v6649
        %v6651 = vpop.f32.mrb[0].mxu0
        %v6652 = vadd.f32 0.0, %v6651
        %6653 = vdwg.mxu0
        %6654 = vmatprep.subr.bf16.mxu0 %v4987
        %6655 = vmatpush1.bf16.msra.mxu0 %v4986
        %6656 = vmatprep.subr.bf16.mxu0 %v4991
        %6657 = vmatpush1.bf16.msra.mxu0 %v4990
        %6658 = vmatprep.subr.bf16.mxu0 %v4995
        %6659 = vmatpush1.bf16.msra.mxu0 %v4994
        %6660 = vmatprep.subr.bf16.mxu0 %v4999
        %6661 = vmatpush1.bf16.msra.mxu0 %v4998
        %6662 = vmatprep.subr.bf16.mxu0 %v5003
        %6663 = vmatpush1.bf16.msra.mxu0 %v5002
        %6664 = vmatprep.subr.bf16.mxu0 %v5007
        %6665 = vmatpush1.bf16.msra.mxu0 %v5006
        %6666 = vmatprep.subr.bf16.mxu0 %v5011
        %6667 = vmatpush1.bf16.msra.mxu0 %v5010
        %6668 = vmatprep.subr.bf16.mxu0 %v5015
        %6669 = vmatpush1.bf16.msra.mxu0 %v5014
        %6670 = vmatprep.subr.bf16.mxu0 %v5019
        %6671 = vmatpush1.bf16.msra.mxu0 %v5018
        %6672 = vmatprep.subr.bf16.mxu0 %v5023
        %6673 = vmatpush1.bf16.msra.mxu0 %v5022
        %6674 = vmatprep.subr.bf16.mxu0 %v5027
        %6675 = vmatpush1.bf16.msra.mxu0 %v5026
        %6676 = vmatprep.subr.bf16.mxu0 %v5031
        %6677 = vmatpush1.bf16.msra.mxu0 %v5030
        %6678 = vmatprep.subr.bf16.mxu0 %v5035
        %6679 = vmatpush1.bf16.msra.mxu0 %v5034
        %6680 = vmatprep.subr.bf16.mxu0 %v5039
        %6681 = vmatpush1.bf16.msra.mxu0 %v5038
        %6682 = vmatprep.subr.bf16.mxu0 %v5043
        %6683 = vmatpush1.bf16.msra.mxu0 %v5042
        %6684 = vmatprep.subr.bf16.mxu0 %v5047
        %6685 = vmatpush1.bf16.msra.mxu0 %v5046
        %6686 = vmatprep.mubr.bf16.mxu0 %v3627
        %6687 = vmatmul.mubr.bf16.gmra.mrb[0].mxu0 %v3626
        %v6688 = vpop.f32.mrb[0].mxu0
        %v6689 = vadd.f32 %v6496, %v6688
        %v6690 = vpop.f32.mrb[0].mxu0
        %v6691 = vadd.f32 %v6498, %v6690
        %v6692 = vpop.f32.mrb[0].mxu0
        %v6693 = vadd.f32 %v6500, %v6692
        %v6694 = vpop.f32.mrb[0].mxu0
        %v6695 = vadd.f32 %v6502, %v6694
        %6696 = vmatprep.mubr.bf16.mxu0 %v3636
        %6697 = vmatmul.mubr.bf16.gmra.mrb[0].mxu0 %v3635
        %v6698 = vpop.f32.mrb[0].mxu0
        %v6699 = vadd.f32 %v6506, %v6698
        %v6700 = vpop.f32.mrb[0].mxu0
        %v6701 = vadd.f32 %v6508, %v6700
        %v6702 = vpop.f32.mrb[0].mxu0
        %v6703 = vadd.f32 %v6510, %v6702
        %v6704 = vpop.f32.mrb[0].mxu0
        %v6705 = vadd.f32 %v6512, %v6704
        %6706 = vmatprep.mubr.bf16.mxu0 %v3645
        %6707 = vmatmul.mubr.bf16.gmra.mrb[0].mxu0 %v3644
        %v6708 = vpop.f32.mrb[0].mxu0
        %v6709 = vadd.f32 %v6516, %v6708
        %v6710 = vpop.f32.mrb[0].mxu0
        %v6711 = vadd.f32 %v6518, %v6710
        %v6712 = vpop.f32.mrb[0].mxu0
        %v6713 = vadd.f32 %v6520, %v6712
        %v6714 = vpop.f32.mrb[0].mxu0
        %v6715 = vadd.f32 %v6522, %v6714
        %6716 = vmatprep.mubr.bf16.mxu0 %v3654
        %6717 = vmatmul.mubr.bf16.gmra.mrb[0].mxu0 %v3653
        %v6718 = vpop.f32.mrb[0].mxu0
        %v6719 = vadd.f32 %v6526, %v6718
        %v6720 = vpop.f32.mrb[0].mxu0
        %v6721 = vadd.f32 %v6528, %v6720
        %v6722 = vpop.f32.mrb[0].mxu0
        %v6723 = vadd.f32 %v6530, %v6722
        %v6724 = vpop.f32.mrb[0].mxu0
        %v6725 = vadd.f32 %v6532, %v6724
        %6726 = vmatprep.mubr.bf16.mxu0 %v3663
        %6727 = vmatmul.mubr.bf16.gmra.mrb[0].mxu0 %v3662
        %v6728 = vpop.f32.mrb[0].mxu0
        %v6729 = vadd.f32 %v6536, %v6728
        %v6730 = vpop.f32.mrb[0].mxu0
        %v6731 = vadd.f32 %v6538, %v6730
        %v6732 = vpop.f32.mrb[0].mxu0
        %v6733 = vadd.f32 %v6540, %v6732
        %v6734 = vpop.f32.mrb[0].mxu0
        %v6735 = vadd.f32 %v6542, %v6734
        %6736 = vmatprep.mubr.bf16.mxu0 %v3672
        %6737 = vmatmul.mubr.bf16.gmra.mrb[0].mxu0 %v3671
        %v6738 = vpop.f32.mrb[0].mxu0
        %v6739 = vadd.f32 %v6546, %v6738
        %v6740 = vpop.f32.mrb[0].mxu0
        %v6741 = vadd.f32 %v6548, %v6740
        %v6742 = vpop.f32.mrb[0].mxu0
        %v6743 = vadd.f32 %v6550, %v6742
        %v6744 = vpop.f32.mrb[0].mxu0
        %v6745 = vadd.f32 %v6552, %v6744
        %6746 = vmatprep.mubr.bf16.mxu0 %v3681
        %6747 = vmatmul.mubr.bf16.gmra.mrb[0].mxu0 %v3680
        %v6748 = vpop.f32.mrb[0].mxu0
        %v6749 = vadd.f32 %v6556, %v6748
        %v6750 = vpop.f32.mrb[0].mxu0
        %v6751 = vadd.f32 %v6558, %v6750
        %v6752 = vpop.f32.mrb[0].mxu0
        %v6753 = vadd.f32 %v6560, %v6752
        %v6754 = vpop.f32.mrb[0].mxu0
        %v6755 = vadd.f32 %v6562, %v6754
        %6756 = vmatprep.mubr.bf16.mxu0 %v3690
        %6757 = vmatmul.mubr.bf16.gmra.mrb[0].mxu0 %v3689
        %v6758 = vpop.f32.mrb[0].mxu0
        %v6759 = vadd.f32 %v6566, %v6758
        %v6760 = vpop.f32.mrb[0].mxu0
        %v6761 = vadd.f32 %v6568, %v6760
        %v6762 = vpop.f32.mrb[0].mxu0
        %v6763 = vadd.f32 %v6570, %v6762
        %v6764 = vpop.f32.mrb[0].mxu0
        %v6765 = vadd.f32 %v6572, %v6764
        %6766 = vmatprep.mubr.bf16.mxu0 %v3699
        %6767 = vmatmul.mubr.bf16.gmra.mrb[0].mxu0 %v3698
        %v6768 = vpop.f32.mrb[0].mxu0
        %v6769 = vadd.f32 %v6576, %v6768
        %v6770 = vpop.f32.mrb[0].mxu0
        %v6771 = vadd.f32 %v6578, %v6770
        %v6772 = vpop.f32.mrb[0].mxu0
        %v6773 = vadd.f32 %v6580, %v6772
        %v6774 = vpop.f32.mrb[0].mxu0
        %v6775 = vadd.f32 %v6582, %v6774
        %6776 = vmatprep.mubr.bf16.mxu0 %v3708
        %6777 = vmatmul.mubr.bf16.gmra.mrb[0].mxu0 %v3707
        %v6778 = vpop.f32.mrb[0].mxu0
        %v6779 = vadd.f32 %v6586, %v6778
        %v6780 = vpop.f32.mrb[0].mxu0
        %v6781 = vadd.f32 %v6588, %v6780
        %v6782 = vpop.f32.mrb[0].mxu0
        %v6783 = vadd.f32 %v6590, %v6782
        %v6784 = vpop.f32.mrb[0].mxu0
        %v6785 = vadd.f32 %v6592, %v6784
        %6786 = vmatprep.mubr.bf16.mxu0 %v3717
        %6787 = vmatmul.mubr.bf16.gmra.mrb[0].mxu0 %v3716
        %v6788 = vpop.f32.mrb[0].mxu0
        %v6789 = vadd.f32 %v6596, %v6788
        %v6790 = vpop.f32.mrb[0].mxu0
        %v6791 = vadd.f32 %v6598, %v6790
        %v6792 = vpop.f32.mrb[0].mxu0
        %v6793 = vadd.f32 %v6600, %v6792
        %v6794 = vpop.f32.mrb[0].mxu0
        %v6795 = vadd.f32 %v6602, %v6794
        %6796 = vmatprep.mubr.bf16.mxu0 %v3726
        %6797 = vmatmul.mubr.bf16.gmra.mrb[0].mxu0 %v3725
        %v6798 = vpop.f32.mrb[0].mxu0
        %v6799 = vadd.f32 %v6606, %v6798
        %v6800 = vpop.f32.mrb[0].mxu0
        %v6801 = vadd.f32 %v6608, %v6800
        %v6802 = vpop.f32.mrb[0].mxu0
        %v6803 = vadd.f32 %v6610, %v6802
        %v6804 = vpop.f32.mrb[0].mxu0
        %v6805 = vadd.f32 %v6612, %v6804
        %6806 = vmatprep.mubr.bf16.mxu0 %v3735
        %6807 = vmatmul.mubr.bf16.gmra.mrb[0].mxu0 %v3734
        %v6808 = vpop.f32.mrb[0].mxu0
        %v6809 = vadd.f32 %v6616, %v6808
        %v6810 = vpop.f32.mrb[0].mxu0
        %v6811 = vadd.f32 %v6618, %v6810
        %v6812 = vpop.f32.mrb[0].mxu0
        %v6813 = vadd.f32 %v6620, %v6812
        %v6814 = vpop.f32.mrb[0].mxu0
        %v6815 = vadd.f32 %v6622, %v6814
        %6816 = vmatprep.mubr.bf16.mxu0 %v3744
        %6817 = vmatmul.mubr.bf16.gmra.mrb[0].mxu0 %v3743
        %v6818 = vpop.f32.mrb[0].mxu0
        %v6819 = vadd.f32 %v6626, %v6818
        %v6820 = vpop.f32.mrb[0].mxu0
        %v6821 = vadd.f32 %v6628, %v6820
        %v6822 = vpop.f32.mrb[0].mxu0
        %v6823 = vadd.f32 %v6630, %v6822
        %v6824 = vpop.f32.mrb[0].mxu0
        %v6825 = vadd.f32 %v6632, %v6824
        %6826 = vmatprep.mubr.bf16.mxu0 %v3753
        %6827 = vmatmul.mubr.bf16.gmra.mrb[0].mxu0 %v3752
        %v6828 = vpop.f32.mrb[0].mxu0
        %v6829 = vadd.f32 %v6636, %v6828
        %v6830 = vpop.f32.mrb[0].mxu0
        %v6831 = vadd.f32 %v6638, %v6830
        %v6832 = vpop.f32.mrb[0].mxu0
        %v6833 = vadd.f32 %v6640, %v6832
        %v6834 = vpop.f32.mrb[0].mxu0
        %v6835 = vadd.f32 %v6642, %v6834
        %6836 = vmatprep.mubr.bf16.mxu0 %v3762
        %6837 = vmatmul.mubr.bf16.gmra.mrb[0].mxu0 %v3761
        %v6838 = vpop.f32.mrb[0].mxu0
        %v6839 = vadd.f32 %v6646, %v6838
        %v6840 = vpop.f32.mrb[0].mxu0
        %v6841 = vadd.f32 %v6648, %v6840
        %v6842 = vpop.f32.mrb[0].mxu0
        %v6843 = vadd.f32 %v6650, %v6842
        %v6844 = vpop.f32.mrb[0].mxu0
        %v6845 = vadd.f32 %v6652, %v6844
        %6846 = vdwg.mxu0
        %6847 = vmatprep.subr.bf16.mxu0 %v5051
        %6848 = vmatpush1.bf16.msra.mxu0 %v5050
        %6849 = vmatprep.subr.bf16.mxu0 %v5055
        %6850 = vmatpush1.bf16.msra.mxu0 %v5054
        %6851 = vmatprep.subr.bf16.mxu0 %v5059
        %6852 = vmatpush1.bf16.msra.mxu0 %v5058
        %6853 = vmatprep.subr.bf16.mxu0 %v5063
        %6854 = vmatpush1.bf16.msra.mxu0 %v5062
        %6855 = vmatprep.subr.bf16.mxu0 %v5067
        %6856 = vmatpush1.bf16.msra.mxu0 %v5066
        %6857 = vmatprep.subr.bf16.mxu0 %v5071
        %6858 = vmatpush1.bf16.msra.mxu0 %v5070
        %6859 = vmatprep.subr.bf16.mxu0 %v5075
        %6860 = vmatpush1.bf16.msra.mxu0 %v5074
        %6861 = vmatprep.subr.bf16.mxu0 %v5079
        %6862 = vmatpush1.bf16.msra.mxu0 %v5078
        %6863 = vmatprep.subr.bf16.mxu0 %v5083
        %6864 = vmatpush1.bf16.msra.mxu0 %v5082
        %6865 = vmatprep.subr.bf16.mxu0 %v5087
        %6866 = vmatpush1.bf16.msra.mxu0 %v5086
        %6867 = vmatprep.subr.bf16.mxu0 %v5091
        %6868 = vmatpush1.bf16.msra.mxu0 %v5090
        %6869 = vmatprep.subr.bf16.mxu0 %v5095
        %6870 = vmatpush1.bf16.msra.mxu0 %v5094
        %6871 = vmatprep.subr.bf16.mxu0 %v5099
        %6872 = vmatpush1.bf16.msra.mxu0 %v5098
        %6873 = vmatprep.subr.bf16.mxu0 %v5103
        %6874 = vmatpush1.bf16.msra.mxu0 %v5102
        %6875 = vmatprep.subr.bf16.mxu0 %v5107
        %6876 = vmatpush1.bf16.msra.mxu0 %v5106
        %6877 = vmatprep.subr.bf16.mxu0 %v5111
        %6878 = vmatpush1.bf16.msra.mxu0 %v5110
        %6879 = vmatprep.mubr.bf16.mxu0 %v3629
        %6880 = vmatmul.mubr.bf16.gmra.mrb[0].mxu0 %v3628
        %v6881 = vpop.f32.mrb[0].mxu0
        %v6882 = vadd.f32 %v6689, %v6881
        %v6883 = vpop.f32.mrb[0].mxu0
        %v6884 = vadd.f32 %v6691, %v6883
        %v6885 = vpop.f32.mrb[0].mxu0
        %v6886 = vadd.f32 %v6693, %v6885
        %v6887 = vpop.f32.mrb[0].mxu0
        %v6888 = vadd.f32 %v6695, %v6887
        %6889 = vmatprep.mubr.bf16.mxu0 %v3638
        %6890 = vmatmul.mubr.bf16.gmra.mrb[0].mxu0 %v3637
        %v6891 = vpop.f32.mrb[0].mxu0
        %v6892 = vadd.f32 %v6699, %v6891
        %v6893 = vpop.f32.mrb[0].mxu0
        %v6894 = vadd.f32 %v6701, %v6893
        %v6895 = vpop.f32.mrb[0].mxu0
        %v6896 = vadd.f32 %v6703, %v6895
        %v6897 = vpop.f32.mrb[0].mxu0
        %v6898 = vadd.f32 %v6705, %v6897
        %6899 = vmatprep.mubr.bf16.mxu0 %v3647
        %6900 = vmatmul.mubr.bf16.gmra.mrb[0].mxu0 %v3646
        %v6901 = vpop.f32.mrb[0].mxu0
        %v6902 = vadd.f32 %v6709, %v6901
        %v6903 = vpop.f32.mrb[0].mxu0
        %v6904 = vadd.f32 %v6711, %v6903
        %v6905 = vpop.f32.mrb[0].mxu0
        %v6906 = vadd.f32 %v6713, %v6905
        %v6907 = vpop.f32.mrb[0].mxu0
        %v6908 = vadd.f32 %v6715, %v6907
        %6909 = vmatprep.mubr.bf16.mxu0 %v3656
        %6910 = vmatmul.mubr.bf16.gmra.mrb[0].mxu0 %v3655
        %v6911 = vpop.f32.mrb[0].mxu0
        %v6912 = vadd.f32 %v6719, %v6911
        %v6913 = vpop.f32.mrb[0].mxu0
        %v6914 = vadd.f32 %v6721, %v6913
        %v6915 = vpop.f32.mrb[0].mxu0
        %v6916 = vadd.f32 %v6723, %v6915
        %v6917 = vpop.f32.mrb[0].mxu0
        %v6918 = vadd.f32 %v6725, %v6917
        %6919 = vmatprep.mubr.bf16.mxu0 %v3665
        %6920 = vmatmul.mubr.bf16.gmra.mrb[0].mxu0 %v3664
        %v6921 = vpop.f32.mrb[0].mxu0
        %v6922 = vadd.f32 %v6729, %v6921
        %v6923 = vpop.f32.mrb[0].mxu0
        %v6924 = vadd.f32 %v6731, %v6923
        %v6925 = vpop.f32.mrb[0].mxu0
        %v6926 = vadd.f32 %v6733, %v6925
        %v6927 = vpop.f32.mrb[0].mxu0
        %v6928 = vadd.f32 %v6735, %v6927
        %6929 = vmatprep.mubr.bf16.mxu0 %v3674
        %6930 = vmatmul.mubr.bf16.gmra.mrb[0].mxu0 %v3673
        %v6931 = vpop.f32.mrb[0].mxu0
        %v6932 = vadd.f32 %v6739, %v6931
        %v6933 = vpop.f32.mrb[0].mxu0
        %v6934 = vadd.f32 %v6741, %v6933
        %v6935 = vpop.f32.mrb[0].mxu0
        %v6936 = vadd.f32 %v6743, %v6935
        %v6937 = vpop.f32.mrb[0].mxu0
        %v6938 = vadd.f32 %v6745, %v6937
        %6939 = vmatprep.mubr.bf16.mxu0 %v3683
        %6940 = vmatmul.mubr.bf16.gmra.mrb[0].mxu0 %v3682
        %v6941 = vpop.f32.mrb[0].mxu0
        %v6942 = vadd.f32 %v6749, %v6941
        %v6943 = vpop.f32.mrb[0].mxu0
        %v6944 = vadd.f32 %v6751, %v6943
        %v6945 = vpop.f32.mrb[0].mxu0
        %v6946 = vadd.f32 %v6753, %v6945
        %v6947 = vpop.f32.mrb[0].mxu0
        %v6948 = vadd.f32 %v6755, %v6947
        %6949 = vmatprep.mubr.bf16.mxu0 %v3692
        %6950 = vmatmul.mubr.bf16.gmra.mrb[0].mxu0 %v3691
        %v6951 = vpop.f32.mrb[0].mxu0
        %v6952 = vadd.f32 %v6759, %v6951
        %v6953 = vpop.f32.mrb[0].mxu0
        %v6954 = vadd.f32 %v6761, %v6953
        %v6955 = vpop.f32.mrb[0].mxu0
        %v6956 = vadd.f32 %v6763, %v6955
        %v6957 = vpop.f32.mrb[0].mxu0
        %v6958 = vadd.f32 %v6765, %v6957
        %6959 = vmatprep.mubr.bf16.mxu0 %v3701
        %6960 = vmatmul.mubr.bf16.gmra.mrb[0].mxu0 %v3700
        %v6961 = vpop.f32.mrb[0].mxu0
        %v6962 = vadd.f32 %v6769, %v6961
        %v6963 = vpop.f32.mrb[0].mxu0
        %v6964 = vadd.f32 %v6771, %v6963
        %v6965 = vpop.f32.mrb[0].mxu0
        %v6966 = vadd.f32 %v6773, %v6965
        %v6967 = vpop.f32.mrb[0].mxu0
        %v6968 = vadd.f32 %v6775, %v6967
        %6969 = vmatprep.mubr.bf16.mxu0 %v3710
        %6970 = vmatmul.mubr.bf16.gmra.mrb[0].mxu0 %v3709
        %v6971 = vpop.f32.mrb[0].mxu0
        %v6972 = vadd.f32 %v6779, %v6971
        %v6973 = vpop.f32.mrb[0].mxu0
        %v6974 = vadd.f32 %v6781, %v6973
        %v6975 = vpop.f32.mrb[0].mxu0
        %v6976 = vadd.f32 %v6783, %v6975
        %v6977 = vpop.f32.mrb[0].mxu0
        %v6978 = vadd.f32 %v6785, %v6977
        %6979 = vmatprep.mubr.bf16.mxu0 %v3719
        %6980 = vmatmul.mubr.bf16.gmra.mrb[0].mxu0 %v3718
        %v6981 = vpop.f32.mrb[0].mxu0
        %v6982 = vadd.f32 %v6789, %v6981
        %v6983 = vpop.f32.mrb[0].mxu0
        %v6984 = vadd.f32 %v6791, %v6983
        %v6985 = vpop.f32.mrb[0].mxu0
        %v6986 = vadd.f32 %v6793, %v6985
        %v6987 = vpop.f32.mrb[0].mxu0
        %v6988 = vadd.f32 %v6795, %v6987
        %6989 = vmatprep.mubr.bf16.mxu0 %v3728
        %6990 = vmatmul.mubr.bf16.gmra.mrb[0].mxu0 %v3727
        %v6991 = vpop.f32.mrb[0].mxu0
        %v6992 = vadd.f32 %v6799, %v6991
        %v6993 = vpop.f32.mrb[0].mxu0
        %v6994 = vadd.f32 %v6801, %v6993
        %v6995 = vpop.f32.mrb[0].mxu0
        %v6996 = vadd.f32 %v6803, %v6995
        %v6997 = vpop.f32.mrb[0].mxu0
        %v6998 = vadd.f32 %v6805, %v6997
        %6999 = vmatprep.mubr.bf16.mxu0 %v3737
        %7000 = vmatmul.mubr.bf16.gmra.mrb[0].mxu0 %v3736
        %v7001 = vpop.f32.mrb[0].mxu0
        %v7002 = vadd.f32 %v6809, %v7001
        %v7003 = vpop.f32.mrb[0].mxu0
        %v7004 = vadd.f32 %v6811, %v7003
        %v7005 = vpop.f32.mrb[0].mxu0
        %v7006 = vadd.f32 %v6813, %v7005
        %v7007 = vpop.f32.mrb[0].mxu0
        %v7008 = vadd.f32 %v6815, %v7007
        %7009 = vmatprep.mubr.bf16.mxu0 %v3746
        %7010 = vmatmul.mubr.bf16.gmra.mrb[0].mxu0 %v3745
        %v7011 = vpop.f32.mrb[0].mxu0
        %v7012 = vadd.f32 %v6819, %v7011
        %v7013 = vpop.f32.mrb[0].mxu0
        %v7014 = vadd.f32 %v6821, %v7013
        %v7015 = vpop.f32.mrb[0].mxu0
        %v7016 = vadd.f32 %v6823, %v7015
        %v7017 = vpop.f32.mrb[0].mxu0
        %v7018 = vadd.f32 %v6825, %v7017
        %7019 = vmatprep.mubr.bf16.mxu0 %v3755
        %7020 = vmatmul.mubr.bf16.gmra.mrb[0].mxu0 %v3754
        %v7021 = vpop.f32.mrb[0].mxu0
        %v7022 = vadd.f32 %v6829, %v7021
        %v7023 = vpop.f32.mrb[0].mxu0
        %v7024 = vadd.f32 %v6831, %v7023
        %v7025 = vpop.f32.mrb[0].mxu0
        %v7026 = vadd.f32 %v6833, %v7025
        %v7027 = vpop.f32.mrb[0].mxu0
        %v7028 = vadd.f32 %v6835, %v7027
        %7029 = vmatprep.mubr.bf16.mxu0 %v3764
        %7030 = vmatmul.mubr.bf16.gmra.mrb[0].mxu0 %v3763
        %v7031 = vpop.f32.mrb[0].mxu0
        %v7032 = vadd.f32 %v6839, %v7031
        %v7033 = vpop.f32.mrb[0].mxu0
        %v7034 = vadd.f32 %v6841, %v7033
        %v7035 = vpop.f32.mrb[0].mxu0
        %v7036 = vadd.f32 %v6843, %v7035
        %v7037 = vpop.f32.mrb[0].mxu0
        %v7038 = vadd.f32 %v6845, %v7037
        %7039 = vdwg.mxu0
        %7040 = vmatprep.subr.bf16.mxu0 %v5115
        %7041 = vmatpush1.bf16.msra.mxu0 %v5114
        %7042 = vmatprep.subr.bf16.mxu0 %v5119
        %7043 = vmatpush1.bf16.msra.mxu0 %v5118
        %7044 = vmatprep.subr.bf16.mxu0 %v5123
        %7045 = vmatpush1.bf16.msra.mxu0 %v5122
        %7046 = vmatprep.subr.bf16.mxu0 %v5127
        %7047 = vmatpush1.bf16.msra.mxu0 %v5126
        %7048 = vmatprep.subr.bf16.mxu0 %v5131
        %7049 = vmatpush1.bf16.msra.mxu0 %v5130
        %7050 = vmatprep.subr.bf16.mxu0 %v5135
        %7051 = vmatpush1.bf16.msra.mxu0 %v5134
        %7052 = vmatprep.subr.bf16.mxu0 %v5139
        %7053 = vmatpush1.bf16.msra.mxu0 %v5138
        %7054 = vmatprep.subr.bf16.mxu0 %v5143
        %7055 = vmatpush1.bf16.msra.mxu0 %v5142
        %7056 = vmatprep.subr.bf16.mxu0 %v5147
        %7057 = vmatpush1.bf16.msra.mxu0 %v5146
        %7058 = vmatprep.subr.bf16.mxu0 %v5151
        %7059 = vmatpush1.bf16.msra.mxu0 %v5150
        %7060 = vmatprep.subr.bf16.mxu0 %v5155
        %7061 = vmatpush1.bf16.msra.mxu0 %v5154
        %7062 = vmatprep.subr.bf16.mxu0 %v5159
        %7063 = vmatpush1.bf16.msra.mxu0 %v5158
        %7064 = vmatprep.subr.bf16.mxu0 %v5163
        %7065 = vmatpush1.bf16.msra.mxu0 %v5162
        %7066 = vmatprep.subr.bf16.mxu0 %v5167
        %7067 = vmatpush1.bf16.msra.mxu0 %v5166
        %7068 = vmatprep.subr.bf16.mxu0 %v5171
        %7069 = vmatpush1.bf16.msra.mxu0 %v5170
        %7070 = vmatprep.subr.bf16.mxu0 %v5175
        %7071 = vmatpush1.bf16.msra.mxu0 %v5174
        %7072 = vmatprep.mubr.bf16.mxu0 %v3631
        %7073 = vmatmul.mubr.bf16.gmra.mrb[0].mxu0 %v3630
        %v7074 = vpop.f32.mrb[0].mxu0
        %v7075 = vadd.f32 %v6882, %v7074
        %v7076 = vpop.f32.mrb[0].mxu0
        %v7077 = vadd.f32 %v6884, %v7076
        %v7078 = vpop.f32.mrb[0].mxu0
        %v7079 = vadd.f32 %v6886, %v7078
        %v7080 = vpop.f32.mrb[0].mxu0
        %v7081 = vadd.f32 %v6888, %v7080
        %7082 = vmatprep.mubr.bf16.mxu0 %v3640
        %7083 = vmatmul.mubr.bf16.gmra.mrb[0].mxu0 %v3639
        %v7084 = vpop.f32.mrb[0].mxu0
        %v7085 = vadd.f32 %v6892, %v7084
        %v7086 = vpop.f32.mrb[0].mxu0
        %v7087 = vadd.f32 %v6894, %v7086
        %v7088 = vpop.f32.mrb[0].mxu0
        %v7089 = vadd.f32 %v6896, %v7088
        %v7090 = vpop.f32.mrb[0].mxu0
        %v7091 = vadd.f32 %v6898, %v7090
        %7092 = vmatprep.mubr.bf16.mxu0 %v3649
        %7093 = vmatmul.mubr.bf16.gmra.mrb[0].mxu0 %v3648
        %v7094 = vpop.f32.mrb[0].mxu0
        %v7095 = vadd.f32 %v6902, %v7094
        %v7096 = vpop.f32.mrb[0].mxu0
        %v7097 = vadd.f32 %v6904, %v7096
        %v7098 = vpop.f32.mrb[0].mxu0
        %v7099 = vadd.f32 %v6906, %v7098
        %v7100 = vpop.f32.mrb[0].mxu0
        %v7101 = vadd.f32 %v6908, %v7100
        %7102 = vmatprep.mubr.bf16.mxu0 %v3658
        %7103 = vmatmul.mubr.bf16.gmra.mrb[0].mxu0 %v3657
        %v7104 = vpop.f32.mrb[0].mxu0
        %v7105 = vadd.f32 %v6912, %v7104
        %v7106 = vpop.f32.mrb[0].mxu0
        %v7107 = vadd.f32 %v6914, %v7106
        %v7108 = vpop.f32.mrb[0].mxu0
        %v7109 = vadd.f32 %v6916, %v7108
        %v7110 = vpop.f32.mrb[0].mxu0
        %v7111 = vadd.f32 %v6918, %v7110
        %7112 = vmatprep.mubr.bf16.mxu0 %v3667
        %7113 = vmatmul.mubr.bf16.gmra.mrb[0].mxu0 %v3666
        %v7114 = vpop.f32.mrb[0].mxu0
        %v7115 = vadd.f32 %v6922, %v7114
        %v7116 = vpop.f32.mrb[0].mxu0
        %v7117 = vadd.f32 %v6924, %v7116
        %v7118 = vpop.f32.mrb[0].mxu0
        %v7119 = vadd.f32 %v6926, %v7118
        %v7120 = vpop.f32.mrb[0].mxu0
        %v7121 = vadd.f32 %v6928, %v7120
        %7122 = vmatprep.mubr.bf16.mxu0 %v3676
        %7123 = vmatmul.mubr.bf16.gmra.mrb[0].mxu0 %v3675
        %v7124 = vpop.f32.mrb[0].mxu0
        %v7125 = vadd.f32 %v6932, %v7124
        %v7126 = vpop.f32.mrb[0].mxu0
        %v7127 = vadd.f32 %v6934, %v7126
        %v7128 = vpop.f32.mrb[0].mxu0
        %v7129 = vadd.f32 %v6936, %v7128
        %v7130 = vpop.f32.mrb[0].mxu0
        %v7131 = vadd.f32 %v6938, %v7130
        %7132 = vmatprep.mubr.bf16.mxu0 %v3685
        %7133 = vmatmul.mubr.bf16.gmra.mrb[0].mxu0 %v3684
        %v7134 = vpop.f32.mrb[0].mxu0
        %v7135 = vadd.f32 %v6942, %v7134
        %v7136 = vpop.f32.mrb[0].mxu0
        %v7137 = vadd.f32 %v6944, %v7136
        %v7138 = vpop.f32.mrb[0].mxu0
        %v7139 = vadd.f32 %v6946, %v7138
        %v7140 = vpop.f32.mrb[0].mxu0
        %v7141 = vadd.f32 %v6948, %v7140
        %7142 = vmatprep.mubr.bf16.mxu0 %v3694
        %7143 = vmatmul.mubr.bf16.gmra.mrb[0].mxu0 %v3693
        %v7144 = vpop.f32.mrb[0].mxu0
        %v7145 = vadd.f32 %v6952, %v7144
        %v7146 = vpop.f32.mrb[0].mxu0
        %v7147 = vadd.f32 %v6954, %v7146
        %v7148 = vpop.f32.mrb[0].mxu0
        %v7149 = vadd.f32 %v6956, %v7148
        %v7150 = vpop.f32.mrb[0].mxu0
        %v7151 = vadd.f32 %v6958, %v7150
        %7152 = vmatprep.mubr.bf16.mxu0 %v3703
        %7153 = vmatmul.mubr.bf16.gmra.mrb[0].mxu0 %v3702
        %v7154 = vpop.f32.mrb[0].mxu0
        %v7155 = vadd.f32 %v6962, %v7154
        %v7156 = vpop.f32.mrb[0].mxu0
        %v7157 = vadd.f32 %v6964, %v7156
        %v7158 = vpop.f32.mrb[0].mxu0
        %v7159 = vadd.f32 %v6966, %v7158
        %v7160 = vpop.f32.mrb[0].mxu0
        %v7161 = vadd.f32 %v6968, %v7160
        %7162 = vmatprep.mubr.bf16.mxu0 %v3712
        %7163 = vmatmul.mubr.bf16.gmra.mrb[0].mxu0 %v3711
        %v7164 = vpop.f32.mrb[0].mxu0
        %v7165 = vadd.f32 %v6972, %v7164
        %v7166 = vpop.f32.mrb[0].mxu0
        %v7167 = vadd.f32 %v6974, %v7166
        %v7168 = vpop.f32.mrb[0].mxu0
        %v7169 = vadd.f32 %v6976, %v7168
        %v7170 = vpop.f32.mrb[0].mxu0
        %v7171 = vadd.f32 %v6978, %v7170
        %7172 = vmatprep.mubr.bf16.mxu0 %v3721
        %7173 = vmatmul.mubr.bf16.gmra.mrb[0].mxu0 %v3720
        %v7174 = vpop.f32.mrb[0].mxu0
        %v7175 = vadd.f32 %v6982, %v7174
        %v7176 = vpop.f32.mrb[0].mxu0
        %v7177 = vadd.f32 %v6984, %v7176
        %v7178 = vpop.f32.mrb[0].mxu0
        %v7179 = vadd.f32 %v6986, %v7178
        %v7180 = vpop.f32.mrb[0].mxu0
        %v7181 = vadd.f32 %v6988, %v7180
        %7182 = vmatprep.mubr.bf16.mxu0 %v3730
        %7183 = vmatmul.mubr.bf16.gmra.mrb[0].mxu0 %v3729
        %v7184 = vpop.f32.mrb[0].mxu0
        %v7185 = vadd.f32 %v6992, %v7184
        %v7186 = vpop.f32.mrb[0].mxu0
        %v7187 = vadd.f32 %v6994, %v7186
        %v7188 = vpop.f32.mrb[0].mxu0
        %v7189 = vadd.f32 %v6996, %v7188
        %v7190 = vpop.f32.mrb[0].mxu0
        %v7191 = vadd.f32 %v6998, %v7190
        %7192 = vmatprep.mubr.bf16.mxu0 %v3739
        %7193 = vmatmul.mubr.bf16.gmra.mrb[0].mxu0 %v3738
        %v7194 = vpop.f32.mrb[0].mxu0
        %v7195 = vadd.f32 %v7002, %v7194
        %v7196 = vpop.f32.mrb[0].mxu0
        %v7197 = vadd.f32 %v7004, %v7196
        %v7198 = vpop.f32.mrb[0].mxu0
        %v7199 = vadd.f32 %v7006, %v7198
        %v7200 = vpop.f32.mrb[0].mxu0
        %v7201 = vadd.f32 %v7008, %v7200
        %7202 = vmatprep.mubr.bf16.mxu0 %v3748
        %7203 = vmatmul.mubr.bf16.gmra.mrb[0].mxu0 %v3747
        %v7204 = vpop.f32.mrb[0].mxu0
        %v7205 = vadd.f32 %v7012, %v7204
        %v7206 = vpop.f32.mrb[0].mxu0
        %v7207 = vadd.f32 %v7014, %v7206
        %v7208 = vpop.f32.mrb[0].mxu0
        %v7209 = vadd.f32 %v7016, %v7208
        %v7210 = vpop.f32.mrb[0].mxu0
        %v7211 = vadd.f32 %v7018, %v7210
        %7212 = vmatprep.mubr.bf16.mxu0 %v3757
        %7213 = vmatmul.mubr.bf16.gmra.mrb[0].mxu0 %v3756
        %v7214 = vpop.f32.mrb[0].mxu0
        %v7215 = vadd.f32 %v7022, %v7214
        %v7216 = vpop.f32.mrb[0].mxu0
        %v7217 = vadd.f32 %v7024, %v7216
        %v7218 = vpop.f32.mrb[0].mxu0
        %v7219 = vadd.f32 %v7026, %v7218
        %v7220 = vpop.f32.mrb[0].mxu0
        %v7221 = vadd.f32 %v7028, %v7220
        %7222 = vmatprep.mubr.bf16.mxu0 %v3766
        %7223 = vmatmul.mubr.bf16.gmra.mrb[0].mxu0 %v3765
        %v7224 = vpop.f32.mrb[0].mxu0
        %v7225 = vadd.f32 %v7032, %v7224
        %v7226 = vpop.f32.mrb[0].mxu0
        %v7227 = vadd.f32 %v7034, %v7226
        %v7228 = vpop.f32.mrb[0].mxu0
        %v7229 = vadd.f32 %v7036, %v7228
        %v7230 = vpop.f32.mrb[0].mxu0
        %v7231 = vadd.f32 %v7038, %v7230
        %7232 = vdwg.mxu0
        %7233 = vmatprep.subr.bf16.mxu0 %v5179
        %7234 = vmatpush1.bf16.msra.mxu0 %v5178
        %7235 = vmatprep.subr.bf16.mxu0 %v5183
        %7236 = vmatpush1.bf16.msra.mxu0 %v5182
        %7237 = vmatprep.subr.bf16.mxu0 %v5187
        %7238 = vmatpush1.bf16.msra.mxu0 %v5186
        %7239 = vmatprep.subr.bf16.mxu0 %v5191
        %7240 = vmatpush1.bf16.msra.mxu0 %v5190
        %7241 = vmatprep.subr.bf16.mxu0 %v5195
        %7242 = vmatpush1.bf16.msra.mxu0 %v5194
        %7243 = vmatprep.subr.bf16.mxu0 %v5199
        %7244 = vmatpush1.bf16.msra.mxu0 %v5198
        %7245 = vmatprep.subr.bf16.mxu0 %v5203
        %7246 = vmatpush1.bf16.msra.mxu0 %v5202
        %7247 = vmatprep.subr.bf16.mxu0 %v5207
        %7248 = vmatpush1.bf16.msra.mxu0 %v5206
        %7249 = vmatprep.subr.bf16.mxu0 0
        %7250 = vmatpush1.bf16.msra.mxu0 0
        %7251 = vmatprep.subr.bf16.mxu0 0
        %7252 = vmatpush1.bf16.msra.mxu0 0
        %7253 = vmatprep.subr.bf16.mxu0 0
        %7254 = vmatpush1.bf16.msra.mxu0 0
        %7255 = vmatprep.subr.bf16.mxu0 0
        %7256 = vmatpush1.bf16.msra.mxu0 0
        %7257 = vmatprep.subr.bf16.mxu0 0
        %7258 = vmatpush1.bf16.msra.mxu0 0
        %7259 = vmatprep.subr.bf16.mxu0 0
        %7260 = vmatpush1.bf16.msra.mxu0 0
        %7261 = vmatprep.subr.bf16.mxu0 0
        %7262 = vmatpush1.bf16.msra.mxu0 0
        %7263 = vmatprep.subr.bf16.mxu0 0
        %7264 = vmatpush1.bf16.msra.mxu0 0
        %7265 = vmatprep.mubr.bf16.mxu0 0
        %7266 = vmatmul.mubr.bf16.gmra.mrb[0].mxu0 %v3632
        %v7267 = vpop.f32.mrb[0].mxu0
        %v7268 = vadd.f32 %v7075, %v7267
        %v7269 = vpop.f32.mrb[0].mxu0
        %v7270 = vadd.f32 %v7077, %v7269
        %v7271 = vpop.f32.mrb[0].mxu0
        %v7272 = vadd.f32 %v7079, %v7271
        %v7273 = vpop.f32.mrb[0].mxu0
        %v7274 = vadd.f32 %v7081, %v7273
        %7275 = vmatprep.mubr.bf16.mxu0 0
        %7276 = vmatmul.mubr.bf16.gmra.mrb[0].mxu0 %v3641
        %v7277 = vpop.f32.mrb[0].mxu0
        %v7278 = vadd.f32 %v7085, %v7277
        %v7279 = vpop.f32.mrb[0].mxu0
        %v7280 = vadd.f32 %v7087, %v7279
        %v7281 = vpop.f32.mrb[0].mxu0
        %v7282 = vadd.f32 %v7089, %v7281
        %v7283 = vpop.f32.mrb[0].mxu0
        %v7284 = vadd.f32 %v7091, %v7283
        %7285 = vmatprep.mubr.bf16.mxu0 0
        %7286 = vmatmul.mubr.bf16.gmra.mrb[0].mxu0 %v3650
        %v7287 = vpop.f32.mrb[0].mxu0
        %v7288 = vadd.f32 %v7095, %v7287
        %v7289 = vpop.f32.mrb[0].mxu0
        %v7290 = vadd.f32 %v7097, %v7289
        %v7291 = vpop.f32.mrb[0].mxu0
        %v7292 = vadd.f32 %v7099, %v7291
        %v7293 = vpop.f32.mrb[0].mxu0
        %v7294 = vadd.f32 %v7101, %v7293
        %7295 = vmatprep.mubr.bf16.mxu0 0
        %7296 = vmatmul.mubr.bf16.gmra.mrb[0].mxu0 %v3659
        %v7297 = vpop.f32.mrb[0].mxu0
        %v7298 = vadd.f32 %v7105, %v7297
        %v7299 = vpop.f32.mrb[0].mxu0
        %v7300 = vadd.f32 %v7107, %v7299
        %v7301 = vpop.f32.mrb[0].mxu0
        %v7302 = vadd.f32 %v7109, %v7301
        %v7303 = vpop.f32.mrb[0].mxu0
        %v7304 = vadd.f32 %v7111, %v7303
        %7305 = vmatprep.mubr.bf16.mxu0 0
        %7306 = vmatmul.mubr.bf16.gmra.mrb[0].mxu0 %v3668
        %v7307 = vpop.f32.mrb[0].mxu0
        %v7308 = vadd.f32 %v7115, %v7307
        %v7309 = vpop.f32.mrb[0].mxu0
        %v7310 = vadd.f32 %v7117, %v7309
        %v7311 = vpop.f32.mrb[0].mxu0
        %v7312 = vadd.f32 %v7119, %v7311
        %v7313 = vpop.f32.mrb[0].mxu0
        %v7314 = vadd.f32 %v7121, %v7313
        %7315 = vmatprep.mubr.bf16.mxu0 0
        %7316 = vmatmul.mubr.bf16.gmra.mrb[0].mxu0 %v3677
        %v7317 = vpop.f32.mrb[0].mxu0
        %v7318 = vadd.f32 %v7125, %v7317
        %v7319 = vpop.f32.mrb[0].mxu0
        %v7320 = vadd.f32 %v7127, %v7319
        %v7321 = vpop.f32.mrb[0].mxu0
        %v7322 = vadd.f32 %v7129, %v7321
        %v7323 = vpop.f32.mrb[0].mxu0
        %v7324 = vadd.f32 %v7131, %v7323
        %7325 = vmatprep.mubr.bf16.mxu0 0
        %7326 = vmatmul.mubr.bf16.gmra.mrb[0].mxu0 %v3686
        %v7327 = vpop.f32.mrb[0].mxu0
        %v7328 = vadd.f32 %v7135, %v7327
        %v7329 = vpop.f32.mrb[0].mxu0
        %v7330 = vadd.f32 %v7137, %v7329
        %v7331 = vpop.f32.mrb[0].mxu0
        %v7332 = vadd.f32 %v7139, %v7331
        %v7333 = vpop.f32.mrb[0].mxu0
        %v7334 = vadd.f32 %v7141, %v7333
        %7335 = vmatprep.mubr.bf16.mxu0 0
        %7336 = vmatmul.mubr.bf16.gmra.mrb[0].mxu0 %v3695
        %v7337 = vpop.f32.mrb[0].mxu0
        %v7338 = vadd.f32 %v7145, %v7337
        %v7339 = vpop.f32.mrb[0].mxu0
        %v7340 = vadd.f32 %v7147, %v7339
        %v7341 = vpop.f32.mrb[0].mxu0
        %v7342 = vadd.f32 %v7149, %v7341
        %v7343 = vpop.f32.mrb[0].mxu0
        %v7344 = vadd.f32 %v7151, %v7343
        %7345 = vmatprep.mubr.bf16.mxu0 0
        %7346 = vmatmul.mubr.bf16.gmra.mrb[0].mxu0 %v3704
        %v7347 = vpop.f32.mrb[0].mxu0
        %v7348 = vadd.f32 %v7155, %v7347
        %v7349 = vpop.f32.mrb[0].mxu0
        %v7350 = vadd.f32 %v7157, %v7349
        %v7351 = vpop.f32.mrb[0].mxu0
        %v7352 = vadd.f32 %v7159, %v7351
        %v7353 = vpop.f32.mrb[0].mxu0
        %v7354 = vadd.f32 %v7161, %v7353
        %7355 = vmatprep.mubr.bf16.mxu0 0
        %7356 = vmatmul.mubr.bf16.gmra.mrb[0].mxu0 %v3713
        %v7357 = vpop.f32.mrb[0].mxu0
        %v7358 = vadd.f32 %v7165, %v7357
        %v7359 = vpop.f32.mrb[0].mxu0
        %v7360 = vadd.f32 %v7167, %v7359
        %v7361 = vpop.f32.mrb[0].mxu0
        %v7362 = vadd.f32 %v7169, %v7361
        %v7363 = vpop.f32.mrb[0].mxu0
        %v7364 = vadd.f32 %v7171, %v7363
        %7365 = vmatprep.mubr.bf16.mxu0 0
        %7366 = vmatmul.mubr.bf16.gmra.mrb[0].mxu0 %v3722
        %v7367 = vpop.f32.mrb[0].mxu0
        %v7368 = vadd.f32 %v7175, %v7367
        %v7369 = vpop.f32.mrb[0].mxu0
        %v7370 = vadd.f32 %v7177, %v7369
        %v7371 = vpop.f32.mrb[0].mxu0
        %v7372 = vadd.f32 %v7179, %v7371
        %v7373 = vpop.f32.mrb[0].mxu0
        %v7374 = vadd.f32 %v7181, %v7373
        %7375 = vmatprep.mubr.bf16.mxu0 0
        %7376 = vmatmul.mubr.bf16.gmra.mrb[0].mxu0 %v3731
        %v7377 = vpop.f32.mrb[0].mxu0
        %v7378 = vadd.f32 %v7185, %v7377
        %v7379 = vpop.f32.mrb[0].mxu0
        %v7380 = vadd.f32 %v7187, %v7379
        %v7381 = vpop.f32.mrb[0].mxu0
        %v7382 = vadd.f32 %v7189, %v7381
        %v7383 = vpop.f32.mrb[0].mxu0
        %v7384 = vadd.f32 %v7191, %v7383
        %7385 = vmatprep.mubr.bf16.mxu0 0
        %7386 = vmatmul.mubr.bf16.gmra.mrb[0].mxu0 %v3740
        %v7387 = vpop.f32.mrb[0].mxu0
        %v7388 = vadd.f32 %v7195, %v7387
        %v7389 = vpop.f32.mrb[0].mxu0
        %v7390 = vadd.f32 %v7197, %v7389
        %v7391 = vpop.f32.mrb[0].mxu0
        %v7392 = vadd.f32 %v7199, %v7391
        %v7393 = vpop.f32.mrb[0].mxu0
        %v7394 = vadd.f32 %v7201, %v7393
        %7395 = vmatprep.mubr.bf16.mxu0 0
        %7396 = vmatmul.mubr.bf16.gmra.mrb[0].mxu0 %v3749
        %v7397 = vpop.f32.mrb[0].mxu0
        %v7398 = vadd.f32 %v7205, %v7397
        %v7399 = vpop.f32.mrb[0].mxu0
        %v7400 = vadd.f32 %v7207, %v7399
        %v7401 = vpop.f32.mrb[0].mxu0
        %v7402 = vadd.f32 %v7209, %v7401
        %v7403 = vpop.f32.mrb[0].mxu0
        %v7404 = vadd.f32 %v7211, %v7403
        %7405 = vmatprep.mubr.bf16.mxu0 0
        %7406 = vmatmul.mubr.bf16.gmra.mrb[0].mxu0 %v3758
        %v7407 = vpop.f32.mrb[0].mxu0
        %v7408 = vadd.f32 %v7215, %v7407
        %v7409 = vpop.f32.mrb[0].mxu0
        %v7410 = vadd.f32 %v7217, %v7409
        %v7411 = vpop.f32.mrb[0].mxu0
        %v7412 = vadd.f32 %v7219, %v7411
        %v7413 = vpop.f32.mrb[0].mxu0
        %v7414 = vadd.f32 %v7221, %v7413
        %7415 = vmatprep.mubr.bf16.mxu0 0
        %7416 = vmatmul.mubr.bf16.gmra.mrb[0].mxu0 %v3767
        %v7417 = vpop.f32.mrb[0].mxu0
        %v7418 = vadd.f32 %v7225, %v7417
        %v7419 = vpop.f32.mrb[0].mxu0
        %v7420 = vadd.f32 %v7227, %v7419
        %v7421 = vpop.f32.mrb[0].mxu0
        %v7422 = vadd.f32 %v7229, %v7421
        %v7423 = vpop.f32.mrb[0].mxu0
        %v7424 = vadd.f32 %v7231, %v7423
        %7425 = vdwg.mxu0
        %v7426 = vmax.f32 %v6303, %v7268
        %v7427 = vmax.f32 %v6305, %v7270
        %v7428 = vmax.f32 %v6307, %v7272
        %v7429 = vmax.f32 %v6309, %v7274
        %v7430 = vmax.f32 %v6313, %v7278
        %v7431 = vmax.f32 %v6315, %v7280
        %v7432 = vmax.f32 %v6317, %v7282
        %v7433 = vmax.f32 %v6319, %v7284
        %v7434 = vmax.f32 %v6323, %v7288
        %v7435 = vmax.f32 %v6325, %v7290
        %v7436 = vmax.f32 %v6327, %v7292
        %v7437 = vmax.f32 %v6329, %v7294
        %v7438 = vmax.f32 %v6333, %v7298
        %v7439 = vmax.f32 %v6335, %v7300
        %v7440 = vmax.f32 %v6337, %v7302
        %v7441 = vmax.f32 %v6339, %v7304
        %v7442 = vmax.f32 %v6343, %v7308
        %v7443 = vmax.f32 %v6345, %v7310
        %v7444 = vmax.f32 %v6347, %v7312
        %v7445 = vmax.f32 %v6349, %v7314
        %v7446 = vmax.f32 %v6353, %v7318
        %v7447 = vmax.f32 %v6355, %v7320
        %v7448 = vmax.f32 %v6357, %v7322
        %v7449 = vmax.f32 %v6359, %v7324
        %v7450 = vmax.f32 %v6363, %v7328
        %v7451 = vmax.f32 %v6365, %v7330
        %v7452 = vmax.f32 %v6367, %v7332
        %v7453 = vmax.f32 %v6369, %v7334
        %v7454 = vmax.f32 %v6373, %v7338
        %v7455 = vmax.f32 %v6375, %v7340
        %v7456 = vmax.f32 %v6377, %v7342
        %v7457 = vmax.f32 %v6379, %v7344
        %v7458 = vmax.f32 %v6383, %v7348
        %v7459 = vmax.f32 %v6385, %v7350
        %v7460 = vmax.f32 %v6387, %v7352
        %v7461 = vmax.f32 %v6389, %v7354
        %v7462 = vmax.f32 %v6393, %v7358
        %v7463 = vmax.f32 %v6395, %v7360
        %v7464 = vmax.f32 %v6397, %v7362
        %v7465 = vmax.f32 %v6399, %v7364
        %v7466 = vmax.f32 %v6403, %v7368
        %v7467 = vmax.f32 %v6405, %v7370
        %v7468 = vmax.f32 %v6407, %v7372
        %v7469 = vmax.f32 %v6409, %v7374
        %v7470 = vmax.f32 %v6413, %v7378
        %v7471 = vmax.f32 %v6415, %v7380
        %v7472 = vmax.f32 %v6417, %v7382
        %v7473 = vmax.f32 %v6419, %v7384
        %v7474 = vmax.f32 %v6423, %v7388
        %v7475 = vmax.f32 %v6425, %v7390
        %v7476 = vmax.f32 %v6427, %v7392
        %v7477 = vmax.f32 %v6429, %v7394
        %v7478 = vmax.f32 %v6433, %v7398
        %v7479 = vmax.f32 %v6435, %v7400
        %v7480 = vmax.f32 %v6437, %v7402
        %v7481 = vmax.f32 %v6439, %v7404
        %v7482 = vmax.f32 %v6443, %v7408
        %v7483 = vmax.f32 %v6445, %v7410
        %v7484 = vmax.f32 %v6447, %v7412
        %v7485 = vmax.f32 %v6449, %v7414
        %v7486 = vmax.f32 %v6453, %v7418
        %v7487 = vmax.f32 %v6455, %v7420
        %v7488 = vmax.f32 %v6457, %v7422
        %v7489 = vmax.f32 %v6459, %v7424
        %v7554 = vcombine.low %v7426, %v7427
        %v7555 = vcombine.high %v7426, %v7427
        %v7557 = vunpack.c.l.s4 1983009808
        %v7558 = vunpack.c.0.s8 %v7557
        %v7559 = vlaneseq
        %v7560 = vshrl.u32 %v7559, 7
        %v7561 = vsub.s32 %v7558, %v7560
        %v7562 = vrot.slane %v7554, %v7561
        %v7564 = vunpack.c.l.s4 1983009808
        %v7565 = vunpack.c.0.s8 %v7564
        %v7566 = vlaneseq
        %v7567 = vshrl.u32 %v7566, 7
        %v7568 = vsub.s32 %v7565, %v7567
        %v7569 = vrot.slane %v7555, %v7568
        %v7570 = vcombine.high %v7562, %v7562
        %v7571 = vcombine.high %v7569, %v7569
        %v7572 = vcombine.low %v7428, %v7429
        %v7573 = vcombine.high %v7428, %v7429
        %v7575 = vunpack.c.l.s4 1983009808
        %v7576 = vunpack.c.0.s8 %v7575
        %v7577 = vlaneseq
        %v7578 = vshrl.u32 %v7577, 7
        %v7579 = vsub.s32 %v7576, %v7578
        %v7580 = vrot.slane %v7572, %v7579
        %v7582 = vunpack.c.l.s4 1983009808
        %v7583 = vunpack.c.0.s8 %v7582
        %v7584 = vlaneseq
        %v7585 = vshrl.u32 %v7584, 7
        %v7586 = vsub.s32 %v7583, %v7585
        %v7587 = vrot.slane %v7573, %v7586
        %v7588 = vcombine.high %v7580, %v7580
        %v7589 = vcombine.high %v7587, %v7587
        %v7590 = vcombine.low %v7430, %v7431
        %v7591 = vcombine.high %v7430, %v7431
        %v7593 = vunpack.c.l.s4 1983009808
        %v7594 = vunpack.c.0.s8 %v7593
        %v7595 = vlaneseq
        %v7596 = vshrl.u32 %v7595, 7
        %v7597 = vsub.s32 %v7594, %v7596
        %v7598 = vrot.slane %v7590, %v7597
        %v7600 = vunpack.c.l.s4 1983009808
        %v7601 = vunpack.c.0.s8 %v7600
        %v7602 = vlaneseq
        %v7603 = vshrl.u32 %v7602, 7
        %v7604 = vsub.s32 %v7601, %v7603
        %v7605 = vrot.slane %v7591, %v7604
        %v7606 = vcombine.high %v7598, %v7598
        %v7607 = vcombine.high %v7605, %v7605
        %v7608 = vcombine.low %v7432, %v7433
        %v7609 = vcombine.high %v7432, %v7433
        %v7611 = vunpack.c.l.s4 1983009808
        %v7612 = vunpack.c.0.s8 %v7611
        %v7613 = vlaneseq
        %v7614 = vshrl.u32 %v7613, 7
        %v7615 = vsub.s32 %v7612, %v7614
        %v7616 = vrot.slane %v7608, %v7615
        %v7618 = vunpack.c.l.s4 1983009808
        %v7619 = vunpack.c.0.s8 %v7618
        %v7620 = vlaneseq
        %v7621 = vshrl.u32 %v7620, 7
        %v7622 = vsub.s32 %v7619, %v7621
        %v7623 = vrot.slane %v7609, %v7622
        %v7624 = vcombine.high %v7616, %v7616
        %v7625 = vcombine.high %v7623, %v7623
        %v7626 = vcombine.low %v7434, %v7435
        %v7627 = vcombine.high %v7434, %v7435
        %v7629 = vunpack.c.l.s4 1983009808
        %v7630 = vunpack.c.0.s8 %v7629
        %v7631 = vlaneseq
        %v7632 = vshrl.u32 %v7631, 7
        %v7633 = vsub.s32 %v7630, %v7632
        %v7634 = vrot.slane %v7626, %v7633
        %v7636 = vunpack.c.l.s4 1983009808
        %v7637 = vunpack.c.0.s8 %v7636
        %v7638 = vlaneseq
        %v7639 = vshrl.u32 %v7638, 7
        %v7640 = vsub.s32 %v7637, %v7639
        %v7641 = vrot.slane %v7627, %v7640
        %v7642 = vcombine.high %v7634, %v7634
        %v7643 = vcombine.high %v7641, %v7641
        %v7644 = vcombine.low %v7436, %v7437
        %v7645 = vcombine.high %v7436, %v7437
        %v7647 = vunpack.c.l.s4 1983009808
        %v7648 = vunpack.c.0.s8 %v7647
        %v7649 = vlaneseq
        %v7650 = vshrl.u32 %v7649, 7
        %v7651 = vsub.s32 %v7648, %v7650
        %v7652 = vrot.slane %v7644, %v7651
        %v7654 = vunpack.c.l.s4 1983009808
        %v7655 = vunpack.c.0.s8 %v7654
        %v7656 = vlaneseq
        %v7657 = vshrl.u32 %v7656, 7
        %v7658 = vsub.s32 %v7655, %v7657
        %v7659 = vrot.slane %v7645, %v7658
        %v7660 = vcombine.high %v7652, %v7652
        %v7661 = vcombine.high %v7659, %v7659
        %v7662 = vcombine.low %v7438, %v7439
        %v7663 = vcombine.high %v7438, %v7439
        %v7665 = vunpack.c.l.s4 1983009808
        %v7666 = vunpack.c.0.s8 %v7665
        %v7667 = vlaneseq
        %v7668 = vshrl.u32 %v7667, 7
        %v7669 = vsub.s32 %v7666, %v7668
        %v7670 = vrot.slane %v7662, %v7669
        %v7672 = vunpack.c.l.s4 1983009808
        %v7673 = vunpack.c.0.s8 %v7672
        %v7674 = vlaneseq
        %v7675 = vshrl.u32 %v7674, 7
        %v7676 = vsub.s32 %v7673, %v7675
        %v7677 = vrot.slane %v7663, %v7676
        %v7678 = vcombine.high %v7670, %v7670
        %v7679 = vcombine.high %v7677, %v7677
        %v7680 = vcombine.low %v7440, %v7441
        %v7681 = vcombine.high %v7440, %v7441
        %v7683 = vunpack.c.l.s4 1983009808
        %v7684 = vunpack.c.0.s8 %v7683
        %v7685 = vlaneseq
        %v7686 = vshrl.u32 %v7685, 7
        %v7687 = vsub.s32 %v7684, %v7686
        %v7688 = vrot.slane %v7680, %v7687
        %v7690 = vunpack.c.l.s4 1983009808
        %v7691 = vunpack.c.0.s8 %v7690
        %v7692 = vlaneseq
        %v7693 = vshrl.u32 %v7692, 7
        %v7694 = vsub.s32 %v7691, %v7693
        %v7695 = vrot.slane %v7681, %v7694
        %v7696 = vcombine.high %v7688, %v7688
        %v7697 = vcombine.high %v7695, %v7695
        %v7698 = vcombine.low %v7442, %v7443
        %v7699 = vcombine.high %v7442, %v7443
        %v7701 = vunpack.c.l.s4 1983009808
        %v7702 = vunpack.c.0.s8 %v7701
        %v7703 = vlaneseq
        %v7704 = vshrl.u32 %v7703, 7
        %v7705 = vsub.s32 %v7702, %v7704
        %v7706 = vrot.slane %v7698, %v7705
        %v7708 = vunpack.c.l.s4 1983009808
        %v7709 = vunpack.c.0.s8 %v7708
        %v7710 = vlaneseq
        %v7711 = vshrl.u32 %v7710, 7
        %v7712 = vsub.s32 %v7709, %v7711
        %v7713 = vrot.slane %v7699, %v7712
        %v7714 = vcombine.high %v7706, %v7706
        %v7715 = vcombine.high %v7713, %v7713
        %v7716 = vcombine.low %v7444, %v7445
        %v7717 = vcombine.high %v7444, %v7445
        %v7719 = vunpack.c.l.s4 1983009808
        %v7720 = vunpack.c.0.s8 %v7719
        %v7721 = vlaneseq
        %v7722 = vshrl.u32 %v7721, 7
        %v7723 = vsub.s32 %v7720, %v7722
        %v7724 = vrot.slane %v7716, %v7723
        %v7726 = vunpack.c.l.s4 1983009808
        %v7727 = vunpack.c.0.s8 %v7726
        %v7728 = vlaneseq
        %v7729 = vshrl.u32 %v7728, 7
        %v7730 = vsub.s32 %v7727, %v7729
        %v7731 = vrot.slane %v7717, %v7730
        %v7732 = vcombine.high %v7724, %v7724
        %v7733 = vcombine.high %v7731, %v7731
        %v7734 = vcombine.low %v7446, %v7447
        %v7735 = vcombine.high %v7446, %v7447
        %v7737 = vunpack.c.l.s4 1983009808
        %v7738 = vunpack.c.0.s8 %v7737
        %v7739 = vlaneseq
        %v7740 = vshrl.u32 %v7739, 7
        %v7741 = vsub.s32 %v7738, %v7740
        %v7742 = vrot.slane %v7734, %v7741
        %v7744 = vunpack.c.l.s4 1983009808
        %v7745 = vunpack.c.0.s8 %v7744
        %v7746 = vlaneseq
        %v7747 = vshrl.u32 %v7746, 7
        %v7748 = vsub.s32 %v7745, %v7747
        %v7749 = vrot.slane %v7735, %v7748
        %v7750 = vcombine.high %v7742, %v7742
        %v7751 = vcombine.high %v7749, %v7749
        %v7752 = vcombine.low %v7448, %v7449
        %v7753 = vcombine.high %v7448, %v7449
        %v7755 = vunpack.c.l.s4 1983009808
        %v7756 = vunpack.c.0.s8 %v7755
        %v7757 = vlaneseq
        %v7758 = vshrl.u32 %v7757, 7
        %v7759 = vsub.s32 %v7756, %v7758
        %v7760 = vrot.slane %v7752, %v7759
        %v7762 = vunpack.c.l.s4 1983009808
        %v7763 = vunpack.c.0.s8 %v7762
        %v7764 = vlaneseq
        %v7765 = vshrl.u32 %v7764, 7
        %v7766 = vsub.s32 %v7763, %v7765
        %v7767 = vrot.slane %v7753, %v7766
        %v7768 = vcombine.high %v7760, %v7760
        %v7769 = vcombine.high %v7767, %v7767
        %v7770 = vcombine.low %v7450, %v7451
        %v7771 = vcombine.high %v7450, %v7451
        %v7773 = vunpack.c.l.s4 1983009808
        %v7774 = vunpack.c.0.s8 %v7773
        %v7775 = vlaneseq
        %v7776 = vshrl.u32 %v7775, 7
        %v7777 = vsub.s32 %v7774, %v7776
        %v7778 = vrot.slane %v7770, %v7777
        %v7780 = vunpack.c.l.s4 1983009808
        %v7781 = vunpack.c.0.s8 %v7780
        %v7782 = vlaneseq
        %v7783 = vshrl.u32 %v7782, 7
        %v7784 = vsub.s32 %v7781, %v7783
        %v7785 = vrot.slane %v7771, %v7784
        %v7786 = vcombine.high %v7778, %v7778
        %v7787 = vcombine.high %v7785, %v7785
        %v7788 = vcombine.low %v7452, %v7453
        %v7789 = vcombine.high %v7452, %v7453
        %v7791 = vunpack.c.l.s4 1983009808
        %v7792 = vunpack.c.0.s8 %v7791
        %v7793 = vlaneseq
        %v7794 = vshrl.u32 %v7793, 7
        %v7795 = vsub.s32 %v7792, %v7794
        %v7796 = vrot.slane %v7788, %v7795
        %v7798 = vunpack.c.l.s4 1983009808
        %v7799 = vunpack.c.0.s8 %v7798
        %v7800 = vlaneseq
        %v7801 = vshrl.u32 %v7800, 7
        %v7802 = vsub.s32 %v7799, %v7801
        %v7803 = vrot.slane %v7789, %v7802
        %v7804 = vcombine.high %v7796, %v7796
        %v7805 = vcombine.high %v7803, %v7803
        %v7806 = vcombine.low %v7454, %v7455
        %v7807 = vcombine.high %v7454, %v7455
        %v7809 = vunpack.c.l.s4 1983009808
        %v7810 = vunpack.c.0.s8 %v7809
        %v7811 = vlaneseq
        %v7812 = vshrl.u32 %v7811, 7
        %v7813 = vsub.s32 %v7810, %v7812
        %v7814 = vrot.slane %v7806, %v7813
        %v7816 = vunpack.c.l.s4 1983009808
        %v7817 = vunpack.c.0.s8 %v7816
        %v7818 = vlaneseq
        %v7819 = vshrl.u32 %v7818, 7
        %v7820 = vsub.s32 %v7817, %v7819
        %v7821 = vrot.slane %v7807, %v7820
        %v7822 = vcombine.high %v7814, %v7814
        %v7823 = vcombine.high %v7821, %v7821
        %v7824 = vcombine.low %v7456, %v7457
        %v7825 = vcombine.high %v7456, %v7457
        %v7827 = vunpack.c.l.s4 1983009808
        %v7828 = vunpack.c.0.s8 %v7827
        %v7829 = vlaneseq
        %v7830 = vshrl.u32 %v7829, 7
        %v7831 = vsub.s32 %v7828, %v7830
        %v7832 = vrot.slane %v7824, %v7831
        %v7834 = vunpack.c.l.s4 1983009808
        %v7835 = vunpack.c.0.s8 %v7834
        %v7836 = vlaneseq
        %v7837 = vshrl.u32 %v7836, 7
        %v7838 = vsub.s32 %v7835, %v7837
        %v7839 = vrot.slane %v7825, %v7838
        %v7840 = vcombine.high %v7832, %v7832
        %v7841 = vcombine.high %v7839, %v7839
        %v7842 = vcombine.low %v7458, %v7459
        %v7843 = vcombine.high %v7458, %v7459
        %v7845 = vunpack.c.l.s4 1983009808
        %v7846 = vunpack.c.0.s8 %v7845
        %v7847 = vlaneseq
        %v7848 = vshrl.u32 %v7847, 7
        %v7849 = vsub.s32 %v7846, %v7848
        %v7850 = vrot.slane %v7842, %v7849
        %v7852 = vunpack.c.l.s4 1983009808
        %v7853 = vunpack.c.0.s8 %v7852
        %v7854 = vlaneseq
        %v7855 = vshrl.u32 %v7854, 7
        %v7856 = vsub.s32 %v7853, %v7855
        %v7857 = vrot.slane %v7843, %v7856
        %v7858 = vcombine.high %v7850, %v7850
        %v7859 = vcombine.high %v7857, %v7857
        %v7860 = vcombine.low %v7460, %v7461
        %v7861 = vcombine.high %v7460, %v7461
        %v7863 = vunpack.c.l.s4 1983009808
        %v7864 = vunpack.c.0.s8 %v7863
        %v7865 = vlaneseq
        %v7866 = vshrl.u32 %v7865, 7
        %v7867 = vsub.s32 %v7864, %v7866
        %v7868 = vrot.slane %v7860, %v7867
        %v7870 = vunpack.c.l.s4 1983009808
        %v7871 = vunpack.c.0.s8 %v7870
        %v7872 = vlaneseq
        %v7873 = vshrl.u32 %v7872, 7
        %v7874 = vsub.s32 %v7871, %v7873
        %v7875 = vrot.slane %v7861, %v7874
        %v7876 = vcombine.high %v7868, %v7868
        %v7877 = vcombine.high %v7875, %v7875
        %v7878 = vcombine.low %v7462, %v7463
        %v7879 = vcombine.high %v7462, %v7463
        %v7881 = vunpack.c.l.s4 1983009808
        %v7882 = vunpack.c.0.s8 %v7881
        %v7883 = vlaneseq
        %v7884 = vshrl.u32 %v7883, 7
        %v7885 = vsub.s32 %v7882, %v7884
        %v7886 = vrot.slane %v7878, %v7885
        %v7888 = vunpack.c.l.s4 1983009808
        %v7889 = vunpack.c.0.s8 %v7888
        %v7890 = vlaneseq
        %v7891 = vshrl.u32 %v7890, 7
        %v7892 = vsub.s32 %v7889, %v7891
        %v7893 = vrot.slane %v7879, %v7892
        %v7894 = vcombine.high %v7886, %v7886
        %v7895 = vcombine.high %v7893, %v7893
        %v7896 = vcombine.low %v7464, %v7465
        %v7897 = vcombine.high %v7464, %v7465
        %v7899 = vunpack.c.l.s4 1983009808
        %v7900 = vunpack.c.0.s8 %v7899
        %v7901 = vlaneseq
        %v7902 = vshrl.u32 %v7901, 7
        %v7903 = vsub.s32 %v7900, %v7902
        %v7904 = vrot.slane %v7896, %v7903
        %v7906 = vunpack.c.l.s4 1983009808
        %v7907 = vunpack.c.0.s8 %v7906
        %v7908 = vlaneseq
        %v7909 = vshrl.u32 %v7908, 7
        %v7910 = vsub.s32 %v7907, %v7909
        %v7911 = vrot.slane %v7897, %v7910
        %v7912 = vcombine.high %v7904, %v7904
        %v7913 = vcombine.high %v7911, %v7911
        %v7914 = vcombine.low %v7466, %v7467
        %v7915 = vcombine.high %v7466, %v7467
        %v7917 = vunpack.c.l.s4 1983009808
        %v7918 = vunpack.c.0.s8 %v7917
        %v7919 = vlaneseq
        %v7920 = vshrl.u32 %v7919, 7
        %v7921 = vsub.s32 %v7918, %v7920
        %v7922 = vrot.slane %v7914, %v7921
        %v7924 = vunpack.c.l.s4 1983009808
        %v7925 = vunpack.c.0.s8 %v7924
        %v7926 = vlaneseq
        %v7927 = vshrl.u32 %v7926, 7
        %v7928 = vsub.s32 %v7925, %v7927
        %v7929 = vrot.slane %v7915, %v7928
        %v7930 = vcombine.high %v7922, %v7922
        %v7931 = vcombine.high %v7929, %v7929
        %v7932 = vcombine.low %v7468, %v7469
        %v7933 = vcombine.high %v7468, %v7469
        %v7935 = vunpack.c.l.s4 1983009808
        %v7936 = vunpack.c.0.s8 %v7935
        %v7937 = vlaneseq
        %v7938 = vshrl.u32 %v7937, 7
        %v7939 = vsub.s32 %v7936, %v7938
        %v7940 = vrot.slane %v7932, %v7939
        %v7942 = vunpack.c.l.s4 1983009808
        %v7943 = vunpack.c.0.s8 %v7942
        %v7944 = vlaneseq
        %v7945 = vshrl.u32 %v7944, 7
        %v7946 = vsub.s32 %v7943, %v7945
        %v7947 = vrot.slane %v7933, %v7946
        %v7948 = vcombine.high %v7940, %v7940
        %v7949 = vcombine.high %v7947, %v7947
        %v7950 = vcombine.low %v7470, %v7471
        %v7951 = vcombine.high %v7470, %v7471
        %v7953 = vunpack.c.l.s4 1983009808
        %v7954 = vunpack.c.0.s8 %v7953
        %v7955 = vlaneseq
        %v7956 = vshrl.u32 %v7955, 7
        %v7957 = vsub.s32 %v7954, %v7956
        %v7958 = vrot.slane %v7950, %v7957
        %v7960 = vunpack.c.l.s4 1983009808
        %v7961 = vunpack.c.0.s8 %v7960
        %v7962 = vlaneseq
        %v7963 = vshrl.u32 %v7962, 7
        %v7964 = vsub.s32 %v7961, %v7963
        %v7965 = vrot.slane %v7951, %v7964
        %v7966 = vcombine.high %v7958, %v7958
        %v7967 = vcombine.high %v7965, %v7965
        %v7968 = vcombine.low %v7472, %v7473
        %v7969 = vcombine.high %v7472, %v7473
        %v7971 = vunpack.c.l.s4 1983009808
        %v7972 = vunpack.c.0.s8 %v7971
        %v7973 = vlaneseq
        %v7974 = vshrl.u32 %v7973, 7
        %v7975 = vsub.s32 %v7972, %v7974
        %v7976 = vrot.slane %v7968, %v7975
        %v7978 = vunpack.c.l.s4 1983009808
        %v7979 = vunpack.c.0.s8 %v7978
        %v7980 = vlaneseq
        %v7981 = vshrl.u32 %v7980, 7
        %v7982 = vsub.s32 %v7979, %v7981
        %v7983 = vrot.slane %v7969, %v7982
        %v7984 = vcombine.high %v7976, %v7976
        %v7985 = vcombine.high %v7983, %v7983
        %v7986 = vcombine.low %v7474, %v7475
        %v7987 = vcombine.high %v7474, %v7475
        %v7989 = vunpack.c.l.s4 1983009808
        %v7990 = vunpack.c.0.s8 %v7989
        %v7991 = vlaneseq
        %v7992 = vshrl.u32 %v7991, 7
        %v7993 = vsub.s32 %v7990, %v7992
        %v7994 = vrot.slane %v7986, %v7993
        %v7996 = vunpack.c.l.s4 1983009808
        %v7997 = vunpack.c.0.s8 %v7996
        %v7998 = vlaneseq
        %v7999 = vshrl.u32 %v7998, 7
        %v8000 = vsub.s32 %v7997, %v7999
        %v8001 = vrot.slane %v7987, %v8000
        %v8002 = vcombine.high %v7994, %v7994
        %v8003 = vcombine.high %v8001, %v8001
        %v8004 = vcombine.low %v7476, %v7477
        %v8005 = vcombine.high %v7476, %v7477
        %v8007 = vunpack.c.l.s4 1983009808
        %v8008 = vunpack.c.0.s8 %v8007
        %v8009 = vlaneseq
        %v8010 = vshrl.u32 %v8009, 7
        %v8011 = vsub.s32 %v8008, %v8010
        %v8012 = vrot.slane %v8004, %v8011
        %v8014 = vunpack.c.l.s4 1983009808
        %v8015 = vunpack.c.0.s8 %v8014
        %v8016 = vlaneseq
        %v8017 = vshrl.u32 %v8016, 7
        %v8018 = vsub.s32 %v8015, %v8017
        %v8019 = vrot.slane %v8005, %v8018
        %v8020 = vcombine.high %v8012, %v8012
        %v8021 = vcombine.high %v8019, %v8019
        %v8022 = vcombine.low %v7478, %v7479
        %v8023 = vcombine.high %v7478, %v7479
        %v8025 = vunpack.c.l.s4 1983009808
        %v8026 = vunpack.c.0.s8 %v8025
        %v8027 = vlaneseq
        %v8028 = vshrl.u32 %v8027, 7
        %v8029 = vsub.s32 %v8026, %v8028
        %v8030 = vrot.slane %v8022, %v8029
        %v8032 = vunpack.c.l.s4 1983009808
        %v8033 = vunpack.c.0.s8 %v8032
        %v8034 = vlaneseq
        %v8035 = vshrl.u32 %v8034, 7
        %v8036 = vsub.s32 %v8033, %v8035
        %v8037 = vrot.slane %v8023, %v8036
        %v8038 = vcombine.high %v8030, %v8030
        %v8039 = vcombine.high %v8037, %v8037
        %v8040 = vcombine.low %v7480, %v7481
        %v8041 = vcombine.high %v7480, %v7481
        %v8043 = vunpack.c.l.s4 1983009808
        %v8044 = vunpack.c.0.s8 %v8043
        %v8045 = vlaneseq
        %v8046 = vshrl.u32 %v8045, 7
        %v8047 = vsub.s32 %v8044, %v8046
        %v8048 = vrot.slane %v8040, %v8047
        %v8050 = vunpack.c.l.s4 1983009808
        %v8051 = vunpack.c.0.s8 %v8050
        %v8052 = vlaneseq
        %v8053 = vshrl.u32 %v8052, 7
        %v8054 = vsub.s32 %v8051, %v8053
        %v8055 = vrot.slane %v8041, %v8054
        %v8056 = vcombine.high %v8048, %v8048
        %v8057 = vcombine.high %v8055, %v8055
        %v8058 = vcombine.low %v7482, %v7483
        %v8059 = vcombine.high %v7482, %v7483
        %v8061 = vunpack.c.l.s4 1983009808
        %v8062 = vunpack.c.0.s8 %v8061
        %v8063 = vlaneseq
        %v8064 = vshrl.u32 %v8063, 7
        %v8065 = vsub.s32 %v8062, %v8064
        %v8066 = vrot.slane %v8058, %v8065
        %v8068 = vunpack.c.l.s4 1983009808
        %v8069 = vunpack.c.0.s8 %v8068
        %v8070 = vlaneseq
        %v8071 = vshrl.u32 %v8070, 7
        %v8072 = vsub.s32 %v8069, %v8071
        %v8073 = vrot.slane %v8059, %v8072
        %v8074 = vcombine.high %v8066, %v8066
        %v8075 = vcombine.high %v8073, %v8073
        %v8076 = vcombine.low %v7484, %v7485
        %v8077 = vcombine.high %v7484, %v7485
        %v8079 = vunpack.c.l.s4 1983009808
        %v8080 = vunpack.c.0.s8 %v8079
        %v8081 = vlaneseq
        %v8082 = vshrl.u32 %v8081, 7
        %v8083 = vsub.s32 %v8080, %v8082
        %v8084 = vrot.slane %v8076, %v8083
        %v8086 = vunpack.c.l.s4 1983009808
        %v8087 = vunpack.c.0.s8 %v8086
        %v8088 = vlaneseq
        %v8089 = vshrl.u32 %v8088, 7
        %v8090 = vsub.s32 %v8087, %v8089
        %v8091 = vrot.slane %v8077, %v8090
        %v8092 = vcombine.high %v8084, %v8084
        %v8093 = vcombine.high %v8091, %v8091
        %v8094 = vcombine.low %v7486, %v7487
        %v8095 = vcombine.high %v7486, %v7487
        %v8097 = vunpack.c.l.s4 1983009808
        %v8098 = vunpack.c.0.s8 %v8097
        %v8099 = vlaneseq
        %v8100 = vshrl.u32 %v8099, 7
        %v8101 = vsub.s32 %v8098, %v8100
        %v8102 = vrot.slane %v8094, %v8101
        %v8104 = vunpack.c.l.s4 1983009808
        %v8105 = vunpack.c.0.s8 %v8104
        %v8106 = vlaneseq
        %v8107 = vshrl.u32 %v8106, 7
        %v8108 = vsub.s32 %v8105, %v8107
        %v8109 = vrot.slane %v8095, %v8108
        %v8110 = vcombine.high %v8102, %v8102
        %v8111 = vcombine.high %v8109, %v8109
        %v8112 = vcombine.low %v7488, %v7489
        %v8113 = vcombine.high %v7488, %v7489
        %v8115 = vunpack.c.l.s4 1983009808
        %v8116 = vunpack.c.0.s8 %v8115
        %v8117 = vlaneseq
        %v8118 = vshrl.u32 %v8117, 7
        %v8119 = vsub.s32 %v8116, %v8118
        %v8120 = vrot.slane %v8112, %v8119
        %v8122 = vunpack.c.l.s4 1983009808
        %v8123 = vunpack.c.0.s8 %v8122
        %v8124 = vlaneseq
        %v8125 = vshrl.u32 %v8124, 7
        %v8126 = vsub.s32 %v8123, %v8125
        %v8127 = vrot.slane %v8113, %v8126
        %v8128 = vcombine.high %v8120, %v8120
        %v8129 = vcombine.high %v8127, %v8127
        %v8258 = vrot.slane %v7562, 7
        %v8259 = vrot.slane %v8258, 2
        %v8260 = vrot.slane %v7570, 7
        %v8261 = vrot.slane %v8260, 2
        %v8262 = vrot.slane %v7569, 7
        %v8263 = vrot.slane %v8262, 2
        %v8264 = vrot.slane %v7571, 7
        %v8265 = vrot.slane %v8264, 2
        %v8266 = vrot.slane %v7580, 7
        %v8267 = vrot.slane %v8266, 2
        %v8268 = vrot.slane %v7588, 7
        %v8269 = vrot.slane %v8268, 2
        %v8270 = vrot.slane %v7587, 7
        %v8271 = vrot.slane %v8270, 2
        %v8272 = vrot.slane %v7589, 7
        %v8273 = vrot.slane %v8272, 2
        %v8274 = vrot.slane %v7598, 7
        %v8275 = vrot.slane %v8274, 2
        %v8276 = vrot.slane %v7606, 7
        %v8277 = vrot.slane %v8276, 2
        %v8278 = vrot.slane %v7605, 7
        %v8279 = vrot.slane %v8278, 2
        %v8280 = vrot.slane %v7607, 7
        %v8281 = vrot.slane %v8280, 2
        %v8282 = vrot.slane %v7616, 7
        %v8283 = vrot.slane %v8282, 2
        %v8284 = vrot.slane %v7624, 7
        %v8285 = vrot.slane %v8284, 2
        %v8286 = vrot.slane %v7623, 7
        %v8287 = vrot.slane %v8286, 2
        %v8288 = vrot.slane %v7625, 7
        %v8289 = vrot.slane %v8288, 2
        %v8290 = vrot.slane %v7634, 7
        %v8291 = vrot.slane %v8290, 2
        %v8292 = vrot.slane %v7642, 7
        %v8293 = vrot.slane %v8292, 2
        %v8294 = vrot.slane %v7641, 7
        %v8295 = vrot.slane %v8294, 2
        %v8296 = vrot.slane %v7643, 7
        %v8297 = vrot.slane %v8296, 2
        %v8298 = vrot.slane %v7652, 7
        %v8299 = vrot.slane %v8298, 2
        %v8300 = vrot.slane %v7660, 7
        %v8301 = vrot.slane %v8300, 2
        %v8302 = vrot.slane %v7659, 7
        %v8303 = vrot.slane %v8302, 2
        %v8304 = vrot.slane %v7661, 7
        %v8305 = vrot.slane %v8304, 2
        %v8306 = vrot.slane %v7670, 7
        %v8307 = vrot.slane %v8306, 2
        %v8308 = vrot.slane %v7678, 7
        %v8309 = vrot.slane %v8308, 2
        %v8310 = vrot.slane %v7677, 7
        %v8311 = vrot.slane %v8310, 2
        %v8312 = vrot.slane %v7679, 7
        %v8313 = vrot.slane %v8312, 2
        %v8314 = vrot.slane %v7688, 7
        %v8315 = vrot.slane %v8314, 2
        %v8316 = vrot.slane %v7696, 7
        %v8317 = vrot.slane %v8316, 2
        %v8318 = vrot.slane %v7695, 7
        %v8319 = vrot.slane %v8318, 2
        %v8320 = vrot.slane %v7697, 7
        %v8321 = vrot.slane %v8320, 2
        %v8322 = vrot.slane %v7706, 7
        %v8323 = vrot.slane %v8322, 2
        %v8324 = vrot.slane %v7714, 7
        %v8325 = vrot.slane %v8324, 2
        %v8326 = vrot.slane %v7713, 7
        %v8327 = vrot.slane %v8326, 2
        %v8328 = vrot.slane %v7715, 7
        %v8329 = vrot.slane %v8328, 2
        %v8330 = vrot.slane %v7724, 7
        %v8331 = vrot.slane %v8330, 2
        %v8332 = vrot.slane %v7732, 7
        %v8333 = vrot.slane %v8332, 2
        %v8334 = vrot.slane %v7731, 7
        %v8335 = vrot.slane %v8334, 2
        %v8336 = vrot.slane %v7733, 7
        %v8337 = vrot.slane %v8336, 2
        %v8338 = vrot.slane %v7742, 7
        %v8339 = vrot.slane %v8338, 2
        %v8340 = vrot.slane %v7750, 7
        %v8341 = vrot.slane %v8340, 2
        %v8342 = vrot.slane %v7749, 7
        %v8343 = vrot.slane %v8342, 2
        %v8344 = vrot.slane %v7751, 7
        %v8345 = vrot.slane %v8344, 2
        %v8346 = vrot.slane %v7760, 7
        %v8347 = vrot.slane %v8346, 2
        %v8348 = vrot.slane %v7768, 7
        %v8349 = vrot.slane %v8348, 2
        %v8350 = vrot.slane %v7767, 7
        %v8351 = vrot.slane %v8350, 2
        %v8352 = vrot.slane %v7769, 7
        %v8353 = vrot.slane %v8352, 2
        %v8354 = vrot.slane %v7778, 7
        %v8355 = vrot.slane %v8354, 2
        %v8356 = vrot.slane %v7786, 7
        %v8357 = vrot.slane %v8356, 2
        %v8358 = vrot.slane %v7785, 7
        %v8359 = vrot.slane %v8358, 2
        %v8360 = vrot.slane %v7787, 7
        %v8361 = vrot.slane %v8360, 2
        %v8362 = vrot.slane %v7796, 7
        %v8363 = vrot.slane %v8362, 2
        %v8364 = vrot.slane %v7804, 7
        %v8365 = vrot.slane %v8364, 2
        %v8366 = vrot.slane %v7803, 7
        %v8367 = vrot.slane %v8366, 2
        %v8368 = vrot.slane %v7805, 7
        %v8369 = vrot.slane %v8368, 2
        %v8370 = vrot.slane %v7814, 7
        %v8371 = vrot.slane %v8370, 2
        %v8372 = vrot.slane %v7822, 7
        %v8373 = vrot.slane %v8372, 2
        %v8374 = vrot.slane %v7821, 7
        %v8375 = vrot.slane %v8374, 2
        %v8376 = vrot.slane %v7823, 7
        %v8377 = vrot.slane %v8376, 2
        %v8378 = vrot.slane %v7832, 7
        %v8379 = vrot.slane %v8378, 2
        %v8380 = vrot.slane %v7840, 7
        %v8381 = vrot.slane %v8380, 2
        %v8382 = vrot.slane %v7839, 7
        %v8383 = vrot.slane %v8382, 2
        %v8384 = vrot.slane %v7841, 7
        %v8385 = vrot.slane %v8384, 2
        %v8386 = vrot.slane %v7850, 7
        %v8387 = vrot.slane %v8386, 2
        %v8388 = vrot.slane %v7858, 7
        %v8389 = vrot.slane %v8388, 2
        %v8390 = vrot.slane %v7857, 7
        %v8391 = vrot.slane %v8390, 2
        %v8392 = vrot.slane %v7859, 7
        %v8393 = vrot.slane %v8392, 2
        %v8394 = vrot.slane %v7868, 7
        %v8395 = vrot.slane %v8394, 2
        %v8396 = vrot.slane %v7876, 7
        %v8397 = vrot.slane %v8396, 2
        %v8398 = vrot.slane %v7875, 7
        %v8399 = vrot.slane %v8398, 2
        %v8400 = vrot.slane %v7877, 7
        %v8401 = vrot.slane %v8400, 2
        %v8402 = vrot.slane %v7886, 7
        %v8403 = vrot.slane %v8402, 2
        %v8404 = vrot.slane %v7894, 7
        %v8405 = vrot.slane %v8404, 2
        %v8406 = vrot.slane %v7893, 7
        %v8407 = vrot.slane %v8406, 2
        %v8408 = vrot.slane %v7895, 7
        %v8409 = vrot.slane %v8408, 2
        %v8410 = vrot.slane %v7904, 7
        %v8411 = vrot.slane %v8410, 2
        %v8412 = vrot.slane %v7912, 7
        %v8413 = vrot.slane %v8412, 2
        %v8414 = vrot.slane %v7911, 7
        %v8415 = vrot.slane %v8414, 2
        %v8416 = vrot.slane %v7913, 7
        %v8417 = vrot.slane %v8416, 2
        %v8418 = vrot.slane %v7922, 7
        %v8419 = vrot.slane %v8418, 2
        %v8420 = vrot.slane %v7930, 7
        %v8421 = vrot.slane %v8420, 2
        %v8422 = vrot.slane %v7929, 7
        %v8423 = vrot.slane %v8422, 2
        %v8424 = vrot.slane %v7931, 7
        %v8425 = vrot.slane %v8424, 2
        %v8426 = vrot.slane %v7940, 7
        %v8427 = vrot.slane %v8426, 2
        %v8428 = vrot.slane %v7948, 7
        %v8429 = vrot.slane %v8428, 2
        %v8430 = vrot.slane %v7947, 7
        %v8431 = vrot.slane %v8430, 2
        %v8432 = vrot.slane %v7949, 7
        %v8433 = vrot.slane %v8432, 2
        %v8434 = vrot.slane %v7958, 7
        %v8435 = vrot.slane %v8434, 2
        %v8436 = vrot.slane %v7966, 7
        %v8437 = vrot.slane %v8436, 2
        %v8438 = vrot.slane %v7965, 7
        %v8439 = vrot.slane %v8438, 2
        %v8440 = vrot.slane %v7967, 7
        %v8441 = vrot.slane %v8440, 2
        %v8442 = vrot.slane %v7976, 7
        %v8443 = vrot.slane %v8442, 2
        %v8444 = vrot.slane %v7984, 7
        %v8445 = vrot.slane %v8444, 2
        %v8446 = vrot.slane %v7983, 7
        %v8447 = vrot.slane %v8446, 2
        %v8448 = vrot.slane %v7985, 7
        %v8449 = vrot.slane %v8448, 2
        %v8450 = vrot.slane %v7994, 7
        %v8451 = vrot.slane %v8450, 2
        %v8452 = vrot.slane %v8002, 7
        %v8453 = vrot.slane %v8452, 2
        %v8454 = vrot.slane %v8001, 7
        %v8455 = vrot.slane %v8454, 2
        %v8456 = vrot.slane %v8003, 7
        %v8457 = vrot.slane %v8456, 2
        %v8458 = vrot.slane %v8012, 7
        %v8459 = vrot.slane %v8458, 2
        %v8460 = vrot.slane %v8020, 7
        %v8461 = vrot.slane %v8460, 2
        %v8462 = vrot.slane %v8019, 7
        %v8463 = vrot.slane %v8462, 2
        %v8464 = vrot.slane %v8021, 7
        %v8465 = vrot.slane %v8464, 2
        %v8466 = vrot.slane %v8030, 7
        %v8467 = vrot.slane %v8466, 2
        %v8468 = vrot.slane %v8038, 7
        %v8469 = vrot.slane %v8468, 2
        %v8470 = vrot.slane %v8037, 7
        %v8471 = vrot.slane %v8470, 2
        %v8472 = vrot.slane %v8039, 7
        %v8473 = vrot.slane %v8472, 2
        %v8474 = vrot.slane %v8048, 7
        %v8475 = vrot.slane %v8474, 2
        %v8476 = vrot.slane %v8056, 7
        %v8477 = vrot.slane %v8476, 2
        %v8478 = vrot.slane %v8055, 7
        %v8479 = vrot.slane %v8478, 2
        %v8480 = vrot.slane %v8057, 7
        %v8481 = vrot.slane %v8480, 2
        %v8482 = vrot.slane %v8066, 7
        %v8483 = vrot.slane %v8482, 2
        %v8484 = vrot.slane %v8074, 7
        %v8485 = vrot.slane %v8484, 2
        %v8486 = vrot.slane %v8073, 7
        %v8487 = vrot.slane %v8486, 2
        %v8488 = vrot.slane %v8075, 7
        %v8489 = vrot.slane %v8488, 2
        %v8490 = vrot.slane %v8084, 7
        %v8491 = vrot.slane %v8490, 2
        %v8492 = vrot.slane %v8092, 7
        %v8493 = vrot.slane %v8492, 2
        %v8494 = vrot.slane %v8091, 7
        %v8495 = vrot.slane %v8494, 2
        %v8496 = vrot.slane %v8093, 7
        %v8497 = vrot.slane %v8496, 2
        %v8498 = vrot.slane %v8102, 7
        %v8499 = vrot.slane %v8498, 2
        %v8500 = vrot.slane %v8110, 7
        %v8501 = vrot.slane %v8500, 2
        %v8502 = vrot.slane %v8109, 7
        %v8503 = vrot.slane %v8502, 2
        %v8504 = vrot.slane %v8111, 7
        %v8505 = vrot.slane %v8504, 2
        %v8506 = vrot.slane %v8120, 7
        %v8507 = vrot.slane %v8506, 2
        %v8508 = vrot.slane %v8128, 7
        %v8509 = vrot.slane %v8508, 2
        %v8510 = vrot.slane %v8127, 7
        %v8511 = vrot.slane %v8510, 2
        %v8512 = vrot.slane %v8129, 7
        %v8513 = vrot.slane %v8512, 2
        %v8642 = vmax.f32 %v7562, %v8259
        %v8643 = vmax.f32 %v7570, %v8261
        %v8644 = vmax.f32 %v7569, %v8263
        %v8645 = vmax.f32 %v7571, %v8265
        %v8646 = vmax.f32 %v7580, %v8267
        %v8647 = vmax.f32 %v7588, %v8269
        %v8648 = vmax.f32 %v7587, %v8271
        %v8649 = vmax.f32 %v7589, %v8273
        %v8650 = vmax.f32 %v7598, %v8275
        %v8651 = vmax.f32 %v7606, %v8277
        %v8652 = vmax.f32 %v7605, %v8279
        %v8653 = vmax.f32 %v7607, %v8281
        %v8654 = vmax.f32 %v7616, %v8283
        %v8655 = vmax.f32 %v7624, %v8285
        %v8656 = vmax.f32 %v7623, %v8287
        %v8657 = vmax.f32 %v7625, %v8289
        %v8658 = vmax.f32 %v7634, %v8291
        %v8659 = vmax.f32 %v7642, %v8293
        %v8660 = vmax.f32 %v7641, %v8295
        %v8661 = vmax.f32 %v7643, %v8297
        %v8662 = vmax.f32 %v7652, %v8299
        %v8663 = vmax.f32 %v7660, %v8301
        %v8664 = vmax.f32 %v7659, %v8303
        %v8665 = vmax.f32 %v7661, %v8305
        %v8666 = vmax.f32 %v7670, %v8307
        %v8667 = vmax.f32 %v7678, %v8309
        %v8668 = vmax.f32 %v7677, %v8311
        %v8669 = vmax.f32 %v7679, %v8313
        %v8670 = vmax.f32 %v7688, %v8315
        %v8671 = vmax.f32 %v7696, %v8317
        %v8672 = vmax.f32 %v7695, %v8319
        %v8673 = vmax.f32 %v7697, %v8321
        %v8674 = vmax.f32 %v7706, %v8323
        %v8675 = vmax.f32 %v7714, %v8325
        %v8676 = vmax.f32 %v7713, %v8327
        %v8677 = vmax.f32 %v7715, %v8329
        %v8678 = vmax.f32 %v7724, %v8331
        %v8679 = vmax.f32 %v7732, %v8333
        %v8680 = vmax.f32 %v7731, %v8335
        %v8681 = vmax.f32 %v7733, %v8337
        %v8682 = vmax.f32 %v7742, %v8339
        %v8683 = vmax.f32 %v7750, %v8341
        %v8684 = vmax.f32 %v7749, %v8343
        %v8685 = vmax.f32 %v7751, %v8345
        %v8686 = vmax.f32 %v7760, %v8347
        %v8687 = vmax.f32 %v7768, %v8349
        %v8688 = vmax.f32 %v7767, %v8351
        %v8689 = vmax.f32 %v7769, %v8353
        %v8690 = vmax.f32 %v7778, %v8355
        %v8691 = vmax.f32 %v7786, %v8357
        %v8692 = vmax.f32 %v7785, %v8359
        %v8693 = vmax.f32 %v7787, %v8361
        %v8694 = vmax.f32 %v7796, %v8363
        %v8695 = vmax.f32 %v7804, %v8365
        %v8696 = vmax.f32 %v7803, %v8367
        %v8697 = vmax.f32 %v7805, %v8369
        %v8698 = vmax.f32 %v7814, %v8371
        %v8699 = vmax.f32 %v7822, %v8373
        %v8700 = vmax.f32 %v7821, %v8375
        %v8701 = vmax.f32 %v7823, %v8377
        %v8702 = vmax.f32 %v7832, %v8379
        %v8703 = vmax.f32 %v7840, %v8381
        %v8704 = vmax.f32 %v7839, %v8383
        %v8705 = vmax.f32 %v7841, %v8385
        %v8706 = vmax.f32 %v7850, %v8387
        %v8707 = vmax.f32 %v7858, %v8389
        %v8708 = vmax.f32 %v7857, %v8391
        %v8709 = vmax.f32 %v7859, %v8393
        %v8710 = vmax.f32 %v7868, %v8395
        %v8711 = vmax.f32 %v7876, %v8397
        %v8712 = vmax.f32 %v7875, %v8399
        %v8713 = vmax.f32 %v7877, %v8401
        %v8714 = vmax.f32 %v7886, %v8403
        %v8715 = vmax.f32 %v7894, %v8405
        %v8716 = vmax.f32 %v7893, %v8407
        %v8717 = vmax.f32 %v7895, %v8409
        %v8718 = vmax.f32 %v7904, %v8411
        %v8719 = vmax.f32 %v7912, %v8413
        %v8720 = vmax.f32 %v7911, %v8415
        %v8721 = vmax.f32 %v7913, %v8417
        %v8722 = vmax.f32 %v7922, %v8419
        %v8723 = vmax.f32 %v7930, %v8421
        %v8724 = vmax.f32 %v7929, %v8423
        %v8725 = vmax.f32 %v7931, %v8425
        %v8726 = vmax.f32 %v7940, %v8427
        %v8727 = vmax.f32 %v7948, %v8429
        %v8728 = vmax.f32 %v7947, %v8431
        %v8729 = vmax.f32 %v7949, %v8433
        %v8730 = vmax.f32 %v7958, %v8435
        %v8731 = vmax.f32 %v7966, %v8437
        %v8732 = vmax.f32 %v7965, %v8439
        %v8733 = vmax.f32 %v7967, %v8441
        %v8734 = vmax.f32 %v7976, %v8443
        %v8735 = vmax.f32 %v7984, %v8445
        %v8736 = vmax.f32 %v7983, %v8447
        %v8737 = vmax.f32 %v7985, %v8449
        %v8738 = vmax.f32 %v7994, %v8451
        %v8739 = vmax.f32 %v8002, %v8453
        %v8740 = vmax.f32 %v8001, %v8455
        %v8741 = vmax.f32 %v8003, %v8457
        %v8742 = vmax.f32 %v8012, %v8459
        %v8743 = vmax.f32 %v8020, %v8461
        %v8744 = vmax.f32 %v8019, %v8463
        %v8745 = vmax.f32 %v8021, %v8465
        %v8746 = vmax.f32 %v8030, %v8467
        %v8747 = vmax.f32 %v8038, %v8469
        %v8748 = vmax.f32 %v8037, %v8471
        %v8749 = vmax.f32 %v8039, %v8473
        %v8750 = vmax.f32 %v8048, %v8475
        %v8751 = vmax.f32 %v8056, %v8477
        %v8752 = vmax.f32 %v8055, %v8479
        %v8753 = vmax.f32 %v8057, %v8481
        %v8754 = vmax.f32 %v8066, %v8483
        %v8755 = vmax.f32 %v8074, %v8485
        %v8756 = vmax.f32 %v8073, %v8487
        %v8757 = vmax.f32 %v8075, %v8489
        %v8758 = vmax.f32 %v8084, %v8491
        %v8759 = vmax.f32 %v8092, %v8493
        %v8760 = vmax.f32 %v8091, %v8495
        %v8761 = vmax.f32 %v8093, %v8497
        %v8762 = vmax.f32 %v8102, %v8499
        %v8763 = vmax.f32 %v8110, %v8501
        %v8764 = vmax.f32 %v8109, %v8503
        %v8765 = vmax.f32 %v8111, %v8505
        %v8766 = vmax.f32 %v8120, %v8507
        %v8767 = vmax.f32 %v8128, %v8509
        %v8768 = vmax.f32 %v8127, %v8511
        %v8769 = vmax.f32 %v8129, %v8513
        %v8770 = vmax.f32 %v8642, %v8650
        %v8771 = vmax.f32 %v8643, %v8651
        %v8772 = vmax.f32 %v8644, %v8652
        %v8773 = vmax.f32 %v8645, %v8653
        %v8774 = vmax.f32 %v8646, %v8654
        %v8775 = vmax.f32 %v8647, %v8655
        %v8776 = vmax.f32 %v8648, %v8656
        %v8777 = vmax.f32 %v8649, %v8657
        %v8778 = vmax.f32 %v8658, %v8666
        %v8779 = vmax.f32 %v8659, %v8667
        %v8780 = vmax.f32 %v8660, %v8668
        %v8781 = vmax.f32 %v8661, %v8669
        %v8782 = vmax.f32 %v8662, %v8670
        %v8783 = vmax.f32 %v8663, %v8671
        %v8784 = vmax.f32 %v8664, %v8672
        %v8785 = vmax.f32 %v8665, %v8673
        %v8786 = vmax.f32 %v8674, %v8682
        %v8787 = vmax.f32 %v8675, %v8683
        %v8788 = vmax.f32 %v8676, %v8684
        %v8789 = vmax.f32 %v8677, %v8685
        %v8790 = vmax.f32 %v8678, %v8686
        %v8791 = vmax.f32 %v8679, %v8687
        %v8792 = vmax.f32 %v8680, %v8688
        %v8793 = vmax.f32 %v8681, %v8689
        %v8794 = vmax.f32 %v8690, %v8698
        %v8795 = vmax.f32 %v8691, %v8699
        %v8796 = vmax.f32 %v8692, %v8700
        %v8797 = vmax.f32 %v8693, %v8701
        %v8798 = vmax.f32 %v8694, %v8702
        %v8799 = vmax.f32 %v8695, %v8703
        %v8800 = vmax.f32 %v8696, %v8704
        %v8801 = vmax.f32 %v8697, %v8705
        %v8802 = vmax.f32 %v8706, %v8714
        %v8803 = vmax.f32 %v8707, %v8715
        %v8804 = vmax.f32 %v8708, %v8716
        %v8805 = vmax.f32 %v8709, %v8717
        %v8806 = vmax.f32 %v8710, %v8718
        %v8807 = vmax.f32 %v8711, %v8719
        %v8808 = vmax.f32 %v8712, %v8720
        %v8809 = vmax.f32 %v8713, %v8721
        %v8810 = vmax.f32 %v8722, %v8730
        %v8811 = vmax.f32 %v8723, %v8731
        %v8812 = vmax.f32 %v8724, %v8732
        %v8813 = vmax.f32 %v8725, %v8733
        %v8814 = vmax.f32 %v8726, %v8734
        %v8815 = vmax.f32 %v8727, %v8735
        %v8816 = vmax.f32 %v8728, %v8736
        %v8817 = vmax.f32 %v8729, %v8737
        %v8818 = vmax.f32 %v8738, %v8746
        %v8819 = vmax.f32 %v8739, %v8747
        %v8820 = vmax.f32 %v8740, %v8748
        %v8821 = vmax.f32 %v8741, %v8749
        %v8822 = vmax.f32 %v8742, %v8750
        %v8823 = vmax.f32 %v8743, %v8751
        %v8824 = vmax.f32 %v8744, %v8752
        %v8825 = vmax.f32 %v8745, %v8753
        %v8826 = vmax.f32 %v8754, %v8762
        %v8827 = vmax.f32 %v8755, %v8763
        %v8828 = vmax.f32 %v8756, %v8764
        %v8829 = vmax.f32 %v8757, %v8765
        %v8830 = vmax.f32 %v8758, %v8766
        %v8831 = vmax.f32 %v8759, %v8767
        %v8832 = vmax.f32 %v8760, %v8768
        %v8833 = vmax.f32 %v8761, %v8769
        %v8898 = vlaneseq
        %v8899 = vshrl.u32 %v8898, 7
        %v8900 = vsub.s32 0, %v8899
        %v8901 = vrot.slane %v8770, %v8900
        %v8902 = vlaneseq
        %v8903 = vshrl.u32 %v8902, 7
        %v8904 = vsub.s32 2, %v8903
        %v8905 = vrot.slane %v8770, %v8904
        %v8906 = vlaneseq
        %v8907 = vshrl.u32 %v8906, 7
        %v8908 = vsub.s32 0, %v8907
        %v8909 = vrot.slane %v8771, %v8908
        %v8910 = vlaneseq
        %v8911 = vshrl.u32 %v8910, 7
        %v8912 = vsub.s32 2, %v8911
        %v8913 = vrot.slane %v8771, %v8912
        %v8914 = vlaneseq
        %v8915 = vshrl.u32 %v8914, 7
        %v8916 = vsub.s32 0, %v8915
        %v8917 = vrot.slane %v8772, %v8916
        %v8918 = vlaneseq
        %v8919 = vshrl.u32 %v8918, 7
        %v8920 = vsub.s32 2, %v8919
        %v8921 = vrot.slane %v8772, %v8920
        %v8922 = vlaneseq
        %v8923 = vshrl.u32 %v8922, 7
        %v8924 = vsub.s32 0, %v8923
        %v8925 = vrot.slane %v8773, %v8924
        %v8926 = vlaneseq
        %v8927 = vshrl.u32 %v8926, 7
        %v8928 = vsub.s32 2, %v8927
        %v8929 = vrot.slane %v8773, %v8928
        %v8930 = vlaneseq
        %v8931 = vshrl.u32 %v8930, 7
        %v8932 = vsub.s32 0, %v8931
        %v8933 = vrot.slane %v8774, %v8932
        %v8934 = vlaneseq
        %v8935 = vshrl.u32 %v8934, 7
        %v8936 = vsub.s32 2, %v8935
        %v8937 = vrot.slane %v8774, %v8936
        %v8938 = vlaneseq
        %v8939 = vshrl.u32 %v8938, 7
        %v8940 = vsub.s32 0, %v8939
        %v8941 = vrot.slane %v8775, %v8940
        %v8942 = vlaneseq
        %v8943 = vshrl.u32 %v8942, 7
        %v8944 = vsub.s32 2, %v8943
        %v8945 = vrot.slane %v8775, %v8944
        %v8946 = vlaneseq
        %v8947 = vshrl.u32 %v8946, 7
        %v8948 = vsub.s32 0, %v8947
        %v8949 = vrot.slane %v8776, %v8948
        %v8950 = vlaneseq
        %v8951 = vshrl.u32 %v8950, 7
        %v8952 = vsub.s32 2, %v8951
        %v8953 = vrot.slane %v8776, %v8952
        %v8954 = vlaneseq
        %v8955 = vshrl.u32 %v8954, 7
        %v8956 = vsub.s32 0, %v8955
        %v8957 = vrot.slane %v8777, %v8956
        %v8958 = vlaneseq
        %v8959 = vshrl.u32 %v8958, 7
        %v8960 = vsub.s32 2, %v8959
        %v8961 = vrot.slane %v8777, %v8960
        %v8962 = vlaneseq
        %v8963 = vshrl.u32 %v8962, 7
        %v8964 = vsub.s32 0, %v8963
        %v8965 = vrot.slane %v8778, %v8964
        %v8966 = vlaneseq
        %v8967 = vshrl.u32 %v8966, 7
        %v8968 = vsub.s32 2, %v8967
        %v8969 = vrot.slane %v8778, %v8968
        %v8970 = vlaneseq
        %v8971 = vshrl.u32 %v8970, 7
        %v8972 = vsub.s32 0, %v8971
        %v8973 = vrot.slane %v8779, %v8972
        %v8974 = vlaneseq
        %v8975 = vshrl.u32 %v8974, 7
        %v8976 = vsub.s32 2, %v8975
        %v8977 = vrot.slane %v8779, %v8976
        %v8978 = vlaneseq
        %v8979 = vshrl.u32 %v8978, 7
        %v8980 = vsub.s32 0, %v8979
        %v8981 = vrot.slane %v8780, %v8980
        %v8982 = vlaneseq
        %v8983 = vshrl.u32 %v8982, 7
        %v8984 = vsub.s32 2, %v8983
        %v8985 = vrot.slane %v8780, %v8984
        %v8986 = vlaneseq
        %v8987 = vshrl.u32 %v8986, 7
        %v8988 = vsub.s32 0, %v8987
        %v8989 = vrot.slane %v8781, %v8988
        %v8990 = vlaneseq
        %v8991 = vshrl.u32 %v8990, 7
        %v8992 = vsub.s32 2, %v8991
        %v8993 = vrot.slane %v8781, %v8992
        %v8994 = vlaneseq
        %v8995 = vshrl.u32 %v8994, 7
        %v8996 = vsub.s32 0, %v8995
        %v8997 = vrot.slane %v8782, %v8996
        %v8998 = vlaneseq
        %v8999 = vshrl.u32 %v8998, 7
        %v9000 = vsub.s32 2, %v8999
        %v9001 = vrot.slane %v8782, %v9000
        %v9002 = vlaneseq
        %v9003 = vshrl.u32 %v9002, 7
        %v9004 = vsub.s32 0, %v9003
        %v9005 = vrot.slane %v8783, %v9004
        %v9006 = vlaneseq
        %v9007 = vshrl.u32 %v9006, 7
        %v9008 = vsub.s32 2, %v9007
        %v9009 = vrot.slane %v8783, %v9008
        %v9010 = vlaneseq
        %v9011 = vshrl.u32 %v9010, 7
        %v9012 = vsub.s32 0, %v9011
        %v9013 = vrot.slane %v8784, %v9012
        %v9014 = vlaneseq
        %v9015 = vshrl.u32 %v9014, 7
        %v9016 = vsub.s32 2, %v9015
        %v9017 = vrot.slane %v8784, %v9016
        %v9018 = vlaneseq
        %v9019 = vshrl.u32 %v9018, 7
        %v9020 = vsub.s32 0, %v9019
        %v9021 = vrot.slane %v8785, %v9020
        %v9022 = vlaneseq
        %v9023 = vshrl.u32 %v9022, 7
        %v9024 = vsub.s32 2, %v9023
        %v9025 = vrot.slane %v8785, %v9024
        %v9026 = vlaneseq
        %v9027 = vshrl.u32 %v9026, 7
        %v9028 = vsub.s32 0, %v9027
        %v9029 = vrot.slane %v8786, %v9028
        %v9030 = vlaneseq
        %v9031 = vshrl.u32 %v9030, 7
        %v9032 = vsub.s32 2, %v9031
        %v9033 = vrot.slane %v8786, %v9032
        %v9034 = vlaneseq
        %v9035 = vshrl.u32 %v9034, 7
        %v9036 = vsub.s32 0, %v9035
        %v9037 = vrot.slane %v8787, %v9036
        %v9038 = vlaneseq
        %v9039 = vshrl.u32 %v9038, 7
        %v9040 = vsub.s32 2, %v9039
        %v9041 = vrot.slane %v8787, %v9040
        %v9042 = vlaneseq
        %v9043 = vshrl.u32 %v9042, 7
        %v9044 = vsub.s32 0, %v9043
        %v9045 = vrot.slane %v8788, %v9044
        %v9046 = vlaneseq
        %v9047 = vshrl.u32 %v9046, 7
        %v9048 = vsub.s32 2, %v9047
        %v9049 = vrot.slane %v8788, %v9048
        %v9050 = vlaneseq
        %v9051 = vshrl.u32 %v9050, 7
        %v9052 = vsub.s32 0, %v9051
        %v9053 = vrot.slane %v8789, %v9052
        %v9054 = vlaneseq
        %v9055 = vshrl.u32 %v9054, 7
        %v9056 = vsub.s32 2, %v9055
        %v9057 = vrot.slane %v8789, %v9056
        %v9058 = vlaneseq
        %v9059 = vshrl.u32 %v9058, 7
        %v9060 = vsub.s32 0, %v9059
        %v9061 = vrot.slane %v8790, %v9060
        %v9062 = vlaneseq
        %v9063 = vshrl.u32 %v9062, 7
        %v9064 = vsub.s32 2, %v9063
        %v9065 = vrot.slane %v8790, %v9064
        %v9066 = vlaneseq
        %v9067 = vshrl.u32 %v9066, 7
        %v9068 = vsub.s32 0, %v9067
        %v9069 = vrot.slane %v8791, %v9068
        %v9070 = vlaneseq
        %v9071 = vshrl.u32 %v9070, 7
        %v9072 = vsub.s32 2, %v9071
        %v9073 = vrot.slane %v8791, %v9072
        %v9074 = vlaneseq
        %v9075 = vshrl.u32 %v9074, 7
        %v9076 = vsub.s32 0, %v9075
        %v9077 = vrot.slane %v8792, %v9076
        %v9078 = vlaneseq
        %v9079 = vshrl.u32 %v9078, 7
        %v9080 = vsub.s32 2, %v9079
        %v9081 = vrot.slane %v8792, %v9080
        %v9082 = vlaneseq
        %v9083 = vshrl.u32 %v9082, 7
        %v9084 = vsub.s32 0, %v9083
        %v9085 = vrot.slane %v8793, %v9084
        %v9086 = vlaneseq
        %v9087 = vshrl.u32 %v9086, 7
        %v9088 = vsub.s32 2, %v9087
        %v9089 = vrot.slane %v8793, %v9088
        %v9090 = vlaneseq
        %v9091 = vshrl.u32 %v9090, 7
        %v9092 = vsub.s32 0, %v9091
        %v9093 = vrot.slane %v8794, %v9092
        %v9094 = vlaneseq
        %v9095 = vshrl.u32 %v9094, 7
        %v9096 = vsub.s32 2, %v9095
        %v9097 = vrot.slane %v8794, %v9096
        %v9098 = vlaneseq
        %v9099 = vshrl.u32 %v9098, 7
        %v9100 = vsub.s32 0, %v9099
        %v9101 = vrot.slane %v8795, %v9100
        %v9102 = vlaneseq
        %v9103 = vshrl.u32 %v9102, 7
        %v9104 = vsub.s32 2, %v9103
        %v9105 = vrot.slane %v8795, %v9104
        %v9106 = vlaneseq
        %v9107 = vshrl.u32 %v9106, 7
        %v9108 = vsub.s32 0, %v9107
        %v9109 = vrot.slane %v8796, %v9108
        %v9110 = vlaneseq
        %v9111 = vshrl.u32 %v9110, 7
        %v9112 = vsub.s32 2, %v9111
        %v9113 = vrot.slane %v8796, %v9112
        %v9114 = vlaneseq
        %v9115 = vshrl.u32 %v9114, 7
        %v9116 = vsub.s32 0, %v9115
        %v9117 = vrot.slane %v8797, %v9116
        %v9118 = vlaneseq
        %v9119 = vshrl.u32 %v9118, 7
        %v9120 = vsub.s32 2, %v9119
        %v9121 = vrot.slane %v8797, %v9120
        %v9122 = vlaneseq
        %v9123 = vshrl.u32 %v9122, 7
        %v9124 = vsub.s32 0, %v9123
        %v9125 = vrot.slane %v8798, %v9124
        %v9126 = vlaneseq
        %v9127 = vshrl.u32 %v9126, 7
        %v9128 = vsub.s32 2, %v9127
        %v9129 = vrot.slane %v8798, %v9128
        %v9130 = vlaneseq
        %v9131 = vshrl.u32 %v9130, 7
        %v9132 = vsub.s32 0, %v9131
        %v9133 = vrot.slane %v8799, %v9132
        %v9134 = vlaneseq
        %v9135 = vshrl.u32 %v9134, 7
        %v9136 = vsub.s32 2, %v9135
        %v9137 = vrot.slane %v8799, %v9136
        %v9138 = vlaneseq
        %v9139 = vshrl.u32 %v9138, 7
        %v9140 = vsub.s32 0, %v9139
        %v9141 = vrot.slane %v8800, %v9140
        %v9142 = vlaneseq
        %v9143 = vshrl.u32 %v9142, 7
        %v9144 = vsub.s32 2, %v9143
        %v9145 = vrot.slane %v8800, %v9144
        %v9146 = vlaneseq
        %v9147 = vshrl.u32 %v9146, 7
        %v9148 = vsub.s32 0, %v9147
        %v9149 = vrot.slane %v8801, %v9148
        %v9150 = vlaneseq
        %v9151 = vshrl.u32 %v9150, 7
        %v9152 = vsub.s32 2, %v9151
        %v9153 = vrot.slane %v8801, %v9152
        %v9154 = vlaneseq
        %v9155 = vshrl.u32 %v9154, 7
        %v9156 = vsub.s32 0, %v9155
        %v9157 = vrot.slane %v8802, %v9156
        %v9158 = vlaneseq
        %v9159 = vshrl.u32 %v9158, 7
        %v9160 = vsub.s32 2, %v9159
        %v9161 = vrot.slane %v8802, %v9160
        %v9162 = vlaneseq
        %v9163 = vshrl.u32 %v9162, 7
        %v9164 = vsub.s32 0, %v9163
        %v9165 = vrot.slane %v8803, %v9164
        %v9166 = vlaneseq
        %v9167 = vshrl.u32 %v9166, 7
        %v9168 = vsub.s32 2, %v9167
        %v9169 = vrot.slane %v8803, %v9168
        %v9170 = vlaneseq
        %v9171 = vshrl.u32 %v9170, 7
        %v9172 = vsub.s32 0, %v9171
        %v9173 = vrot.slane %v8804, %v9172
        %v9174 = vlaneseq
        %v9175 = vshrl.u32 %v9174, 7
        %v9176 = vsub.s32 2, %v9175
        %v9177 = vrot.slane %v8804, %v9176
        %v9178 = vlaneseq
        %v9179 = vshrl.u32 %v9178, 7
        %v9180 = vsub.s32 0, %v9179
        %v9181 = vrot.slane %v8805, %v9180
        %v9182 = vlaneseq
        %v9183 = vshrl.u32 %v9182, 7
        %v9184 = vsub.s32 2, %v9183
        %v9185 = vrot.slane %v8805, %v9184
        %v9186 = vlaneseq
        %v9187 = vshrl.u32 %v9186, 7
        %v9188 = vsub.s32 0, %v9187
        %v9189 = vrot.slane %v8806, %v9188
        %v9190 = vlaneseq
        %v9191 = vshrl.u32 %v9190, 7
        %v9192 = vsub.s32 2, %v9191
        %v9193 = vrot.slane %v8806, %v9192
        %v9194 = vlaneseq
        %v9195 = vshrl.u32 %v9194, 7
        %v9196 = vsub.s32 0, %v9195
        %v9197 = vrot.slane %v8807, %v9196
        %v9198 = vlaneseq
        %v9199 = vshrl.u32 %v9198, 7
        %v9200 = vsub.s32 2, %v9199
        %v9201 = vrot.slane %v8807, %v9200
        %v9202 = vlaneseq
        %v9203 = vshrl.u32 %v9202, 7
        %v9204 = vsub.s32 0, %v9203
        %v9205 = vrot.slane %v8808, %v9204
        %v9206 = vlaneseq
        %v9207 = vshrl.u32 %v9206, 7
        %v9208 = vsub.s32 2, %v9207
        %v9209 = vrot.slane %v8808, %v9208
        %v9210 = vlaneseq
        %v9211 = vshrl.u32 %v9210, 7
        %v9212 = vsub.s32 0, %v9211
        %v9213 = vrot.slane %v8809, %v9212
        %v9214 = vlaneseq
        %v9215 = vshrl.u32 %v9214, 7
        %v9216 = vsub.s32 2, %v9215
        %v9217 = vrot.slane %v8809, %v9216
        %v9218 = vlaneseq
        %v9219 = vshrl.u32 %v9218, 7
        %v9220 = vsub.s32 0, %v9219
        %v9221 = vrot.slane %v8810, %v9220
        %v9222 = vlaneseq
        %v9223 = vshrl.u32 %v9222, 7
        %v9224 = vsub.s32 2, %v9223
        %v9225 = vrot.slane %v8810, %v9224
        %v9226 = vlaneseq
        %v9227 = vshrl.u32 %v9226, 7
        %v9228 = vsub.s32 0, %v9227
        %v9229 = vrot.slane %v8811, %v9228
        %v9230 = vlaneseq
        %v9231 = vshrl.u32 %v9230, 7
        %v9232 = vsub.s32 2, %v9231
        %v9233 = vrot.slane %v8811, %v9232
        %v9234 = vlaneseq
        %v9235 = vshrl.u32 %v9234, 7
        %v9236 = vsub.s32 0, %v9235
        %v9237 = vrot.slane %v8812, %v9236
        %v9238 = vlaneseq
        %v9239 = vshrl.u32 %v9238, 7
        %v9240 = vsub.s32 2, %v9239
        %v9241 = vrot.slane %v8812, %v9240
        %v9242 = vlaneseq
        %v9243 = vshrl.u32 %v9242, 7
        %v9244 = vsub.s32 0, %v9243
        %v9245 = vrot.slane %v8813, %v9244
        %v9246 = vlaneseq
        %v9247 = vshrl.u32 %v9246, 7
        %v9248 = vsub.s32 2, %v9247
        %v9249 = vrot.slane %v8813, %v9248
        %v9250 = vlaneseq
        %v9251 = vshrl.u32 %v9250, 7
        %v9252 = vsub.s32 0, %v9251
        %v9253 = vrot.slane %v8814, %v9252
        %v9254 = vlaneseq
        %v9255 = vshrl.u32 %v9254, 7
        %v9256 = vsub.s32 2, %v9255
        %v9257 = vrot.slane %v8814, %v9256
        %v9258 = vlaneseq
        %v9259 = vshrl.u32 %v9258, 7
        %v9260 = vsub.s32 0, %v9259
        %v9261 = vrot.slane %v8815, %v9260
        %v9262 = vlaneseq
        %v9263 = vshrl.u32 %v9262, 7
        %v9264 = vsub.s32 2, %v9263
        %v9265 = vrot.slane %v8815, %v9264
        %v9266 = vlaneseq
        %v9267 = vshrl.u32 %v9266, 7
        %v9268 = vsub.s32 0, %v9267
        %v9269 = vrot.slane %v8816, %v9268
        %v9270 = vlaneseq
        %v9271 = vshrl.u32 %v9270, 7
        %v9272 = vsub.s32 2, %v9271
        %v9273 = vrot.slane %v8816, %v9272
        %v9274 = vlaneseq
        %v9275 = vshrl.u32 %v9274, 7
        %v9276 = vsub.s32 0, %v9275
        %v9277 = vrot.slane %v8817, %v9276
        %v9278 = vlaneseq
        %v9279 = vshrl.u32 %v9278, 7
        %v9280 = vsub.s32 2, %v9279
        %v9281 = vrot.slane %v8817, %v9280
        %v9282 = vlaneseq
        %v9283 = vshrl.u32 %v9282, 7
        %v9284 = vsub.s32 0, %v9283
        %v9285 = vrot.slane %v8818, %v9284
        %v9286 = vlaneseq
        %v9287 = vshrl.u32 %v9286, 7
        %v9288 = vsub.s32 2, %v9287
        %v9289 = vrot.slane %v8818, %v9288
        %v9290 = vlaneseq
        %v9291 = vshrl.u32 %v9290, 7
        %v9292 = vsub.s32 0, %v9291
        %v9293 = vrot.slane %v8819, %v9292
        %v9294 = vlaneseq
        %v9295 = vshrl.u32 %v9294, 7
        %v9296 = vsub.s32 2, %v9295
        %v9297 = vrot.slane %v8819, %v9296
        %v9298 = vlaneseq
        %v9299 = vshrl.u32 %v9298, 7
        %v9300 = vsub.s32 0, %v9299
        %v9301 = vrot.slane %v8820, %v9300
        %v9302 = vlaneseq
        %v9303 = vshrl.u32 %v9302, 7
        %v9304 = vsub.s32 2, %v9303
        %v9305 = vrot.slane %v8820, %v9304
        %v9306 = vlaneseq
        %v9307 = vshrl.u32 %v9306, 7
        %v9308 = vsub.s32 0, %v9307
        %v9309 = vrot.slane %v8821, %v9308
        %v9310 = vlaneseq
        %v9311 = vshrl.u32 %v9310, 7
        %v9312 = vsub.s32 2, %v9311
        %v9313 = vrot.slane %v8821, %v9312
        %v9314 = vlaneseq
        %v9315 = vshrl.u32 %v9314, 7
        %v9316 = vsub.s32 0, %v9315
        %v9317 = vrot.slane %v8822, %v9316
        %v9318 = vlaneseq
        %v9319 = vshrl.u32 %v9318, 7
        %v9320 = vsub.s32 2, %v9319
        %v9321 = vrot.slane %v8822, %v9320
        %v9322 = vlaneseq
        %v9323 = vshrl.u32 %v9322, 7
        %v9324 = vsub.s32 0, %v9323
        %v9325 = vrot.slane %v8823, %v9324
        %v9326 = vlaneseq
        %v9327 = vshrl.u32 %v9326, 7
        %v9328 = vsub.s32 2, %v9327
        %v9329 = vrot.slane %v8823, %v9328
        %v9330 = vlaneseq
        %v9331 = vshrl.u32 %v9330, 7
        %v9332 = vsub.s32 0, %v9331
        %v9333 = vrot.slane %v8824, %v9332
        %v9334 = vlaneseq
        %v9335 = vshrl.u32 %v9334, 7
        %v9336 = vsub.s32 2, %v9335
        %v9337 = vrot.slane %v8824, %v9336
        %v9338 = vlaneseq
        %v9339 = vshrl.u32 %v9338, 7
        %v9340 = vsub.s32 0, %v9339
        %v9341 = vrot.slane %v8825, %v9340
        %v9342 = vlaneseq
        %v9343 = vshrl.u32 %v9342, 7
        %v9344 = vsub.s32 2, %v9343
        %v9345 = vrot.slane %v8825, %v9344
        %v9346 = vlaneseq
        %v9347 = vshrl.u32 %v9346, 7
        %v9348 = vsub.s32 0, %v9347
        %v9349 = vrot.slane %v8826, %v9348
        %v9350 = vlaneseq
        %v9351 = vshrl.u32 %v9350, 7
        %v9352 = vsub.s32 2, %v9351
        %v9353 = vrot.slane %v8826, %v9352
        %v9354 = vlaneseq
        %v9355 = vshrl.u32 %v9354, 7
        %v9356 = vsub.s32 0, %v9355
        %v9357 = vrot.slane %v8827, %v9356
        %v9358 = vlaneseq
        %v9359 = vshrl.u32 %v9358, 7
        %v9360 = vsub.s32 2, %v9359
        %v9361 = vrot.slane %v8827, %v9360
        %v9362 = vlaneseq
        %v9363 = vshrl.u32 %v9362, 7
        %v9364 = vsub.s32 0, %v9363
        %v9365 = vrot.slane %v8828, %v9364
        %v9366 = vlaneseq
        %v9367 = vshrl.u32 %v9366, 7
        %v9368 = vsub.s32 2, %v9367
        %v9369 = vrot.slane %v8828, %v9368
        %v9370 = vlaneseq
        %v9371 = vshrl.u32 %v9370, 7
        %v9372 = vsub.s32 0, %v9371
        %v9373 = vrot.slane %v8829, %v9372
        %v9374 = vlaneseq
        %v9375 = vshrl.u32 %v9374, 7
        %v9376 = vsub.s32 2, %v9375
        %v9377 = vrot.slane %v8829, %v9376
        %v9378 = vlaneseq
        %v9379 = vshrl.u32 %v9378, 7
        %v9380 = vsub.s32 0, %v9379
        %v9381 = vrot.slane %v8830, %v9380
        %v9382 = vlaneseq
        %v9383 = vshrl.u32 %v9382, 7
        %v9384 = vsub.s32 2, %v9383
        %v9385 = vrot.slane %v8830, %v9384
        %v9386 = vlaneseq
        %v9387 = vshrl.u32 %v9386, 7
        %v9388 = vsub.s32 0, %v9387
        %v9389 = vrot.slane %v8831, %v9388
        %v9390 = vlaneseq
        %v9391 = vshrl.u32 %v9390, 7
        %v9392 = vsub.s32 2, %v9391
        %v9393 = vrot.slane %v8831, %v9392
        %v9394 = vlaneseq
        %v9395 = vshrl.u32 %v9394, 7
        %v9396 = vsub.s32 0, %v9395
        %v9397 = vrot.slane %v8832, %v9396
        %v9398 = vlaneseq
        %v9399 = vshrl.u32 %v9398, 7
        %v9400 = vsub.s32 2, %v9399
        %v9401 = vrot.slane %v8832, %v9400
        %v9402 = vlaneseq
        %v9403 = vshrl.u32 %v9402, 7
        %v9404 = vsub.s32 0, %v9403
        %v9405 = vrot.slane %v8833, %v9404
        %v9406 = vlaneseq
        %v9407 = vshrl.u32 %v9406, 7
        %v9408 = vsub.s32 2, %v9407
        %v9409 = vrot.slane %v8833, %v9408
        %vm9410 = vcmask 1041409
        %v9411 = vsel %vm9410, %v8909, %v8901
        %vm9412 = vcmask 1042434
        %v9413 = vsel %vm9412, %v8917, %v9411
        %vm9414 = vcmask 1043459
        %v9415 = vsel %vm9414, %v8925, %v9413
        %vm9416 = vcmask 1044484
        %v9417 = vsel %vm9416, %v8933, %v9415
        %vm9418 = vcmask 1045509
        %v9419 = vsel %vm9418, %v8941, %v9417
        %vm9420 = vcmask 1046534
        %v9421 = vsel %vm9420, %v8949, %v9419
        %vm9422 = vcmask 1047559
        %v9423 = vsel %vm9422, %v8957, %v9421
        %v9424 = vsel %vm9410, %v8913, %v8905
        %v9425 = vsel %vm9412, %v8921, %v9424
        %v9426 = vsel %vm9414, %v8929, %v9425
        %v9427 = vsel %vm9416, %v8937, %v9426
        %v9428 = vsel %vm9418, %v8945, %v9427
        %v9429 = vsel %vm9420, %v8953, %v9428
        %v9430 = vsel %vm9422, %v8961, %v9429
        %v9431 = vsel %vm9410, %v8973, %v8965
        %v9432 = vsel %vm9412, %v8981, %v9431
        %v9433 = vsel %vm9414, %v8989, %v9432
        %v9434 = vsel %vm9416, %v8997, %v9433
        %v9435 = vsel %vm9418, %v9005, %v9434
        %v9436 = vsel %vm9420, %v9013, %v9435
        %v9437 = vsel %vm9422, %v9021, %v9436
        %v9438 = vsel %vm9410, %v8977, %v8969
        %v9439 = vsel %vm9412, %v8985, %v9438
        %v9440 = vsel %vm9414, %v8993, %v9439
        %v9441 = vsel %vm9416, %v9001, %v9440
        %v9442 = vsel %vm9418, %v9009, %v9441
        %v9443 = vsel %vm9420, %v9017, %v9442
        %v9444 = vsel %vm9422, %v9025, %v9443
        %v9445 = vsel %vm9410, %v9037, %v9029
        %v9446 = vsel %vm9412, %v9045, %v9445
        %v9447 = vsel %vm9414, %v9053, %v9446
        %v9448 = vsel %vm9416, %v9061, %v9447
        %v9449 = vsel %vm9418, %v9069, %v9448
        %v9450 = vsel %vm9420, %v9077, %v9449
        %v9451 = vsel %vm9422, %v9085, %v9450
        %v9452 = vsel %vm9410, %v9041, %v9033
        %v9453 = vsel %vm9412, %v9049, %v9452
        %v9454 = vsel %vm9414, %v9057, %v9453
        %v9455 = vsel %vm9416, %v9065, %v9454
        %v9456 = vsel %vm9418, %v9073, %v9455
        %v9457 = vsel %vm9420, %v9081, %v9456
        %v9458 = vsel %vm9422, %v9089, %v9457
        %v9459 = vsel %vm9410, %v9101, %v9093
        %v9460 = vsel %vm9412, %v9109, %v9459
        %v9461 = vsel %vm9414, %v9117, %v9460
        %v9462 = vsel %vm9416, %v9125, %v9461
        %v9463 = vsel %vm9418, %v9133, %v9462
        %v9464 = vsel %vm9420, %v9141, %v9463
        %v9465 = vsel %vm9422, %v9149, %v9464
        %v9466 = vsel %vm9410, %v9105, %v9097
        %v9467 = vsel %vm9412, %v9113, %v9466
        %v9468 = vsel %vm9414, %v9121, %v9467
        %v9469 = vsel %vm9416, %v9129, %v9468
        %v9470 = vsel %vm9418, %v9137, %v9469
        %v9471 = vsel %vm9420, %v9145, %v9470
        %v9472 = vsel %vm9422, %v9153, %v9471
        %v9473 = vsel %vm9410, %v9165, %v9157
        %v9474 = vsel %vm9412, %v9173, %v9473
        %v9475 = vsel %vm9414, %v9181, %v9474
        %v9476 = vsel %vm9416, %v9189, %v9475
        %v9477 = vsel %vm9418, %v9197, %v9476
        %v9478 = vsel %vm9420, %v9205, %v9477
        %v9479 = vsel %vm9422, %v9213, %v9478
        %v9480 = vsel %vm9410, %v9169, %v9161
        %v9481 = vsel %vm9412, %v9177, %v9480
        %v9482 = vsel %vm9414, %v9185, %v9481
        %v9483 = vsel %vm9416, %v9193, %v9482
        %v9484 = vsel %vm9418, %v9201, %v9483
        %v9485 = vsel %vm9420, %v9209, %v9484
        %v9486 = vsel %vm9422, %v9217, %v9485
        %v9487 = vsel %vm9410, %v9229, %v9221
        %v9488 = vsel %vm9412, %v9237, %v9487
        %v9489 = vsel %vm9414, %v9245, %v9488
        %v9490 = vsel %vm9416, %v9253, %v9489
        %v9491 = vsel %vm9418, %v9261, %v9490
        %v9492 = vsel %vm9420, %v9269, %v9491
        %v9493 = vsel %vm9422, %v9277, %v9492
        %v9494 = vsel %vm9410, %v9233, %v9225
        %v9495 = vsel %vm9412, %v9241, %v9494
        %v9496 = vsel %vm9414, %v9249, %v9495
        %v9497 = vsel %vm9416, %v9257, %v9496
        %v9498 = vsel %vm9418, %v9265, %v9497
        %v9499 = vsel %vm9420, %v9273, %v9498
        %v9500 = vsel %vm9422, %v9281, %v9499
        %v9501 = vsel %vm9410, %v9293, %v9285
        %v9502 = vsel %vm9412, %v9301, %v9501
        %v9503 = vsel %vm9414, %v9309, %v9502
        %v9504 = vsel %vm9416, %v9317, %v9503
        %v9505 = vsel %vm9418, %v9325, %v9504
        %v9506 = vsel %vm9420, %v9333, %v9505
        %v9507 = vsel %vm9422, %v9341, %v9506
        %v9508 = vsel %vm9410, %v9297, %v9289
        %v9509 = vsel %vm9412, %v9305, %v9508
        %v9510 = vsel %vm9414, %v9313, %v9509
        %v9511 = vsel %vm9416, %v9321, %v9510
        %v9512 = vsel %vm9418, %v9329, %v9511
        %v9513 = vsel %vm9420, %v9337, %v9512
        %v9514 = vsel %vm9422, %v9345, %v9513
        %v9515 = vsel %vm9410, %v9357, %v9349
        %v9516 = vsel %vm9412, %v9365, %v9515
        %v9517 = vsel %vm9414, %v9373, %v9516
        %v9518 = vsel %vm9416, %v9381, %v9517
        %v9519 = vsel %vm9418, %v9389, %v9518
        %v9520 = vsel %vm9420, %v9397, %v9519
        %v9521 = vsel %vm9422, %v9405, %v9520
        %v9522 = vsel %vm9410, %v9361, %v9353
        %v9523 = vsel %vm9412, %v9369, %v9522
        %v9524 = vsel %vm9414, %v9377, %v9523
        %v9525 = vsel %vm9416, %v9385, %v9524
        %v9526 = vsel %vm9418, %v9393, %v9525
        %v9527 = vsel %vm9420, %v9401, %v9526
        %v9528 = vsel %vm9422, %v9409, %v9527
        %9545 = vst [vmem:[%s269] sm:$0xff] %v9423
        %9546 = vst [vmem:[%s269 + $0x8] sm:$0xff] %v9430
        %9547 = vst [vmem:[%s269 + $0x10] sm:$0xff] %v9437
        %9548 = vst [vmem:[%s269 + $0x18] sm:$0xff] %v9444
        %9549 = vst [vmem:[%s269 + $0x20] sm:$0xff] %v9451
        %9550 = vst [vmem:[%s269 + $0x28] sm:$0xff] %v9458
        %9551 = vst [vmem:[%s269 + $0x30] sm:$0xff] %v9465
        %9552 = vst [vmem:[%s269 + $0x38] sm:$0xff] %v9472
        %9553 = vst [vmem:[%s269 + $0x40] sm:$0xff] %v9479
        %9554 = vst [vmem:[%s269 + $0x48] sm:$0xff] %v9486
        %9555 = vst [vmem:[%s269 + $0x50] sm:$0xff] %v9493
        %9556 = vst [vmem:[%s269 + $0x58] sm:$0xff] %v9500
        %9557 = vst [vmem:[%s269 + $0x60] sm:$0xff] %v9507
        %9558 = vst [vmem:[%s269 + $0x68] sm:$0xff] %v9514
        %9559 = vst [vmem:[%s269 + $0x70] sm:$0xff] %v9521
        %9560 = vst [vmem:[%s269 + $0x78] sm:$0xff] %v9528
        %s9561 = sand.u32 %s134, 1
        %s9562 = scalar_lea.sflag [#allocation6], %s9561
        %s9563 = sand.u32 %s134, 1
        %s9564 = smul.addr %s9563, 128
        %s9565 = scalar_lea.vmem [#allocation12], %s9564
        // Predicated region
        $region69: #{tpu_custom_call.1} parent=35 // pred_check
          %p9566 = pneg %p144
        $region70: #{tpu_custom_call.1} parent=35 // pred_check_branch
          %9568 = sbr.rel (%p9566) target = $region72
        $region71: #{tpu_custom_call.1} parent=35 // pred_region
          %s9569 = smul.u32 8, %s28
          %s9571 = ssub.s32 2048, 2048
          %9572 = vsyncadd %s9562, %s9571
          %s9573 = smul.addr %s9569, 2
          %s9574 = smul.addr %s27, 16
          %s9575 = sadd.s32 %s9573, %s9574
          %s9576 = smul.addr %s9575, 128
          %s9577 = scalar_lea.hbm %s4, %s9576
          %s9578 = sshll.u32 %s9565, 4
          %s9579 = int_to_ptr.vmem [resolvable:$true] %s9578
          %9584 = dma.vmem_to_hbm [thread:$0]  %s9579, 2048, %s9577, %s9562, 256, 256, 16
        $region72: #{tpu_custom_call.1} parent=35 // pred_fallthru
          _
      $region36: #{tpu_custom_call.1} parent=5 // pred_fallthru
        _
      %p9585 = scmp.le.s32.totalorder 2, %s18
      // Predicated region
      $region73: #{tpu_custom_call.1} parent=5 // pred_check
        %p9586 = pneg %p9585
      $region74: #{tpu_custom_call.1} parent=5 // pred_check_branch
        %9588 = sbr.rel (%p9586) target = $region76
      $region75: #{tpu_custom_call.1} parent=5 // pred_region
        %s9589 = ssub.s32 %s18, 2
        // Predicated region
        $region77: #{tpu_custom_call.1} parent=75 // pred_check
          %p9590 = pneg %p150
        $region78: #{tpu_custom_call.1} parent=75 // pred_check_branch
          %9592 = sbr.rel (%p9590) target = $region80
        $region79: #{tpu_custom_call.1} parent=75 // pred_region
          %s9593 = sand.u32 %s135, 1
          %s9594 = scalar_lea.sflag [#allocation6], %s9593
          %s9595 = sand.u32 %s135, 1
          %s9596 = smul.addr %s9595, 128
          %s9597 = scalar_lea.vmem [#allocation12], %s9596
          %9598 = dma.done %s9594, 2048
        $region80: #{tpu_custom_call.1} parent=75 // pred_fallthru
          _
      $region76: #{tpu_custom_call.1} parent=5 // pred_fallthru
        _
    $region6: #{tpu_custom_call.1} parent=1 // loop_footer
      %s22 = sadd.s32 1, %s18
    $region7: #{tpu_custom_call.1} parent=1 // loop_footer_branch
      %17 = sbr.rel target = $region3
    $region8: #{tpu_custom_call.1} parent=1 // loop_exit
      _
    %9599 = vsyncpa [#allocation5], 1
    %s9600 = scalar_lea.sflag [#allocation5], 1
    %9601 = vsyncpa %s9600, 1
    %9602 = vsyncpa [#allocation8], 1
    %9603 = vsyncpa [#allocation11], 1
    %9604 = vsyncpa [#allocation6], 1
    %s9605 = scalar_lea.sflag [#allocation6], 1
    %9606 = vsyncpa %s9605, 1

</llo_original>
